<compile_context>
chip_gen: v7x
topology: tpu7x:2x2x1
jax: 0.10.0
libtpu: 0.0.40
codegen_flags: <defaults>
</compile_context>

<pallas_src>
import functools

import jax
import jax.numpy as jnp
from jax import lax
from jax.experimental import pallas as pl
from jax.experimental.pallas import tpu as pltpu


# ------------------------------ fused block kernel ------------------------------


def _fused_block_kernel(*args, H, W, Ho, Wo, Cin, Cout, pre_im2col, has_downsample):
    idx = 0
    c1_ref = args[idx]; idx += 1                   # conv1 input: x or pre-im2col patches
    if has_downsample:
        res_ref = args[idx]; idx += 1              # strided residual input (1, Ho, Wo, Cin)
    else:
        res_ref = c1_ref                           # identity residual (Cin == Cout, stride 1)
    (w1_ref, bn1s_ref, bn1b_ref, w2_ref, bn2s_ref, bn2b_ref,
     fc1w_ref, fc1b_ref, fc2w_ref, fc2b_ref) = args[idx:idx + 10]; idx += 10
    if has_downsample:
        dsw_ref, dss_ref, dsb_ref = args[idx:idx + 3]; idx += 3
    o_ref = args[idx]; idx += 1
    mid_ref = args[idx]; idx += 1                  # (Ho+2, Wo+2, Cout) padded conv1 output
    if not pre_im2col:
        xpad_ref = args[idx]; idx += 1             # (H+2, W+2, Cin) padded conv1 input

    # ---- conv1: 3x3 taps folded into a single deep-K matmul -> ReLU -> BN1 ----------
    if pre_im2col:
        # Strided conv: im2col (stride folded) was built in the wrapper.
        p1 = c1_ref[...].reshape(Ho * Wo, 9 * Cin)
    else:
        xpad_ref[...] = jnp.zeros_like(xpad_ref)
        xpad_ref[1:H + 1, 1:W + 1, :] = c1_ref[0]
        xp = xpad_ref[...]
        p1 = jnp.concatenate(
            [xp[kh:kh + H, kw:kw + W, :] for kh in range(3) for kw in range(3)],
            axis=-1).reshape(Ho * Wo, 9 * Cin)
    y1 = jnp.dot(p1, w1_ref[...], preferred_element_type=jnp.float32)
    y1 = jnp.maximum(y1, 0.0)                      # ReLU BEFORE BN1 (module order)
    y1 = y1 * bn1s_ref[...] + bn1b_ref[...]

    # ---- conv2: 3x3 deep-K matmul -> BN2 (intermediate never leaves VMEM) -----------
    mid_ref[...] = jnp.zeros_like(mid_ref)
    mid_ref[1:Ho + 1, 1:Wo + 1, :] = y1.reshape(Ho, Wo, Cout)
    mp = mid_ref[...]
    p2 = jnp.concatenate(
        [mp[kh:kh + Ho, kw:kw + Wo, :] for kh in range(3) for kw in range(3)],
        axis=-1).reshape(Ho * Wo, 9 * Cout)
    y2 = jnp.dot(p2, w2_ref[...], preferred_element_type=jnp.float32)
    y2 = y2 * bn2s_ref[...] + bn2b_ref[...]

    # ---- squeeze-excite: global avg-pool -> FC -> ReLU -> FC -> ReLU -> scale --------
    pooled = jnp.mean(y2, axis=0, keepdims=True)                              # (1, Cout)
    h = jnp.dot(pooled, fc1w_ref[...], preferred_element_type=jnp.float32) + fc1b_ref[...]
    h = jnp.maximum(h, 0.0)                                                   # (1, Cr)
    g = jnp.dot(h, fc2w_ref[...], preferred_element_type=jnp.float32) + fc2b_ref[...]
    g = jnp.maximum(g, 0.0)                                                   # (1, Cout)
    y2 = y2 * g

    # ---- residual (optional 1x1-conv + BN downsample), add, final ReLU ---------------
    if has_downsample:
        r = jnp.dot(res_ref[...].reshape(Ho * Wo, Cin), dsw_ref[...],
                    preferred_element_type=jnp.float32)
        r = r * dss_ref[...] + dsb_ref[...]
    else:
        r = res_ref[...].reshape(Ho * Wo, Cout)
    out = jnp.maximum(y2 + r, 0.0)
    o_ref[...] = out.reshape(1, Ho, Wo, Cout).astype(o_ref.dtype)


# ------------------------------ module forward (Pallas) --------------------------


def block_forward(x, p):
    """x: (B, H, W, Cin) f32 NHWC. One fused pallas_call for the whole SE-ResNet block."""
    B, H, W, Cin = x.shape
    stride = p["stride"]
    Cout = p["conv1_w"].shape[-1]
    has_downsample = "ds_w" in p
    Ho, Wo = H // stride, W // stride

    # Tap-major weight reshape: row index = (kh*3 + kw)*Cin + cin.
    w1 = p["conv1_w"].reshape(9 * Cin, Cout)
    w2 = p["conv2_w"].reshape(9 * Cout, Cout)

    if stride != 1:
        # Exact strided im2col, done once in XLA (tiny): the kernel then only does
        # contiguous reads and 1/stride^2 of the full-resolution MXU work.
        assert has_downsample, "stride>1 without downsample is not a valid module config"
        xp = jnp.pad(x, ((0, 0), (1, 1), (1, 1), (0, 0)))
        conv1_in = jnp.concatenate(
            [xp[:, kh:kh + stride * Ho:stride, kw:kw + stride * Wo:stride, :]
             for kh in range(3) for kw in range(3)], axis=-1)      # (B, Ho, Wo, 9*Cin)
        pre_im2col = True
    else:
        conv1_in = x
        pre_im2col = False

    inputs = [conv1_in]
    in_specs = [pl.BlockSpec((1,) + conv1_in.shape[1:], lambda b: (b, 0, 0, 0))]
    if has_downsample:
        res_in = x[:, ::stride, ::stride, :]                       # 1x1-conv(stride) input
        inputs.append(res_in)
        in_specs.append(pl.BlockSpec((1, Ho, Wo, Cin), lambda b: (b, 0, 0, 0)))

    def add_weight(a):
        inputs.append(a)
        in_specs.append(pl.BlockSpec(a.shape, lambda b, _nd=a.ndim: (0,) * _nd))

    for a in (w1, p["bn1_scale"], p["bn1_shift"], w2, p["bn2_scale"], p["bn2_shift"],
              p["fc1_w"], p["fc1_b"], p["fc2_w"], p["fc2_b"]):
        add_weight(a)
    if has_downsample:
        for a in (p["ds_w"], p["ds_scale"], p["ds_shift"]):
            add_weight(a)

    scratch = [pltpu.VMEM((Ho + 2, Wo + 2, Cout), jnp.float32)]    # padded conv1 output
    if not pre_im2col:
        scratch.append(pltpu.VMEM((H + 2, W + 2, Cin), jnp.float32))  # padded conv1 input

    kernel = functools.partial(
        _fused_block_kernel, H=H, W=W, Ho=Ho, Wo=Wo, Cin=Cin, Cout=Cout,
        pre_im2col=pre_im2col, has_downsample=has_downsample)

    return pl.pallas_call(
        kernel,
        out_shape=jax.ShapeDtypeStruct((B, Ho, Wo, Cout), jnp.float32),
        grid=(B,),
        in_specs=in_specs,
        out_specs=pl.BlockSpec((1, Ho, Wo, Cout), lambda b: (b, 0, 0, 0)),
        scratch_shapes=scratch,
        compiler_params=pltpu.CompilerParams(dimension_semantics=("parallel",)),
    )(*inputs)


def resnet_layer_forward(x_nchw, layer_params):
    x = jnp.transpose(x_nchw, (0, 2, 3, 1))          # NCHW -> NHWC (channels on lanes)
    for p in layer_params:
        x = block_forward(x, p)
    return jnp.transpose(x, (0, 3, 1, 2))            # back to NCHW


# --------------------------------- parameters ------------------------------------


def _bn_scale_shift(key, c):
    k1, k2, k3, k4 = jax.random.split(key, 4)
    gamma = 1.0 + 0.1 * jax.random.normal(k1, (c,), jnp.float32)
    beta = 0.1 * jax.random.normal(k2, (c,), jnp.float32)
    mean = 0.1 * jax.random.normal(k3, (c,), jnp.float32)
    var = jax.random.uniform(k4, (c,), jnp.float32, 0.5, 1.5)
    scale = gamma * lax.rsqrt(var + 1e-5)
    shift = beta - mean * scale
    return scale.reshape(1, c), shift.reshape(1, c)


def make_block_params(key, cin, cout, stride, reduction=8):
    keys = jax.random.split(key, 10)
    p = {"stride": stride}
    p["conv1_w"] = jax.random.normal(keys[0], (3, 3, cin, cout), jnp.float32) * (2.0 / (9 * cin)) ** 0.5
    p["bn1_scale"], p["bn1_shift"] = _bn_scale_shift(keys[1], cout)
    p["conv2_w"] = jax.random.normal(keys[2], (3, 3, cout, cout), jnp.float32) * (2.0 / (9 * cout)) ** 0.5
    p["bn2_scale"], p["bn2_shift"] = _bn_scale_shift(keys[3], cout)
    cr = cout // reduction
    p["fc1_w"] = jax.random.normal(keys[4], (cout, cr), jnp.float32) * (2.0 / cout) ** 0.5
    p["fc1_b"] = 0.1 * jax.random.normal(keys[5], (1, cr), jnp.float32)
    p["fc2_w"] = jax.random.normal(keys[6], (cr, cout), jnp.float32) * (2.0 / cr) ** 0.5
    p["fc2_b"] = 0.1 * jax.random.normal(keys[7], (1, cout), jnp.float32)
    if cin != cout and stride != 1:   # mirrors ResNetLayer's downsample condition (AND, per spec)
        p["ds_w"] = jax.random.normal(keys[8], (cin, cout), jnp.float32) * (1.0 / cin) ** 0.5
        p["ds_scale"], p["ds_shift"] = _bn_scale_shift(keys[9], cout)
    return p


def make_layer_params(key, inplanes, planes, n_blocks, stride):
    keys = jax.random.split(key, n_blocks)
    params = [make_block_params(keys[0], inplanes, planes, stride)]
    for i in range(1, n_blocks):
        params.append(make_block_params(keys[i], planes, planes, 1))
    return params


# ------------------------------ pure-JAX reference --------------------------------


def _conv3x3_ref(x, w, stride):
    return lax.conv_general_dilated(x, w, window_strides=(stride, stride),
                                    padding=((1, 1), (1, 1)),
                                    dimension_numbers=("NHWC", "HWIO", "NHWC"))


def block_forward_ref(x, p):
    stride = p["stride"]
    out = _conv3x3_ref(x, p["conv1_w"], stride)
    out = jnp.maximum(out, 0.0)
    out = out * p["bn1_scale"].reshape(1, 1, 1, -1) + p["bn1_shift"].reshape(1, 1, 1, -1)
    out = _conv3x3_ref(out, p["conv2_w"], 1)
    out = out * p["bn2_scale"].reshape(1, 1, 1, -1) + p["bn2_shift"].reshape(1, 1, 1, -1)
    pooled = jnp.mean(out, axis=(1, 2))                                   # (B, C)
    h = jnp.maximum(pooled @ p["fc1_w"] + p["fc1_b"], 0.0)
    yv = jnp.maximum(h @ p["fc2_w"] + p["fc2_b"], 0.0)
    out = out * yv[:, None, None, :]
    if "ds_w" in p:
        dw = p["ds_w"].reshape(1, 1, *p["ds_w"].shape)
        residual = lax.conv_general_dilated(x, dw, window_strides=(stride, stride),
                                            padding=((0, 0), (0, 0)),
                                            dimension_numbers=("NHWC", "HWIO", "NHWC"))
        residual = residual * p["ds_scale"].reshape(1, 1, 1, -1) + p["ds_shift"].reshape(1, 1, 1, -1)
    else:
        residual = x
    return jnp.maximum(out + residual, 0.0)


def resnet_layer_forward_ref(x_nchw, layer_params):
    x = jnp.transpose(x_nchw, (0, 2, 3, 1))
    for p in layer_params:
        x = block_forward_ref(x, p)
    return jnp.transpose(x, (0, 3, 1, 2))


# ---------------------------------------- main -------------------------------------


if __name__ == "__main__":
    # Full f32 matmul/conv precision everywhere so the kernel-vs-reference gate can be tight.
    jax.config.update("jax_default_matmul_precision", "highest")

    key = jax.random.PRNGKey(0)
    kx, kp = jax.random.split(key)

    B, Cin, H, W = 2, 32, 16, 16
    planes, n_blocks, stride = 64, 2, 2          # exercises the downsample + strided path

    x = jax.random.normal(kx, (B, Cin, H, W), jnp.float32)
    params = make_layer_params(kp, Cin, planes, n_blocks, stride)

    y = resnet_layer_forward(x, params)
    y = jax.block_until_ready(y)

    y_ref = resnet_layer_forward_ref(x, params)
    y_ref = jax.block_until_ready(y_ref)

    assert y.shape == y_ref.shape == (B, planes, H // stride, W // stride)
    assert y.dtype == jnp.float32
    rel_err = float(jnp.max(jnp.abs(y - y_ref)) / (jnp.max(jnp.abs(y_ref)) + 1e-6))
    assert rel_err < 1e-3, f"mismatch vs reference: rel_err={rel_err}"

    print("KERNEL_OK")
</pallas_src>

<mosaic_0001>
module attributes {stable_mosaic.version = 11 : i64} {
  func.func @_fused_block_kernel(%arg0: i32, %arg1: memref<1x8x8x288xf32, #tpu.memory_space<vmem>>, %arg2: memref<1x8x8x32xf32, #tpu.memory_space<vmem>>, %arg3: memref<288x64xf32, #tpu.memory_space<vmem>>, %arg4: memref<1x64xf32, #tpu.memory_space<vmem>>, %arg5: memref<1x64xf32, #tpu.memory_space<vmem>>, %arg6: memref<576x64xf32, #tpu.memory_space<vmem>>, %arg7: memref<1x64xf32, #tpu.memory_space<vmem>>, %arg8: memref<1x64xf32, #tpu.memory_space<vmem>>, %arg9: memref<64x8xf32, #tpu.memory_space<vmem>>, %arg10: memref<1x8xf32, #tpu.memory_space<vmem>>, %arg11: memref<8x64xf32, #tpu.memory_space<vmem>>, %arg12: memref<1x64xf32, #tpu.memory_space<vmem>>, %arg13: memref<32x64xf32, #tpu.memory_space<vmem>>, %arg14: memref<1x64xf32, #tpu.memory_space<vmem>>, %arg15: memref<1x64xf32, #tpu.memory_space<vmem>>, %arg16: memref<1x8x8x64xf32, #tpu.memory_space<vmem>>, %arg17: memref<10x10x64xf32, #tpu.memory_space<vmem>>) attributes {dimension_semantics = [#tpu.dimension_semantics<parallel>], iteration_bounds = array<i64: 2>, scalar_prefetch = 0 : i64, scratch_operands = 1 : i64, tpu.core_type = #tpu.core_type<tc>, window_params = [{transform_indices = @transform_0, window_bounds = array<i64: 1, 8, 8, 288>}, {transform_indices = @transform_1, window_bounds = array<i64: 1, 8, 8, 32>}, {pipeline_mode = #tpu.pipeline_mode<synchronous>, transform_indices = @transform_2, window_bounds = array<i64: 288, 64>}, {pipeline_mode = #tpu.pipeline_mode<synchronous>, transform_indices = @transform_3, window_bounds = array<i64: 1, 64>}, {pipeline_mode = #tpu.pipeline_mode<synchronous>, transform_indices = @transform_4, window_bounds = array<i64: 1, 64>}, {pipeline_mode = #tpu.pipeline_mode<synchronous>, transform_indices = @transform_5, window_bounds = array<i64: 576, 64>}, {pipeline_mode = #tpu.pipeline_mode<synchronous>, transform_indices = @transform_6, window_bounds = array<i64: 1, 64>}, {pipeline_mode = #tpu.pipeline_mode<synchronous>, transform_indices = @transform_7, window_bounds = array<i64: 1, 64>}, {pipeline_mode = #tpu.pipeline_mode<synchronous>, transform_indices = @transform_8, window_bounds = array<i64: 64, 8>}, {pipeline_mode = #tpu.pipeline_mode<synchronous>, transform_indices = @transform_9, window_bounds = array<i64: 1, 8>}, {pipeline_mode = #tpu.pipeline_mode<synchronous>, transform_indices = @transform_10, window_bounds = array<i64: 8, 64>}, {pipeline_mode = #tpu.pipeline_mode<synchronous>, transform_indices = @transform_11, window_bounds = array<i64: 1, 64>}, {pipeline_mode = #tpu.pipeline_mode<synchronous>, transform_indices = @transform_12, window_bounds = array<i64: 32, 64>}, {pipeline_mode = #tpu.pipeline_mode<synchronous>, transform_indices = @transform_13, window_bounds = array<i64: 1, 64>}, {pipeline_mode = #tpu.pipeline_mode<synchronous>, transform_indices = @transform_14, window_bounds = array<i64: 1, 64>}, {transform_indices = @transform_15, window_bounds = array<i64: 1, 8, 8, 64>}]} {
    %c0 = arith.constant 0 : index
    %c0_0 = arith.constant 0 : index
    %c0_1 = arith.constant 0 : index
    %c0_2 = arith.constant 0 : index
    %0 = vector.load %arg1[%c0, %c0_0, %c0_1, %c0_2] : memref<1x8x8x288xf32, #tpu.memory_space<vmem>>, vector<1x8x8x288xf32>
    %1 = vector.shape_cast %0 : vector<1x8x8x288xf32> to vector<64x288xf32>
    %c0_3 = arith.constant 0 : index
    %c0_4 = arith.constant 0 : index
    %2 = vector.load %arg3[%c0_3, %c0_4] : memref<288x64xf32, #tpu.memory_space<vmem>>, vector<288x64xf32>
    %cst = arith.constant dense<0.000000e+00> : vector<64x64xf32>
    %3 = tpu.matmul %1, %2, %cst {dimension_numbers = #tpu.dot_dimension_numbers<[1], [0], [0], [1], [0, 0, 1, 1], [], []>, precision = #tpu.contract_precision<fp32>} : vector<64x288xf32>, vector<288x64xf32>, vector<64x64xf32> -> vector<64x64xf32>
    %cst_5 = arith.constant 0.000000e+00 : f32
    %4 = vector.broadcast %cst_5 : f32 to vector<64x64xf32>
    %5 = arith.maximumf %3, %4 : vector<64x64xf32>
    %c0_6 = arith.constant 0 : index
    %c0_7 = arith.constant 0 : index
    %6 = vector.load %arg4[%c0_6, %c0_7] : memref<1x64xf32, #tpu.memory_space<vmem>>, vector<1x64xf32>
    %7 = vector.broadcast %6 : vector<1x64xf32> to vector<64x64xf32>
    %8 = arith.mulf %5, %7 : vector<64x64xf32>
    %c0_8 = arith.constant 0 : index
    %c0_9 = arith.constant 0 : index
    %9 = vector.load %arg5[%c0_8, %c0_9] : memref<1x64xf32, #tpu.memory_space<vmem>>, vector<1x64xf32>
    %10 = vector.broadcast %9 : vector<1x64xf32> to vector<64x64xf32>
    %11 = arith.addf %8, %10 : vector<64x64xf32>
    %cst_10 = arith.constant 0.000000e+00 : f32
    %12 = vector.broadcast %cst_10 : f32 to vector<10x10x64xf32>
    %c0_11 = arith.constant 0 : index
    %c0_12 = arith.constant 0 : index
    %c0_13 = arith.constant 0 : index
    %13 = vector.load %arg17[%c0_11, %c0_12, %c0_13] : memref<10x10x64xf32, #tpu.memory_space<vmem>>, vector<10x10x64xf32>
    tpu.vector_store %arg17[%c0_11, %c0_12, %c0_13], %12 {strides = array<i32>} : memref<10x10x64xf32, #tpu.memory_space<vmem>>, vector<10x10x64xf32>,
    %14 = vector.shape_cast %11 : vector<64x64xf32> to vector<8x8x64xf32>
    %c1 = arith.constant 1 : index
    %c1_14 = arith.constant 1 : index
    %c0_15 = arith.constant 0 : index
    %15 = vector.load %arg17[%c1, %c1_14, %c0_15] : memref<10x10x64xf32, #tpu.memory_space<vmem>>, vector<8x8x64xf32>
    tpu.vector_store %arg17[%c1, %c1_14, %c0_15], %14 {strides = array<i32>} : memref<10x10x64xf32, #tpu.memory_space<vmem>>, vector<8x8x64xf32>,
    %c0_16 = arith.constant 0 : index
    %c0_17 = arith.constant 0 : index
    %c0_18 = arith.constant 0 : index
    %16 = vector.load %arg17[%c0_16, %c0_17, %c0_18] : memref<10x10x64xf32, #tpu.memory_space<vmem>>, vector<10x10x64xf32>
    %17 = vector.extract_strided_slice %16 {offsets = [0, 0, 0], sizes = [8, 8, 64], strides = [1, 1, 1]} : vector<10x10x64xf32> to vector<8x8x64xf32>
    %18 = vector.extract_strided_slice %16 {offsets = [0, 1, 0], sizes = [8, 8, 64], strides = [1, 1, 1]} : vector<10x10x64xf32> to vector<8x8x64xf32>
    %19 = vector.extract_strided_slice %16 {offsets = [0, 2, 0], sizes = [8, 8, 64], strides = [1, 1, 1]} : vector<10x10x64xf32> to vector<8x8x64xf32>
    %20 = vector.extract_strided_slice %16 {offsets = [1, 0, 0], sizes = [8, 8, 64], strides = [1, 1, 1]} : vector<10x10x64xf32> to vector<8x8x64xf32>
    %21 = vector.extract_strided_slice %16 {offsets = [1, 1, 0], sizes = [8, 8, 64], strides = [1, 1, 1]} : vector<10x10x64xf32> to vector<8x8x64xf32>
    %22 = vector.extract_strided_slice %16 {offsets = [1, 2, 0], sizes = [8, 8, 64], strides = [1, 1, 1]} : vector<10x10x64xf32> to vector<8x8x64xf32>
    %23 = vector.extract_strided_slice %16 {offsets = [2, 0, 0], sizes = [8, 8, 64], strides = [1, 1, 1]} : vector<10x10x64xf32> to vector<8x8x64xf32>
    %24 = vector.extract_strided_slice %16 {offsets = [2, 1, 0], sizes = [8, 8, 64], strides = [1, 1, 1]} : vector<10x10x64xf32> to vector<8x8x64xf32>
    %25 = vector.extract_strided_slice %16 {offsets = [2, 2, 0], sizes = [8, 8, 64], strides = [1, 1, 1]} : vector<10x10x64xf32> to vector<8x8x64xf32>
    %26 = tpu.concatenate %17, %18, %19, %20, %21, %22, %23, %24, %25 in 2 : vector<8x8x64xf32>, vector<8x8x64xf32>, vector<8x8x64xf32>, vector<8x8x64xf32>, vector<8x8x64xf32>, vector<8x8x64xf32>, vector<8x8x64xf32>, vector<8x8x64xf32>, vector<8x8x64xf32> -> vector<8x8x576xf32>
    %27 = vector.shape_cast %26 : vector<8x8x576xf32> to vector<64x576xf32>
    %c0_19 = arith.constant 0 : index
    %c0_20 = arith.constant 0 : index
    %28 = vector.load %arg6[%c0_19, %c0_20] : memref<576x64xf32, #tpu.memory_space<vmem>>, vector<576x64xf32>
    %cst_21 = arith.constant dense<0.000000e+00> : vector<64x64xf32>
    %29 = tpu.matmul %27, %28, %cst_21 {dimension_numbers = #tpu.dot_dimension_numbers<[1], [0], [0], [1], [0, 0, 1, 1], [], []>, precision = #tpu.contract_precision<fp32>} : vector<64x576xf32>, vector<576x64xf32>, vector<64x64xf32> -> vector<64x64xf32>
    %c0_22 = arith.constant 0 : index
    %c0_23 = arith.constant 0 : index
    %30 = vector.load %arg7[%c0_22, %c0_23] : memref<1x64xf32, #tpu.memory_space<vmem>>, vector<1x64xf32>
    %31 = vector.broadcast %30 : vector<1x64xf32> to vector<64x64xf32>
    %32 = arith.mulf %29, %31 : vector<64x64xf32>
    %c0_24 = arith.constant 0 : index
    %c0_25 = arith.constant 0 : index
    %33 = vector.load %arg8[%c0_24, %c0_25] : memref<1x64xf32, #tpu.memory_space<vmem>>, vector<1x64xf32>
    %34 = vector.broadcast %33 : vector<1x64xf32> to vector<64x64xf32>
    %35 = arith.addf %32, %34 : vector<64x64xf32>
    %cst_26 = arith.constant dense<0.000000e+00> : vector<64xf32>
    %36 = vector.multi_reduction <add>, %35, %cst_26 [0] : vector<64x64xf32> to vector<64xf32>
    %37 = vector.shape_cast %36 : vector<64xf32> to vector<1x64xf32>
    %cst_27 = arith.constant 6.400000e+01 : f32
    %38 = vector.broadcast %cst_27 : f32 to vector<1x64xf32>
    %39 = arith.divf %37, %38 : vector<1x64xf32>
    %c0_28 = arith.constant 0 : index
    %c0_29 = arith.constant 0 : index
    %40 = vector.load %arg9[%c0_28, %c0_29] : memref<64x8xf32, #tpu.memory_space<vmem>>, vector<64x8xf32>
    %cst_30 = arith.constant dense<0.000000e+00> : vector<1x8xf32>
    %41 = tpu.matmul %39, %40, %cst_30 {dimension_numbers = #tpu.dot_dimension_numbers<[1], [0], [0], [1], [0, 0, 1, 1], [], []>, precision = #tpu.contract_precision<fp32>} : vector<1x64xf32>, vector<64x8xf32>, vector<1x8xf32> -> vector<1x8xf32>
    %c0_31 = arith.constant 0 : index
    %c0_32 = arith.constant 0 : index
    %42 = vector.load %arg10[%c0_31, %c0_32] : memref<1x8xf32, #tpu.memory_space<vmem>>, vector<1x8xf32>
    %43 = arith.addf %41, %42 : vector<1x8xf32>
    %cst_33 = arith.constant 0.000000e+00 : f32
    %44 = vector.broadcast %cst_33 : f32 to vector<1x8xf32>
    %45 = arith.maximumf %43, %44 : vector<1x8xf32>
    %c0_34 = arith.constant 0 : index
    %c0_35 = arith.constant 0 : index
    %46 = vector.load %arg11[%c0_34, %c0_35] : memref<8x64xf32, #tpu.memory_space<vmem>>, vector<8x64xf32>
    %cst_36 = arith.constant dense<0.000000e+00> : vector<1x64xf32>
    %47 = tpu.matmul %45, %46, %cst_36 {dimension_numbers = #tpu.dot_dimension_numbers<[1], [0], [0], [1], [0, 0, 1, 1], [], []>, precision = #tpu.contract_precision<fp32>} : vector<1x8xf32>, vector<8x64xf32>, vector<1x64xf32> -> vector<1x64xf32>
    %c0_37 = arith.constant 0 : index
    %c0_38 = arith.constant 0 : index
    %48 = vector.load %arg12[%c0_37, %c0_38] : memref<1x64xf32, #tpu.memory_space<vmem>>, vector<1x64xf32>
    %49 = arith.addf %47, %48 : vector<1x64xf32>
    %cst_39 = arith.constant 0.000000e+00 : f32
    %50 = vector.broadcast %cst_39 : f32 to vector<1x64xf32>
    %51 = arith.maximumf %49, %50 : vector<1x64xf32>
    %52 = vector.broadcast %51 : vector<1x64xf32> to vector<64x64xf32>
    %53 = arith.mulf %35, %52 : vector<64x64xf32>
    %c0_40 = arith.constant 0 : index
    %c0_41 = arith.constant 0 : index
    %c0_42 = arith.constant 0 : index
    %c0_43 = arith.constant 0 : index
    %54 = vector.load %arg2[%c0_40, %c0_41, %c0_42, %c0_43] : memref<1x8x8x32xf32, #tpu.memory_space<vmem>>, vector<1x8x8x32xf32>
    %55 = vector.shape_cast %54 : vector<1x8x8x32xf32> to vector<64x32xf32>
    %c0_44 = arith.constant 0 : index
    %c0_45 = arith.constant 0 : index
    %56 = vector.load %arg13[%c0_44, %c0_45] : memref<32x64xf32, #tpu.memory_space<vmem>>, vector<32x64xf32>
    %cst_46 = arith.constant dense<0.000000e+00> : vector<64x64xf32>
    %57 = tpu.matmul %55, %56, %cst_46 {dimension_numbers = #tpu.dot_dimension_numbers<[1], [0], [0], [1], [0, 0, 1, 1], [], []>, precision = #tpu.contract_precision<fp32>} : vector<64x32xf32>, vector<32x64xf32>, vector<64x64xf32> -> vector<64x64xf32>
    %c0_47 = arith.constant 0 : index
    %c0_48 = arith.constant 0 : index
    %58 = vector.load %arg14[%c0_47, %c0_48] : memref<1x64xf32, #tpu.memory_space<vmem>>, vector<1x64xf32>
    %59 = vector.broadcast %58 : vector<1x64xf32> to vector<64x64xf32>
    %60 = arith.mulf %57, %59 : vector<64x64xf32>
    %c0_49 = arith.constant 0 : index
    %c0_50 = arith.constant 0 : index
    %61 = vector.load %arg15[%c0_49, %c0_50] : memref<1x64xf32, #tpu.memory_space<vmem>>, vector<1x64xf32>
    %62 = vector.broadcast %61 : vector<1x64xf32> to vector<64x64xf32>
    %63 = arith.addf %60, %62 : vector<64x64xf32>
    %64 = arith.addf %53, %63 : vector<64x64xf32>
    %cst_51 = arith.constant 0.000000e+00 : f32
    %65 = vector.broadcast %cst_51 : f32 to vector<64x64xf32>
    %66 = arith.maximumf %64, %65 : vector<64x64xf32>
    %67 = vector.shape_cast %66 : vector<64x64xf32> to vector<1x8x8x64xf32>
    %c0_52 = arith.constant 0 : index
    %c0_53 = arith.constant 0 : index
    %c0_54 = arith.constant 0 : index
    %c0_55 = arith.constant 0 : index
    %68 = vector.load %arg16[%c0_52, %c0_53, %c0_54, %c0_55] : memref<1x8x8x64xf32, #tpu.memory_space<vmem>>, vector<1x8x8x64xf32>
    tpu.vector_store %arg16[%c0_52, %c0_53, %c0_54, %c0_55], %67 {strides = array<i32>} : memref<1x8x8x64xf32, #tpu.memory_space<vmem>>, vector<1x8x8x64xf32>,
    return
  }
  func.func @transform_0(%arg0: i32) -> (i32, i32, i32, i32) {
    %c0_i32 = arith.constant 0 : i32
    %c0_i32_0 = arith.constant 0 : i32
    %c0_i32_1 = arith.constant 0 : i32
    %c0_i32_2 = arith.constant 0 : i32
    return %arg0, %c0_i32, %c0_i32_0, %c0_i32_1 : i32, i32, i32, i32
  }
  func.func @transform_1(%arg0: i32) -> (i32, i32, i32, i32) {
    %c0_i32 = arith.constant 0 : i32
    %c0_i32_0 = arith.constant 0 : i32
    %c0_i32_1 = arith.constant 0 : i32
    %c0_i32_2 = arith.constant 0 : i32
    return %arg0, %c0_i32, %c0_i32_0, %c0_i32_1 : i32, i32, i32, i32
  }
  func.func @transform_2(%arg0: i32) -> (i32, i32) {
    %c0_i32 = arith.constant 0 : i32
    %c0_i32_0 = arith.constant 0 : i32
    %c0_i32_1 = arith.constant 0 : i32
    return %c0_i32, %c0_i32_0 : i32, i32
  }
  func.func @transform_3(%arg0: i32) -> (i32, i32) {
    %c0_i32 = arith.constant 0 : i32
    %c0_i32_0 = arith.constant 0 : i32
    %c0_i32_1 = arith.constant 0 : i32
    return %c0_i32, %c0_i32_0 : i32, i32
  }
  func.func @transform_4(%arg0: i32) -> (i32, i32) {
    %c0_i32 = arith.constant 0 : i32
    %c0_i32_0 = arith.constant 0 : i32
    %c0_i32_1 = arith.constant 0 : i32
    return %c0_i32, %c0_i32_0 : i32, i32
  }
  func.func @transform_5(%arg0: i32) -> (i32, i32) {
    %c0_i32 = arith.constant 0 : i32
    %c0_i32_0 = arith.constant 0 : i32
    %c0_i32_1 = arith.constant 0 : i32
    return %c0_i32, %c0_i32_0 : i32, i32
  }
  func.func @transform_6(%arg0: i32) -> (i32, i32) {
    %c0_i32 = arith.constant 0 : i32
    %c0_i32_0 = arith.constant 0 : i32
    %c0_i32_1 = arith.constant 0 : i32
    return %c0_i32, %c0_i32_0 : i32, i32
  }
  func.func @transform_7(%arg0: i32) -> (i32, i32) {
    %c0_i32 = arith.constant 0 : i32
    %c0_i32_0 = arith.constant 0 : i32
    %c0_i32_1 = arith.constant 0 : i32
    return %c0_i32, %c0_i32_0 : i32, i32
  }
  func.func @transform_8(%arg0: i32) -> (i32, i32) {
    %c0_i32 = arith.constant 0 : i32
    %c0_i32_0 = arith.constant 0 : i32
    %c0_i32_1 = arith.constant 0 : i32
    return %c0_i32, %c0_i32_0 : i32, i32
  }
  func.func @transform_9(%arg0: i32) -> (i32, i32) {
    %c0_i32 = arith.constant 0 : i32
    %c0_i32_0 = arith.constant 0 : i32
    %c0_i32_1 = arith.constant 0 : i32
    return %c0_i32, %c0_i32_0 : i32, i32
  }
  func.func @transform_10(%arg0: i32) -> (i32, i32) {
    %c0_i32 = arith.constant 0 : i32
    %c0_i32_0 = arith.constant 0 : i32
    %c0_i32_1 = arith.constant 0 : i32
    return %c0_i32, %c0_i32_0 : i32, i32
  }
  func.func @transform_11(%arg0: i32) -> (i32, i32) {
    %c0_i32 = arith.constant 0 : i32
    %c0_i32_0 = arith.constant 0 : i32
    %c0_i32_1 = arith.constant 0 : i32
    return %c0_i32, %c0_i32_0 : i32, i32
  }
  func.func @transform_12(%arg0: i32) -> (i32, i32) {
    %c0_i32 = arith.constant 0 : i32
    %c0_i32_0 = arith.constant 0 : i32
    %c0_i32_1 = arith.constant 0 : i32
    return %c0_i32, %c0_i32_0 : i32, i32
  }
  func.func @transform_13(%arg0: i32) -> (i32, i32) {
    %c0_i32 = arith.constant 0 : i32
    %c0_i32_0 = arith.constant 0 : i32
    %c0_i32_1 = arith.constant 0 : i32
    return %c0_i32, %c0_i32_0 : i32, i32
  }
  func.func @transform_14(%arg0: i32) -> (i32, i32) {
    %c0_i32 = arith.constant 0 : i32
    %c0_i32_0 = arith.constant 0 : i32
    %c0_i32_1 = arith.constant 0 : i32
    return %c0_i32, %c0_i32_0 : i32, i32
  }
  func.func @transform_15(%arg0: i32) -> (i32, i32, i32, i32) {
    %c0_i32 = arith.constant 0 : i32
    %c0_i32_0 = arith.constant 0 : i32
    %c0_i32_1 = arith.constant 0 : i32
    %c0_i32_2 = arith.constant 0 : i32
    return %arg0, %c0_i32, %c0_i32_0, %c0_i32_1 : i32, i32, i32, i32
  }
}

</mosaic_0001>

<llo_original>
// kernel: tpu_custom_call.1
$region0: #{tpu_custom_call.1}
  #allocation0 [shape = 'u32[]', space=smem, size = 0x4, offset = 0x4, fixed_abs, tag = 'smem constant byte address 0x4 - core index']
  #allocation1 [shape = 'u32[144,128]{1,0:T(1,128)}', space=vmem, size = 0x12000, scoped, tag = 'internal scratch']
  #allocation2 [shape = 'f32[10,10,64]{2,1,0:T(8,128)}', space=vmem, size = 0x14000, scoped, tag = 'scratch operand']
  %s0 = inlined_call_operand.vmem [shape: f32[2,8,8,288], index: 0, kind: input, shape index: {}]
  %s1 = inlined_call_operand.vmem [shape: f32[2,8,8,32], index: 1, kind: input, shape index: {}]
  %s2 = inlined_call_operand.vmem [shape: f32[288,64], index: 2, kind: input, shape index: {}]
  %s3 = inlined_call_operand.vmem [shape: f32[1,64], index: 3, kind: input, shape index: {}]
  %s4 = inlined_call_operand.vmem [shape: f32[1,64], index: 4, kind: input, shape index: {}]
  %s5 = inlined_call_operand.vmem [shape: f32[576,64], index: 5, kind: input, shape index: {}]
  %s6 = inlined_call_operand.vmem [shape: f32[1,64], index: 6, kind: input, shape index: {}]
  %s7 = inlined_call_operand.vmem [shape: f32[1,64], index: 7, kind: input, shape index: {}]
  %s8 = inlined_call_operand.vmem [shape: f32[64,8], index: 8, kind: input, shape index: {}]
  %s9 = inlined_call_operand.vmem [shape: f32[1,8], index: 9, kind: input, shape index: {}]
  %s10 = inlined_call_operand.vmem [shape: f32[8,64], index: 10, kind: input, shape index: {}]
  %s11 = inlined_call_operand.vmem [shape: f32[1,64], index: 11, kind: input, shape index: {}]
  %s12 = inlined_call_operand.vmem [shape: f32[32,64], index: 12, kind: input, shape index: {}]
  %s13 = inlined_call_operand.vmem [shape: f32[1,64], index: 13, kind: input, shape index: {}]
  %s14 = inlined_call_operand.vmem [shape: f32[1,64], index: 14, kind: input, shape index: {}]
  %s15 = inlined_call_operand.hbm [shape: f32[2,8,8,64], index: 15, kind: output, shape index: {}]
  %s16 = sld [smem:[#allocation0]]
  $region93: #{tpu_custom_call.1} parent=0
    _
  %s18 = ssub.s32 1, %s16
  %s19 = scalar_select 0, %s18, %s16
  $region1: #{tpu_custom_call.1} parent=0
    #allocation3 [shape = 'u8[65536]{0}', space=vmem, size = 0x10000, scoped, tag = 'output window, operand 0']
    #allocation4 [shape = 's32[2]{0}', space=sflag, size = 0x8, scoped, tag = 'scoped memory for tpu_custom_call.1']
    %20 = vsyncpa [#allocation4], 0
    %s21 = scalar_lea.sflag [#allocation4], 1
    %22 = vsyncpa %s21, 0
    loop: start=0, step=1, limit=4
    $region2: #{tpu_custom_call.1} parent=1 // loop_pre_header
      _
    $region3: #{tpu_custom_call.1} parent=1 // loop_header
      %s24 = sphi 0, %s28
      %p25 = scmp.ge.s32.totalorder %s24, 4
      %s34 = sphi 0, %s36
      %s37 = sphi 0, %s34
      %s38 = sphi 0, %s37
      %s54 = sphi 0, %s38
      %s60 = sphi 0, %s62
      %s63 = sphi 0, %s60
      %s64 = sphi 0, %s63
      %s80 = sphi 0, %s64
      %s84 = sphi 0, %s84
      %s86 = sphi 0, %s84
      %s87 = sphi 0, %s86
      %s101 = sphi 0, %s87
      %s105 = sphi 0, %s105
      %s107 = sphi 0, %s105
      %s108 = sphi 0, %s107
      %s122 = sphi 0, %s108
      %s126 = sphi 0, %s126
      %s128 = sphi 0, %s126
      %s129 = sphi 0, %s128
      %s143 = sphi 0, %s129
      %s147 = sphi 0, %s147
      %s149 = sphi 0, %s147
      %s150 = sphi 0, %s149
      %s164 = sphi 0, %s150
      %s168 = sphi 0, %s168
      %s170 = sphi 0, %s168
      %s171 = sphi 0, %s170
      %s185 = sphi 0, %s171
      %s189 = sphi 0, %s189
      %s191 = sphi 0, %s189
      %s192 = sphi 0, %s191
      %s206 = sphi 0, %s192
      %s210 = sphi 0, %s210
      %s212 = sphi 0, %s210
      %s213 = sphi 0, %s212
      %s227 = sphi 0, %s213
      %s231 = sphi 0, %s231
      %s233 = sphi 0, %s231
      %s234 = sphi 0, %s233
      %s248 = sphi 0, %s234
      %s252 = sphi 0, %s252
      %s254 = sphi 0, %s252
      %s255 = sphi 0, %s254
      %s269 = sphi 0, %s255
      %s273 = sphi 0, %s273
      %s275 = sphi 0, %s273
      %s276 = sphi 0, %s275
      %s290 = sphi 0, %s276
      %s294 = sphi 0, %s294
      %s296 = sphi 0, %s294
      %s297 = sphi 0, %s296
      %s311 = sphi 0, %s297
      %s315 = sphi 0, %s315
      %s317 = sphi 0, %s315
      %s318 = sphi 0, %s317
      %s332 = sphi 0, %s318
      %s336 = sphi 0, %s336
      %s338 = sphi 0, %s336
      %s339 = sphi 0, %s338
      %s353 = sphi 0, %s339
      %s359 = sphi 0, %s361
      %s362 = sphi 0, %s359
      %s363 = sphi 0, %s362
      %s379 = sphi 0, %s363
    $region4: #{tpu_custom_call.1} parent=1 // loop_header_branch
      %27 = sbr.rel (%p25) target = $region8
    $region5: #{tpu_custom_call.1} parent=1 // loop_body
      %s29 = ssub.s32 %s24, 1
      %s30 = ssub.s32 %s24, 2
      %s31 = sadd.s32 %s24, 1
      %s32 = ssub.s32 %s24, %s31
      %p33 = scmp.eq.s32.totalorder %s32, 0
      %s35 = sadd.s32 %s34, 1
      %s36 = scalar_select %p33, %s34, %s35
      %p39 = pneg %p33
      %p40 = scmp.eq.s32.totalorder %s24, 1
      %p41 = por %p39, %p40
      %p42 = scmp.ne.s32.totalorder %s34, %s37
      %p43 = scmp.eq.s32.totalorder %s24, 0
      %p44 = por %p42, %p43
      %p45 = scmp.ne.s32.totalorder %s34, %s37
      %p46 = scmp.eq.s32.totalorder %s29, 1
      %p47 = por %p45, %p46
      %p48 = scmp.ne.s32.totalorder %s37, %s38
      %p49 = scmp.eq.s32.totalorder %s29, 0
      %p50 = por %p48, %p49
      %p51 = scmp.ne.s32.totalorder %s37, %s38
      %p52 = scmp.eq.s32.totalorder %s30, 1
      %p53 = por %p51, %p52
      %p55 = scmp.ne.s32.totalorder %s38, %s54
      %p56 = scmp.eq.s32.totalorder %s30, 0
      %p57 = por %p55, %p56
      %s58 = ssub.s32 %s24, %s31
      %p59 = scmp.eq.s32.totalorder %s58, 0
      %s61 = sadd.s32 %s60, 1
      %s62 = scalar_select %p59, %s60, %s61
      %p65 = pneg %p59
      %p66 = scmp.eq.s32.totalorder %s24, 1
      %p67 = por %p65, %p66
      %p68 = scmp.ne.s32.totalorder %s60, %s63
      %p69 = scmp.eq.s32.totalorder %s24, 0
      %p70 = por %p68, %p69
      %p71 = scmp.ne.s32.totalorder %s60, %s63
      %p72 = scmp.eq.s32.totalorder %s29, 1
      %p73 = por %p71, %p72
      %p74 = scmp.ne.s32.totalorder %s63, %s64
      %p75 = scmp.eq.s32.totalorder %s29, 0
      %p76 = por %p74, %p75
      %p77 = scmp.ne.s32.totalorder %s63, %s64
      %p78 = scmp.eq.s32.totalorder %s30, 1
      %p79 = por %p77, %p78
      %p81 = scmp.ne.s32.totalorder %s64, %s80
      %p82 = scmp.eq.s32.totalorder %s30, 0
      %p83 = por %p81, %p82
      %s85 = sadd.s32 %s84, 1
      %p88 = scmp.eq.s32.totalorder %s24, 1
      %p89 = scmp.ne.s32.totalorder %s84, %s86
      %p90 = scmp.eq.s32.totalorder %s24, 0
      %p91 = por %p89, %p90
      %p92 = scmp.ne.s32.totalorder %s84, %s86
      %p93 = scmp.eq.s32.totalorder %s29, 1
      %p94 = por %p92, %p93
      %p95 = scmp.ne.s32.totalorder %s86, %s87
      %p96 = scmp.eq.s32.totalorder %s29, 0
      %p97 = por %p95, %p96
      %p98 = scmp.ne.s32.totalorder %s86, %s87
      %p99 = scmp.eq.s32.totalorder %s30, 1
      %p100 = por %p98, %p99
      %p102 = scmp.ne.s32.totalorder %s87, %s101
      %p103 = scmp.eq.s32.totalorder %s30, 0
      %p104 = por %p102, %p103
      %s106 = sadd.s32 %s105, 1
      %p109 = scmp.eq.s32.totalorder %s24, 1
      %p110 = scmp.ne.s32.totalorder %s105, %s107
      %p111 = scmp.eq.s32.totalorder %s24, 0
      %p112 = por %p110, %p111
      %p113 = scmp.ne.s32.totalorder %s105, %s107
      %p114 = scmp.eq.s32.totalorder %s29, 1
      %p115 = por %p113, %p114
      %p116 = scmp.ne.s32.totalorder %s107, %s108
      %p117 = scmp.eq.s32.totalorder %s29, 0
      %p118 = por %p116, %p117
      %p119 = scmp.ne.s32.totalorder %s107, %s108
      %p120 = scmp.eq.s32.totalorder %s30, 1
      %p121 = por %p119, %p120
      %p123 = scmp.ne.s32.totalorder %s108, %s122
      %p124 = scmp.eq.s32.totalorder %s30, 0
      %p125 = por %p123, %p124
      %s127 = sadd.s32 %s126, 1
      %p130 = scmp.eq.s32.totalorder %s24, 1
      %p131 = scmp.ne.s32.totalorder %s126, %s128
      %p132 = scmp.eq.s32.totalorder %s24, 0
      %p133 = por %p131, %p132
      %p134 = scmp.ne.s32.totalorder %s126, %s128
      %p135 = scmp.eq.s32.totalorder %s29, 1
      %p136 = por %p134, %p135
      %p137 = scmp.ne.s32.totalorder %s128, %s129
      %p138 = scmp.eq.s32.totalorder %s29, 0
      %p139 = por %p137, %p138
      %p140 = scmp.ne.s32.totalorder %s128, %s129
      %p141 = scmp.eq.s32.totalorder %s30, 1
      %p142 = por %p140, %p141
      %p144 = scmp.ne.s32.totalorder %s129, %s143
      %p145 = scmp.eq.s32.totalorder %s30, 0
      %p146 = por %p144, %p145
      %s148 = sadd.s32 %s147, 1
      %p151 = scmp.eq.s32.totalorder %s24, 1
      %p152 = scmp.ne.s32.totalorder %s147, %s149
      %p153 = scmp.eq.s32.totalorder %s24, 0
      %p154 = por %p152, %p153
      %p155 = scmp.ne.s32.totalorder %s147, %s149
      %p156 = scmp.eq.s32.totalorder %s29, 1
      %p157 = por %p155, %p156
      %p158 = scmp.ne.s32.totalorder %s149, %s150
      %p159 = scmp.eq.s32.totalorder %s29, 0
      %p160 = por %p158, %p159
      %p161 = scmp.ne.s32.totalorder %s149, %s150
      %p162 = scmp.eq.s32.totalorder %s30, 1
      %p163 = por %p161, %p162
      %p165 = scmp.ne.s32.totalorder %s150, %s164
      %p166 = scmp.eq.s32.totalorder %s30, 0
      %p167 = por %p165, %p166
      %s169 = sadd.s32 %s168, 1
      %p172 = scmp.eq.s32.totalorder %s24, 1
      %p173 = scmp.ne.s32.totalorder %s168, %s170
      %p174 = scmp.eq.s32.totalorder %s24, 0
      %p175 = por %p173, %p174
      %p176 = scmp.ne.s32.totalorder %s168, %s170
      %p177 = scmp.eq.s32.totalorder %s29, 1
      %p178 = por %p176, %p177
      %p179 = scmp.ne.s32.totalorder %s170, %s171
      %p180 = scmp.eq.s32.totalorder %s29, 0
      %p181 = por %p179, %p180
      %p182 = scmp.ne.s32.totalorder %s170, %s171
      %p183 = scmp.eq.s32.totalorder %s30, 1
      %p184 = por %p182, %p183
      %p186 = scmp.ne.s32.totalorder %s171, %s185
      %p187 = scmp.eq.s32.totalorder %s30, 0
      %p188 = por %p186, %p187
      %s190 = sadd.s32 %s189, 1
      %p193 = scmp.eq.s32.totalorder %s24, 1
      %p194 = scmp.ne.s32.totalorder %s189, %s191
      %p195 = scmp.eq.s32.totalorder %s24, 0
      %p196 = por %p194, %p195
      %p197 = scmp.ne.s32.totalorder %s189, %s191
      %p198 = scmp.eq.s32.totalorder %s29, 1
      %p199 = por %p197, %p198
      %p200 = scmp.ne.s32.totalorder %s191, %s192
      %p201 = scmp.eq.s32.totalorder %s29, 0
      %p202 = por %p200, %p201
      %p203 = scmp.ne.s32.totalorder %s191, %s192
      %p204 = scmp.eq.s32.totalorder %s30, 1
      %p205 = por %p203, %p204
      %p207 = scmp.ne.s32.totalorder %s192, %s206
      %p208 = scmp.eq.s32.totalorder %s30, 0
      %p209 = por %p207, %p208
      %s211 = sadd.s32 %s210, 1
      %p214 = scmp.eq.s32.totalorder %s24, 1
      %p215 = scmp.ne.s32.totalorder %s210, %s212
      %p216 = scmp.eq.s32.totalorder %s24, 0
      %p217 = por %p215, %p216
      %p218 = scmp.ne.s32.totalorder %s210, %s212
      %p219 = scmp.eq.s32.totalorder %s29, 1
      %p220 = por %p218, %p219
      %p221 = scmp.ne.s32.totalorder %s212, %s213
      %p222 = scmp.eq.s32.totalorder %s29, 0
      %p223 = por %p221, %p222
      %p224 = scmp.ne.s32.totalorder %s212, %s213
      %p225 = scmp.eq.s32.totalorder %s30, 1
      %p226 = por %p224, %p225
      %p228 = scmp.ne.s32.totalorder %s213, %s227
      %p229 = scmp.eq.s32.totalorder %s30, 0
      %p230 = por %p228, %p229
      %s232 = sadd.s32 %s231, 1
      %p235 = scmp.eq.s32.totalorder %s24, 1
      %p236 = scmp.ne.s32.totalorder %s231, %s233
      %p237 = scmp.eq.s32.totalorder %s24, 0
      %p238 = por %p236, %p237
      %p239 = scmp.ne.s32.totalorder %s231, %s233
      %p240 = scmp.eq.s32.totalorder %s29, 1
      %p241 = por %p239, %p240
      %p242 = scmp.ne.s32.totalorder %s233, %s234
      %p243 = scmp.eq.s32.totalorder %s29, 0
      %p244 = por %p242, %p243
      %p245 = scmp.ne.s32.totalorder %s233, %s234
      %p246 = scmp.eq.s32.totalorder %s30, 1
      %p247 = por %p245, %p246
      %p249 = scmp.ne.s32.totalorder %s234, %s248
      %p250 = scmp.eq.s32.totalorder %s30, 0
      %p251 = por %p249, %p250
      %s253 = sadd.s32 %s252, 1
      %p256 = scmp.eq.s32.totalorder %s24, 1
      %p257 = scmp.ne.s32.totalorder %s252, %s254
      %p258 = scmp.eq.s32.totalorder %s24, 0
      %p259 = por %p257, %p258
      %p260 = scmp.ne.s32.totalorder %s252, %s254
      %p261 = scmp.eq.s32.totalorder %s29, 1
      %p262 = por %p260, %p261
      %p263 = scmp.ne.s32.totalorder %s254, %s255
      %p264 = scmp.eq.s32.totalorder %s29, 0
      %p265 = por %p263, %p264
      %p266 = scmp.ne.s32.totalorder %s254, %s255
      %p267 = scmp.eq.s32.totalorder %s30, 1
      %p268 = por %p266, %p267
      %p270 = scmp.ne.s32.totalorder %s255, %s269
      %p271 = scmp.eq.s32.totalorder %s30, 0
      %p272 = por %p270, %p271
      %s274 = sadd.s32 %s273, 1
      %p277 = scmp.eq.s32.totalorder %s24, 1
      %p278 = scmp.ne.s32.totalorder %s273, %s275
      %p279 = scmp.eq.s32.totalorder %s24, 0
      %p280 = por %p278, %p279
      %p281 = scmp.ne.s32.totalorder %s273, %s275
      %p282 = scmp.eq.s32.totalorder %s29, 1
      %p283 = por %p281, %p282
      %p284 = scmp.ne.s32.totalorder %s275, %s276
      %p285 = scmp.eq.s32.totalorder %s29, 0
      %p286 = por %p284, %p285
      %p287 = scmp.ne.s32.totalorder %s275, %s276
      %p288 = scmp.eq.s32.totalorder %s30, 1
      %p289 = por %p287, %p288
      %p291 = scmp.ne.s32.totalorder %s276, %s290
      %p292 = scmp.eq.s32.totalorder %s30, 0
      %p293 = por %p291, %p292
      %s295 = sadd.s32 %s294, 1
      %p298 = scmp.eq.s32.totalorder %s24, 1
      %p299 = scmp.ne.s32.totalorder %s294, %s296
      %p300 = scmp.eq.s32.totalorder %s24, 0
      %p301 = por %p299, %p300
      %p302 = scmp.ne.s32.totalorder %s294, %s296
      %p303 = scmp.eq.s32.totalorder %s29, 1
      %p304 = por %p302, %p303
      %p305 = scmp.ne.s32.totalorder %s296, %s297
      %p306 = scmp.eq.s32.totalorder %s29, 0
      %p307 = por %p305, %p306
      %p308 = scmp.ne.s32.totalorder %s296, %s297
      %p309 = scmp.eq.s32.totalorder %s30, 1
      %p310 = por %p308, %p309
      %p312 = scmp.ne.s32.totalorder %s297, %s311
      %p313 = scmp.eq.s32.totalorder %s30, 0
      %p314 = por %p312, %p313
      %s316 = sadd.s32 %s315, 1
      %p319 = scmp.eq.s32.totalorder %s24, 1
      %p320 = scmp.ne.s32.totalorder %s315, %s317
      %p321 = scmp.eq.s32.totalorder %s24, 0
      %p322 = por %p320, %p321
      %p323 = scmp.ne.s32.totalorder %s315, %s317
      %p324 = scmp.eq.s32.totalorder %s29, 1
      %p325 = por %p323, %p324
      %p326 = scmp.ne.s32.totalorder %s317, %s318
      %p327 = scmp.eq.s32.totalorder %s29, 0
      %p328 = por %p326, %p327
      %p329 = scmp.ne.s32.totalorder %s317, %s318
      %p330 = scmp.eq.s32.totalorder %s30, 1
      %p331 = por %p329, %p330
      %p333 = scmp.ne.s32.totalorder %s318, %s332
      %p334 = scmp.eq.s32.totalorder %s30, 0
      %p335 = por %p333, %p334
      %s337 = sadd.s32 %s336, 1
      %p340 = scmp.eq.s32.totalorder %s24, 1
      %p341 = scmp.ne.s32.totalorder %s336, %s338
      %p342 = scmp.eq.s32.totalorder %s24, 0
      %p343 = por %p341, %p342
      %p344 = scmp.ne.s32.totalorder %s336, %s338
      %p345 = scmp.eq.s32.totalorder %s29, 1
      %p346 = por %p344, %p345
      %p347 = scmp.ne.s32.totalorder %s338, %s339
      %p348 = scmp.eq.s32.totalorder %s29, 0
      %p349 = por %p347, %p348
      %p350 = scmp.ne.s32.totalorder %s338, %s339
      %p351 = scmp.eq.s32.totalorder %s30, 1
      %p352 = por %p350, %p351
      %p354 = scmp.ne.s32.totalorder %s339, %s353
      %p355 = scmp.eq.s32.totalorder %s30, 0
      %p356 = por %p354, %p355
      %s357 = ssub.s32 %s24, %s31
      %p358 = scmp.eq.s32.totalorder %s357, 0
      %s360 = sadd.s32 %s359, 1
      %s361 = scalar_select %p358, %s359, %s360
      %p364 = pneg %p358
      %p365 = scmp.eq.s32.totalorder %s24, 1
      %p366 = por %p364, %p365
      %p367 = scmp.ne.s32.totalorder %s359, %s362
      %p368 = scmp.eq.s32.totalorder %s24, 0
      %p369 = por %p367, %p368
      %p370 = scmp.ne.s32.totalorder %s359, %s362
      %p371 = scmp.eq.s32.totalorder %s29, 1
      %p372 = por %p370, %p371
      %p373 = scmp.ne.s32.totalorder %s362, %s363
      %p374 = scmp.eq.s32.totalorder %s29, 0
      %p375 = por %p373, %p374
      %p376 = scmp.ne.s32.totalorder %s362, %s363
      %p377 = scmp.eq.s32.totalorder %s30, 1
      %p378 = por %p376, %p377
      %p380 = scmp.ne.s32.totalorder %s363, %s379
      %p381 = scmp.eq.s32.totalorder %s30, 0
      %p382 = por %p380, %p381
      %p383 = scmp.le.s32.totalorder 1, %s24
      %p384 = scmp.lt.s32.totalorder %s24, 3
      %p385 = pnand %p383, %p384
      %p386 = pneg %p385
      // Predicated region
      $region9: #{tpu_custom_call.1} parent=5 // pred_check
        _
      $region10: #{tpu_custom_call.1} parent=5 // pred_check_branch
        %388 = sbr.rel (%p385) target = $region12
      $region11: #{tpu_custom_call.1} parent=5 // pred_region
        %s389 = ssub.s32 %s24, 1
        // Predicated region
        $region13: #{tpu_custom_call.1} parent=11 // pred_check
          %p390 = pneg %p97
        $region14: #{tpu_custom_call.1} parent=11 // pred_check_branch
          %392 = sbr.rel (%p390) target = $region16
        $region15: #{tpu_custom_call.1} parent=11 // pred_region
          _
        $region16: #{tpu_custom_call.1} parent=11 // pred_fallthru
          _
        // Predicated region
        $region17: #{tpu_custom_call.1} parent=11 // pred_check
          %p393 = pneg %p118
        $region18: #{tpu_custom_call.1} parent=11 // pred_check_branch
          %395 = sbr.rel (%p393) target = $region20
        $region19: #{tpu_custom_call.1} parent=11 // pred_region
          _
        $region20: #{tpu_custom_call.1} parent=11 // pred_fallthru
          _
        // Predicated region
        $region21: #{tpu_custom_call.1} parent=11 // pred_check
          %p396 = pneg %p139
        $region22: #{tpu_custom_call.1} parent=11 // pred_check_branch
          %398 = sbr.rel (%p396) target = $region24
        $region23: #{tpu_custom_call.1} parent=11 // pred_region
          _
        $region24: #{tpu_custom_call.1} parent=11 // pred_fallthru
          _
        // Predicated region
        $region25: #{tpu_custom_call.1} parent=11 // pred_check
          %p399 = pneg %p160
        $region26: #{tpu_custom_call.1} parent=11 // pred_check_branch
          %401 = sbr.rel (%p399) target = $region28
        $region27: #{tpu_custom_call.1} parent=11 // pred_region
          _
        $region28: #{tpu_custom_call.1} parent=11 // pred_fallthru
          _
        // Predicated region
        $region29: #{tpu_custom_call.1} parent=11 // pred_check
          %p402 = pneg %p181
        $region30: #{tpu_custom_call.1} parent=11 // pred_check_branch
          %404 = sbr.rel (%p402) target = $region32
        $region31: #{tpu_custom_call.1} parent=11 // pred_region
          _
        $region32: #{tpu_custom_call.1} parent=11 // pred_fallthru
          _
        // Predicated region
        $region33: #{tpu_custom_call.1} parent=11 // pred_check
          %p405 = pneg %p202
        $region34: #{tpu_custom_call.1} parent=11 // pred_check_branch
          %407 = sbr.rel (%p405) target = $region36
        $region35: #{tpu_custom_call.1} parent=11 // pred_region
          _
        $region36: #{tpu_custom_call.1} parent=11 // pred_fallthru
          _
        // Predicated region
        $region37: #{tpu_custom_call.1} parent=11 // pred_check
          %p408 = pneg %p223
        $region38: #{tpu_custom_call.1} parent=11 // pred_check_branch
          %410 = sbr.rel (%p408) target = $region40
        $region39: #{tpu_custom_call.1} parent=11 // pred_region
          _
        $region40: #{tpu_custom_call.1} parent=11 // pred_fallthru
          _
        // Predicated region
        $region41: #{tpu_custom_call.1} parent=11 // pred_check
          %p411 = pneg %p244
        $region42: #{tpu_custom_call.1} parent=11 // pred_check_branch
          %413 = sbr.rel (%p411) target = $region44
        $region43: #{tpu_custom_call.1} parent=11 // pred_region
          _
        $region44: #{tpu_custom_call.1} parent=11 // pred_fallthru
          _
        // Predicated region
        $region45: #{tpu_custom_call.1} parent=11 // pred_check
          %p414 = pneg %p265
        $region46: #{tpu_custom_call.1} parent=11 // pred_check_branch
          %416 = sbr.rel (%p414) target = $region48
        $region47: #{tpu_custom_call.1} parent=11 // pred_region
          _
        $region48: #{tpu_custom_call.1} parent=11 // pred_fallthru
          _
        // Predicated region
        $region49: #{tpu_custom_call.1} parent=11 // pred_check
          %p417 = pneg %p286
        $region50: #{tpu_custom_call.1} parent=11 // pred_check_branch
          %419 = sbr.rel (%p417) target = $region52
        $region51: #{tpu_custom_call.1} parent=11 // pred_region
          _
        $region52: #{tpu_custom_call.1} parent=11 // pred_fallthru
          _
        // Predicated region
        $region53: #{tpu_custom_call.1} parent=11 // pred_check
          %p420 = pneg %p307
        $region54: #{tpu_custom_call.1} parent=11 // pred_check_branch
          %422 = sbr.rel (%p420) target = $region56
        $region55: #{tpu_custom_call.1} parent=11 // pred_region
          _
        $region56: #{tpu_custom_call.1} parent=11 // pred_fallthru
          _
        // Predicated region
        $region57: #{tpu_custom_call.1} parent=11 // pred_check
          %p423 = pneg %p328
        $region58: #{tpu_custom_call.1} parent=11 // pred_check_branch
          %425 = sbr.rel (%p423) target = $region60
        $region59: #{tpu_custom_call.1} parent=11 // pred_region
          _
        $region60: #{tpu_custom_call.1} parent=11 // pred_fallthru
          _
        // Predicated region
        $region61: #{tpu_custom_call.1} parent=11 // pred_check
          %p426 = pneg %p349
        $region62: #{tpu_custom_call.1} parent=11 // pred_check_branch
          %428 = sbr.rel (%p426) target = $region64
        $region63: #{tpu_custom_call.1} parent=11 // pred_region
          _
        $region64: #{tpu_custom_call.1} parent=11 // pred_fallthru
          _
      $region12: #{tpu_custom_call.1} parent=5 // pred_fallthru
        _
      %p429 = scmp.lt.s32.totalorder %s24, 2
      // Predicated region
      $region65: #{tpu_custom_call.1} parent=5 // pred_check
        %p430 = pneg %p429
      $region66: #{tpu_custom_call.1} parent=5 // pred_check_branch
        %432 = sbr.rel (%p430) target = $region68
      $region67: #{tpu_custom_call.1} parent=5 // pred_region
        // Predicated region
        $region69: #{tpu_custom_call.1} parent=67 // pred_check
          %p433 = pneg %p44
        $region70: #{tpu_custom_call.1} parent=67 // pred_check_branch
          %435 = sbr.rel (%p433) target = $region72
        $region71: #{tpu_custom_call.1} parent=67 // pred_region
          %p436 = scmp.lt.s32.totalorder %s24, 1
          %s437 = scalar_select %p436, %s24, 1
          %s438 = smul.addr %s437, 24
          %s439 = smul.addr %s438, 8
          %s440 = scalar_lea.vmem %s0, %s439
        $region72: #{tpu_custom_call.1} parent=67 // pred_fallthru
          _
        // Predicated region
        $region73: #{tpu_custom_call.1} parent=67 // pred_check
          %p441 = pneg %p70
        $region74: #{tpu_custom_call.1} parent=67 // pred_check_branch
          %443 = sbr.rel (%p441) target = $region76
        $region75: #{tpu_custom_call.1} parent=67 // pred_region
          %p444 = scmp.lt.s32.totalorder %s24, 1
          %s445 = scalar_select %p444, %s24, 1
          %s446 = smul.addr %s445, 8
          %s447 = smul.addr %s446, 8
          %s448 = scalar_lea.vmem %s1, %s447
        $region76: #{tpu_custom_call.1} parent=67 // pred_fallthru
          _
      $region68: #{tpu_custom_call.1} parent=5 // pred_fallthru
        _
      %p449 = scmp.le.s32.totalorder 1, %s24
      %p450 = scmp.lt.s32.totalorder %s24, 3
      %p451 = pnand %p449, %p450
      %p452 = pneg %p451
      // Predicated region
      $region77: #{tpu_custom_call.1} parent=5 // pred_check
        _
      $region78: #{tpu_custom_call.1} parent=5 // pred_check_branch
        %454 = sbr.rel (%p451) target = $region80
      $region79: #{tpu_custom_call.1} parent=5 // pred_region
        %s455 = ssub.s32 %s24, 1
        %p456 = scmp.lt.s32.totalorder %s29, 1
        %s457 = scalar_select %p456, %s29, 1
        %s458 = smul.addr %s457, 24
        %s459 = smul.addr %s458, 8
        %s460 = scalar_lea.vmem %s0, %s459
        %p461 = pneg %p50
        %p462 = pneg %p47
        %p463 = scmp.lt.s32.totalorder %s29, 1
        %s464 = scalar_select %p463, %s29, 1
        %s465 = smul.addr %s464, 8
        %s466 = smul.addr %s465, 8
        %s467 = scalar_lea.vmem %s1, %s466
        %p468 = pneg %p76
        %p469 = pneg %p73
        %p470 = pneg %p97
        %p471 = pneg %p94
        %p472 = pneg %p118
        %p473 = pneg %p115
        %p474 = pneg %p139
        %p475 = pneg %p136
        %p476 = pneg %p160
        %p477 = pneg %p157
        %p478 = pneg %p181
        %p479 = pneg %p178
        %p480 = pneg %p202
        %p481 = pneg %p199
        %p482 = pneg %p223
        %p483 = pneg %p220
        %p484 = pneg %p244
        %p485 = pneg %p241
        %p486 = pneg %p265
        %p487 = pneg %p262
        %p488 = pneg %p286
        %p489 = pneg %p283
        %p490 = pneg %p307
        %p491 = pneg %p304
        %p492 = pneg %p328
        %p493 = pneg %p325
        %p494 = pneg %p349
        %p495 = pneg %p346
        %p496 = pneg %p375
        %p497 = pneg %p372
        %s498 = sand.u32 %s362, 1
        %s499 = scalar_lea.sflag [#allocation4], %s498
        %s500 = sand.u32 %s362, 1
        %s501 = smul.addr %s500, 64
        %s502 = scalar_lea.vmem [#allocation3], %s501
        %p503 = scmp.lt.s32.totalorder %s29, 1
        %s504 = scalar_select %p503, %s29, 1
        %s505 = smul.addr %s504, 24
        %s506 = smul.addr %s505, 8
        %s507 = scalar_lea.vmem %s0, %s506
        %p508 = scmp.lt.s32.totalorder %s29, 1
        %s509 = scalar_select %p508, %s29, 1
        %s510 = smul.addr %s509, 8
        %s511 = smul.addr %s510, 8
        %s512 = scalar_lea.vmem %s1, %s511
        %v513 = vld [vmem:[%s507] sm:$0xff]
        %v514 = vld [vmem:[%s507 + $0x8] sm:$0xff]
        %v515 = vld [vmem:[%s507 + $0x10] sm:$0xff]
        %v516 = vld [vmem:[%s507 + $0x18] sm:$0xff]
        %v517 = vld [vmem:[%s507 + $0x20] sm:$0xff]
        %v518 = vld [vmem:[%s507 + $0x28] sm:$0xff]
        %v519 = vld [vmem:[%s507 + $0x30] sm:$0xff]
        %v520 = vld [vmem:[%s507 + $0x38] sm:$0xff]
        %v521 = vld [vmem:[%s507 + $0x40] sm:$0xff]
        %v522 = vld [vmem:[%s507 + $0x48] sm:$0xff]
        %v523 = vld [vmem:[%s507 + $0x50] sm:$0xff]
        %v524 = vld [vmem:[%s507 + $0x58] sm:$0xff]
        %v525 = vld [vmem:[%s507 + $0x60] sm:$0xff]
        %v526 = vld [vmem:[%s507 + $0x68] sm:$0xff]
        %v527 = vld [vmem:[%s507 + $0x70] sm:$0xff]
        %v528 = vld [vmem:[%s507 + $0x78] sm:$0xff]
        %v529 = vld [vmem:[%s507 + $0x80] sm:$0xff]
        %v530 = vld [vmem:[%s507 + $0x88] sm:$0xff]
        %v531 = vld [vmem:[%s507 + $0x90] sm:$0xff]
        %v532 = vld [vmem:[%s507 + $0x98] sm:$0xff]
        %v533 = vld [vmem:[%s507 + $0xa0] sm:$0xff]
        %v534 = vld [vmem:[%s507 + $0xa8] sm:$0xff]
        %v535 = vld [vmem:[%s507 + $0xb0] sm:$0xff]
        %v536 = vld [vmem:[%s507 + $0xb8] sm:$0xff]
        %v537 = vld [vmem:[%s2] sm:$0xff]
        %v538 = vld [vmem:[%s2 + $0x8] sm:$0xff]
        %v539 = vld [vmem:[%s2 + $0x10] sm:$0xff]
        %v540 = vld [vmem:[%s2 + $0x18] sm:$0xff]
        %v541 = vld [vmem:[%s2 + $0x20] sm:$0xff]
        %v542 = vld [vmem:[%s2 + $0x28] sm:$0xff]
        %v543 = vld [vmem:[%s2 + $0x30] sm:$0xff]
        %v544 = vld [vmem:[%s2 + $0x38] sm:$0xff]
        %v545 = vld [vmem:[%s2 + $0x40] sm:$0xff]
        %v546 = vld [vmem:[%s2 + $0x48] sm:$0xff]
        %v547 = vld [vmem:[%s2 + $0x50] sm:$0xff]
        %v548 = vld [vmem:[%s2 + $0x58] sm:$0xff]
        %v549 = vld [vmem:[%s2 + $0x60] sm:$0xff]
        %v550 = vld [vmem:[%s2 + $0x68] sm:$0xff]
        %v551 = vld [vmem:[%s2 + $0x70] sm:$0xff]
        %v552 = vld [vmem:[%s2 + $0x78] sm:$0xff]
        %v553 = vld [vmem:[%s2 + $0x80] sm:$0xff]
        %v554 = vld [vmem:[%s2 + $0x88] sm:$0xff]
        %v555 = vld [vmem:[%s2 + $0x90] sm:$0xff]
        %v556 = vld [vmem:[%s2 + $0x98] sm:$0xff]
        %v557 = vld [vmem:[%s2 + $0xa0] sm:$0xff]
        %v558 = vld [vmem:[%s2 + $0xa8] sm:$0xff]
        %v559 = vld [vmem:[%s2 + $0xb0] sm:$0xff]
        %v560 = vld [vmem:[%s2 + $0xb8] sm:$0xff]
        %v561 = vld [vmem:[%s2 + $0xc0] sm:$0xff]
        %v562 = vld [vmem:[%s2 + $0xc8] sm:$0xff]
        %v563 = vld [vmem:[%s2 + $0xd0] sm:$0xff]
        %v564 = vld [vmem:[%s2 + $0xd8] sm:$0xff]
        %v565 = vld [vmem:[%s2 + $0xe0] sm:$0xff]
        %v566 = vld [vmem:[%s2 + $0xe8] sm:$0xff]
        %v567 = vld [vmem:[%s2 + $0xf0] sm:$0xff]
        %v568 = vld [vmem:[%s2 + $0xf8] sm:$0xff]
        %v569 = vld [vmem:[%s2 + $0x100] sm:$0xff]
        %v570 = vld [vmem:[%s2 + $0x108] sm:$0xff]
        %v571 = vld [vmem:[%s2 + $0x110] sm:$0xff]
        %v572 = vld [vmem:[%s2 + $0x118] sm:$0xff]
        %vm573 = vcmask 261120
        %v575 = vsel %vm573, %v515, 0
        %v578 = vsel %vm573, %v518, 0
        %v581 = vsel %vm573, %v521, 0
        %v584 = vsel %vm573, %v524, 0
        %v587 = vsel %vm573, %v527, 0
        %v590 = vsel %vm573, %v530, 0
        %v593 = vsel %vm573, %v533, 0
        %v596 = vsel %vm573, %v536, 0
        %598 = vmatprep.subr.mxu0 0.0
        %v599 = vand.u32 %v537, 4294901760
        %600 = vmatpush1.msra.mxu0 %v599
        %601 = vmatprep.subr.mxu0 0.0
        %v602 = vand.u32 %v538, 4294901760
        %603 = vmatpush1.msra.mxu0 %v602
        %604 = vmatprep.subr.mxu0 0.0
        %v605 = vand.u32 %v539, 4294901760
        %606 = vmatpush1.msra.mxu0 %v605
        %607 = vmatprep.subr.mxu0 0.0
        %v608 = vand.u32 %v540, 4294901760
        %609 = vmatpush1.msra.mxu0 %v608
        %610 = vmatprep.subr.mxu0 0.0
        %v611 = vand.u32 %v541, 4294901760
        %612 = vmatpush1.msra.mxu0 %v611
        %613 = vmatprep.subr.mxu0 0.0
        %v614 = vand.u32 %v542, 4294901760
        %615 = vmatpush1.msra.mxu0 %v614
        %616 = vmatprep.subr.mxu0 0.0
        %v617 = vand.u32 %v543, 4294901760
        %618 = vmatpush1.msra.mxu0 %v617
        %619 = vmatprep.subr.mxu0 0.0
        %v620 = vand.u32 %v544, 4294901760
        %621 = vmatpush1.msra.mxu0 %v620
        %622 = vmatprep.subr.mxu0 0.0
        %v623 = vand.u32 %v545, 4294901760
        %624 = vmatpush1.msra.mxu0 %v623
        %625 = vmatprep.subr.mxu0 0.0
        %v626 = vand.u32 %v546, 4294901760
        %627 = vmatpush1.msra.mxu0 %v626
        %628 = vmatprep.subr.mxu0 0.0
        %v629 = vand.u32 %v547, 4294901760
        %630 = vmatpush1.msra.mxu0 %v629
        %631 = vmatprep.subr.mxu0 0.0
        %v632 = vand.u32 %v548, 4294901760
        %633 = vmatpush1.msra.mxu0 %v632
        %634 = vmatprep.subr.mxu0 0.0
        %v635 = vand.u32 %v549, 4294901760
        %636 = vmatpush1.msra.mxu0 %v635
        %637 = vmatprep.subr.mxu0 0.0
        %v638 = vand.u32 %v550, 4294901760
        %639 = vmatpush1.msra.mxu0 %v638
        %640 = vmatprep.subr.mxu0 0.0
        %v641 = vand.u32 %v551, 4294901760
        %642 = vmatpush1.msra.mxu0 %v641
        %643 = vmatprep.subr.mxu0 0.0
        %v644 = vand.u32 %v552, 4294901760
        %645 = vmatpush1.msra.mxu0 %v644
        %646 = vmatprep.subr.mxu0 0.0
        %v647 = vand.u32 %v553, 4294901760
        %648 = vmatpush1.msra.mxu0 %v647
        %649 = vmatprep.subr.mxu0 0.0
        %v650 = vand.u32 %v554, 4294901760
        %651 = vmatpush1.msra.mxu0 %v650
        %652 = vmatprep.subr.mxu0 0.0
        %v653 = vand.u32 %v555, 4294901760
        %654 = vmatpush1.msra.mxu0 %v653
        %655 = vmatprep.subr.mxu0 0.0
        %v656 = vand.u32 %v556, 4294901760
        %657 = vmatpush1.msra.mxu0 %v656
        %658 = vmatprep.subr.mxu0 0.0
        %v659 = vand.u32 %v557, 4294901760
        %660 = vmatpush1.msra.mxu0 %v659
        %661 = vmatprep.subr.mxu0 0.0
        %v662 = vand.u32 %v558, 4294901760
        %663 = vmatpush1.msra.mxu0 %v662
        %664 = vmatprep.subr.mxu0 0.0
        %v665 = vand.u32 %v559, 4294901760
        %666 = vmatpush1.msra.mxu0 %v665
        %667 = vmatprep.subr.mxu0 0.0
        %v668 = vand.u32 %v560, 4294901760
        %669 = vmatpush1.msra.mxu0 %v668
        %670 = vmatprep.subr.mxu0 0.0
        %v671 = vand.u32 %v561, 4294901760
        %672 = vmatpush1.msra.mxu0 %v671
        %673 = vmatprep.subr.mxu0 0.0
        %v674 = vand.u32 %v562, 4294901760
        %675 = vmatpush1.msra.mxu0 %v674
        %676 = vmatprep.subr.mxu0 0.0
        %v677 = vand.u32 %v563, 4294901760
        %678 = vmatpush1.msra.mxu0 %v677
        %679 = vmatprep.subr.mxu0 0.0
        %v680 = vand.u32 %v564, 4294901760
        %681 = vmatpush1.msra.mxu0 %v680
        %682 = vmatprep.subr.mxu0 0.0
        %v683 = vand.u32 %v565, 4294901760
        %684 = vmatpush1.msra.mxu0 %v683
        %685 = vmatprep.subr.mxu0 0.0
        %v686 = vand.u32 %v566, 4294901760
        %687 = vmatpush1.msra.mxu0 %v686
        %688 = vmatprep.subr.mxu0 0.0
        %v689 = vand.u32 %v567, 4294901760
        %690 = vmatpush1.msra.mxu0 %v689
        %691 = vmatprep.subr.mxu0 0.0
        %v692 = vand.u32 %v568, 4294901760
        %693 = vmatpush1.msra.mxu0 %v692
        %v694 = vand.u32 %v514, 4294901760
        %v695 = vsub.f32 %v514, %v694
        %v696 = vand.u32 %v695, 4294901760
        %v697 = vsub.f32 %v695, %v696
        %v698 = vand.u32 %v697, 4294901760
        %699 = vmatprep.mubr.f32.mxu0 %v698
        %v700 = vand.u32 %v513, 4294901760
        %v701 = vsub.f32 %v513, %v700
        %v702 = vand.u32 %v701, 4294901760
        %v703 = vsub.f32 %v701, %v702
        %v704 = vand.u32 %v703, 4294901760
        %705 = vmatmul.mubr.f32.gmra.mrb[0].mxu0 %v704
        %v706 = vpop.f32.mrb[0].mxu0
        %v707 = vadd.f32 0.0, %v706
        %v708 = vpop.f32.mrb[0].mxu0
        %v709 = vand.u32 %v517, 4294901760
        %v710 = vsub.f32 %v517, %v709
        %v711 = vand.u32 %v710, 4294901760
        %v712 = vsub.f32 %v710, %v711
        %v713 = vand.u32 %v712, 4294901760
        %714 = vmatprep.mubr.f32.mxu0 %v713
        %v715 = vand.u32 %v516, 4294901760
        %v716 = vsub.f32 %v516, %v715
        %v717 = vand.u32 %v716, 4294901760
        %v718 = vsub.f32 %v716, %v717
        %v719 = vand.u32 %v718, 4294901760
        %720 = vmatmul.mubr.f32.gmra.mrb[0].mxu0 %v719
        %v721 = vpop.f32.mrb[0].mxu0
        %v722 = vadd.f32 0.0, %v721
        %v723 = vpop.f32.mrb[0].mxu0
        %v724 = vand.u32 %v520, 4294901760
        %v725 = vsub.f32 %v520, %v724
        %v726 = vand.u32 %v725, 4294901760
        %v727 = vsub.f32 %v725, %v726
        %v728 = vand.u32 %v727, 4294901760
        %729 = vmatprep.mubr.f32.mxu0 %v728
        %v730 = vand.u32 %v519, 4294901760
        %v731 = vsub.f32 %v519, %v730
        %v732 = vand.u32 %v731, 4294901760
        %v733 = vsub.f32 %v731, %v732
        %v734 = vand.u32 %v733, 4294901760
        %735 = vmatmul.mubr.f32.gmra.mrb[0].mxu0 %v734
        %v736 = vpop.f32.mrb[0].mxu0
        %v737 = vadd.f32 0.0, %v736
        %v738 = vpop.f32.mrb[0].mxu0
        %v739 = vand.u32 %v523, 4294901760
        %v740 = vsub.f32 %v523, %v739
        %v741 = vand.u32 %v740, 4294901760
        %v742 = vsub.f32 %v740, %v741
        %v743 = vand.u32 %v742, 4294901760
        %744 = vmatprep.mubr.f32.mxu0 %v743
        %v745 = vand.u32 %v522, 4294901760
        %v746 = vsub.f32 %v522, %v745
        %v747 = vand.u32 %v746, 4294901760
        %v748 = vsub.f32 %v746, %v747
        %v749 = vand.u32 %v748, 4294901760
        %750 = vmatmul.mubr.f32.gmra.mrb[0].mxu0 %v749
        %v751 = vpop.f32.mrb[0].mxu0
        %v752 = vadd.f32 0.0, %v751
        %v753 = vpop.f32.mrb[0].mxu0
        %v754 = vand.u32 %v526, 4294901760
        %v755 = vsub.f32 %v526, %v754
        %v756 = vand.u32 %v755, 4294901760
        %v757 = vsub.f32 %v755, %v756
        %v758 = vand.u32 %v757, 4294901760
        %759 = vmatprep.mubr.f32.mxu0 %v758
        %v760 = vand.u32 %v525, 4294901760
        %v761 = vsub.f32 %v525, %v760
        %v762 = vand.u32 %v761, 4294901760
        %v763 = vsub.f32 %v761, %v762
        %v764 = vand.u32 %v763, 4294901760
        %765 = vmatmul.mubr.f32.gmra.mrb[0].mxu0 %v764
        %v766 = vpop.f32.mrb[0].mxu0
        %v767 = vadd.f32 0.0, %v766
        %v768 = vpop.f32.mrb[0].mxu0
        %v769 = vand.u32 %v529, 4294901760
        %v770 = vsub.f32 %v529, %v769
        %v771 = vand.u32 %v770, 4294901760
        %v772 = vsub.f32 %v770, %v771
        %v773 = vand.u32 %v772, 4294901760
        %774 = vmatprep.mubr.f32.mxu0 %v773
        %v775 = vand.u32 %v528, 4294901760
        %v776 = vsub.f32 %v528, %v775
        %v777 = vand.u32 %v776, 4294901760
        %v778 = vsub.f32 %v776, %v777
        %v779 = vand.u32 %v778, 4294901760
        %780 = vmatmul.mubr.f32.gmra.mrb[0].mxu0 %v779
        %v781 = vpop.f32.mrb[0].mxu0
        %v782 = vadd.f32 0.0, %v781
        %v783 = vpop.f32.mrb[0].mxu0
        %v784 = vand.u32 %v532, 4294901760
        %v785 = vsub.f32 %v532, %v784
        %v786 = vand.u32 %v785, 4294901760
        %v787 = vsub.f32 %v785, %v786
        %v788 = vand.u32 %v787, 4294901760
        %789 = vmatprep.mubr.f32.mxu0 %v788
        %v790 = vand.u32 %v531, 4294901760
        %v791 = vsub.f32 %v531, %v790
        %v792 = vand.u32 %v791, 4294901760
        %v793 = vsub.f32 %v791, %v792
        %v794 = vand.u32 %v793, 4294901760
        %795 = vmatmul.mubr.f32.gmra.mrb[0].mxu0 %v794
        %v796 = vpop.f32.mrb[0].mxu0
        %v797 = vadd.f32 0.0, %v796
        %v798 = vpop.f32.mrb[0].mxu0
        %v799 = vand.u32 %v535, 4294901760
        %v800 = vsub.f32 %v535, %v799
        %v801 = vand.u32 %v800, 4294901760
        %v802 = vsub.f32 %v800, %v801
        %v803 = vand.u32 %v802, 4294901760
        %804 = vmatprep.mubr.f32.mxu0 %v803
        %v805 = vand.u32 %v534, 4294901760
        %v806 = vsub.f32 %v534, %v805
        %v807 = vand.u32 %v806, 4294901760
        %v808 = vsub.f32 %v806, %v807
        %v809 = vand.u32 %v808, 4294901760
        %810 = vmatmul.mubr.f32.gmra.mrb[0].mxu0 %v809
        %v811 = vpop.f32.mrb[0].mxu0
        %v812 = vadd.f32 0.0, %v811
        %v813 = vpop.f32.mrb[0].mxu0
        %814 = vdwg.mxu0
        %815 = vmatprep.subr.mxu0 0.0
        %v816 = vand.u32 %v537, 4294901760
        %v817 = vsub.f32 %v537, %v816
        %v818 = vand.u32 %v817, 4294901760
        %v819 = vsub.f32 %v817, %v818
        %v820 = vand.u32 %v819, 4294901760
        %821 = vmatpush1.msra.mxu0 %v820
        %822 = vmatprep.subr.mxu0 0.0
        %v823 = vand.u32 %v538, 4294901760
        %v824 = vsub.f32 %v538, %v823
        %v825 = vand.u32 %v824, 4294901760
        %v826 = vsub.f32 %v824, %v825
        %v827 = vand.u32 %v826, 4294901760
        %828 = vmatpush1.msra.mxu0 %v827
        %829 = vmatprep.subr.mxu0 0.0
        %v830 = vand.u32 %v539, 4294901760
        %v831 = vsub.f32 %v539, %v830
        %v832 = vand.u32 %v831, 4294901760
        %v833 = vsub.f32 %v831, %v832
        %v834 = vand.u32 %v833, 4294901760
        %835 = vmatpush1.msra.mxu0 %v834
        %836 = vmatprep.subr.mxu0 0.0
        %v837 = vand.u32 %v540, 4294901760
        %v838 = vsub.f32 %v540, %v837
        %v839 = vand.u32 %v838, 4294901760
        %v840 = vsub.f32 %v838, %v839
        %v841 = vand.u32 %v840, 4294901760
        %842 = vmatpush1.msra.mxu0 %v841
        %843 = vmatprep.subr.mxu0 0.0
        %v844 = vand.u32 %v541, 4294901760
        %v845 = vsub.f32 %v541, %v844
        %v846 = vand.u32 %v845, 4294901760
        %v847 = vsub.f32 %v845, %v846
        %v848 = vand.u32 %v847, 4294901760
        %849 = vmatpush1.msra.mxu0 %v848
        %850 = vmatprep.subr.mxu0 0.0
        %v851 = vand.u32 %v542, 4294901760
        %v852 = vsub.f32 %v542, %v851
        %v853 = vand.u32 %v852, 4294901760
        %v854 = vsub.f32 %v852, %v853
        %v855 = vand.u32 %v854, 4294901760
        %856 = vmatpush1.msra.mxu0 %v855
        %857 = vmatprep.subr.mxu0 0.0
        %v858 = vand.u32 %v543, 4294901760
        %v859 = vsub.f32 %v543, %v858
        %v860 = vand.u32 %v859, 4294901760
        %v861 = vsub.f32 %v859, %v860
        %v862 = vand.u32 %v861, 4294901760
        %863 = vmatpush1.msra.mxu0 %v862
        %864 = vmatprep.subr.mxu0 0.0
        %v865 = vand.u32 %v544, 4294901760
        %v866 = vsub.f32 %v544, %v865
        %v867 = vand.u32 %v866, 4294901760
        %v868 = vsub.f32 %v866, %v867
        %v869 = vand.u32 %v868, 4294901760
        %870 = vmatpush1.msra.mxu0 %v869
        %871 = vmatprep.subr.mxu0 0.0
        %v872 = vand.u32 %v545, 4294901760
        %v873 = vsub.f32 %v545, %v872
        %v874 = vand.u32 %v873, 4294901760
        %v875 = vsub.f32 %v873, %v874
        %v876 = vand.u32 %v875, 4294901760
        %877 = vmatpush1.msra.mxu0 %v876
        %878 = vmatprep.subr.mxu0 0.0
        %v879 = vand.u32 %v546, 4294901760
        %v880 = vsub.f32 %v546, %v879
        %v881 = vand.u32 %v880, 4294901760
        %v882 = vsub.f32 %v880, %v881
        %v883 = vand.u32 %v882, 4294901760
        %884 = vmatpush1.msra.mxu0 %v883
        %885 = vmatprep.subr.mxu0 0.0
        %v886 = vand.u32 %v547, 4294901760
        %v887 = vsub.f32 %v547, %v886
        %v888 = vand.u32 %v887, 4294901760
        %v889 = vsub.f32 %v887, %v888
        %v890 = vand.u32 %v889, 4294901760
        %891 = vmatpush1.msra.mxu0 %v890
        %892 = vmatprep.subr.mxu0 0.0
        %v893 = vand.u32 %v548, 4294901760
        %v894 = vsub.f32 %v548, %v893
        %v895 = vand.u32 %v894, 4294901760
        %v896 = vsub.f32 %v894, %v895
        %v897 = vand.u32 %v896, 4294901760
        %898 = vmatpush1.msra.mxu0 %v897
        %899 = vmatprep.subr.mxu0 0.0
        %v900 = vand.u32 %v549, 4294901760
        %v901 = vsub.f32 %v549, %v900
        %v902 = vand.u32 %v901, 4294901760
        %v903 = vsub.f32 %v901, %v902
        %v904 = vand.u32 %v903, 4294901760
        %905 = vmatpush1.msra.mxu0 %v904
        %906 = vmatprep.subr.mxu0 0.0
        %v907 = vand.u32 %v550, 4294901760
        %v908 = vsub.f32 %v550, %v907
        %v909 = vand.u32 %v908, 4294901760
        %v910 = vsub.f32 %v908, %v909
        %v911 = vand.u32 %v910, 4294901760
        %912 = vmatpush1.msra.mxu0 %v911
        %913 = vmatprep.subr.mxu0 0.0
        %v914 = vand.u32 %v551, 4294901760
        %v915 = vsub.f32 %v551, %v914
        %v916 = vand.u32 %v915, 4294901760
        %v917 = vsub.f32 %v915, %v916
        %v918 = vand.u32 %v917, 4294901760
        %919 = vmatpush1.msra.mxu0 %v918
        %920 = vmatprep.subr.mxu0 0.0
        %v921 = vand.u32 %v552, 4294901760
        %v922 = vsub.f32 %v552, %v921
        %v923 = vand.u32 %v922, 4294901760
        %v924 = vsub.f32 %v922, %v923
        %v925 = vand.u32 %v924, 4294901760
        %926 = vmatpush1.msra.mxu0 %v925
        %927 = vmatprep.subr.mxu0 0.0
        %v928 = vand.u32 %v553, 4294901760
        %v929 = vsub.f32 %v553, %v928
        %v930 = vand.u32 %v929, 4294901760
        %v931 = vsub.f32 %v929, %v930
        %v932 = vand.u32 %v931, 4294901760
        %933 = vmatpush1.msra.mxu0 %v932
        %934 = vmatprep.subr.mxu0 0.0
        %v935 = vand.u32 %v554, 4294901760
        %v936 = vsub.f32 %v554, %v935
        %v937 = vand.u32 %v936, 4294901760
        %v938 = vsub.f32 %v936, %v937
        %v939 = vand.u32 %v938, 4294901760
        %940 = vmatpush1.msra.mxu0 %v939
        %941 = vmatprep.subr.mxu0 0.0
        %v942 = vand.u32 %v555, 4294901760
        %v943 = vsub.f32 %v555, %v942
        %v944 = vand.u32 %v943, 4294901760
        %v945 = vsub.f32 %v943, %v944
        %v946 = vand.u32 %v945, 4294901760
        %947 = vmatpush1.msra.mxu0 %v946
        %948 = vmatprep.subr.mxu0 0.0
        %v949 = vand.u32 %v556, 4294901760
        %v950 = vsub.f32 %v556, %v949
        %v951 = vand.u32 %v950, 4294901760
        %v952 = vsub.f32 %v950, %v951
        %v953 = vand.u32 %v952, 4294901760
        %954 = vmatpush1.msra.mxu0 %v953
        %955 = vmatprep.subr.mxu0 0.0
        %v956 = vand.u32 %v557, 4294901760
        %v957 = vsub.f32 %v557, %v956
        %v958 = vand.u32 %v957, 4294901760
        %v959 = vsub.f32 %v957, %v958
        %v960 = vand.u32 %v959, 4294901760
        %961 = vmatpush1.msra.mxu0 %v960
        %962 = vmatprep.subr.mxu0 0.0
        %v963 = vand.u32 %v558, 4294901760
        %v964 = vsub.f32 %v558, %v963
        %v965 = vand.u32 %v964, 4294901760
        %v966 = vsub.f32 %v964, %v965
        %v967 = vand.u32 %v966, 4294901760
        %968 = vmatpush1.msra.mxu0 %v967
        %969 = vmatprep.subr.mxu0 0.0
        %v970 = vand.u32 %v559, 4294901760
        %v971 = vsub.f32 %v559, %v970
        %v972 = vand.u32 %v971, 4294901760
        %v973 = vsub.f32 %v971, %v972
        %v974 = vand.u32 %v973, 4294901760
        %975 = vmatpush1.msra.mxu0 %v974
        %976 = vmatprep.subr.mxu0 0.0
        %v977 = vand.u32 %v560, 4294901760
        %v978 = vsub.f32 %v560, %v977
        %v979 = vand.u32 %v978, 4294901760
        %v980 = vsub.f32 %v978, %v979
        %v981 = vand.u32 %v980, 4294901760
        %982 = vmatpush1.msra.mxu0 %v981
        %983 = vmatprep.subr.mxu0 0.0
        %v984 = vand.u32 %v561, 4294901760
        %v985 = vsub.f32 %v561, %v984
        %v986 = vand.u32 %v985, 4294901760
        %v987 = vsub.f32 %v985, %v986
        %v988 = vand.u32 %v987, 4294901760
        %989 = vmatpush1.msra.mxu0 %v988
        %990 = vmatprep.subr.mxu0 0.0
        %v991 = vand.u32 %v562, 4294901760
        %v992 = vsub.f32 %v562, %v991
        %v993 = vand.u32 %v992, 4294901760
        %v994 = vsub.f32 %v992, %v993
        %v995 = vand.u32 %v994, 4294901760
        %996 = vmatpush1.msra.mxu0 %v995
        %997 = vmatprep.subr.mxu0 0.0
        %v998 = vand.u32 %v563, 4294901760
        %v999 = vsub.f32 %v563, %v998
        %v1000 = vand.u32 %v999, 4294901760
        %v1001 = vsub.f32 %v999, %v1000
        %v1002 = vand.u32 %v1001, 4294901760
        %1003 = vmatpush1.msra.mxu0 %v1002
        %1004 = vmatprep.subr.mxu0 0.0
        %v1005 = vand.u32 %v564, 4294901760
        %v1006 = vsub.f32 %v564, %v1005
        %v1007 = vand.u32 %v1006, 4294901760
        %v1008 = vsub.f32 %v1006, %v1007
        %v1009 = vand.u32 %v1008, 4294901760
        %1010 = vmatpush1.msra.mxu0 %v1009
        %1011 = vmatprep.subr.mxu0 0.0
        %v1012 = vand.u32 %v565, 4294901760
        %v1013 = vsub.f32 %v565, %v1012
        %v1014 = vand.u32 %v1013, 4294901760
        %v1015 = vsub.f32 %v1013, %v1014
        %v1016 = vand.u32 %v1015, 4294901760
        %1017 = vmatpush1.msra.mxu0 %v1016
        %1018 = vmatprep.subr.mxu0 0.0
        %v1019 = vand.u32 %v566, 4294901760
        %v1020 = vsub.f32 %v566, %v1019
        %v1021 = vand.u32 %v1020, 4294901760
        %v1022 = vsub.f32 %v1020, %v1021
        %v1023 = vand.u32 %v1022, 4294901760
        %1024 = vmatpush1.msra.mxu0 %v1023
        %1025 = vmatprep.subr.mxu0 0.0
        %v1026 = vand.u32 %v567, 4294901760
        %v1027 = vsub.f32 %v567, %v1026
        %v1028 = vand.u32 %v1027, 4294901760
        %v1029 = vsub.f32 %v1027, %v1028
        %v1030 = vand.u32 %v1029, 4294901760
        %1031 = vmatpush1.msra.mxu0 %v1030
        %1032 = vmatprep.subr.mxu0 0.0
        %v1033 = vand.u32 %v568, 4294901760
        %v1034 = vsub.f32 %v568, %v1033
        %v1035 = vand.u32 %v1034, 4294901760
        %v1036 = vsub.f32 %v1034, %v1035
        %v1037 = vand.u32 %v1036, 4294901760
        %1038 = vmatpush1.msra.mxu0 %v1037
        %v1039 = vand.u32 %v514, 4294901760
        %1040 = vmatprep.mubr.f32.mxu0 %v1039
        %v1041 = vand.u32 %v513, 4294901760
        %1042 = vmatmul.mubr.f32.gmra.mrb[0].mxu0 %v1041
        %v1043 = vpop.f32.mrb[0].mxu0
        %v1044 = vadd.f32 %v707, %v1043
        %v1045 = vpop.f32.mrb[0].mxu0
        %v1046 = vand.u32 %v517, 4294901760
        %1047 = vmatprep.mubr.f32.mxu0 %v1046
        %v1048 = vand.u32 %v516, 4294901760
        %1049 = vmatmul.mubr.f32.gmra.mrb[0].mxu0 %v1048
        %v1050 = vpop.f32.mrb[0].mxu0
        %v1051 = vadd.f32 %v722, %v1050
        %v1052 = vpop.f32.mrb[0].mxu0
        %v1053 = vand.u32 %v520, 4294901760
        %1054 = vmatprep.mubr.f32.mxu0 %v1053
        %v1055 = vand.u32 %v519, 4294901760
        %1056 = vmatmul.mubr.f32.gmra.mrb[0].mxu0 %v1055
        %v1057 = vpop.f32.mrb[0].mxu0
        %v1058 = vadd.f32 %v737, %v1057
        %v1059 = vpop.f32.mrb[0].mxu0
        %v1060 = vand.u32 %v523, 4294901760
        %1061 = vmatprep.mubr.f32.mxu0 %v1060
        %v1062 = vand.u32 %v522, 4294901760
        %1063 = vmatmul.mubr.f32.gmra.mrb[0].mxu0 %v1062
        %v1064 = vpop.f32.mrb[0].mxu0
        %v1065 = vadd.f32 %v752, %v1064
        %v1066 = vpop.f32.mrb[0].mxu0
        %v1067 = vand.u32 %v526, 4294901760
        %1068 = vmatprep.mubr.f32.mxu0 %v1067
        %v1069 = vand.u32 %v525, 4294901760
        %1070 = vmatmul.mubr.f32.gmra.mrb[0].mxu0 %v1069
        %v1071 = vpop.f32.mrb[0].mxu0
        %v1072 = vadd.f32 %v767, %v1071
        %v1073 = vpop.f32.mrb[0].mxu0
        %v1074 = vand.u32 %v529, 4294901760
        %1075 = vmatprep.mubr.f32.mxu0 %v1074
        %v1076 = vand.u32 %v528, 4294901760
        %1077 = vmatmul.mubr.f32.gmra.mrb[0].mxu0 %v1076
        %v1078 = vpop.f32.mrb[0].mxu0
        %v1079 = vadd.f32 %v782, %v1078
        %v1080 = vpop.f32.mrb[0].mxu0
        %v1081 = vand.u32 %v532, 4294901760
        %1082 = vmatprep.mubr.f32.mxu0 %v1081
        %v1083 = vand.u32 %v531, 4294901760
        %1084 = vmatmul.mubr.f32.gmra.mrb[0].mxu0 %v1083
        %v1085 = vpop.f32.mrb[0].mxu0
        %v1086 = vadd.f32 %v797, %v1085
        %v1087 = vpop.f32.mrb[0].mxu0
        %v1088 = vand.u32 %v535, 4294901760
        %1089 = vmatprep.mubr.f32.mxu0 %v1088
        %v1090 = vand.u32 %v534, 4294901760
        %1091 = vmatmul.mubr.f32.gmra.mrb[0].mxu0 %v1090
        %v1092 = vpop.f32.mrb[0].mxu0
        %v1093 = vadd.f32 %v812, %v1092
        %v1094 = vpop.f32.mrb[0].mxu0
        %1095 = vdwg.mxu0
        %1096 = vmatprep.subr.mxu0 0.0
        %v1097 = vand.u32 %v537, 4294901760
        %v1098 = vsub.f32 %v537, %v1097
        %1099 = vmatpush1.msra.mxu0 %v1098
        %1100 = vmatprep.subr.mxu0 0.0
        %v1101 = vand.u32 %v538, 4294901760
        %v1102 = vsub.f32 %v538, %v1101
        %1103 = vmatpush1.msra.mxu0 %v1102
        %1104 = vmatprep.subr.mxu0 0.0
        %v1105 = vand.u32 %v539, 4294901760
        %v1106 = vsub.f32 %v539, %v1105
        %1107 = vmatpush1.msra.mxu0 %v1106
        %1108 = vmatprep.subr.mxu0 0.0
        %v1109 = vand.u32 %v540, 4294901760
        %v1110 = vsub.f32 %v540, %v1109
        %1111 = vmatpush1.msra.mxu0 %v1110
        %1112 = vmatprep.subr.mxu0 0.0
        %v1113 = vand.u32 %v541, 4294901760
        %v1114 = vsub.f32 %v541, %v1113
        %1115 = vmatpush1.msra.mxu0 %v1114
        %1116 = vmatprep.subr.mxu0 0.0
        %v1117 = vand.u32 %v542, 4294901760
        %v1118 = vsub.f32 %v542, %v1117
        %1119 = vmatpush1.msra.mxu0 %v1118
        %1120 = vmatprep.subr.mxu0 0.0
        %v1121 = vand.u32 %v543, 4294901760
        %v1122 = vsub.f32 %v543, %v1121
        %1123 = vmatpush1.msra.mxu0 %v1122
        %1124 = vmatprep.subr.mxu0 0.0
        %v1125 = vand.u32 %v544, 4294901760
        %v1126 = vsub.f32 %v544, %v1125
        %1127 = vmatpush1.msra.mxu0 %v1126
        %1128 = vmatprep.subr.mxu0 0.0
        %v1129 = vand.u32 %v545, 4294901760
        %v1130 = vsub.f32 %v545, %v1129
        %1131 = vmatpush1.msra.mxu0 %v1130
        %1132 = vmatprep.subr.mxu0 0.0
        %v1133 = vand.u32 %v546, 4294901760
        %v1134 = vsub.f32 %v546, %v1133
        %1135 = vmatpush1.msra.mxu0 %v1134
        %1136 = vmatprep.subr.mxu0 0.0
        %v1137 = vand.u32 %v547, 4294901760
        %v1138 = vsub.f32 %v547, %v1137
        %1139 = vmatpush1.msra.mxu0 %v1138
        %1140 = vmatprep.subr.mxu0 0.0
        %v1141 = vand.u32 %v548, 4294901760
        %v1142 = vsub.f32 %v548, %v1141
        %1143 = vmatpush1.msra.mxu0 %v1142
        %1144 = vmatprep.subr.mxu0 0.0
        %v1145 = vand.u32 %v549, 4294901760
        %v1146 = vsub.f32 %v549, %v1145
        %1147 = vmatpush1.msra.mxu0 %v1146
        %1148 = vmatprep.subr.mxu0 0.0
        %v1149 = vand.u32 %v550, 4294901760
        %v1150 = vsub.f32 %v550, %v1149
        %1151 = vmatpush1.msra.mxu0 %v1150
        %1152 = vmatprep.subr.mxu0 0.0
        %v1153 = vand.u32 %v551, 4294901760
        %v1154 = vsub.f32 %v551, %v1153
        %1155 = vmatpush1.msra.mxu0 %v1154
        %1156 = vmatprep.subr.mxu0 0.0
        %v1157 = vand.u32 %v552, 4294901760
        %v1158 = vsub.f32 %v552, %v1157
        %1159 = vmatpush1.msra.mxu0 %v1158
        %1160 = vmatprep.subr.mxu0 0.0
        %v1161 = vand.u32 %v553, 4294901760
        %v1162 = vsub.f32 %v553, %v1161
        %1163 = vmatpush1.msra.mxu0 %v1162
        %1164 = vmatprep.subr.mxu0 0.0
        %v1165 = vand.u32 %v554, 4294901760
        %v1166 = vsub.f32 %v554, %v1165
        %1167 = vmatpush1.msra.mxu0 %v1166
        %1168 = vmatprep.subr.mxu0 0.0
        %v1169 = vand.u32 %v555, 4294901760
        %v1170 = vsub.f32 %v555, %v1169
        %1171 = vmatpush1.msra.mxu0 %v1170
        %1172 = vmatprep.subr.mxu0 0.0
        %v1173 = vand.u32 %v556, 4294901760
        %v1174 = vsub.f32 %v556, %v1173
        %1175 = vmatpush1.msra.mxu0 %v1174
        %1176 = vmatprep.subr.mxu0 0.0
        %v1177 = vand.u32 %v557, 4294901760
        %v1178 = vsub.f32 %v557, %v1177
        %1179 = vmatpush1.msra.mxu0 %v1178
        %1180 = vmatprep.subr.mxu0 0.0
        %v1181 = vand.u32 %v558, 4294901760
        %v1182 = vsub.f32 %v558, %v1181
        %1183 = vmatpush1.msra.mxu0 %v1182
        %1184 = vmatprep.subr.mxu0 0.0
        %v1185 = vand.u32 %v559, 4294901760
        %v1186 = vsub.f32 %v559, %v1185
        %1187 = vmatpush1.msra.mxu0 %v1186
        %1188 = vmatprep.subr.mxu0 0.0
        %v1189 = vand.u32 %v560, 4294901760
        %v1190 = vsub.f32 %v560, %v1189
        %1191 = vmatpush1.msra.mxu0 %v1190
        %1192 = vmatprep.subr.mxu0 0.0
        %v1193 = vand.u32 %v561, 4294901760
        %v1194 = vsub.f32 %v561, %v1193
        %1195 = vmatpush1.msra.mxu0 %v1194
        %1196 = vmatprep.subr.mxu0 0.0
        %v1197 = vand.u32 %v562, 4294901760
        %v1198 = vsub.f32 %v562, %v1197
        %1199 = vmatpush1.msra.mxu0 %v1198
        %1200 = vmatprep.subr.mxu0 0.0
        %v1201 = vand.u32 %v563, 4294901760
        %v1202 = vsub.f32 %v563, %v1201
        %1203 = vmatpush1.msra.mxu0 %v1202
        %1204 = vmatprep.subr.mxu0 0.0
        %v1205 = vand.u32 %v564, 4294901760
        %v1206 = vsub.f32 %v564, %v1205
        %1207 = vmatpush1.msra.mxu0 %v1206
        %1208 = vmatprep.subr.mxu0 0.0
        %v1209 = vand.u32 %v565, 4294901760
        %v1210 = vsub.f32 %v565, %v1209
        %1211 = vmatpush1.msra.mxu0 %v1210
        %1212 = vmatprep.subr.mxu0 0.0
        %v1213 = vand.u32 %v566, 4294901760
        %v1214 = vsub.f32 %v566, %v1213
        %1215 = vmatpush1.msra.mxu0 %v1214
        %1216 = vmatprep.subr.mxu0 0.0
        %v1217 = vand.u32 %v567, 4294901760
        %v1218 = vsub.f32 %v567, %v1217
        %1219 = vmatpush1.msra.mxu0 %v1218
        %1220 = vmatprep.subr.mxu0 0.0
        %v1221 = vand.u32 %v568, 4294901760
        %v1222 = vsub.f32 %v568, %v1221
        %1223 = vmatpush1.msra.mxu0 %v1222
        %v1224 = vand.u32 %v514, 4294901760
        %v1225 = vsub.f32 %v514, %v1224
        %1226 = vmatprep.mubr.f32.mxu0 %v1225
        %v1227 = vand.u32 %v513, 4294901760
        %v1228 = vsub.f32 %v513, %v1227
        %1229 = vmatmul.mubr.f32.gmra.mrb[0].mxu0 %v1228
        %v1230 = vpop.f32.mrb[0].mxu0
        %v1231 = vadd.f32 %v1044, %v1230
        %v1232 = vpop.f32.mrb[0].mxu0
        %v1233 = vand.u32 %v517, 4294901760
        %v1234 = vsub.f32 %v517, %v1233
        %1235 = vmatprep.mubr.f32.mxu0 %v1234
        %v1236 = vand.u32 %v516, 4294901760
        %v1237 = vsub.f32 %v516, %v1236
        %1238 = vmatmul.mubr.f32.gmra.mrb[0].mxu0 %v1237
        %v1239 = vpop.f32.mrb[0].mxu0
        %v1240 = vadd.f32 %v1051, %v1239
        %v1241 = vpop.f32.mrb[0].mxu0
        %v1242 = vand.u32 %v520, 4294901760
        %v1243 = vsub.f32 %v520, %v1242
        %1244 = vmatprep.mubr.f32.mxu0 %v1243
        %v1245 = vand.u32 %v519, 4294901760
        %v1246 = vsub.f32 %v519, %v1245
        %1247 = vmatmul.mubr.f32.gmra.mrb[0].mxu0 %v1246
        %v1248 = vpop.f32.mrb[0].mxu0
        %v1249 = vadd.f32 %v1058, %v1248
        %v1250 = vpop.f32.mrb[0].mxu0
        %v1251 = vand.u32 %v523, 4294901760
        %v1252 = vsub.f32 %v523, %v1251
        %1253 = vmatprep.mubr.f32.mxu0 %v1252
        %v1254 = vand.u32 %v522, 4294901760
        %v1255 = vsub.f32 %v522, %v1254
        %1256 = vmatmul.mubr.f32.gmra.mrb[0].mxu0 %v1255
        %v1257 = vpop.f32.mrb[0].mxu0
        %v1258 = vadd.f32 %v1065, %v1257
        %v1259 = vpop.f32.mrb[0].mxu0
        %v1260 = vand.u32 %v526, 4294901760
        %v1261 = vsub.f32 %v526, %v1260
        %1262 = vmatprep.mubr.f32.mxu0 %v1261
        %v1263 = vand.u32 %v525, 4294901760
        %v1264 = vsub.f32 %v525, %v1263
        %1265 = vmatmul.mubr.f32.gmra.mrb[0].mxu0 %v1264
        %v1266 = vpop.f32.mrb[0].mxu0
        %v1267 = vadd.f32 %v1072, %v1266
        %v1268 = vpop.f32.mrb[0].mxu0
        %v1269 = vand.u32 %v529, 4294901760
        %v1270 = vsub.f32 %v529, %v1269
        %1271 = vmatprep.mubr.f32.mxu0 %v1270
        %v1272 = vand.u32 %v528, 4294901760
        %v1273 = vsub.f32 %v528, %v1272
        %1274 = vmatmul.mubr.f32.gmra.mrb[0].mxu0 %v1273
        %v1275 = vpop.f32.mrb[0].mxu0
        %v1276 = vadd.f32 %v1079, %v1275
        %v1277 = vpop.f32.mrb[0].mxu0
        %v1278 = vand.u32 %v532, 4294901760
        %v1279 = vsub.f32 %v532, %v1278
        %1280 = vmatprep.mubr.f32.mxu0 %v1279
        %v1281 = vand.u32 %v531, 4294901760
        %v1282 = vsub.f32 %v531, %v1281
        %1283 = vmatmul.mubr.f32.gmra.mrb[0].mxu0 %v1282
        %v1284 = vpop.f32.mrb[0].mxu0
        %v1285 = vadd.f32 %v1086, %v1284
        %v1286 = vpop.f32.mrb[0].mxu0
        %v1287 = vand.u32 %v535, 4294901760
        %v1288 = vsub.f32 %v535, %v1287
        %1289 = vmatprep.mubr.f32.mxu0 %v1288
        %v1290 = vand.u32 %v534, 4294901760
        %v1291 = vsub.f32 %v534, %v1290
        %1292 = vmatmul.mubr.f32.gmra.mrb[0].mxu0 %v1291
        %v1293 = vpop.f32.mrb[0].mxu0
        %v1294 = vadd.f32 %v1093, %v1293
        %v1295 = vpop.f32.mrb[0].mxu0
        %1296 = vdwg.mxu0
        %1297 = vmatprep.subr.mxu0 0.0
        %v1298 = vand.u32 %v537, 4294901760
        %1299 = vmatpush1.msra.mxu0 %v1298
        %1300 = vmatprep.subr.mxu0 0.0
        %v1301 = vand.u32 %v538, 4294901760
        %1302 = vmatpush1.msra.mxu0 %v1301
        %1303 = vmatprep.subr.mxu0 0.0
        %v1304 = vand.u32 %v539, 4294901760
        %1305 = vmatpush1.msra.mxu0 %v1304
        %1306 = vmatprep.subr.mxu0 0.0
        %v1307 = vand.u32 %v540, 4294901760
        %1308 = vmatpush1.msra.mxu0 %v1307
        %1309 = vmatprep.subr.mxu0 0.0
        %v1310 = vand.u32 %v541, 4294901760
        %1311 = vmatpush1.msra.mxu0 %v1310
        %1312 = vmatprep.subr.mxu0 0.0
        %v1313 = vand.u32 %v542, 4294901760
        %1314 = vmatpush1.msra.mxu0 %v1313
        %1315 = vmatprep.subr.mxu0 0.0
        %v1316 = vand.u32 %v543, 4294901760
        %1317 = vmatpush1.msra.mxu0 %v1316
        %1318 = vmatprep.subr.mxu0 0.0
        %v1319 = vand.u32 %v544, 4294901760
        %1320 = vmatpush1.msra.mxu0 %v1319
        %1321 = vmatprep.subr.mxu0 0.0
        %v1322 = vand.u32 %v545, 4294901760
        %1323 = vmatpush1.msra.mxu0 %v1322
        %1324 = vmatprep.subr.mxu0 0.0
        %v1325 = vand.u32 %v546, 4294901760
        %1326 = vmatpush1.msra.mxu0 %v1325
        %1327 = vmatprep.subr.mxu0 0.0
        %v1328 = vand.u32 %v547, 4294901760
        %1329 = vmatpush1.msra.mxu0 %v1328
        %1330 = vmatprep.subr.mxu0 0.0
        %v1331 = vand.u32 %v548, 4294901760
        %1332 = vmatpush1.msra.mxu0 %v1331
        %1333 = vmatprep.subr.mxu0 0.0
        %v1334 = vand.u32 %v549, 4294901760
        %1335 = vmatpush1.msra.mxu0 %v1334
        %1336 = vmatprep.subr.mxu0 0.0
        %v1337 = vand.u32 %v550, 4294901760
        %1338 = vmatpush1.msra.mxu0 %v1337
        %1339 = vmatprep.subr.mxu0 0.0
        %v1340 = vand.u32 %v551, 4294901760
        %1341 = vmatpush1.msra.mxu0 %v1340
        %1342 = vmatprep.subr.mxu0 0.0
        %v1343 = vand.u32 %v552, 4294901760
        %1344 = vmatpush1.msra.mxu0 %v1343
        %1345 = vmatprep.subr.mxu0 0.0
        %v1346 = vand.u32 %v553, 4294901760
        %1347 = vmatpush1.msra.mxu0 %v1346
        %1348 = vmatprep.subr.mxu0 0.0
        %v1349 = vand.u32 %v554, 4294901760
        %1350 = vmatpush1.msra.mxu0 %v1349
        %1351 = vmatprep.subr.mxu0 0.0
        %v1352 = vand.u32 %v555, 4294901760
        %1353 = vmatpush1.msra.mxu0 %v1352
        %1354 = vmatprep.subr.mxu0 0.0
        %v1355 = vand.u32 %v556, 4294901760
        %1356 = vmatpush1.msra.mxu0 %v1355
        %1357 = vmatprep.subr.mxu0 0.0
        %v1358 = vand.u32 %v557, 4294901760
        %1359 = vmatpush1.msra.mxu0 %v1358
        %1360 = vmatprep.subr.mxu0 0.0
        %v1361 = vand.u32 %v558, 4294901760
        %1362 = vmatpush1.msra.mxu0 %v1361
        %1363 = vmatprep.subr.mxu0 0.0
        %v1364 = vand.u32 %v559, 4294901760
        %1365 = vmatpush1.msra.mxu0 %v1364
        %1366 = vmatprep.subr.mxu0 0.0
        %v1367 = vand.u32 %v560, 4294901760
        %1368 = vmatpush1.msra.mxu0 %v1367
        %1369 = vmatprep.subr.mxu0 0.0
        %v1370 = vand.u32 %v561, 4294901760
        %1371 = vmatpush1.msra.mxu0 %v1370
        %1372 = vmatprep.subr.mxu0 0.0
        %v1373 = vand.u32 %v562, 4294901760
        %1374 = vmatpush1.msra.mxu0 %v1373
        %1375 = vmatprep.subr.mxu0 0.0
        %v1376 = vand.u32 %v563, 4294901760
        %1377 = vmatpush1.msra.mxu0 %v1376
        %1378 = vmatprep.subr.mxu0 0.0
        %v1379 = vand.u32 %v564, 4294901760
        %1380 = vmatpush1.msra.mxu0 %v1379
        %1381 = vmatprep.subr.mxu0 0.0
        %v1382 = vand.u32 %v565, 4294901760
        %1383 = vmatpush1.msra.mxu0 %v1382
        %1384 = vmatprep.subr.mxu0 0.0
        %v1385 = vand.u32 %v566, 4294901760
        %1386 = vmatpush1.msra.mxu0 %v1385
        %1387 = vmatprep.subr.mxu0 0.0
        %v1388 = vand.u32 %v567, 4294901760
        %1389 = vmatpush1.msra.mxu0 %v1388
        %1390 = vmatprep.subr.mxu0 0.0
        %v1391 = vand.u32 %v568, 4294901760
        %1392 = vmatpush1.msra.mxu0 %v1391
        %v1393 = vand.u32 %v514, 4294901760
        %v1394 = vsub.f32 %v514, %v1393
        %v1395 = vand.u32 %v1394, 4294901760
        %1396 = vmatprep.mubr.f32.mxu0 %v1395
        %v1397 = vand.u32 %v513, 4294901760
        %v1398 = vsub.f32 %v513, %v1397
        %v1399 = vand.u32 %v1398, 4294901760
        %1400 = vmatmul.mubr.f32.gmra.mrb[0].mxu0 %v1399
        %v1401 = vpop.f32.mrb[0].mxu0
        %v1402 = vadd.f32 %v1231, %v1401
        %v1403 = vpop.f32.mrb[0].mxu0
        %v1404 = vand.u32 %v517, 4294901760
        %v1405 = vsub.f32 %v517, %v1404
        %v1406 = vand.u32 %v1405, 4294901760
        %1407 = vmatprep.mubr.f32.mxu0 %v1406
        %v1408 = vand.u32 %v516, 4294901760
        %v1409 = vsub.f32 %v516, %v1408
        %v1410 = vand.u32 %v1409, 4294901760
        %1411 = vmatmul.mubr.f32.gmra.mrb[0].mxu0 %v1410
        %v1412 = vpop.f32.mrb[0].mxu0
        %v1413 = vadd.f32 %v1240, %v1412
        %v1414 = vpop.f32.mrb[0].mxu0
        %v1415 = vand.u32 %v520, 4294901760
        %v1416 = vsub.f32 %v520, %v1415
        %v1417 = vand.u32 %v1416, 4294901760
        %1418 = vmatprep.mubr.f32.mxu0 %v1417
        %v1419 = vand.u32 %v519, 4294901760
        %v1420 = vsub.f32 %v519, %v1419
        %v1421 = vand.u32 %v1420, 4294901760
        %1422 = vmatmul.mubr.f32.gmra.mrb[0].mxu0 %v1421
        %v1423 = vpop.f32.mrb[0].mxu0
        %v1424 = vadd.f32 %v1249, %v1423
        %v1425 = vpop.f32.mrb[0].mxu0
        %v1426 = vand.u32 %v523, 4294901760
        %v1427 = vsub.f32 %v523, %v1426
        %v1428 = vand.u32 %v1427, 4294901760
        %1429 = vmatprep.mubr.f32.mxu0 %v1428
        %v1430 = vand.u32 %v522, 4294901760
        %v1431 = vsub.f32 %v522, %v1430
        %v1432 = vand.u32 %v1431, 4294901760
        %1433 = vmatmul.mubr.f32.gmra.mrb[0].mxu0 %v1432
        %v1434 = vpop.f32.mrb[0].mxu0
        %v1435 = vadd.f32 %v1258, %v1434
        %v1436 = vpop.f32.mrb[0].mxu0
        %v1437 = vand.u32 %v526, 4294901760
        %v1438 = vsub.f32 %v526, %v1437
        %v1439 = vand.u32 %v1438, 4294901760
        %1440 = vmatprep.mubr.f32.mxu0 %v1439
        %v1441 = vand.u32 %v525, 4294901760
        %v1442 = vsub.f32 %v525, %v1441
        %v1443 = vand.u32 %v1442, 4294901760
        %1444 = vmatmul.mubr.f32.gmra.mrb[0].mxu0 %v1443
        %v1445 = vpop.f32.mrb[0].mxu0
        %v1446 = vadd.f32 %v1267, %v1445
        %v1447 = vpop.f32.mrb[0].mxu0
        %v1448 = vand.u32 %v529, 4294901760
        %v1449 = vsub.f32 %v529, %v1448
        %v1450 = vand.u32 %v1449, 4294901760
        %1451 = vmatprep.mubr.f32.mxu0 %v1450
        %v1452 = vand.u32 %v528, 4294901760
        %v1453 = vsub.f32 %v528, %v1452
        %v1454 = vand.u32 %v1453, 4294901760
        %1455 = vmatmul.mubr.f32.gmra.mrb[0].mxu0 %v1454
        %v1456 = vpop.f32.mrb[0].mxu0
        %v1457 = vadd.f32 %v1276, %v1456
        %v1458 = vpop.f32.mrb[0].mxu0
        %v1459 = vand.u32 %v532, 4294901760
        %v1460 = vsub.f32 %v532, %v1459
        %v1461 = vand.u32 %v1460, 4294901760
        %1462 = vmatprep.mubr.f32.mxu0 %v1461
        %v1463 = vand.u32 %v531, 4294901760
        %v1464 = vsub.f32 %v531, %v1463
        %v1465 = vand.u32 %v1464, 4294901760
        %1466 = vmatmul.mubr.f32.gmra.mrb[0].mxu0 %v1465
        %v1467 = vpop.f32.mrb[0].mxu0
        %v1468 = vadd.f32 %v1285, %v1467
        %v1469 = vpop.f32.mrb[0].mxu0
        %v1470 = vand.u32 %v535, 4294901760
        %v1471 = vsub.f32 %v535, %v1470
        %v1472 = vand.u32 %v1471, 4294901760
        %1473 = vmatprep.mubr.f32.mxu0 %v1472
        %v1474 = vand.u32 %v534, 4294901760
        %v1475 = vsub.f32 %v534, %v1474
        %v1476 = vand.u32 %v1475, 4294901760
        %1477 = vmatmul.mubr.f32.gmra.mrb[0].mxu0 %v1476
        %v1478 = vpop.f32.mrb[0].mxu0
        %v1479 = vadd.f32 %v1294, %v1478
        %v1480 = vpop.f32.mrb[0].mxu0
        %1481 = vdwg.mxu0
        %1482 = vmatprep.subr.mxu0 0.0
        %v1483 = vand.u32 %v537, 4294901760
        %v1484 = vsub.f32 %v537, %v1483
        %v1485 = vand.u32 %v1484, 4294901760
        %1486 = vmatpush1.msra.mxu0 %v1485
        %1487 = vmatprep.subr.mxu0 0.0
        %v1488 = vand.u32 %v538, 4294901760
        %v1489 = vsub.f32 %v538, %v1488
        %v1490 = vand.u32 %v1489, 4294901760
        %1491 = vmatpush1.msra.mxu0 %v1490
        %1492 = vmatprep.subr.mxu0 0.0
        %v1493 = vand.u32 %v539, 4294901760
        %v1494 = vsub.f32 %v539, %v1493
        %v1495 = vand.u32 %v1494, 4294901760
        %1496 = vmatpush1.msra.mxu0 %v1495
        %1497 = vmatprep.subr.mxu0 0.0
        %v1498 = vand.u32 %v540, 4294901760
        %v1499 = vsub.f32 %v540, %v1498
        %v1500 = vand.u32 %v1499, 4294901760
        %1501 = vmatpush1.msra.mxu0 %v1500
        %1502 = vmatprep.subr.mxu0 0.0
        %v1503 = vand.u32 %v541, 4294901760
        %v1504 = vsub.f32 %v541, %v1503
        %v1505 = vand.u32 %v1504, 4294901760
        %1506 = vmatpush1.msra.mxu0 %v1505
        %1507 = vmatprep.subr.mxu0 0.0
        %v1508 = vand.u32 %v542, 4294901760
        %v1509 = vsub.f32 %v542, %v1508
        %v1510 = vand.u32 %v1509, 4294901760
        %1511 = vmatpush1.msra.mxu0 %v1510
        %1512 = vmatprep.subr.mxu0 0.0
        %v1513 = vand.u32 %v543, 4294901760
        %v1514 = vsub.f32 %v543, %v1513
        %v1515 = vand.u32 %v1514, 4294901760
        %1516 = vmatpush1.msra.mxu0 %v1515
        %1517 = vmatprep.subr.mxu0 0.0
        %v1518 = vand.u32 %v544, 4294901760
        %v1519 = vsub.f32 %v544, %v1518
        %v1520 = vand.u32 %v1519, 4294901760
        %1521 = vmatpush1.msra.mxu0 %v1520
        %1522 = vmatprep.subr.mxu0 0.0
        %v1523 = vand.u32 %v545, 4294901760
        %v1524 = vsub.f32 %v545, %v1523
        %v1525 = vand.u32 %v1524, 4294901760
        %1526 = vmatpush1.msra.mxu0 %v1525
        %1527 = vmatprep.subr.mxu0 0.0
        %v1528 = vand.u32 %v546, 4294901760
        %v1529 = vsub.f32 %v546, %v1528
        %v1530 = vand.u32 %v1529, 4294901760
        %1531 = vmatpush1.msra.mxu0 %v1530
        %1532 = vmatprep.subr.mxu0 0.0
        %v1533 = vand.u32 %v547, 4294901760
        %v1534 = vsub.f32 %v547, %v1533
        %v1535 = vand.u32 %v1534, 4294901760
        %1536 = vmatpush1.msra.mxu0 %v1535
        %1537 = vmatprep.subr.mxu0 0.0
        %v1538 = vand.u32 %v548, 4294901760
        %v1539 = vsub.f32 %v548, %v1538
        %v1540 = vand.u32 %v1539, 4294901760
        %1541 = vmatpush1.msra.mxu0 %v1540
        %1542 = vmatprep.subr.mxu0 0.0
        %v1543 = vand.u32 %v549, 4294901760
        %v1544 = vsub.f32 %v549, %v1543
        %v1545 = vand.u32 %v1544, 4294901760
        %1546 = vmatpush1.msra.mxu0 %v1545
        %1547 = vmatprep.subr.mxu0 0.0
        %v1548 = vand.u32 %v550, 4294901760
        %v1549 = vsub.f32 %v550, %v1548
        %v1550 = vand.u32 %v1549, 4294901760
        %1551 = vmatpush1.msra.mxu0 %v1550
        %1552 = vmatprep.subr.mxu0 0.0
        %v1553 = vand.u32 %v551, 4294901760
        %v1554 = vsub.f32 %v551, %v1553
        %v1555 = vand.u32 %v1554, 4294901760
        %1556 = vmatpush1.msra.mxu0 %v1555
        %1557 = vmatprep.subr.mxu0 0.0
        %v1558 = vand.u32 %v552, 4294901760
        %v1559 = vsub.f32 %v552, %v1558
        %v1560 = vand.u32 %v1559, 4294901760
        %1561 = vmatpush1.msra.mxu0 %v1560
        %1562 = vmatprep.subr.mxu0 0.0
        %v1563 = vand.u32 %v553, 4294901760
        %v1564 = vsub.f32 %v553, %v1563
        %v1565 = vand.u32 %v1564, 4294901760
        %1566 = vmatpush1.msra.mxu0 %v1565
        %1567 = vmatprep.subr.mxu0 0.0
        %v1568 = vand.u32 %v554, 4294901760
        %v1569 = vsub.f32 %v554, %v1568
        %v1570 = vand.u32 %v1569, 4294901760
        %1571 = vmatpush1.msra.mxu0 %v1570
        %1572 = vmatprep.subr.mxu0 0.0
        %v1573 = vand.u32 %v555, 4294901760
        %v1574 = vsub.f32 %v555, %v1573
        %v1575 = vand.u32 %v1574, 4294901760
        %1576 = vmatpush1.msra.mxu0 %v1575
        %1577 = vmatprep.subr.mxu0 0.0
        %v1578 = vand.u32 %v556, 4294901760
        %v1579 = vsub.f32 %v556, %v1578
        %v1580 = vand.u32 %v1579, 4294901760
        %1581 = vmatpush1.msra.mxu0 %v1580
        %1582 = vmatprep.subr.mxu0 0.0
        %v1583 = vand.u32 %v557, 4294901760
        %v1584 = vsub.f32 %v557, %v1583
        %v1585 = vand.u32 %v1584, 4294901760
        %1586 = vmatpush1.msra.mxu0 %v1585
        %1587 = vmatprep.subr.mxu0 0.0
        %v1588 = vand.u32 %v558, 4294901760
        %v1589 = vsub.f32 %v558, %v1588
        %v1590 = vand.u32 %v1589, 4294901760
        %1591 = vmatpush1.msra.mxu0 %v1590
        %1592 = vmatprep.subr.mxu0 0.0
        %v1593 = vand.u32 %v559, 4294901760
        %v1594 = vsub.f32 %v559, %v1593
        %v1595 = vand.u32 %v1594, 4294901760
        %1596 = vmatpush1.msra.mxu0 %v1595
        %1597 = vmatprep.subr.mxu0 0.0
        %v1598 = vand.u32 %v560, 4294901760
        %v1599 = vsub.f32 %v560, %v1598
        %v1600 = vand.u32 %v1599, 4294901760
        %1601 = vmatpush1.msra.mxu0 %v1600
        %1602 = vmatprep.subr.mxu0 0.0
        %v1603 = vand.u32 %v561, 4294901760
        %v1604 = vsub.f32 %v561, %v1603
        %v1605 = vand.u32 %v1604, 4294901760
        %1606 = vmatpush1.msra.mxu0 %v1605
        %1607 = vmatprep.subr.mxu0 0.0
        %v1608 = vand.u32 %v562, 4294901760
        %v1609 = vsub.f32 %v562, %v1608
        %v1610 = vand.u32 %v1609, 4294901760
        %1611 = vmatpush1.msra.mxu0 %v1610
        %1612 = vmatprep.subr.mxu0 0.0
        %v1613 = vand.u32 %v563, 4294901760
        %v1614 = vsub.f32 %v563, %v1613
        %v1615 = vand.u32 %v1614, 4294901760
        %1616 = vmatpush1.msra.mxu0 %v1615
        %1617 = vmatprep.subr.mxu0 0.0
        %v1618 = vand.u32 %v564, 4294901760
        %v1619 = vsub.f32 %v564, %v1618
        %v1620 = vand.u32 %v1619, 4294901760
        %1621 = vmatpush1.msra.mxu0 %v1620
        %1622 = vmatprep.subr.mxu0 0.0
        %v1623 = vand.u32 %v565, 4294901760
        %v1624 = vsub.f32 %v565, %v1623
        %v1625 = vand.u32 %v1624, 4294901760
        %1626 = vmatpush1.msra.mxu0 %v1625
        %1627 = vmatprep.subr.mxu0 0.0
        %v1628 = vand.u32 %v566, 4294901760
        %v1629 = vsub.f32 %v566, %v1628
        %v1630 = vand.u32 %v1629, 4294901760
        %1631 = vmatpush1.msra.mxu0 %v1630
        %1632 = vmatprep.subr.mxu0 0.0
        %v1633 = vand.u32 %v567, 4294901760
        %v1634 = vsub.f32 %v567, %v1633
        %v1635 = vand.u32 %v1634, 4294901760
        %1636 = vmatpush1.msra.mxu0 %v1635
        %1637 = vmatprep.subr.mxu0 0.0
        %v1638 = vand.u32 %v568, 4294901760
        %v1639 = vsub.f32 %v568, %v1638
        %v1640 = vand.u32 %v1639, 4294901760
        %1641 = vmatpush1.msra.mxu0 %v1640
        %v1642 = vand.u32 %v514, 4294901760
        %1643 = vmatprep.mubr.f32.mxu0 %v1642
        %v1644 = vand.u32 %v513, 4294901760
        %1645 = vmatmul.mubr.f32.gmra.mrb[0].mxu0 %v1644
        %v1646 = vpop.f32.mrb[0].mxu0
        %v1647 = vadd.f32 %v1402, %v1646
        %v1648 = vpop.f32.mrb[0].mxu0
        %v1649 = vand.u32 %v517, 4294901760
        %1650 = vmatprep.mubr.f32.mxu0 %v1649
        %v1651 = vand.u32 %v516, 4294901760
        %1652 = vmatmul.mubr.f32.gmra.mrb[0].mxu0 %v1651
        %v1653 = vpop.f32.mrb[0].mxu0
        %v1654 = vadd.f32 %v1413, %v1653
        %v1655 = vpop.f32.mrb[0].mxu0
        %v1656 = vand.u32 %v520, 4294901760
        %1657 = vmatprep.mubr.f32.mxu0 %v1656
        %v1658 = vand.u32 %v519, 4294901760
        %1659 = vmatmul.mubr.f32.gmra.mrb[0].mxu0 %v1658
        %v1660 = vpop.f32.mrb[0].mxu0
        %v1661 = vadd.f32 %v1424, %v1660
        %v1662 = vpop.f32.mrb[0].mxu0
        %v1663 = vand.u32 %v523, 4294901760
        %1664 = vmatprep.mubr.f32.mxu0 %v1663
        %v1665 = vand.u32 %v522, 4294901760
        %1666 = vmatmul.mubr.f32.gmra.mrb[0].mxu0 %v1665
        %v1667 = vpop.f32.mrb[0].mxu0
        %v1668 = vadd.f32 %v1435, %v1667
        %v1669 = vpop.f32.mrb[0].mxu0
        %v1670 = vand.u32 %v526, 4294901760
        %1671 = vmatprep.mubr.f32.mxu0 %v1670
        %v1672 = vand.u32 %v525, 4294901760
        %1673 = vmatmul.mubr.f32.gmra.mrb[0].mxu0 %v1672
        %v1674 = vpop.f32.mrb[0].mxu0
        %v1675 = vadd.f32 %v1446, %v1674
        %v1676 = vpop.f32.mrb[0].mxu0
        %v1677 = vand.u32 %v529, 4294901760
        %1678 = vmatprep.mubr.f32.mxu0 %v1677
        %v1679 = vand.u32 %v528, 4294901760
        %1680 = vmatmul.mubr.f32.gmra.mrb[0].mxu0 %v1679
        %v1681 = vpop.f32.mrb[0].mxu0
        %v1682 = vadd.f32 %v1457, %v1681
        %v1683 = vpop.f32.mrb[0].mxu0
        %v1684 = vand.u32 %v532, 4294901760
        %1685 = vmatprep.mubr.f32.mxu0 %v1684
        %v1686 = vand.u32 %v531, 4294901760
        %1687 = vmatmul.mubr.f32.gmra.mrb[0].mxu0 %v1686
        %v1688 = vpop.f32.mrb[0].mxu0
        %v1689 = vadd.f32 %v1468, %v1688
        %v1690 = vpop.f32.mrb[0].mxu0
        %v1691 = vand.u32 %v535, 4294901760
        %1692 = vmatprep.mubr.f32.mxu0 %v1691
        %v1693 = vand.u32 %v534, 4294901760
        %1694 = vmatmul.mubr.f32.gmra.mrb[0].mxu0 %v1693
        %v1695 = vpop.f32.mrb[0].mxu0
        %v1696 = vadd.f32 %v1479, %v1695
        %v1697 = vpop.f32.mrb[0].mxu0
        %1698 = vdwg.mxu0
        %1699 = vmatprep.subr.mxu0 0.0
        %v1700 = vand.u32 %v537, 4294901760
        %1701 = vmatpush1.msra.mxu0 %v1700
        %1702 = vmatprep.subr.mxu0 0.0
        %v1703 = vand.u32 %v538, 4294901760
        %1704 = vmatpush1.msra.mxu0 %v1703
        %1705 = vmatprep.subr.mxu0 0.0
        %v1706 = vand.u32 %v539, 4294901760
        %1707 = vmatpush1.msra.mxu0 %v1706
        %1708 = vmatprep.subr.mxu0 0.0
        %v1709 = vand.u32 %v540, 4294901760
        %1710 = vmatpush1.msra.mxu0 %v1709
        %1711 = vmatprep.subr.mxu0 0.0
        %v1712 = vand.u32 %v541, 4294901760
        %1713 = vmatpush1.msra.mxu0 %v1712
        %1714 = vmatprep.subr.mxu0 0.0
        %v1715 = vand.u32 %v542, 4294901760
        %1716 = vmatpush1.msra.mxu0 %v1715
        %1717 = vmatprep.subr.mxu0 0.0
        %v1718 = vand.u32 %v543, 4294901760
        %1719 = vmatpush1.msra.mxu0 %v1718
        %1720 = vmatprep.subr.mxu0 0.0
        %v1721 = vand.u32 %v544, 4294901760
        %1722 = vmatpush1.msra.mxu0 %v1721
        %1723 = vmatprep.subr.mxu0 0.0
        %v1724 = vand.u32 %v545, 4294901760
        %1725 = vmatpush1.msra.mxu0 %v1724
        %1726 = vmatprep.subr.mxu0 0.0
        %v1727 = vand.u32 %v546, 4294901760
        %1728 = vmatpush1.msra.mxu0 %v1727
        %1729 = vmatprep.subr.mxu0 0.0
        %v1730 = vand.u32 %v547, 4294901760
        %1731 = vmatpush1.msra.mxu0 %v1730
        %1732 = vmatprep.subr.mxu0 0.0
        %v1733 = vand.u32 %v548, 4294901760
        %1734 = vmatpush1.msra.mxu0 %v1733
        %1735 = vmatprep.subr.mxu0 0.0
        %v1736 = vand.u32 %v549, 4294901760
        %1737 = vmatpush1.msra.mxu0 %v1736
        %1738 = vmatprep.subr.mxu0 0.0
        %v1739 = vand.u32 %v550, 4294901760
        %1740 = vmatpush1.msra.mxu0 %v1739
        %1741 = vmatprep.subr.mxu0 0.0
        %v1742 = vand.u32 %v551, 4294901760
        %1743 = vmatpush1.msra.mxu0 %v1742
        %1744 = vmatprep.subr.mxu0 0.0
        %v1745 = vand.u32 %v552, 4294901760
        %1746 = vmatpush1.msra.mxu0 %v1745
        %1747 = vmatprep.subr.mxu0 0.0
        %v1748 = vand.u32 %v553, 4294901760
        %1749 = vmatpush1.msra.mxu0 %v1748
        %1750 = vmatprep.subr.mxu0 0.0
        %v1751 = vand.u32 %v554, 4294901760
        %1752 = vmatpush1.msra.mxu0 %v1751
        %1753 = vmatprep.subr.mxu0 0.0
        %v1754 = vand.u32 %v555, 4294901760
        %1755 = vmatpush1.msra.mxu0 %v1754
        %1756 = vmatprep.subr.mxu0 0.0
        %v1757 = vand.u32 %v556, 4294901760
        %1758 = vmatpush1.msra.mxu0 %v1757
        %1759 = vmatprep.subr.mxu0 0.0
        %v1760 = vand.u32 %v557, 4294901760
        %1761 = vmatpush1.msra.mxu0 %v1760
        %1762 = vmatprep.subr.mxu0 0.0
        %v1763 = vand.u32 %v558, 4294901760
        %1764 = vmatpush1.msra.mxu0 %v1763
        %1765 = vmatprep.subr.mxu0 0.0
        %v1766 = vand.u32 %v559, 4294901760
        %1767 = vmatpush1.msra.mxu0 %v1766
        %1768 = vmatprep.subr.mxu0 0.0
        %v1769 = vand.u32 %v560, 4294901760
        %1770 = vmatpush1.msra.mxu0 %v1769
        %1771 = vmatprep.subr.mxu0 0.0
        %v1772 = vand.u32 %v561, 4294901760
        %1773 = vmatpush1.msra.mxu0 %v1772
        %1774 = vmatprep.subr.mxu0 0.0
        %v1775 = vand.u32 %v562, 4294901760
        %1776 = vmatpush1.msra.mxu0 %v1775
        %1777 = vmatprep.subr.mxu0 0.0
        %v1778 = vand.u32 %v563, 4294901760
        %1779 = vmatpush1.msra.mxu0 %v1778
        %1780 = vmatprep.subr.mxu0 0.0
        %v1781 = vand.u32 %v564, 4294901760
        %1782 = vmatpush1.msra.mxu0 %v1781
        %1783 = vmatprep.subr.mxu0 0.0
        %v1784 = vand.u32 %v565, 4294901760
        %1785 = vmatpush1.msra.mxu0 %v1784
        %1786 = vmatprep.subr.mxu0 0.0
        %v1787 = vand.u32 %v566, 4294901760
        %1788 = vmatpush1.msra.mxu0 %v1787
        %1789 = vmatprep.subr.mxu0 0.0
        %v1790 = vand.u32 %v567, 4294901760
        %1791 = vmatpush1.msra.mxu0 %v1790
        %1792 = vmatprep.subr.mxu0 0.0
        %v1793 = vand.u32 %v568, 4294901760
        %1794 = vmatpush1.msra.mxu0 %v1793
        %v1795 = vand.u32 %v514, 4294901760
        %1796 = vmatprep.mubr.f32.mxu0 %v1795
        %v1797 = vand.u32 %v513, 4294901760
        %1798 = vmatmul.mubr.f32.gmra.mrb[0].mxu0 %v1797
        %v1799 = vpop.f32.mrb[0].mxu0
        %v1800 = vadd.f32 %v1647, %v1799
        %v1801 = vpop.f32.mrb[0].mxu0
        %v1802 = vand.u32 %v517, 4294901760
        %1803 = vmatprep.mubr.f32.mxu0 %v1802
        %v1804 = vand.u32 %v516, 4294901760
        %1805 = vmatmul.mubr.f32.gmra.mrb[0].mxu0 %v1804
        %v1806 = vpop.f32.mrb[0].mxu0
        %v1807 = vadd.f32 %v1654, %v1806
        %v1808 = vpop.f32.mrb[0].mxu0
        %v1809 = vand.u32 %v520, 4294901760
        %1810 = vmatprep.mubr.f32.mxu0 %v1809
        %v1811 = vand.u32 %v519, 4294901760
        %1812 = vmatmul.mubr.f32.gmra.mrb[0].mxu0 %v1811
        %v1813 = vpop.f32.mrb[0].mxu0
        %v1814 = vadd.f32 %v1661, %v1813
        %v1815 = vpop.f32.mrb[0].mxu0
        %v1816 = vand.u32 %v523, 4294901760
        %1817 = vmatprep.mubr.f32.mxu0 %v1816
        %v1818 = vand.u32 %v522, 4294901760
        %1819 = vmatmul.mubr.f32.gmra.mrb[0].mxu0 %v1818
        %v1820 = vpop.f32.mrb[0].mxu0
        %v1821 = vadd.f32 %v1668, %v1820
        %v1822 = vpop.f32.mrb[0].mxu0
        %v1823 = vand.u32 %v526, 4294901760
        %1824 = vmatprep.mubr.f32.mxu0 %v1823
        %v1825 = vand.u32 %v525, 4294901760
        %1826 = vmatmul.mubr.f32.gmra.mrb[0].mxu0 %v1825
        %v1827 = vpop.f32.mrb[0].mxu0
        %v1828 = vadd.f32 %v1675, %v1827
        %v1829 = vpop.f32.mrb[0].mxu0
        %v1830 = vand.u32 %v529, 4294901760
        %1831 = vmatprep.mubr.f32.mxu0 %v1830
        %v1832 = vand.u32 %v528, 4294901760
        %1833 = vmatmul.mubr.f32.gmra.mrb[0].mxu0 %v1832
        %v1834 = vpop.f32.mrb[0].mxu0
        %v1835 = vadd.f32 %v1682, %v1834
        %v1836 = vpop.f32.mrb[0].mxu0
        %v1837 = vand.u32 %v532, 4294901760
        %1838 = vmatprep.mubr.f32.mxu0 %v1837
        %v1839 = vand.u32 %v531, 4294901760
        %1840 = vmatmul.mubr.f32.gmra.mrb[0].mxu0 %v1839
        %v1841 = vpop.f32.mrb[0].mxu0
        %v1842 = vadd.f32 %v1689, %v1841
        %v1843 = vpop.f32.mrb[0].mxu0
        %v1844 = vand.u32 %v535, 4294901760
        %1845 = vmatprep.mubr.f32.mxu0 %v1844
        %v1846 = vand.u32 %v534, 4294901760
        %1847 = vmatmul.mubr.f32.gmra.mrb[0].mxu0 %v1846
        %v1848 = vpop.f32.mrb[0].mxu0
        %v1849 = vadd.f32 %v1696, %v1848
        %v1850 = vpop.f32.mrb[0].mxu0
        %1851 = vdwg.mxu0
        %1852 = vmatprep.subr.mxu0 0.0
        %v1853 = vand.u32 %v569, 4294901760
        %1854 = vmatpush1.msra.mxu0 %v1853
        %1855 = vmatprep.subr.mxu0 0.0
        %v1856 = vand.u32 %v570, 4294901760
        %1857 = vmatpush1.msra.mxu0 %v1856
        %1858 = vmatprep.subr.mxu0 0.0
        %v1859 = vand.u32 %v571, 4294901760
        %1860 = vmatpush1.msra.mxu0 %v1859
        %1861 = vmatprep.subr.mxu0 0.0
        %v1862 = vand.u32 %v572, 4294901760
        %1863 = vmatpush1.msra.mxu0 %v1862
        %1864 = vmatprep.subr.mxu0 0.0
        %1865 = vmatpush1.msra.mxu0 0.0
        %1866 = vmatprep.subr.mxu0 0.0
        %1867 = vmatpush1.msra.mxu0 0.0
        %1868 = vmatprep.subr.mxu0 0.0
        %1869 = vmatpush1.msra.mxu0 0.0
        %1870 = vmatprep.subr.mxu0 0.0
        %1871 = vmatpush1.msra.mxu0 0.0
        %1872 = vmatprep.subr.mxu0 0.0
        %1873 = vmatpush1.msra.mxu0 0.0
        %1874 = vmatprep.subr.mxu0 0.0
        %1875 = vmatpush1.msra.mxu0 0.0
        %1876 = vmatprep.subr.mxu0 0.0
        %1877 = vmatpush1.msra.mxu0 0.0
        %1878 = vmatprep.subr.mxu0 0.0
        %1879 = vmatpush1.msra.mxu0 0.0
        %1880 = vmatprep.subr.mxu0 0.0
        %1881 = vmatpush1.msra.mxu0 0.0
        %1882 = vmatprep.subr.mxu0 0.0
        %1883 = vmatpush1.msra.mxu0 0.0
        %1884 = vmatprep.subr.mxu0 0.0
        %1885 = vmatpush1.msra.mxu0 0.0
        %1886 = vmatprep.subr.mxu0 0.0
        %1887 = vmatpush1.msra.mxu0 0.0
        %1888 = vmatprep.subr.mxu0 0.0
        %1889 = vmatpush1.msra.mxu0 0.0
        %1890 = vmatprep.subr.mxu0 0.0
        %1891 = vmatpush1.msra.mxu0 0.0
        %1892 = vmatprep.subr.mxu0 0.0
        %1893 = vmatpush1.msra.mxu0 0.0
        %1894 = vmatprep.subr.mxu0 0.0
        %1895 = vmatpush1.msra.mxu0 0.0
        %1896 = vmatprep.subr.mxu0 0.0
        %1897 = vmatpush1.msra.mxu0 0.0
        %1898 = vmatprep.subr.mxu0 0.0
        %1899 = vmatpush1.msra.mxu0 0.0
        %1900 = vmatprep.subr.mxu0 0.0
        %1901 = vmatpush1.msra.mxu0 0.0
        %1902 = vmatprep.subr.mxu0 0.0
        %1903 = vmatpush1.msra.mxu0 0.0
        %1904 = vmatprep.subr.mxu0 0.0
        %1905 = vmatpush1.msra.mxu0 0.0
        %1906 = vmatprep.subr.mxu0 0.0
        %1907 = vmatpush1.msra.mxu0 0.0
        %1908 = vmatprep.subr.mxu0 0.0
        %1909 = vmatpush1.msra.mxu0 0.0
        %1910 = vmatprep.subr.mxu0 0.0
        %1911 = vmatpush1.msra.mxu0 0.0
        %1912 = vmatprep.subr.mxu0 0.0
        %1913 = vmatpush1.msra.mxu0 0.0
        %1914 = vmatprep.subr.mxu0 0.0
        %1915 = vmatpush1.msra.mxu0 0.0
        %1916 = vmatprep.subr.mxu0 0.0
        %1917 = vmatpush1.msra.mxu0 0.0
        %1918 = vmatprep.subr.mxu0 0.0
        %1919 = vmatpush1.msra.mxu0 0.0
        %1920 = vmatprep.mubr.f32.mxu0 0.0
        %v1921 = vand.u32 %v575, 4294901760
        %v1922 = vsub.f32 %v575, %v1921
        %v1923 = vand.u32 %v1922, 4294901760
        %v1924 = vsub.f32 %v1922, %v1923
        %v1925 = vand.u32 %v1924, 4294901760
        %1926 = vmatmul.mubr.f32.gmra.mrb[0].mxu0 %v1925
        %v1927 = vpop.f32.mrb[0].mxu0
        %v1928 = vadd.f32 %v1800, %v1927
        %v1929 = vpop.f32.mrb[0].mxu0
        %1930 = vmatprep.mubr.f32.mxu0 0.0
        %v1931 = vand.u32 %v578, 4294901760
        %v1932 = vsub.f32 %v578, %v1931
        %v1933 = vand.u32 %v1932, 4294901760
        %v1934 = vsub.f32 %v1932, %v1933
        %v1935 = vand.u32 %v1934, 4294901760
        %1936 = vmatmul.mubr.f32.gmra.mrb[0].mxu0 %v1935
        %v1937 = vpop.f32.mrb[0].mxu0
        %v1938 = vadd.f32 %v1807, %v1937
        %v1939 = vpop.f32.mrb[0].mxu0
        %1940 = vmatprep.mubr.f32.mxu0 0.0
        %v1941 = vand.u32 %v581, 4294901760
        %v1942 = vsub.f32 %v581, %v1941
        %v1943 = vand.u32 %v1942, 4294901760
        %v1944 = vsub.f32 %v1942, %v1943
        %v1945 = vand.u32 %v1944, 4294901760
        %1946 = vmatmul.mubr.f32.gmra.mrb[0].mxu0 %v1945
        %v1947 = vpop.f32.mrb[0].mxu0
        %v1948 = vadd.f32 %v1814, %v1947
        %v1949 = vpop.f32.mrb[0].mxu0
        %1950 = vmatprep.mubr.f32.mxu0 0.0
        %v1951 = vand.u32 %v584, 4294901760
        %v1952 = vsub.f32 %v584, %v1951
        %v1953 = vand.u32 %v1952, 4294901760
        %v1954 = vsub.f32 %v1952, %v1953
        %v1955 = vand.u32 %v1954, 4294901760
        %1956 = vmatmul.mubr.f32.gmra.mrb[0].mxu0 %v1955
        %v1957 = vpop.f32.mrb[0].mxu0
        %v1958 = vadd.f32 %v1821, %v1957
        %v1959 = vpop.f32.mrb[0].mxu0
        %1960 = vmatprep.mubr.f32.mxu0 0.0
        %v1961 = vand.u32 %v587, 4294901760
        %v1962 = vsub.f32 %v587, %v1961
        %v1963 = vand.u32 %v1962, 4294901760
        %v1964 = vsub.f32 %v1962, %v1963
        %v1965 = vand.u32 %v1964, 4294901760
        %1966 = vmatmul.mubr.f32.gmra.mrb[0].mxu0 %v1965
        %v1967 = vpop.f32.mrb[0].mxu0
        %v1968 = vadd.f32 %v1828, %v1967
        %v1969 = vpop.f32.mrb[0].mxu0
        %1970 = vmatprep.mubr.f32.mxu0 0.0
        %v1971 = vand.u32 %v590, 4294901760
        %v1972 = vsub.f32 %v590, %v1971
        %v1973 = vand.u32 %v1972, 4294901760
        %v1974 = vsub.f32 %v1972, %v1973
        %v1975 = vand.u32 %v1974, 4294901760
        %1976 = vmatmul.mubr.f32.gmra.mrb[0].mxu0 %v1975
        %v1977 = vpop.f32.mrb[0].mxu0
        %v1978 = vadd.f32 %v1835, %v1977
        %v1979 = vpop.f32.mrb[0].mxu0
        %1980 = vmatprep.mubr.f32.mxu0 0.0
        %v1981 = vand.u32 %v593, 4294901760
        %v1982 = vsub.f32 %v593, %v1981
        %v1983 = vand.u32 %v1982, 4294901760
        %v1984 = vsub.f32 %v1982, %v1983
        %v1985 = vand.u32 %v1984, 4294901760
        %1986 = vmatmul.mubr.f32.gmra.mrb[0].mxu0 %v1985
        %v1987 = vpop.f32.mrb[0].mxu0
        %v1988 = vadd.f32 %v1842, %v1987
        %v1989 = vpop.f32.mrb[0].mxu0
        %1990 = vmatprep.mubr.f32.mxu0 0.0
        %v1991 = vand.u32 %v596, 4294901760
        %v1992 = vsub.f32 %v596, %v1991
        %v1993 = vand.u32 %v1992, 4294901760
        %v1994 = vsub.f32 %v1992, %v1993
        %v1995 = vand.u32 %v1994, 4294901760
        %1996 = vmatmul.mubr.f32.gmra.mrb[0].mxu0 %v1995
        %v1997 = vpop.f32.mrb[0].mxu0
        %v1998 = vadd.f32 %v1849, %v1997
        %v1999 = vpop.f32.mrb[0].mxu0
        %2000 = vdwg.mxu0
        %2001 = vmatprep.subr.mxu0 0.0
        %v2002 = vand.u32 %v569, 4294901760
        %v2003 = vsub.f32 %v569, %v2002
        %v2004 = vand.u32 %v2003, 4294901760
        %v2005 = vsub.f32 %v2003, %v2004
        %v2006 = vand.u32 %v2005, 4294901760
        %2007 = vmatpush1.msra.mxu0 %v2006
        %2008 = vmatprep.subr.mxu0 0.0
        %v2009 = vand.u32 %v570, 4294901760
        %v2010 = vsub.f32 %v570, %v2009
        %v2011 = vand.u32 %v2010, 4294901760
        %v2012 = vsub.f32 %v2010, %v2011
        %v2013 = vand.u32 %v2012, 4294901760
        %2014 = vmatpush1.msra.mxu0 %v2013
        %2015 = vmatprep.subr.mxu0 0.0
        %v2016 = vand.u32 %v571, 4294901760
        %v2017 = vsub.f32 %v571, %v2016
        %v2018 = vand.u32 %v2017, 4294901760
        %v2019 = vsub.f32 %v2017, %v2018
        %v2020 = vand.u32 %v2019, 4294901760
        %2021 = vmatpush1.msra.mxu0 %v2020
        %2022 = vmatprep.subr.mxu0 0.0
        %v2023 = vand.u32 %v572, 4294901760
        %v2024 = vsub.f32 %v572, %v2023
        %v2025 = vand.u32 %v2024, 4294901760
        %v2026 = vsub.f32 %v2024, %v2025
        %v2027 = vand.u32 %v2026, 4294901760
        %2028 = vmatpush1.msra.mxu0 %v2027
        %2029 = vmatprep.subr.mxu0 0.0
        %2030 = vmatpush1.msra.mxu0 0.0
        %2031 = vmatprep.subr.mxu0 0.0
        %2032 = vmatpush1.msra.mxu0 0.0
        %2033 = vmatprep.subr.mxu0 0.0
        %2034 = vmatpush1.msra.mxu0 0.0
        %2035 = vmatprep.subr.mxu0 0.0
        %2036 = vmatpush1.msra.mxu0 0.0
        %2037 = vmatprep.subr.mxu0 0.0
        %2038 = vmatpush1.msra.mxu0 0.0
        %2039 = vmatprep.subr.mxu0 0.0
        %2040 = vmatpush1.msra.mxu0 0.0
        %2041 = vmatprep.subr.mxu0 0.0
        %2042 = vmatpush1.msra.mxu0 0.0
        %2043 = vmatprep.subr.mxu0 0.0
        %2044 = vmatpush1.msra.mxu0 0.0
        %2045 = vmatprep.subr.mxu0 0.0
        %2046 = vmatpush1.msra.mxu0 0.0
        %2047 = vmatprep.subr.mxu0 0.0
        %2048 = vmatpush1.msra.mxu0 0.0
        %2049 = vmatprep.subr.mxu0 0.0
        %2050 = vmatpush1.msra.mxu0 0.0
        %2051 = vmatprep.subr.mxu0 0.0
        %2052 = vmatpush1.msra.mxu0 0.0
        %2053 = vmatprep.subr.mxu0 0.0
        %2054 = vmatpush1.msra.mxu0 0.0
        %2055 = vmatprep.subr.mxu0 0.0
        %2056 = vmatpush1.msra.mxu0 0.0
        %2057 = vmatprep.subr.mxu0 0.0
        %2058 = vmatpush1.msra.mxu0 0.0
        %2059 = vmatprep.subr.mxu0 0.0
        %2060 = vmatpush1.msra.mxu0 0.0
        %2061 = vmatprep.subr.mxu0 0.0
        %2062 = vmatpush1.msra.mxu0 0.0
        %2063 = vmatprep.subr.mxu0 0.0
        %2064 = vmatpush1.msra.mxu0 0.0
        %2065 = vmatprep.subr.mxu0 0.0
        %2066 = vmatpush1.msra.mxu0 0.0
        %2067 = vmatprep.subr.mxu0 0.0
        %2068 = vmatpush1.msra.mxu0 0.0
        %2069 = vmatprep.subr.mxu0 0.0
        %2070 = vmatpush1.msra.mxu0 0.0
        %2071 = vmatprep.subr.mxu0 0.0
        %2072 = vmatpush1.msra.mxu0 0.0
        %2073 = vmatprep.subr.mxu0 0.0
        %2074 = vmatpush1.msra.mxu0 0.0
        %2075 = vmatprep.subr.mxu0 0.0
        %2076 = vmatpush1.msra.mxu0 0.0
        %2077 = vmatprep.subr.mxu0 0.0
        %2078 = vmatpush1.msra.mxu0 0.0
        %2079 = vmatprep.subr.mxu0 0.0
        %2080 = vmatpush1.msra.mxu0 0.0
        %2081 = vmatprep.subr.mxu0 0.0
        %2082 = vmatpush1.msra.mxu0 0.0
        %2083 = vmatprep.subr.mxu0 0.0
        %2084 = vmatpush1.msra.mxu0 0.0
        %2085 = vmatprep.mubr.f32.mxu0 0.0
        %v2086 = vand.u32 %v575, 4294901760
        %2087 = vmatmul.mubr.f32.gmra.mrb[0].mxu0 %v2086
        %v2088 = vpop.f32.mrb[0].mxu0
        %v2089 = vadd.f32 %v1928, %v2088
        %v2090 = vpop.f32.mrb[0].mxu0
        %2091 = vmatprep.mubr.f32.mxu0 0.0
        %v2092 = vand.u32 %v578, 4294901760
        %2093 = vmatmul.mubr.f32.gmra.mrb[0].mxu0 %v2092
        %v2094 = vpop.f32.mrb[0].mxu0
        %v2095 = vadd.f32 %v1938, %v2094
        %v2096 = vpop.f32.mrb[0].mxu0
        %2097 = vmatprep.mubr.f32.mxu0 0.0
        %v2098 = vand.u32 %v581, 4294901760
        %2099 = vmatmul.mubr.f32.gmra.mrb[0].mxu0 %v2098
        %v2100 = vpop.f32.mrb[0].mxu0
        %v2101 = vadd.f32 %v1948, %v2100
        %v2102 = vpop.f32.mrb[0].mxu0
        %2103 = vmatprep.mubr.f32.mxu0 0.0
        %v2104 = vand.u32 %v584, 4294901760
        %2105 = vmatmul.mubr.f32.gmra.mrb[0].mxu0 %v2104
        %v2106 = vpop.f32.mrb[0].mxu0
        %v2107 = vadd.f32 %v1958, %v2106
        %v2108 = vpop.f32.mrb[0].mxu0
        %2109 = vmatprep.mubr.f32.mxu0 0.0
        %v2110 = vand.u32 %v587, 4294901760
        %2111 = vmatmul.mubr.f32.gmra.mrb[0].mxu0 %v2110
        %v2112 = vpop.f32.mrb[0].mxu0
        %v2113 = vadd.f32 %v1968, %v2112
        %v2114 = vpop.f32.mrb[0].mxu0
        %2115 = vmatprep.mubr.f32.mxu0 0.0
        %v2116 = vand.u32 %v590, 4294901760
        %2117 = vmatmul.mubr.f32.gmra.mrb[0].mxu0 %v2116
        %v2118 = vpop.f32.mrb[0].mxu0
        %v2119 = vadd.f32 %v1978, %v2118
        %v2120 = vpop.f32.mrb[0].mxu0
        %2121 = vmatprep.mubr.f32.mxu0 0.0
        %v2122 = vand.u32 %v593, 4294901760
        %2123 = vmatmul.mubr.f32.gmra.mrb[0].mxu0 %v2122
        %v2124 = vpop.f32.mrb[0].mxu0
        %v2125 = vadd.f32 %v1988, %v2124
        %v2126 = vpop.f32.mrb[0].mxu0
        %2127 = vmatprep.mubr.f32.mxu0 0.0
        %v2128 = vand.u32 %v596, 4294901760
        %2129 = vmatmul.mubr.f32.gmra.mrb[0].mxu0 %v2128
        %v2130 = vpop.f32.mrb[0].mxu0
        %v2131 = vadd.f32 %v1998, %v2130
        %v2132 = vpop.f32.mrb[0].mxu0
        %2133 = vdwg.mxu0
        %2134 = vmatprep.subr.mxu0 0.0
        %v2135 = vand.u32 %v569, 4294901760
        %v2136 = vsub.f32 %v569, %v2135
        %2137 = vmatpush1.msra.mxu0 %v2136
        %2138 = vmatprep.subr.mxu0 0.0
        %v2139 = vand.u32 %v570, 4294901760
        %v2140 = vsub.f32 %v570, %v2139
        %2141 = vmatpush1.msra.mxu0 %v2140
        %2142 = vmatprep.subr.mxu0 0.0
        %v2143 = vand.u32 %v571, 4294901760
        %v2144 = vsub.f32 %v571, %v2143
        %2145 = vmatpush1.msra.mxu0 %v2144
        %2146 = vmatprep.subr.mxu0 0.0
        %v2147 = vand.u32 %v572, 4294901760
        %v2148 = vsub.f32 %v572, %v2147
        %2149 = vmatpush1.msra.mxu0 %v2148
        %2150 = vmatprep.subr.mxu0 0.0
        %2151 = vmatpush1.msra.mxu0 0.0
        %2152 = vmatprep.subr.mxu0 0.0
        %2153 = vmatpush1.msra.mxu0 0.0
        %2154 = vmatprep.subr.mxu0 0.0
        %2155 = vmatpush1.msra.mxu0 0.0
        %2156 = vmatprep.subr.mxu0 0.0
        %2157 = vmatpush1.msra.mxu0 0.0
        %2158 = vmatprep.subr.mxu0 0.0
        %2159 = vmatpush1.msra.mxu0 0.0
        %2160 = vmatprep.subr.mxu0 0.0
        %2161 = vmatpush1.msra.mxu0 0.0
        %2162 = vmatprep.subr.mxu0 0.0
        %2163 = vmatpush1.msra.mxu0 0.0
        %2164 = vmatprep.subr.mxu0 0.0
        %2165 = vmatpush1.msra.mxu0 0.0
        %2166 = vmatprep.subr.mxu0 0.0
        %2167 = vmatpush1.msra.mxu0 0.0
        %2168 = vmatprep.subr.mxu0 0.0
        %2169 = vmatpush1.msra.mxu0 0.0
        %2170 = vmatprep.subr.mxu0 0.0
        %2171 = vmatpush1.msra.mxu0 0.0
        %2172 = vmatprep.subr.mxu0 0.0
        %2173 = vmatpush1.msra.mxu0 0.0
        %2174 = vmatprep.subr.mxu0 0.0
        %2175 = vmatpush1.msra.mxu0 0.0
        %2176 = vmatprep.subr.mxu0 0.0
        %2177 = vmatpush1.msra.mxu0 0.0
        %2178 = vmatprep.subr.mxu0 0.0
        %2179 = vmatpush1.msra.mxu0 0.0
        %2180 = vmatprep.subr.mxu0 0.0
        %2181 = vmatpush1.msra.mxu0 0.0
        %2182 = vmatprep.subr.mxu0 0.0
        %2183 = vmatpush1.msra.mxu0 0.0
        %2184 = vmatprep.subr.mxu0 0.0
        %2185 = vmatpush1.msra.mxu0 0.0
        %2186 = vmatprep.subr.mxu0 0.0
        %2187 = vmatpush1.msra.mxu0 0.0
        %2188 = vmatprep.subr.mxu0 0.0
        %2189 = vmatpush1.msra.mxu0 0.0
        %2190 = vmatprep.subr.mxu0 0.0
        %2191 = vmatpush1.msra.mxu0 0.0
        %2192 = vmatprep.subr.mxu0 0.0
        %2193 = vmatpush1.msra.mxu0 0.0
        %2194 = vmatprep.subr.mxu0 0.0
        %2195 = vmatpush1.msra.mxu0 0.0
        %2196 = vmatprep.subr.mxu0 0.0
        %2197 = vmatpush1.msra.mxu0 0.0
        %2198 = vmatprep.subr.mxu0 0.0
        %2199 = vmatpush1.msra.mxu0 0.0
        %2200 = vmatprep.subr.mxu0 0.0
        %2201 = vmatpush1.msra.mxu0 0.0
        %2202 = vmatprep.subr.mxu0 0.0
        %2203 = vmatpush1.msra.mxu0 0.0
        %2204 = vmatprep.subr.mxu0 0.0
        %2205 = vmatpush1.msra.mxu0 0.0
        %2206 = vmatprep.mubr.f32.mxu0 0.0
        %v2207 = vand.u32 %v575, 4294901760
        %v2208 = vsub.f32 %v575, %v2207
        %2209 = vmatmul.mubr.f32.gmra.mrb[0].mxu0 %v2208
        %v2210 = vpop.f32.mrb[0].mxu0
        %v2211 = vadd.f32 %v2089, %v2210
        %v2212 = vpop.f32.mrb[0].mxu0
        %2213 = vmatprep.mubr.f32.mxu0 0.0
        %v2214 = vand.u32 %v578, 4294901760
        %v2215 = vsub.f32 %v578, %v2214
        %2216 = vmatmul.mubr.f32.gmra.mrb[0].mxu0 %v2215
        %v2217 = vpop.f32.mrb[0].mxu0
        %v2218 = vadd.f32 %v2095, %v2217
        %v2219 = vpop.f32.mrb[0].mxu0
        %2220 = vmatprep.mubr.f32.mxu0 0.0
        %v2221 = vand.u32 %v581, 4294901760
        %v2222 = vsub.f32 %v581, %v2221
        %2223 = vmatmul.mubr.f32.gmra.mrb[0].mxu0 %v2222
        %v2224 = vpop.f32.mrb[0].mxu0
        %v2225 = vadd.f32 %v2101, %v2224
        %v2226 = vpop.f32.mrb[0].mxu0
        %2227 = vmatprep.mubr.f32.mxu0 0.0
        %v2228 = vand.u32 %v584, 4294901760
        %v2229 = vsub.f32 %v584, %v2228
        %2230 = vmatmul.mubr.f32.gmra.mrb[0].mxu0 %v2229
        %v2231 = vpop.f32.mrb[0].mxu0
        %v2232 = vadd.f32 %v2107, %v2231
        %v2233 = vpop.f32.mrb[0].mxu0
        %2234 = vmatprep.mubr.f32.mxu0 0.0
        %v2235 = vand.u32 %v587, 4294901760
        %v2236 = vsub.f32 %v587, %v2235
        %2237 = vmatmul.mubr.f32.gmra.mrb[0].mxu0 %v2236
        %v2238 = vpop.f32.mrb[0].mxu0
        %v2239 = vadd.f32 %v2113, %v2238
        %v2240 = vpop.f32.mrb[0].mxu0
        %2241 = vmatprep.mubr.f32.mxu0 0.0
        %v2242 = vand.u32 %v590, 4294901760
        %v2243 = vsub.f32 %v590, %v2242
        %2244 = vmatmul.mubr.f32.gmra.mrb[0].mxu0 %v2243
        %v2245 = vpop.f32.mrb[0].mxu0
        %v2246 = vadd.f32 %v2119, %v2245
        %v2247 = vpop.f32.mrb[0].mxu0
        %2248 = vmatprep.mubr.f32.mxu0 0.0
        %v2249 = vand.u32 %v593, 4294901760
        %v2250 = vsub.f32 %v593, %v2249
        %2251 = vmatmul.mubr.f32.gmra.mrb[0].mxu0 %v2250
        %v2252 = vpop.f32.mrb[0].mxu0
        %v2253 = vadd.f32 %v2125, %v2252
        %v2254 = vpop.f32.mrb[0].mxu0
        %2255 = vmatprep.mubr.f32.mxu0 0.0
        %v2256 = vand.u32 %v596, 4294901760
        %v2257 = vsub.f32 %v596, %v2256
        %2258 = vmatmul.mubr.f32.gmra.mrb[0].mxu0 %v2257
        %v2259 = vpop.f32.mrb[0].mxu0
        %v2260 = vadd.f32 %v2131, %v2259
        %v2261 = vpop.f32.mrb[0].mxu0
        %2262 = vdwg.mxu0
        %2263 = vmatprep.subr.mxu0 0.0
        %v2264 = vand.u32 %v569, 4294901760
        %2265 = vmatpush1.msra.mxu0 %v2264
        %2266 = vmatprep.subr.mxu0 0.0
        %v2267 = vand.u32 %v570, 4294901760
        %2268 = vmatpush1.msra.mxu0 %v2267
        %2269 = vmatprep.subr.mxu0 0.0
        %v2270 = vand.u32 %v571, 4294901760
        %2271 = vmatpush1.msra.mxu0 %v2270
        %2272 = vmatprep.subr.mxu0 0.0
        %v2273 = vand.u32 %v572, 4294901760
        %2274 = vmatpush1.msra.mxu0 %v2273
        %2275 = vmatprep.subr.mxu0 0.0
        %2276 = vmatpush1.msra.mxu0 0.0
        %2277 = vmatprep.subr.mxu0 0.0
        %2278 = vmatpush1.msra.mxu0 0.0
        %2279 = vmatprep.subr.mxu0 0.0
        %2280 = vmatpush1.msra.mxu0 0.0
        %2281 = vmatprep.subr.mxu0 0.0
        %2282 = vmatpush1.msra.mxu0 0.0
        %2283 = vmatprep.subr.mxu0 0.0
        %2284 = vmatpush1.msra.mxu0 0.0
        %2285 = vmatprep.subr.mxu0 0.0
        %2286 = vmatpush1.msra.mxu0 0.0
        %2287 = vmatprep.subr.mxu0 0.0
        %2288 = vmatpush1.msra.mxu0 0.0
        %2289 = vmatprep.subr.mxu0 0.0
        %2290 = vmatpush1.msra.mxu0 0.0
        %2291 = vmatprep.subr.mxu0 0.0
        %2292 = vmatpush1.msra.mxu0 0.0
        %2293 = vmatprep.subr.mxu0 0.0
        %2294 = vmatpush1.msra.mxu0 0.0
        %2295 = vmatprep.subr.mxu0 0.0
        %2296 = vmatpush1.msra.mxu0 0.0
        %2297 = vmatprep.subr.mxu0 0.0
        %2298 = vmatpush1.msra.mxu0 0.0
        %2299 = vmatprep.subr.mxu0 0.0
        %2300 = vmatpush1.msra.mxu0 0.0
        %2301 = vmatprep.subr.mxu0 0.0
        %2302 = vmatpush1.msra.mxu0 0.0
        %2303 = vmatprep.subr.mxu0 0.0
        %2304 = vmatpush1.msra.mxu0 0.0
        %2305 = vmatprep.subr.mxu0 0.0
        %2306 = vmatpush1.msra.mxu0 0.0
        %2307 = vmatprep.subr.mxu0 0.0
        %2308 = vmatpush1.msra.mxu0 0.0
        %2309 = vmatprep.subr.mxu0 0.0
        %2310 = vmatpush1.msra.mxu0 0.0
        %2311 = vmatprep.subr.mxu0 0.0
        %2312 = vmatpush1.msra.mxu0 0.0
        %2313 = vmatprep.subr.mxu0 0.0
        %2314 = vmatpush1.msra.mxu0 0.0
        %2315 = vmatprep.subr.mxu0 0.0
        %2316 = vmatpush1.msra.mxu0 0.0
        %2317 = vmatprep.subr.mxu0 0.0
        %2318 = vmatpush1.msra.mxu0 0.0
        %2319 = vmatprep.subr.mxu0 0.0
        %2320 = vmatpush1.msra.mxu0 0.0
        %2321 = vmatprep.subr.mxu0 0.0
        %2322 = vmatpush1.msra.mxu0 0.0
        %2323 = vmatprep.subr.mxu0 0.0
        %2324 = vmatpush1.msra.mxu0 0.0
        %2325 = vmatprep.subr.mxu0 0.0
        %2326 = vmatpush1.msra.mxu0 0.0
        %2327 = vmatprep.subr.mxu0 0.0
        %2328 = vmatpush1.msra.mxu0 0.0
        %2329 = vmatprep.subr.mxu0 0.0
        %2330 = vmatpush1.msra.mxu0 0.0
        %2331 = vmatprep.mubr.f32.mxu0 0.0
        %v2332 = vand.u32 %v575, 4294901760
        %v2333 = vsub.f32 %v575, %v2332
        %v2334 = vand.u32 %v2333, 4294901760
        %2335 = vmatmul.mubr.f32.gmra.mrb[0].mxu0 %v2334
        %v2336 = vpop.f32.mrb[0].mxu0
        %v2337 = vadd.f32 %v2211, %v2336
        %v2338 = vpop.f32.mrb[0].mxu0
        %2339 = vmatprep.mubr.f32.mxu0 0.0
        %v2340 = vand.u32 %v578, 4294901760
        %v2341 = vsub.f32 %v578, %v2340
        %v2342 = vand.u32 %v2341, 4294901760
        %2343 = vmatmul.mubr.f32.gmra.mrb[0].mxu0 %v2342
        %v2344 = vpop.f32.mrb[0].mxu0
        %v2345 = vadd.f32 %v2218, %v2344
        %v2346 = vpop.f32.mrb[0].mxu0
        %2347 = vmatprep.mubr.f32.mxu0 0.0
        %v2348 = vand.u32 %v581, 4294901760
        %v2349 = vsub.f32 %v581, %v2348
        %v2350 = vand.u32 %v2349, 4294901760
        %2351 = vmatmul.mubr.f32.gmra.mrb[0].mxu0 %v2350
        %v2352 = vpop.f32.mrb[0].mxu0
        %v2353 = vadd.f32 %v2225, %v2352
        %v2354 = vpop.f32.mrb[0].mxu0
        %2355 = vmatprep.mubr.f32.mxu0 0.0
        %v2356 = vand.u32 %v584, 4294901760
        %v2357 = vsub.f32 %v584, %v2356
        %v2358 = vand.u32 %v2357, 4294901760
        %2359 = vmatmul.mubr.f32.gmra.mrb[0].mxu0 %v2358
        %v2360 = vpop.f32.mrb[0].mxu0
        %v2361 = vadd.f32 %v2232, %v2360
        %v2362 = vpop.f32.mrb[0].mxu0
        %2363 = vmatprep.mubr.f32.mxu0 0.0
        %v2364 = vand.u32 %v587, 4294901760
        %v2365 = vsub.f32 %v587, %v2364
        %v2366 = vand.u32 %v2365, 4294901760
        %2367 = vmatmul.mubr.f32.gmra.mrb[0].mxu0 %v2366
        %v2368 = vpop.f32.mrb[0].mxu0
        %v2369 = vadd.f32 %v2239, %v2368
        %v2370 = vpop.f32.mrb[0].mxu0
        %2371 = vmatprep.mubr.f32.mxu0 0.0
        %v2372 = vand.u32 %v590, 4294901760
        %v2373 = vsub.f32 %v590, %v2372
        %v2374 = vand.u32 %v2373, 4294901760
        %2375 = vmatmul.mubr.f32.gmra.mrb[0].mxu0 %v2374
        %v2376 = vpop.f32.mrb[0].mxu0
        %v2377 = vadd.f32 %v2246, %v2376
        %v2378 = vpop.f32.mrb[0].mxu0
        %2379 = vmatprep.mubr.f32.mxu0 0.0
        %v2380 = vand.u32 %v593, 4294901760
        %v2381 = vsub.f32 %v593, %v2380
        %v2382 = vand.u32 %v2381, 4294901760
        %2383 = vmatmul.mubr.f32.gmra.mrb[0].mxu0 %v2382
        %v2384 = vpop.f32.mrb[0].mxu0
        %v2385 = vadd.f32 %v2253, %v2384
        %v2386 = vpop.f32.mrb[0].mxu0
        %2387 = vmatprep.mubr.f32.mxu0 0.0
        %v2388 = vand.u32 %v596, 4294901760
        %v2389 = vsub.f32 %v596, %v2388
        %v2390 = vand.u32 %v2389, 4294901760
        %2391 = vmatmul.mubr.f32.gmra.mrb[0].mxu0 %v2390
        %v2392 = vpop.f32.mrb[0].mxu0
        %v2393 = vadd.f32 %v2260, %v2392
        %v2394 = vpop.f32.mrb[0].mxu0
        %2395 = vdwg.mxu0
        %2396 = vmatprep.subr.mxu0 0.0
        %v2397 = vand.u32 %v569, 4294901760
        %v2398 = vsub.f32 %v569, %v2397
        %v2399 = vand.u32 %v2398, 4294901760
        %2400 = vmatpush1.msra.mxu0 %v2399
        %2401 = vmatprep.subr.mxu0 0.0
        %v2402 = vand.u32 %v570, 4294901760
        %v2403 = vsub.f32 %v570, %v2402
        %v2404 = vand.u32 %v2403, 4294901760
        %2405 = vmatpush1.msra.mxu0 %v2404
        %2406 = vmatprep.subr.mxu0 0.0
        %v2407 = vand.u32 %v571, 4294901760
        %v2408 = vsub.f32 %v571, %v2407
        %v2409 = vand.u32 %v2408, 4294901760
        %2410 = vmatpush1.msra.mxu0 %v2409
        %2411 = vmatprep.subr.mxu0 0.0
        %v2412 = vand.u32 %v572, 4294901760
        %v2413 = vsub.f32 %v572, %v2412
        %v2414 = vand.u32 %v2413, 4294901760
        %2415 = vmatpush1.msra.mxu0 %v2414
        %2416 = vmatprep.subr.mxu0 0.0
        %2417 = vmatpush1.msra.mxu0 0.0
        %2418 = vmatprep.subr.mxu0 0.0
        %2419 = vmatpush1.msra.mxu0 0.0
        %2420 = vmatprep.subr.mxu0 0.0
        %2421 = vmatpush1.msra.mxu0 0.0
        %2422 = vmatprep.subr.mxu0 0.0
        %2423 = vmatpush1.msra.mxu0 0.0
        %2424 = vmatprep.subr.mxu0 0.0
        %2425 = vmatpush1.msra.mxu0 0.0
        %2426 = vmatprep.subr.mxu0 0.0
        %2427 = vmatpush1.msra.mxu0 0.0
        %2428 = vmatprep.subr.mxu0 0.0
        %2429 = vmatpush1.msra.mxu0 0.0
        %2430 = vmatprep.subr.mxu0 0.0
        %2431 = vmatpush1.msra.mxu0 0.0
        %2432 = vmatprep.subr.mxu0 0.0
        %2433 = vmatpush1.msra.mxu0 0.0
        %2434 = vmatprep.subr.mxu0 0.0
        %2435 = vmatpush1.msra.mxu0 0.0
        %2436 = vmatprep.subr.mxu0 0.0
        %2437 = vmatpush1.msra.mxu0 0.0
        %2438 = vmatprep.subr.mxu0 0.0
        %2439 = vmatpush1.msra.mxu0 0.0
        %2440 = vmatprep.subr.mxu0 0.0
        %2441 = vmatpush1.msra.mxu0 0.0
        %2442 = vmatprep.subr.mxu0 0.0
        %2443 = vmatpush1.msra.mxu0 0.0
        %2444 = vmatprep.subr.mxu0 0.0
        %2445 = vmatpush1.msra.mxu0 0.0
        %2446 = vmatprep.subr.mxu0 0.0
        %2447 = vmatpush1.msra.mxu0 0.0
        %2448 = vmatprep.subr.mxu0 0.0
        %2449 = vmatpush1.msra.mxu0 0.0
        %2450 = vmatprep.subr.mxu0 0.0
        %2451 = vmatpush1.msra.mxu0 0.0
        %2452 = vmatprep.subr.mxu0 0.0
        %2453 = vmatpush1.msra.mxu0 0.0
        %2454 = vmatprep.subr.mxu0 0.0
        %2455 = vmatpush1.msra.mxu0 0.0
        %2456 = vmatprep.subr.mxu0 0.0
        %2457 = vmatpush1.msra.mxu0 0.0
        %2458 = vmatprep.subr.mxu0 0.0
        %2459 = vmatpush1.msra.mxu0 0.0
        %2460 = vmatprep.subr.mxu0 0.0
        %2461 = vmatpush1.msra.mxu0 0.0
        %2462 = vmatprep.subr.mxu0 0.0
        %2463 = vmatpush1.msra.mxu0 0.0
        %2464 = vmatprep.subr.mxu0 0.0
        %2465 = vmatpush1.msra.mxu0 0.0
        %2466 = vmatprep.subr.mxu0 0.0
        %2467 = vmatpush1.msra.mxu0 0.0
        %2468 = vmatprep.subr.mxu0 0.0
        %2469 = vmatpush1.msra.mxu0 0.0
        %2470 = vmatprep.subr.mxu0 0.0
        %2471 = vmatpush1.msra.mxu0 0.0
        %2472 = vmatprep.mubr.f32.mxu0 0.0
        %v2473 = vand.u32 %v575, 4294901760
        %2474 = vmatmul.mubr.f32.gmra.mrb[0].mxu0 %v2473
        %v2475 = vpop.f32.mrb[0].mxu0
        %v2476 = vadd.f32 %v2337, %v2475
        %v2477 = vpop.f32.mrb[0].mxu0
        %2478 = vmatprep.mubr.f32.mxu0 0.0
        %v2479 = vand.u32 %v578, 4294901760
        %2480 = vmatmul.mubr.f32.gmra.mrb[0].mxu0 %v2479
        %v2481 = vpop.f32.mrb[0].mxu0
        %v2482 = vadd.f32 %v2345, %v2481
        %v2483 = vpop.f32.mrb[0].mxu0
        %2484 = vmatprep.mubr.f32.mxu0 0.0
        %v2485 = vand.u32 %v581, 4294901760
        %2486 = vmatmul.mubr.f32.gmra.mrb[0].mxu0 %v2485
        %v2487 = vpop.f32.mrb[0].mxu0
        %v2488 = vadd.f32 %v2353, %v2487
        %v2489 = vpop.f32.mrb[0].mxu0
        %2490 = vmatprep.mubr.f32.mxu0 0.0
        %v2491 = vand.u32 %v584, 4294901760
        %2492 = vmatmul.mubr.f32.gmra.mrb[0].mxu0 %v2491
        %v2493 = vpop.f32.mrb[0].mxu0
        %v2494 = vadd.f32 %v2361, %v2493
        %v2495 = vpop.f32.mrb[0].mxu0
        %2496 = vmatprep.mubr.f32.mxu0 0.0
        %v2497 = vand.u32 %v587, 4294901760
        %2498 = vmatmul.mubr.f32.gmra.mrb[0].mxu0 %v2497
        %v2499 = vpop.f32.mrb[0].mxu0
        %v2500 = vadd.f32 %v2369, %v2499
        %v2501 = vpop.f32.mrb[0].mxu0
        %2502 = vmatprep.mubr.f32.mxu0 0.0
        %v2503 = vand.u32 %v590, 4294901760
        %2504 = vmatmul.mubr.f32.gmra.mrb[0].mxu0 %v2503
        %v2505 = vpop.f32.mrb[0].mxu0
        %v2506 = vadd.f32 %v2377, %v2505
        %v2507 = vpop.f32.mrb[0].mxu0
        %2508 = vmatprep.mubr.f32.mxu0 0.0
        %v2509 = vand.u32 %v593, 4294901760
        %2510 = vmatmul.mubr.f32.gmra.mrb[0].mxu0 %v2509
        %v2511 = vpop.f32.mrb[0].mxu0
        %v2512 = vadd.f32 %v2385, %v2511
        %v2513 = vpop.f32.mrb[0].mxu0
        %2514 = vmatprep.mubr.f32.mxu0 0.0
        %v2515 = vand.u32 %v596, 4294901760
        %2516 = vmatmul.mubr.f32.gmra.mrb[0].mxu0 %v2515
        %v2517 = vpop.f32.mrb[0].mxu0
        %v2518 = vadd.f32 %v2393, %v2517
        %v2519 = vpop.f32.mrb[0].mxu0
        %2520 = vdwg.mxu0
        %2521 = vmatprep.subr.mxu0 0.0
        %v2522 = vand.u32 %v569, 4294901760
        %2523 = vmatpush1.msra.mxu0 %v2522
        %2524 = vmatprep.subr.mxu0 0.0
        %v2525 = vand.u32 %v570, 4294901760
        %2526 = vmatpush1.msra.mxu0 %v2525
        %2527 = vmatprep.subr.mxu0 0.0
        %v2528 = vand.u32 %v571, 4294901760
        %2529 = vmatpush1.msra.mxu0 %v2528
        %2530 = vmatprep.subr.mxu0 0.0
        %v2531 = vand.u32 %v572, 4294901760
        %2532 = vmatpush1.msra.mxu0 %v2531
        %2533 = vmatprep.subr.mxu0 0.0
        %2534 = vmatpush1.msra.mxu0 0.0
        %2535 = vmatprep.subr.mxu0 0.0
        %2536 = vmatpush1.msra.mxu0 0.0
        %2537 = vmatprep.subr.mxu0 0.0
        %2538 = vmatpush1.msra.mxu0 0.0
        %2539 = vmatprep.subr.mxu0 0.0
        %2540 = vmatpush1.msra.mxu0 0.0
        %2541 = vmatprep.subr.mxu0 0.0
        %2542 = vmatpush1.msra.mxu0 0.0
        %2543 = vmatprep.subr.mxu0 0.0
        %2544 = vmatpush1.msra.mxu0 0.0
        %2545 = vmatprep.subr.mxu0 0.0
        %2546 = vmatpush1.msra.mxu0 0.0
        %2547 = vmatprep.subr.mxu0 0.0
        %2548 = vmatpush1.msra.mxu0 0.0
        %2549 = vmatprep.subr.mxu0 0.0
        %2550 = vmatpush1.msra.mxu0 0.0
        %2551 = vmatprep.subr.mxu0 0.0
        %2552 = vmatpush1.msra.mxu0 0.0
        %2553 = vmatprep.subr.mxu0 0.0
        %2554 = vmatpush1.msra.mxu0 0.0
        %2555 = vmatprep.subr.mxu0 0.0
        %2556 = vmatpush1.msra.mxu0 0.0
        %2557 = vmatprep.subr.mxu0 0.0
        %2558 = vmatpush1.msra.mxu0 0.0
        %2559 = vmatprep.subr.mxu0 0.0
        %2560 = vmatpush1.msra.mxu0 0.0
        %2561 = vmatprep.subr.mxu0 0.0
        %2562 = vmatpush1.msra.mxu0 0.0
        %2563 = vmatprep.subr.mxu0 0.0
        %2564 = vmatpush1.msra.mxu0 0.0
        %2565 = vmatprep.subr.mxu0 0.0
        %2566 = vmatpush1.msra.mxu0 0.0
        %2567 = vmatprep.subr.mxu0 0.0
        %2568 = vmatpush1.msra.mxu0 0.0
        %2569 = vmatprep.subr.mxu0 0.0
        %2570 = vmatpush1.msra.mxu0 0.0
        %2571 = vmatprep.subr.mxu0 0.0
        %2572 = vmatpush1.msra.mxu0 0.0
        %2573 = vmatprep.subr.mxu0 0.0
        %2574 = vmatpush1.msra.mxu0 0.0
        %2575 = vmatprep.subr.mxu0 0.0
        %2576 = vmatpush1.msra.mxu0 0.0
        %2577 = vmatprep.subr.mxu0 0.0
        %2578 = vmatpush1.msra.mxu0 0.0
        %2579 = vmatprep.subr.mxu0 0.0
        %2580 = vmatpush1.msra.mxu0 0.0
        %2581 = vmatprep.subr.mxu0 0.0
        %2582 = vmatpush1.msra.mxu0 0.0
        %2583 = vmatprep.subr.mxu0 0.0
        %2584 = vmatpush1.msra.mxu0 0.0
        %2585 = vmatprep.subr.mxu0 0.0
        %2586 = vmatpush1.msra.mxu0 0.0
        %2587 = vmatprep.subr.mxu0 0.0
        %2588 = vmatpush1.msra.mxu0 0.0
        %2589 = vmatprep.mubr.f32.mxu0 0.0
        %v2590 = vand.u32 %v575, 4294901760
        %2591 = vmatmul.mubr.f32.gmra.mrb[0].mxu0 %v2590
        %v2592 = vpop.f32.mrb[0].mxu0
        %v2593 = vadd.f32 %v2476, %v2592
        %v2594 = vpop.f32.mrb[0].mxu0
        %2595 = vmatprep.mubr.f32.mxu0 0.0
        %v2596 = vand.u32 %v578, 4294901760
        %2597 = vmatmul.mubr.f32.gmra.mrb[0].mxu0 %v2596
        %v2598 = vpop.f32.mrb[0].mxu0
        %v2599 = vadd.f32 %v2482, %v2598
        %v2600 = vpop.f32.mrb[0].mxu0
        %2601 = vmatprep.mubr.f32.mxu0 0.0
        %v2602 = vand.u32 %v581, 4294901760
        %2603 = vmatmul.mubr.f32.gmra.mrb[0].mxu0 %v2602
        %v2604 = vpop.f32.mrb[0].mxu0
        %v2605 = vadd.f32 %v2488, %v2604
        %v2606 = vpop.f32.mrb[0].mxu0
        %2607 = vmatprep.mubr.f32.mxu0 0.0
        %v2608 = vand.u32 %v584, 4294901760
        %2609 = vmatmul.mubr.f32.gmra.mrb[0].mxu0 %v2608
        %v2610 = vpop.f32.mrb[0].mxu0
        %v2611 = vadd.f32 %v2494, %v2610
        %v2612 = vpop.f32.mrb[0].mxu0
        %2613 = vmatprep.mubr.f32.mxu0 0.0
        %v2614 = vand.u32 %v587, 4294901760
        %2615 = vmatmul.mubr.f32.gmra.mrb[0].mxu0 %v2614
        %v2616 = vpop.f32.mrb[0].mxu0
        %v2617 = vadd.f32 %v2500, %v2616
        %v2618 = vpop.f32.mrb[0].mxu0
        %2619 = vmatprep.mubr.f32.mxu0 0.0
        %v2620 = vand.u32 %v590, 4294901760
        %2621 = vmatmul.mubr.f32.gmra.mrb[0].mxu0 %v2620
        %v2622 = vpop.f32.mrb[0].mxu0
        %v2623 = vadd.f32 %v2506, %v2622
        %v2624 = vpop.f32.mrb[0].mxu0
        %2625 = vmatprep.mubr.f32.mxu0 0.0
        %v2626 = vand.u32 %v593, 4294901760
        %2627 = vmatmul.mubr.f32.gmra.mrb[0].mxu0 %v2626
        %v2628 = vpop.f32.mrb[0].mxu0
        %v2629 = vadd.f32 %v2512, %v2628
        %v2630 = vpop.f32.mrb[0].mxu0
        %2631 = vmatprep.mubr.f32.mxu0 0.0
        %v2632 = vand.u32 %v596, 4294901760
        %2633 = vmatmul.mubr.f32.gmra.mrb[0].mxu0 %v2632
        %v2634 = vpop.f32.mrb[0].mxu0
        %v2635 = vadd.f32 %v2518, %v2634
        %v2636 = vpop.f32.mrb[0].mxu0
        %2637 = vdwg.mxu0
        %v2638 = vmax.f32 %v2593, 0.0
        %v2639 = vmax.f32 %v2599, 0.0
        %v2640 = vmax.f32 %v2605, 0.0
        %v2641 = vmax.f32 %v2611, 0.0
        %v2642 = vmax.f32 %v2617, 0.0
        %v2643 = vmax.f32 %v2623, 0.0
        %v2644 = vmax.f32 %v2629, 0.0
        %v2645 = vmax.f32 %v2635, 0.0
        %v2646 = vld [vmem:[%s3] sm:$0x1]
        %v2648 = vlaneseq
        %v2649 = vshrl.u32 %v2648, 7
        %v2650 = vsub.s32 0, %v2649
        %v2651 = vrot.slane %v2646, %v2650
        %v2653 = vmul.f32 %v2638, %v2651
        %v2654 = vmul.f32 %v2639, %v2651
        %v2655 = vmul.f32 %v2640, %v2651
        %v2656 = vmul.f32 %v2641, %v2651
        %v2657 = vmul.f32 %v2642, %v2651
        %v2658 = vmul.f32 %v2643, %v2651
        %v2659 = vmul.f32 %v2644, %v2651
        %v2660 = vmul.f32 %v2645, %v2651
        %v2661 = vld [vmem:[%s4] sm:$0x1]
        %v2663 = vlaneseq
        %v2664 = vshrl.u32 %v2663, 7
        %v2665 = vsub.s32 0, %v2664
        %v2666 = vrot.slane %v2661, %v2665
        %v2668 = vadd.f32 %v2653, %v2666
        %v2669 = vadd.f32 %v2654, %v2666
        %v2670 = vadd.f32 %v2655, %v2666
        %v2671 = vadd.f32 %v2656, %v2666
        %v2672 = vadd.f32 %v2657, %v2666
        %v2673 = vadd.f32 %v2658, %v2666
        %v2674 = vadd.f32 %v2659, %v2666
        %v2675 = vadd.f32 %v2660, %v2666
        %vm2676 = vcmask 523264
        %2677 = vst.msk [vmem:[#allocation2] sm:$0xff] %vm2676, 0.0
        %vm2678 = vcmask 517120
        %2679 = vst.msk [vmem:[#allocation2 + $0x8] sm:$0x3] %vm2678, 0.0
        %2680 = vst.msk [vmem:[#allocation2 + $0x10] sm:$0xff] %vm2676, 0.0
        %2681 = vst.msk [vmem:[#allocation2 + $0x18] sm:$0x3] %vm2678, 0.0
        %2682 = vst.msk [vmem:[#allocation2 + $0x20] sm:$0xff] %vm2676, 0.0
        %2683 = vst.msk [vmem:[#allocation2 + $0x28] sm:$0x3] %vm2678, 0.0
        %2684 = vst.msk [vmem:[#allocation2 + $0x30] sm:$0xff] %vm2676, 0.0
        %2685 = vst.msk [vmem:[#allocation2 + $0x38] sm:$0x3] %vm2678, 0.0
        %2686 = vst.msk [vmem:[#allocation2 + $0x40] sm:$0xff] %vm2676, 0.0
        %2687 = vst.msk [vmem:[#allocation2 + $0x48] sm:$0x3] %vm2678, 0.0
        %2688 = vst.msk [vmem:[#allocation2 + $0x50] sm:$0xff] %vm2676, 0.0
        %2689 = vst.msk [vmem:[#allocation2 + $0x58] sm:$0x3] %vm2678, 0.0
        %2690 = vst.msk [vmem:[#allocation2 + $0x60] sm:$0xff] %vm2676, 0.0
        %2691 = vst.msk [vmem:[#allocation2 + $0x68] sm:$0x3] %vm2678, 0.0
        %2692 = vst.msk [vmem:[#allocation2 + $0x70] sm:$0xff] %vm2676, 0.0
        %2693 = vst.msk [vmem:[#allocation2 + $0x78] sm:$0x3] %vm2678, 0.0
        %2694 = vst.msk [vmem:[#allocation2 + $0x80] sm:$0xff] %vm2676, 0.0
        %2695 = vst.msk [vmem:[#allocation2 + $0x88] sm:$0x3] %vm2678, 0.0
        %2696 = vst.msk [vmem:[#allocation2 + $0x90] sm:$0xff] %vm2676, 0.0
        %2697 = vst.msk [vmem:[#allocation2 + $0x98] sm:$0x3] %vm2678, 0.0
        %s2698 = scalar_lea.vmem [#allocation2], 16
        %2699 = vst.msk [vmem:[%s2698 + $0x1] sm:$0xff] %vm2676, %v2668
        %2700 = vst.msk [vmem:[%s2698 + $0x11] sm:$0xff] %vm2676, %v2669
        %2701 = vst.msk [vmem:[%s2698 + $0x21] sm:$0xff] %vm2676, %v2670
        %2702 = vst.msk [vmem:[%s2698 + $0x31] sm:$0xff] %vm2676, %v2671
        %2703 = vst.msk [vmem:[%s2698 + $0x41] sm:$0xff] %vm2676, %v2672
        %2704 = vst.msk [vmem:[%s2698 + $0x51] sm:$0xff] %vm2676, %v2673
        %2705 = vst.msk [vmem:[%s2698 + $0x61] sm:$0xff] %vm2676, %v2674
        %2706 = vst.msk [vmem:[%s2698 + $0x71] sm:$0xff] %vm2676, %v2675
        %v2707 = vld [vmem:[#allocation2] sm:$0xff]
        %v2708 = vld [vmem:[#allocation2 + $0x8] sm:$0x3]
        %v2709 = vld [vmem:[#allocation2 + $0x10] sm:$0xff]
        %v2710 = vld [vmem:[#allocation2 + $0x18] sm:$0x3]
        %v2711 = vld [vmem:[#allocation2 + $0x20] sm:$0xff]
        %v2712 = vld [vmem:[#allocation2 + $0x28] sm:$0x3]
        %v2713 = vld [vmem:[#allocation2 + $0x30] sm:$0xff]
        %v2714 = vld [vmem:[#allocation2 + $0x38] sm:$0x3]
        %v2715 = vld [vmem:[#allocation2 + $0x40] sm:$0xff]
        %v2716 = vld [vmem:[#allocation2 + $0x48] sm:$0x3]
        %v2717 = vld [vmem:[#allocation2 + $0x50] sm:$0xff]
        %v2718 = vld [vmem:[#allocation2 + $0x58] sm:$0x3]
        %v2719 = vld [vmem:[#allocation2 + $0x60] sm:$0xff]
        %v2720 = vld [vmem:[#allocation2 + $0x68] sm:$0x3]
        %v2721 = vld [vmem:[#allocation2 + $0x70] sm:$0xff]
        %v2722 = vld [vmem:[#allocation2 + $0x78] sm:$0x3]
        %v2723 = vld [vmem:[#allocation2 + $0x80] sm:$0xff]
        %v2724 = vld [vmem:[#allocation2 + $0x88] sm:$0x3]
        %v2725 = vld [vmem:[#allocation2 + $0x90] sm:$0xff]
        %v2726 = vld [vmem:[#allocation2 + $0x98] sm:$0x3]
        %vm2743 = vcmask 1046528
        %v2744 = vrot.slane %v2707, 1
        %v2745 = vrot.slane %v2708, 1
        %v2746 = vsel %vm2743, %v2744, %v2745
        %v2747 = vrot.slane %v2709, 1
        %v2748 = vrot.slane %v2710, 1
        %v2749 = vsel %vm2743, %v2747, %v2748
        %v2750 = vrot.slane %v2711, 1
        %v2751 = vrot.slane %v2712, 1
        %v2752 = vsel %vm2743, %v2750, %v2751
        %v2753 = vrot.slane %v2713, 1
        %v2754 = vrot.slane %v2714, 1
        %v2755 = vsel %vm2743, %v2753, %v2754
        %v2756 = vrot.slane %v2715, 1
        %v2757 = vrot.slane %v2716, 1
        %v2758 = vsel %vm2743, %v2756, %v2757
        %v2759 = vrot.slane %v2717, 1
        %v2760 = vrot.slane %v2718, 1
        %v2761 = vsel %vm2743, %v2759, %v2760
        %v2762 = vrot.slane %v2719, 1
        %v2763 = vrot.slane %v2720, 1
        %v2764 = vsel %vm2743, %v2762, %v2763
        %v2765 = vrot.slane %v2721, 1
        %v2766 = vrot.slane %v2722, 1
        %v2767 = vsel %vm2743, %v2765, %v2766
        %2768 = vrot.lane.b32.xlu0 %v2746, 64
        %v2769 = vpop.permute.xlu0 %2768
        %2770 = vrot.lane.b32.xlu0 %v2749, 64
        %v2771 = vpop.permute.xlu0 %2770
        %2772 = vrot.lane.b32.xlu0 %v2752, 64
        %v2773 = vpop.permute.xlu0 %2772
        %2774 = vrot.lane.b32.xlu0 %v2755, 64
        %v2775 = vpop.permute.xlu0 %2774
        %2776 = vrot.lane.b32.xlu0 %v2758, 64
        %v2777 = vpop.permute.xlu0 %2776
        %2778 = vrot.lane.b32.xlu0 %v2761, 64
        %v2779 = vpop.permute.xlu0 %2778
        %2780 = vrot.lane.b32.xlu0 %v2764, 64
        %v2781 = vpop.permute.xlu0 %2780
        %2782 = vrot.lane.b32.xlu0 %v2767, 64
        %v2783 = vpop.permute.xlu0 %2782
        %vm2792 = vcmask 1045504
        %v2793 = vrot.slane %v2707, 2
        %v2794 = vrot.slane %v2708, 2
        %v2795 = vsel %vm2792, %v2793, %v2794
        %v2796 = vrot.slane %v2709, 2
        %v2797 = vrot.slane %v2710, 2
        %v2798 = vsel %vm2792, %v2796, %v2797
        %v2799 = vrot.slane %v2711, 2
        %v2800 = vrot.slane %v2712, 2
        %v2801 = vsel %vm2792, %v2799, %v2800
        %v2802 = vrot.slane %v2713, 2
        %v2803 = vrot.slane %v2714, 2
        %v2804 = vsel %vm2792, %v2802, %v2803
        %v2805 = vrot.slane %v2715, 2
        %v2806 = vrot.slane %v2716, 2
        %v2807 = vsel %vm2792, %v2805, %v2806
        %v2808 = vrot.slane %v2717, 2
        %v2809 = vrot.slane %v2718, 2
        %v2810 = vsel %vm2792, %v2808, %v2809
        %v2811 = vrot.slane %v2719, 2
        %v2812 = vrot.slane %v2720, 2
        %v2813 = vsel %vm2792, %v2811, %v2812
        %v2814 = vrot.slane %v2721, 2
        %v2815 = vrot.slane %v2722, 2
        %v2816 = vsel %vm2792, %v2814, %v2815
        %2826 = vrot.lane.b32.xlu0 %v2709, 64
        %v2827 = vpop.permute.xlu0 %2826
        %2828 = vrot.lane.b32.xlu0 %v2711, 64
        %v2829 = vpop.permute.xlu0 %2828
        %2830 = vrot.lane.b32.xlu0 %v2713, 64
        %v2831 = vpop.permute.xlu0 %2830
        %2832 = vrot.lane.b32.xlu0 %v2715, 64
        %v2833 = vpop.permute.xlu0 %2832
        %2834 = vrot.lane.b32.xlu0 %v2717, 64
        %v2835 = vpop.permute.xlu0 %2834
        %2836 = vrot.lane.b32.xlu0 %v2719, 64
        %v2837 = vpop.permute.xlu0 %2836
        %2838 = vrot.lane.b32.xlu0 %v2721, 64
        %v2839 = vpop.permute.xlu0 %2838
        %2840 = vrot.lane.b32.xlu0 %v2723, 64
        %v2841 = vpop.permute.xlu0 %2840
        %v2851 = vrot.slane %v2723, 1
        %v2852 = vrot.slane %v2724, 1
        %v2853 = vsel %vm2743, %v2851, %v2852
        %v2862 = vrot.slane %v2723, 2
        %v2863 = vrot.slane %v2724, 2
        %v2864 = vsel %vm2792, %v2862, %v2863
        %2865 = vrot.lane.b32.xlu0 %v2798, 64
        %v2866 = vpop.permute.xlu0 %2865
        %2867 = vrot.lane.b32.xlu0 %v2801, 64
        %v2868 = vpop.permute.xlu0 %2867
        %2869 = vrot.lane.b32.xlu0 %v2804, 64
        %v2870 = vpop.permute.xlu0 %2869
        %2871 = vrot.lane.b32.xlu0 %v2807, 64
        %v2872 = vpop.permute.xlu0 %2871
        %2873 = vrot.lane.b32.xlu0 %v2810, 64
        %v2874 = vpop.permute.xlu0 %2873
        %2875 = vrot.lane.b32.xlu0 %v2813, 64
        %v2876 = vpop.permute.xlu0 %2875
        %2877 = vrot.lane.b32.xlu0 %v2816, 64
        %v2878 = vpop.permute.xlu0 %2877
        %2879 = vrot.lane.b32.xlu0 %v2864, 64
        %v2880 = vpop.permute.xlu0 %2879
        %v2891 = vrot.slane %v2725, 1
        %v2892 = vrot.slane %v2726, 1
        %v2893 = vsel %vm2743, %v2891, %v2892
        %2894 = vrot.lane.b32.xlu0 %v2853, 64
        %v2895 = vpop.permute.xlu0 %2894
        %2896 = vrot.lane.b32.xlu0 %v2893, 64
        %v2897 = vpop.permute.xlu0 %2896
        %v2900 = vrot.slane %v2725, 2
        %v2901 = vrot.slane %v2726, 2
        %v2902 = vsel %vm2792, %v2900, %v2901
        %v2903 = vsel %vm2676, %v2707, %v2769
        %v2904 = vsel %vm2676, %v2709, %v2771
        %v2905 = vsel %vm2676, %v2711, %v2773
        %v2906 = vsel %vm2676, %v2713, %v2775
        %v2907 = vsel %vm2676, %v2715, %v2777
        %v2908 = vsel %vm2676, %v2717, %v2779
        %v2909 = vsel %vm2676, %v2719, %v2781
        %v2910 = vsel %vm2676, %v2721, %v2783
        %v2911 = vsel %vm2676, %v2795, %v2827
        %v2912 = vsel %vm2676, %v2798, %v2829
        %v2913 = vsel %vm2676, %v2801, %v2831
        %v2914 = vsel %vm2676, %v2804, %v2833
        %v2915 = vsel %vm2676, %v2807, %v2835
        %v2916 = vsel %vm2676, %v2810, %v2837
        %v2917 = vsel %vm2676, %v2813, %v2839
        %v2918 = vsel %vm2676, %v2816, %v2841
        %v2919 = vsel %vm2676, %v2749, %v2866
        %v2920 = vsel %vm2676, %v2752, %v2868
        %v2921 = vsel %vm2676, %v2755, %v2870
        %v2922 = vsel %vm2676, %v2758, %v2872
        %v2923 = vsel %vm2676, %v2761, %v2874
        %v2924 = vsel %vm2676, %v2764, %v2876
        %v2925 = vsel %vm2676, %v2767, %v2878
        %v2926 = vsel %vm2676, %v2853, %v2880
        %v2927 = vsel %vm2676, %v2723, %v2895
        %v2928 = vsel %vm2676, %v2725, %v2897
        %v2929 = vld [vmem:[%s5] sm:$0xff]
        %v2930 = vld [vmem:[%s5 + $0x8] sm:$0xff]
        %v2931 = vld [vmem:[%s5 + $0x10] sm:$0xff]
        %v2932 = vld [vmem:[%s5 + $0x18] sm:$0xff]
        %v2933 = vld [vmem:[%s5 + $0x20] sm:$0xff]
        %v2934 = vld [vmem:[%s5 + $0x28] sm:$0xff]
        %v2935 = vld [vmem:[%s5 + $0x30] sm:$0xff]
        %v2936 = vld [vmem:[%s5 + $0x38] sm:$0xff]
        %v2937 = vld [vmem:[%s5 + $0x40] sm:$0xff]
        %v2938 = vld [vmem:[%s5 + $0x48] sm:$0xff]
        %v2939 = vld [vmem:[%s5 + $0x50] sm:$0xff]
        %v2940 = vld [vmem:[%s5 + $0x58] sm:$0xff]
        %v2941 = vld [vmem:[%s5 + $0x60] sm:$0xff]
        %v2942 = vld [vmem:[%s5 + $0x68] sm:$0xff]
        %v2943 = vld [vmem:[%s5 + $0x70] sm:$0xff]
        %v2944 = vld [vmem:[%s5 + $0x78] sm:$0xff]
        %v2945 = vld [vmem:[%s5 + $0x80] sm:$0xff]
        %v2946 = vld [vmem:[%s5 + $0x88] sm:$0xff]
        %v2947 = vld [vmem:[%s5 + $0x90] sm:$0xff]
        %v2948 = vld [vmem:[%s5 + $0x98] sm:$0xff]
        %v2949 = vld [vmem:[%s5 + $0xa0] sm:$0xff]
        %v2950 = vld [vmem:[%s5 + $0xa8] sm:$0xff]
        %v2951 = vld [vmem:[%s5 + $0xb0] sm:$0xff]
        %v2952 = vld [vmem:[%s5 + $0xb8] sm:$0xff]
        %v2953 = vld [vmem:[%s5 + $0xc0] sm:$0xff]
        %v2954 = vld [vmem:[%s5 + $0xc8] sm:$0xff]
        %v2955 = vld [vmem:[%s5 + $0xd0] sm:$0xff]
        %v2956 = vld [vmem:[%s5 + $0xd8] sm:$0xff]
        %v2957 = vld [vmem:[%s5 + $0xe0] sm:$0xff]
        %v2958 = vld [vmem:[%s5 + $0xe8] sm:$0xff]
        %v2959 = vld [vmem:[%s5 + $0xf0] sm:$0xff]
        %v2960 = vld [vmem:[%s5 + $0xf8] sm:$0xff]
        %v2961 = vld [vmem:[%s5 + $0x100] sm:$0xff]
        %v2962 = vld [vmem:[%s5 + $0x108] sm:$0xff]
        %v2963 = vld [vmem:[%s5 + $0x110] sm:$0xff]
        %v2964 = vld [vmem:[%s5 + $0x118] sm:$0xff]
        %v2965 = vld [vmem:[%s5 + $0x120] sm:$0xff]
        %v2966 = vld [vmem:[%s5 + $0x128] sm:$0xff]
        %v2967 = vld [vmem:[%s5 + $0x130] sm:$0xff]
        %v2968 = vld [vmem:[%s5 + $0x138] sm:$0xff]
        %v2969 = vld [vmem:[%s5 + $0x140] sm:$0xff]
        %v2970 = vld [vmem:[%s5 + $0x148] sm:$0xff]
        %v2971 = vld [vmem:[%s5 + $0x150] sm:$0xff]
        %v2972 = vld [vmem:[%s5 + $0x158] sm:$0xff]
        %v2973 = vld [vmem:[%s5 + $0x160] sm:$0xff]
        %v2974 = vld [vmem:[%s5 + $0x168] sm:$0xff]
        %v2975 = vld [vmem:[%s5 + $0x170] sm:$0xff]
        %v2976 = vld [vmem:[%s5 + $0x178] sm:$0xff]
        %v2977 = vld [vmem:[%s5 + $0x180] sm:$0xff]
        %v2978 = vld [vmem:[%s5 + $0x188] sm:$0xff]
        %v2979 = vld [vmem:[%s5 + $0x190] sm:$0xff]
        %v2980 = vld [vmem:[%s5 + $0x198] sm:$0xff]
        %v2981 = vld [vmem:[%s5 + $0x1a0] sm:$0xff]
        %v2982 = vld [vmem:[%s5 + $0x1a8] sm:$0xff]
        %v2983 = vld [vmem:[%s5 + $0x1b0] sm:$0xff]
        %v2984 = vld [vmem:[%s5 + $0x1b8] sm:$0xff]
        %v2985 = vld [vmem:[%s5 + $0x1c0] sm:$0xff]
        %v2986 = vld [vmem:[%s5 + $0x1c8] sm:$0xff]
        %v2987 = vld [vmem:[%s5 + $0x1d0] sm:$0xff]
        %v2988 = vld [vmem:[%s5 + $0x1d8] sm:$0xff]
        %v2989 = vld [vmem:[%s5 + $0x1e0] sm:$0xff]
        %v2990 = vld [vmem:[%s5 + $0x1e8] sm:$0xff]
        %v2991 = vld [vmem:[%s5 + $0x1f0] sm:$0xff]
        %v2992 = vld [vmem:[%s5 + $0x1f8] sm:$0xff]
        %v2993 = vld [vmem:[%s5 + $0x200] sm:$0xff]
        %v2994 = vld [vmem:[%s5 + $0x208] sm:$0xff]
        %v2995 = vld [vmem:[%s5 + $0x210] sm:$0xff]
        %v2996 = vld [vmem:[%s5 + $0x218] sm:$0xff]
        %v2997 = vld [vmem:[%s5 + $0x220] sm:$0xff]
        %v2998 = vld [vmem:[%s5 + $0x228] sm:$0xff]
        %v2999 = vld [vmem:[%s5 + $0x230] sm:$0xff]
        %v3000 = vld [vmem:[%s5 + $0x238] sm:$0xff]
        %v3001 = vsel %vm2676, %v2801, 0
        %v3003 = vsel %vm2676, %v2804, 0
        %v3005 = vsel %vm2676, %v2807, 0
        %v3007 = vsel %vm2676, %v2810, 0
        %v3009 = vsel %vm2676, %v2813, 0
        %v3011 = vsel %vm2676, %v2816, 0
        %v3013 = vsel %vm2676, %v2864, 0
        %v3015 = vsel %vm2676, %v2902, 0
        %3017 = vmatprep.subr.mxu0 0.0
        %v3018 = vand.u32 %v2929, 4294901760
        %3019 = vmatpush1.msra.mxu0 %v3018
        %3020 = vmatprep.subr.mxu0 0.0
        %v3021 = vand.u32 %v2930, 4294901760
        %3022 = vmatpush1.msra.mxu0 %v3021
        %3023 = vmatprep.subr.mxu0 0.0
        %v3024 = vand.u32 %v2931, 4294901760
        %3025 = vmatpush1.msra.mxu0 %v3024
        %3026 = vmatprep.subr.mxu0 0.0
        %v3027 = vand.u32 %v2932, 4294901760
        %3028 = vmatpush1.msra.mxu0 %v3027
        %3029 = vmatprep.subr.mxu0 0.0
        %v3030 = vand.u32 %v2933, 4294901760
        %3031 = vmatpush1.msra.mxu0 %v3030
        %3032 = vmatprep.subr.mxu0 0.0
        %v3033 = vand.u32 %v2934, 4294901760
        %3034 = vmatpush1.msra.mxu0 %v3033
        %3035 = vmatprep.subr.mxu0 0.0
        %v3036 = vand.u32 %v2935, 4294901760
        %3037 = vmatpush1.msra.mxu0 %v3036
        %3038 = vmatprep.subr.mxu0 0.0
        %v3039 = vand.u32 %v2936, 4294901760
        %3040 = vmatpush1.msra.mxu0 %v3039
        %3041 = vmatprep.subr.mxu0 0.0
        %v3042 = vand.u32 %v2937, 4294901760
        %3043 = vmatpush1.msra.mxu0 %v3042
        %3044 = vmatprep.subr.mxu0 0.0
        %v3045 = vand.u32 %v2938, 4294901760
        %3046 = vmatpush1.msra.mxu0 %v3045
        %3047 = vmatprep.subr.mxu0 0.0
        %v3048 = vand.u32 %v2939, 4294901760
        %3049 = vmatpush1.msra.mxu0 %v3048
        %3050 = vmatprep.subr.mxu0 0.0
        %v3051 = vand.u32 %v2940, 4294901760
        %3052 = vmatpush1.msra.mxu0 %v3051
        %3053 = vmatprep.subr.mxu0 0.0
        %v3054 = vand.u32 %v2941, 4294901760
        %3055 = vmatpush1.msra.mxu0 %v3054
        %3056 = vmatprep.subr.mxu0 0.0
        %v3057 = vand.u32 %v2942, 4294901760
        %3058 = vmatpush1.msra.mxu0 %v3057
        %3059 = vmatprep.subr.mxu0 0.0
        %v3060 = vand.u32 %v2943, 4294901760
        %3061 = vmatpush1.msra.mxu0 %v3060
        %3062 = vmatprep.subr.mxu0 0.0
        %v3063 = vand.u32 %v2944, 4294901760
        %3064 = vmatpush1.msra.mxu0 %v3063
        %3065 = vmatprep.subr.mxu0 0.0
        %v3066 = vand.u32 %v2945, 4294901760
        %3067 = vmatpush1.msra.mxu0 %v3066
        %3068 = vmatprep.subr.mxu0 0.0
        %v3069 = vand.u32 %v2946, 4294901760
        %3070 = vmatpush1.msra.mxu0 %v3069
        %3071 = vmatprep.subr.mxu0 0.0
        %v3072 = vand.u32 %v2947, 4294901760
        %3073 = vmatpush1.msra.mxu0 %v3072
        %3074 = vmatprep.subr.mxu0 0.0
        %v3075 = vand.u32 %v2948, 4294901760
        %3076 = vmatpush1.msra.mxu0 %v3075
        %3077 = vmatprep.subr.mxu0 0.0
        %v3078 = vand.u32 %v2949, 4294901760
        %3079 = vmatpush1.msra.mxu0 %v3078
        %3080 = vmatprep.subr.mxu0 0.0
        %v3081 = vand.u32 %v2950, 4294901760
        %3082 = vmatpush1.msra.mxu0 %v3081
        %3083 = vmatprep.subr.mxu0 0.0
        %v3084 = vand.u32 %v2951, 4294901760
        %3085 = vmatpush1.msra.mxu0 %v3084
        %3086 = vmatprep.subr.mxu0 0.0
        %v3087 = vand.u32 %v2952, 4294901760
        %3088 = vmatpush1.msra.mxu0 %v3087
        %3089 = vmatprep.subr.mxu0 0.0
        %v3090 = vand.u32 %v2953, 4294901760
        %3091 = vmatpush1.msra.mxu0 %v3090
        %3092 = vmatprep.subr.mxu0 0.0
        %v3093 = vand.u32 %v2954, 4294901760
        %3094 = vmatpush1.msra.mxu0 %v3093
        %3095 = vmatprep.subr.mxu0 0.0
        %v3096 = vand.u32 %v2955, 4294901760
        %3097 = vmatpush1.msra.mxu0 %v3096
        %3098 = vmatprep.subr.mxu0 0.0
        %v3099 = vand.u32 %v2956, 4294901760
        %3100 = vmatpush1.msra.mxu0 %v3099
        %3101 = vmatprep.subr.mxu0 0.0
        %v3102 = vand.u32 %v2957, 4294901760
        %3103 = vmatpush1.msra.mxu0 %v3102
        %3104 = vmatprep.subr.mxu0 0.0
        %v3105 = vand.u32 %v2958, 4294901760
        %3106 = vmatpush1.msra.mxu0 %v3105
        %3107 = vmatprep.subr.mxu0 0.0
        %v3108 = vand.u32 %v2959, 4294901760
        %3109 = vmatpush1.msra.mxu0 %v3108
        %3110 = vmatprep.subr.mxu0 0.0
        %v3111 = vand.u32 %v2960, 4294901760
        %3112 = vmatpush1.msra.mxu0 %v3111
        %v3113 = vand.u32 %v2911, 4294901760
        %v3114 = vsub.f32 %v2911, %v3113
        %v3115 = vand.u32 %v3114, 4294901760
        %v3116 = vsub.f32 %v3114, %v3115
        %v3117 = vand.u32 %v3116, 4294901760
        %3118 = vmatprep.mubr.f32.mxu0 %v3117
        %v3119 = vand.u32 %v2903, 4294901760
        %v3120 = vsub.f32 %v2903, %v3119
        %v3121 = vand.u32 %v3120, 4294901760
        %v3122 = vsub.f32 %v3120, %v3121
        %v3123 = vand.u32 %v3122, 4294901760
        %3124 = vmatmul.mubr.f32.gmra.mrb[0].mxu0 %v3123
        %v3125 = vpop.f32.mrb[0].mxu0
        %v3126 = vadd.f32 0.0, %v3125
        %v3127 = vpop.f32.mrb[0].mxu0
        %v3128 = vand.u32 %v2912, 4294901760
        %v3129 = vsub.f32 %v2912, %v3128
        %v3130 = vand.u32 %v3129, 4294901760
        %v3131 = vsub.f32 %v3129, %v3130
        %v3132 = vand.u32 %v3131, 4294901760
        %3133 = vmatprep.mubr.f32.mxu0 %v3132
        %v3134 = vand.u32 %v2904, 4294901760
        %v3135 = vsub.f32 %v2904, %v3134
        %v3136 = vand.u32 %v3135, 4294901760
        %v3137 = vsub.f32 %v3135, %v3136
        %v3138 = vand.u32 %v3137, 4294901760
        %3139 = vmatmul.mubr.f32.gmra.mrb[0].mxu0 %v3138
        %v3140 = vpop.f32.mrb[0].mxu0
        %v3141 = vadd.f32 0.0, %v3140
        %v3142 = vpop.f32.mrb[0].mxu0
        %v3143 = vand.u32 %v2913, 4294901760
        %v3144 = vsub.f32 %v2913, %v3143
        %v3145 = vand.u32 %v3144, 4294901760
        %v3146 = vsub.f32 %v3144, %v3145
        %v3147 = vand.u32 %v3146, 4294901760
        %3148 = vmatprep.mubr.f32.mxu0 %v3147
        %v3149 = vand.u32 %v2905, 4294901760
        %v3150 = vsub.f32 %v2905, %v3149
        %v3151 = vand.u32 %v3150, 4294901760
        %v3152 = vsub.f32 %v3150, %v3151
        %v3153 = vand.u32 %v3152, 4294901760
        %3154 = vmatmul.mubr.f32.gmra.mrb[0].mxu0 %v3153
        %v3155 = vpop.f32.mrb[0].mxu0
        %v3156 = vadd.f32 0.0, %v3155
        %v3157 = vpop.f32.mrb[0].mxu0
        %v3158 = vand.u32 %v2914, 4294901760
        %v3159 = vsub.f32 %v2914, %v3158
        %v3160 = vand.u32 %v3159, 4294901760
        %v3161 = vsub.f32 %v3159, %v3160
        %v3162 = vand.u32 %v3161, 4294901760
        %3163 = vmatprep.mubr.f32.mxu0 %v3162
        %v3164 = vand.u32 %v2906, 4294901760
        %v3165 = vsub.f32 %v2906, %v3164
        %v3166 = vand.u32 %v3165, 4294901760
        %v3167 = vsub.f32 %v3165, %v3166
        %v3168 = vand.u32 %v3167, 4294901760
        %3169 = vmatmul.mubr.f32.gmra.mrb[0].mxu0 %v3168
        %v3170 = vpop.f32.mrb[0].mxu0
        %v3171 = vadd.f32 0.0, %v3170
        %v3172 = vpop.f32.mrb[0].mxu0
        %v3173 = vand.u32 %v2915, 4294901760
        %v3174 = vsub.f32 %v2915, %v3173
        %v3175 = vand.u32 %v3174, 4294901760
        %v3176 = vsub.f32 %v3174, %v3175
        %v3177 = vand.u32 %v3176, 4294901760
        %3178 = vmatprep.mubr.f32.mxu0 %v3177
        %v3179 = vand.u32 %v2907, 4294901760
        %v3180 = vsub.f32 %v2907, %v3179
        %v3181 = vand.u32 %v3180, 4294901760
        %v3182 = vsub.f32 %v3180, %v3181
        %v3183 = vand.u32 %v3182, 4294901760
        %3184 = vmatmul.mubr.f32.gmra.mrb[0].mxu0 %v3183
        %v3185 = vpop.f32.mrb[0].mxu0
        %v3186 = vadd.f32 0.0, %v3185
        %v3187 = vpop.f32.mrb[0].mxu0
        %v3188 = vand.u32 %v2916, 4294901760
        %v3189 = vsub.f32 %v2916, %v3188
        %v3190 = vand.u32 %v3189, 4294901760
        %v3191 = vsub.f32 %v3189, %v3190
        %v3192 = vand.u32 %v3191, 4294901760
        %3193 = vmatprep.mubr.f32.mxu0 %v3192
        %v3194 = vand.u32 %v2908, 4294901760
        %v3195 = vsub.f32 %v2908, %v3194
        %v3196 = vand.u32 %v3195, 4294901760
        %v3197 = vsub.f32 %v3195, %v3196
        %v3198 = vand.u32 %v3197, 4294901760
        %3199 = vmatmul.mubr.f32.gmra.mrb[0].mxu0 %v3198
        %v3200 = vpop.f32.mrb[0].mxu0
        %v3201 = vadd.f32 0.0, %v3200
        %v3202 = vpop.f32.mrb[0].mxu0
        %v3203 = vand.u32 %v2917, 4294901760
        %v3204 = vsub.f32 %v2917, %v3203
        %v3205 = vand.u32 %v3204, 4294901760
        %v3206 = vsub.f32 %v3204, %v3205
        %v3207 = vand.u32 %v3206, 4294901760
        %3208 = vmatprep.mubr.f32.mxu0 %v3207
        %v3209 = vand.u32 %v2909, 4294901760
        %v3210 = vsub.f32 %v2909, %v3209
        %v3211 = vand.u32 %v3210, 4294901760
        %v3212 = vsub.f32 %v3210, %v3211
        %v3213 = vand.u32 %v3212, 4294901760
        %3214 = vmatmul.mubr.f32.gmra.mrb[0].mxu0 %v3213
        %v3215 = vpop.f32.mrb[0].mxu0
        %v3216 = vadd.f32 0.0, %v3215
        %v3217 = vpop.f32.mrb[0].mxu0
        %v3218 = vand.u32 %v2918, 4294901760
        %v3219 = vsub.f32 %v2918, %v3218
        %v3220 = vand.u32 %v3219, 4294901760
        %v3221 = vsub.f32 %v3219, %v3220
        %v3222 = vand.u32 %v3221, 4294901760
        %3223 = vmatprep.mubr.f32.mxu0 %v3222
        %v3224 = vand.u32 %v2910, 4294901760
        %v3225 = vsub.f32 %v2910, %v3224
        %v3226 = vand.u32 %v3225, 4294901760
        %v3227 = vsub.f32 %v3225, %v3226
        %v3228 = vand.u32 %v3227, 4294901760
        %3229 = vmatmul.mubr.f32.gmra.mrb[0].mxu0 %v3228
        %v3230 = vpop.f32.mrb[0].mxu0
        %v3231 = vadd.f32 0.0, %v3230
        %v3232 = vpop.f32.mrb[0].mxu0
        %3233 = vdwg.mxu0
        %3234 = vmatprep.subr.mxu0 0.0
        %v3235 = vand.u32 %v2929, 4294901760
        %v3236 = vsub.f32 %v2929, %v3235
        %v3237 = vand.u32 %v3236, 4294901760
        %v3238 = vsub.f32 %v3236, %v3237
        %v3239 = vand.u32 %v3238, 4294901760
        %3240 = vmatpush1.msra.mxu0 %v3239
        %3241 = vmatprep.subr.mxu0 0.0
        %v3242 = vand.u32 %v2930, 4294901760
        %v3243 = vsub.f32 %v2930, %v3242
        %v3244 = vand.u32 %v3243, 4294901760
        %v3245 = vsub.f32 %v3243, %v3244
        %v3246 = vand.u32 %v3245, 4294901760
        %3247 = vmatpush1.msra.mxu0 %v3246
        %3248 = vmatprep.subr.mxu0 0.0
        %v3249 = vand.u32 %v2931, 4294901760
        %v3250 = vsub.f32 %v2931, %v3249
        %v3251 = vand.u32 %v3250, 4294901760
        %v3252 = vsub.f32 %v3250, %v3251
        %v3253 = vand.u32 %v3252, 4294901760
        %3254 = vmatpush1.msra.mxu0 %v3253
        %3255 = vmatprep.subr.mxu0 0.0
        %v3256 = vand.u32 %v2932, 4294901760
        %v3257 = vsub.f32 %v2932, %v3256
        %v3258 = vand.u32 %v3257, 4294901760
        %v3259 = vsub.f32 %v3257, %v3258
        %v3260 = vand.u32 %v3259, 4294901760
        %3261 = vmatpush1.msra.mxu0 %v3260
        %3262 = vmatprep.subr.mxu0 0.0
        %v3263 = vand.u32 %v2933, 4294901760
        %v3264 = vsub.f32 %v2933, %v3263
        %v3265 = vand.u32 %v3264, 4294901760
        %v3266 = vsub.f32 %v3264, %v3265
        %v3267 = vand.u32 %v3266, 4294901760
        %3268 = vmatpush1.msra.mxu0 %v3267
        %3269 = vmatprep.subr.mxu0 0.0
        %v3270 = vand.u32 %v2934, 4294901760
        %v3271 = vsub.f32 %v2934, %v3270
        %v3272 = vand.u32 %v3271, 4294901760
        %v3273 = vsub.f32 %v3271, %v3272
        %v3274 = vand.u32 %v3273, 4294901760
        %3275 = vmatpush1.msra.mxu0 %v3274
        %3276 = vmatprep.subr.mxu0 0.0
        %v3277 = vand.u32 %v2935, 4294901760
        %v3278 = vsub.f32 %v2935, %v3277
        %v3279 = vand.u32 %v3278, 4294901760
        %v3280 = vsub.f32 %v3278, %v3279
        %v3281 = vand.u32 %v3280, 4294901760
        %3282 = vmatpush1.msra.mxu0 %v3281
        %3283 = vmatprep.subr.mxu0 0.0
        %v3284 = vand.u32 %v2936, 4294901760
        %v3285 = vsub.f32 %v2936, %v3284
        %v3286 = vand.u32 %v3285, 4294901760
        %v3287 = vsub.f32 %v3285, %v3286
        %v3288 = vand.u32 %v3287, 4294901760
        %3289 = vmatpush1.msra.mxu0 %v3288
        %3290 = vmatprep.subr.mxu0 0.0
        %v3291 = vand.u32 %v2937, 4294901760
        %v3292 = vsub.f32 %v2937, %v3291
        %v3293 = vand.u32 %v3292, 4294901760
        %v3294 = vsub.f32 %v3292, %v3293
        %v3295 = vand.u32 %v3294, 4294901760
        %3296 = vmatpush1.msra.mxu0 %v3295
        %3297 = vmatprep.subr.mxu0 0.0
        %v3298 = vand.u32 %v2938, 4294901760
        %v3299 = vsub.f32 %v2938, %v3298
        %v3300 = vand.u32 %v3299, 4294901760
        %v3301 = vsub.f32 %v3299, %v3300
        %v3302 = vand.u32 %v3301, 4294901760
        %3303 = vmatpush1.msra.mxu0 %v3302
        %3304 = vmatprep.subr.mxu0 0.0
        %v3305 = vand.u32 %v2939, 4294901760
        %v3306 = vsub.f32 %v2939, %v3305
        %v3307 = vand.u32 %v3306, 4294901760
        %v3308 = vsub.f32 %v3306, %v3307
        %v3309 = vand.u32 %v3308, 4294901760
        %3310 = vmatpush1.msra.mxu0 %v3309
        %3311 = vmatprep.subr.mxu0 0.0
        %v3312 = vand.u32 %v2940, 4294901760
        %v3313 = vsub.f32 %v2940, %v3312
        %v3314 = vand.u32 %v3313, 4294901760
        %v3315 = vsub.f32 %v3313, %v3314
        %v3316 = vand.u32 %v3315, 4294901760
        %3317 = vmatpush1.msra.mxu0 %v3316
        %3318 = vmatprep.subr.mxu0 0.0
        %v3319 = vand.u32 %v2941, 4294901760
        %v3320 = vsub.f32 %v2941, %v3319
        %v3321 = vand.u32 %v3320, 4294901760
        %v3322 = vsub.f32 %v3320, %v3321
        %v3323 = vand.u32 %v3322, 4294901760
        %3324 = vmatpush1.msra.mxu0 %v3323
        %3325 = vmatprep.subr.mxu0 0.0
        %v3326 = vand.u32 %v2942, 4294901760
        %v3327 = vsub.f32 %v2942, %v3326
        %v3328 = vand.u32 %v3327, 4294901760
        %v3329 = vsub.f32 %v3327, %v3328
        %v3330 = vand.u32 %v3329, 4294901760
        %3331 = vmatpush1.msra.mxu0 %v3330
        %3332 = vmatprep.subr.mxu0 0.0
        %v3333 = vand.u32 %v2943, 4294901760
        %v3334 = vsub.f32 %v2943, %v3333
        %v3335 = vand.u32 %v3334, 4294901760
        %v3336 = vsub.f32 %v3334, %v3335
        %v3337 = vand.u32 %v3336, 4294901760
        %3338 = vmatpush1.msra.mxu0 %v3337
        %3339 = vmatprep.subr.mxu0 0.0
        %v3340 = vand.u32 %v2944, 4294901760
        %v3341 = vsub.f32 %v2944, %v3340
        %v3342 = vand.u32 %v3341, 4294901760
        %v3343 = vsub.f32 %v3341, %v3342
        %v3344 = vand.u32 %v3343, 4294901760
        %3345 = vmatpush1.msra.mxu0 %v3344
        %3346 = vmatprep.subr.mxu0 0.0
        %v3347 = vand.u32 %v2945, 4294901760
        %v3348 = vsub.f32 %v2945, %v3347
        %v3349 = vand.u32 %v3348, 4294901760
        %v3350 = vsub.f32 %v3348, %v3349
        %v3351 = vand.u32 %v3350, 4294901760
        %3352 = vmatpush1.msra.mxu0 %v3351
        %3353 = vmatprep.subr.mxu0 0.0
        %v3354 = vand.u32 %v2946, 4294901760
        %v3355 = vsub.f32 %v2946, %v3354
        %v3356 = vand.u32 %v3355, 4294901760
        %v3357 = vsub.f32 %v3355, %v3356
        %v3358 = vand.u32 %v3357, 4294901760
        %3359 = vmatpush1.msra.mxu0 %v3358
        %3360 = vmatprep.subr.mxu0 0.0
        %v3361 = vand.u32 %v2947, 4294901760
        %v3362 = vsub.f32 %v2947, %v3361
        %v3363 = vand.u32 %v3362, 4294901760
        %v3364 = vsub.f32 %v3362, %v3363
        %v3365 = vand.u32 %v3364, 4294901760
        %3366 = vmatpush1.msra.mxu0 %v3365
        %3367 = vmatprep.subr.mxu0 0.0
        %v3368 = vand.u32 %v2948, 4294901760
        %v3369 = vsub.f32 %v2948, %v3368
        %v3370 = vand.u32 %v3369, 4294901760
        %v3371 = vsub.f32 %v3369, %v3370
        %v3372 = vand.u32 %v3371, 4294901760
        %3373 = vmatpush1.msra.mxu0 %v3372
        %3374 = vmatprep.subr.mxu0 0.0
        %v3375 = vand.u32 %v2949, 4294901760
        %v3376 = vsub.f32 %v2949, %v3375
        %v3377 = vand.u32 %v3376, 4294901760
        %v3378 = vsub.f32 %v3376, %v3377
        %v3379 = vand.u32 %v3378, 4294901760
        %3380 = vmatpush1.msra.mxu0 %v3379
        %3381 = vmatprep.subr.mxu0 0.0
        %v3382 = vand.u32 %v2950, 4294901760
        %v3383 = vsub.f32 %v2950, %v3382
        %v3384 = vand.u32 %v3383, 4294901760
        %v3385 = vsub.f32 %v3383, %v3384
        %v3386 = vand.u32 %v3385, 4294901760
        %3387 = vmatpush1.msra.mxu0 %v3386
        %3388 = vmatprep.subr.mxu0 0.0
        %v3389 = vand.u32 %v2951, 4294901760
        %v3390 = vsub.f32 %v2951, %v3389
        %v3391 = vand.u32 %v3390, 4294901760
        %v3392 = vsub.f32 %v3390, %v3391
        %v3393 = vand.u32 %v3392, 4294901760
        %3394 = vmatpush1.msra.mxu0 %v3393
        %3395 = vmatprep.subr.mxu0 0.0
        %v3396 = vand.u32 %v2952, 4294901760
        %v3397 = vsub.f32 %v2952, %v3396
        %v3398 = vand.u32 %v3397, 4294901760
        %v3399 = vsub.f32 %v3397, %v3398
        %v3400 = vand.u32 %v3399, 4294901760
        %3401 = vmatpush1.msra.mxu0 %v3400
        %3402 = vmatprep.subr.mxu0 0.0
        %v3403 = vand.u32 %v2953, 4294901760
        %v3404 = vsub.f32 %v2953, %v3403
        %v3405 = vand.u32 %v3404, 4294901760
        %v3406 = vsub.f32 %v3404, %v3405
        %v3407 = vand.u32 %v3406, 4294901760
        %3408 = vmatpush1.msra.mxu0 %v3407
        %3409 = vmatprep.subr.mxu0 0.0
        %v3410 = vand.u32 %v2954, 4294901760
        %v3411 = vsub.f32 %v2954, %v3410
        %v3412 = vand.u32 %v3411, 4294901760
        %v3413 = vsub.f32 %v3411, %v3412
        %v3414 = vand.u32 %v3413, 4294901760
        %3415 = vmatpush1.msra.mxu0 %v3414
        %3416 = vmatprep.subr.mxu0 0.0
        %v3417 = vand.u32 %v2955, 4294901760
        %v3418 = vsub.f32 %v2955, %v3417
        %v3419 = vand.u32 %v3418, 4294901760
        %v3420 = vsub.f32 %v3418, %v3419
        %v3421 = vand.u32 %v3420, 4294901760
        %3422 = vmatpush1.msra.mxu0 %v3421
        %3423 = vmatprep.subr.mxu0 0.0
        %v3424 = vand.u32 %v2956, 4294901760
        %v3425 = vsub.f32 %v2956, %v3424
        %v3426 = vand.u32 %v3425, 4294901760
        %v3427 = vsub.f32 %v3425, %v3426
        %v3428 = vand.u32 %v3427, 4294901760
        %3429 = vmatpush1.msra.mxu0 %v3428
        %3430 = vmatprep.subr.mxu0 0.0
        %v3431 = vand.u32 %v2957, 4294901760
        %v3432 = vsub.f32 %v2957, %v3431
        %v3433 = vand.u32 %v3432, 4294901760
        %v3434 = vsub.f32 %v3432, %v3433
        %v3435 = vand.u32 %v3434, 4294901760
        %3436 = vmatpush1.msra.mxu0 %v3435
        %3437 = vmatprep.subr.mxu0 0.0
        %v3438 = vand.u32 %v2958, 4294901760
        %v3439 = vsub.f32 %v2958, %v3438
        %v3440 = vand.u32 %v3439, 4294901760
        %v3441 = vsub.f32 %v3439, %v3440
        %v3442 = vand.u32 %v3441, 4294901760
        %3443 = vmatpush1.msra.mxu0 %v3442
        %3444 = vmatprep.subr.mxu0 0.0
        %v3445 = vand.u32 %v2959, 4294901760
        %v3446 = vsub.f32 %v2959, %v3445
        %v3447 = vand.u32 %v3446, 4294901760
        %v3448 = vsub.f32 %v3446, %v3447
        %v3449 = vand.u32 %v3448, 4294901760
        %3450 = vmatpush1.msra.mxu0 %v3449
        %3451 = vmatprep.subr.mxu0 0.0
        %v3452 = vand.u32 %v2960, 4294901760
        %v3453 = vsub.f32 %v2960, %v3452
        %v3454 = vand.u32 %v3453, 4294901760
        %v3455 = vsub.f32 %v3453, %v3454
        %v3456 = vand.u32 %v3455, 4294901760
        %3457 = vmatpush1.msra.mxu0 %v3456
        %v3458 = vand.u32 %v2911, 4294901760
        %3459 = vmatprep.mubr.f32.mxu0 %v3458
        %v3460 = vand.u32 %v2903, 4294901760
        %3461 = vmatmul.mubr.f32.gmra.mrb[0].mxu0 %v3460
        %v3462 = vpop.f32.mrb[0].mxu0
        %v3463 = vadd.f32 %v3126, %v3462
        %v3464 = vpop.f32.mrb[0].mxu0
        %v3465 = vand.u32 %v2912, 4294901760
        %3466 = vmatprep.mubr.f32.mxu0 %v3465
        %v3467 = vand.u32 %v2904, 4294901760
        %3468 = vmatmul.mubr.f32.gmra.mrb[0].mxu0 %v3467
        %v3469 = vpop.f32.mrb[0].mxu0
        %v3470 = vadd.f32 %v3141, %v3469
        %v3471 = vpop.f32.mrb[0].mxu0
        %v3472 = vand.u32 %v2913, 4294901760
        %3473 = vmatprep.mubr.f32.mxu0 %v3472
        %v3474 = vand.u32 %v2905, 4294901760
        %3475 = vmatmul.mubr.f32.gmra.mrb[0].mxu0 %v3474
        %v3476 = vpop.f32.mrb[0].mxu0
        %v3477 = vadd.f32 %v3156, %v3476
        %v3478 = vpop.f32.mrb[0].mxu0
        %v3479 = vand.u32 %v2914, 4294901760
        %3480 = vmatprep.mubr.f32.mxu0 %v3479
        %v3481 = vand.u32 %v2906, 4294901760
        %3482 = vmatmul.mubr.f32.gmra.mrb[0].mxu0 %v3481
        %v3483 = vpop.f32.mrb[0].mxu0
        %v3484 = vadd.f32 %v3171, %v3483
        %v3485 = vpop.f32.mrb[0].mxu0
        %v3486 = vand.u32 %v2915, 4294901760
        %3487 = vmatprep.mubr.f32.mxu0 %v3486
        %v3488 = vand.u32 %v2907, 4294901760
        %3489 = vmatmul.mubr.f32.gmra.mrb[0].mxu0 %v3488
        %v3490 = vpop.f32.mrb[0].mxu0
        %v3491 = vadd.f32 %v3186, %v3490
        %v3492 = vpop.f32.mrb[0].mxu0
        %v3493 = vand.u32 %v2916, 4294901760
        %3494 = vmatprep.mubr.f32.mxu0 %v3493
        %v3495 = vand.u32 %v2908, 4294901760
        %3496 = vmatmul.mubr.f32.gmra.mrb[0].mxu0 %v3495
        %v3497 = vpop.f32.mrb[0].mxu0
        %v3498 = vadd.f32 %v3201, %v3497
        %v3499 = vpop.f32.mrb[0].mxu0
        %v3500 = vand.u32 %v2917, 4294901760
        %3501 = vmatprep.mubr.f32.mxu0 %v3500
        %v3502 = vand.u32 %v2909, 4294901760
        %3503 = vmatmul.mubr.f32.gmra.mrb[0].mxu0 %v3502
        %v3504 = vpop.f32.mrb[0].mxu0
        %v3505 = vadd.f32 %v3216, %v3504
        %v3506 = vpop.f32.mrb[0].mxu0
        %v3507 = vand.u32 %v2918, 4294901760
        %3508 = vmatprep.mubr.f32.mxu0 %v3507
        %v3509 = vand.u32 %v2910, 4294901760
        %3510 = vmatmul.mubr.f32.gmra.mrb[0].mxu0 %v3509
        %v3511 = vpop.f32.mrb[0].mxu0
        %v3512 = vadd.f32 %v3231, %v3511
        %v3513 = vpop.f32.mrb[0].mxu0
        %3514 = vdwg.mxu0
        %3515 = vmatprep.subr.mxu0 0.0
        %v3516 = vand.u32 %v2929, 4294901760
        %v3517 = vsub.f32 %v2929, %v3516
        %3518 = vmatpush1.msra.mxu0 %v3517
        %3519 = vmatprep.subr.mxu0 0.0
        %v3520 = vand.u32 %v2930, 4294901760
        %v3521 = vsub.f32 %v2930, %v3520
        %3522 = vmatpush1.msra.mxu0 %v3521
        %3523 = vmatprep.subr.mxu0 0.0
        %v3524 = vand.u32 %v2931, 4294901760
        %v3525 = vsub.f32 %v2931, %v3524
        %3526 = vmatpush1.msra.mxu0 %v3525
        %3527 = vmatprep.subr.mxu0 0.0
        %v3528 = vand.u32 %v2932, 4294901760
        %v3529 = vsub.f32 %v2932, %v3528
        %3530 = vmatpush1.msra.mxu0 %v3529
        %3531 = vmatprep.subr.mxu0 0.0
        %v3532 = vand.u32 %v2933, 4294901760
        %v3533 = vsub.f32 %v2933, %v3532
        %3534 = vmatpush1.msra.mxu0 %v3533
        %3535 = vmatprep.subr.mxu0 0.0
        %v3536 = vand.u32 %v2934, 4294901760
        %v3537 = vsub.f32 %v2934, %v3536
        %3538 = vmatpush1.msra.mxu0 %v3537
        %3539 = vmatprep.subr.mxu0 0.0
        %v3540 = vand.u32 %v2935, 4294901760
        %v3541 = vsub.f32 %v2935, %v3540
        %3542 = vmatpush1.msra.mxu0 %v3541
        %3543 = vmatprep.subr.mxu0 0.0
        %v3544 = vand.u32 %v2936, 4294901760
        %v3545 = vsub.f32 %v2936, %v3544
        %3546 = vmatpush1.msra.mxu0 %v3545
        %3547 = vmatprep.subr.mxu0 0.0
        %v3548 = vand.u32 %v2937, 4294901760
        %v3549 = vsub.f32 %v2937, %v3548
        %3550 = vmatpush1.msra.mxu0 %v3549
        %3551 = vmatprep.subr.mxu0 0.0
        %v3552 = vand.u32 %v2938, 4294901760
        %v3553 = vsub.f32 %v2938, %v3552
        %3554 = vmatpush1.msra.mxu0 %v3553
        %3555 = vmatprep.subr.mxu0 0.0
        %v3556 = vand.u32 %v2939, 4294901760
        %v3557 = vsub.f32 %v2939, %v3556
        %3558 = vmatpush1.msra.mxu0 %v3557
        %3559 = vmatprep.subr.mxu0 0.0
        %v3560 = vand.u32 %v2940, 4294901760
        %v3561 = vsub.f32 %v2940, %v3560
        %3562 = vmatpush1.msra.mxu0 %v3561
        %3563 = vmatprep.subr.mxu0 0.0
        %v3564 = vand.u32 %v2941, 4294901760
        %v3565 = vsub.f32 %v2941, %v3564
        %3566 = vmatpush1.msra.mxu0 %v3565
        %3567 = vmatprep.subr.mxu0 0.0
        %v3568 = vand.u32 %v2942, 4294901760
        %v3569 = vsub.f32 %v2942, %v3568
        %3570 = vmatpush1.msra.mxu0 %v3569
        %3571 = vmatprep.subr.mxu0 0.0
        %v3572 = vand.u32 %v2943, 4294901760
        %v3573 = vsub.f32 %v2943, %v3572
        %3574 = vmatpush1.msra.mxu0 %v3573
        %3575 = vmatprep.subr.mxu0 0.0
        %v3576 = vand.u32 %v2944, 4294901760
        %v3577 = vsub.f32 %v2944, %v3576
        %3578 = vmatpush1.msra.mxu0 %v3577
        %3579 = vmatprep.subr.mxu0 0.0
        %v3580 = vand.u32 %v2945, 4294901760
        %v3581 = vsub.f32 %v2945, %v3580
        %3582 = vmatpush1.msra.mxu0 %v3581
        %3583 = vmatprep.subr.mxu0 0.0
        %v3584 = vand.u32 %v2946, 4294901760
        %v3585 = vsub.f32 %v2946, %v3584
        %3586 = vmatpush1.msra.mxu0 %v3585
        %3587 = vmatprep.subr.mxu0 0.0
        %v3588 = vand.u32 %v2947, 4294901760
        %v3589 = vsub.f32 %v2947, %v3588
        %3590 = vmatpush1.msra.mxu0 %v3589
        %3591 = vmatprep.subr.mxu0 0.0
        %v3592 = vand.u32 %v2948, 4294901760
        %v3593 = vsub.f32 %v2948, %v3592
        %3594 = vmatpush1.msra.mxu0 %v3593
        %3595 = vmatprep.subr.mxu0 0.0
        %v3596 = vand.u32 %v2949, 4294901760
        %v3597 = vsub.f32 %v2949, %v3596
        %3598 = vmatpush1.msra.mxu0 %v3597
        %3599 = vmatprep.subr.mxu0 0.0
        %v3600 = vand.u32 %v2950, 4294901760
        %v3601 = vsub.f32 %v2950, %v3600
        %3602 = vmatpush1.msra.mxu0 %v3601
        %3603 = vmatprep.subr.mxu0 0.0
        %v3604 = vand.u32 %v2951, 4294901760
        %v3605 = vsub.f32 %v2951, %v3604
        %3606 = vmatpush1.msra.mxu0 %v3605
        %3607 = vmatprep.subr.mxu0 0.0
        %v3608 = vand.u32 %v2952, 4294901760
        %v3609 = vsub.f32 %v2952, %v3608
        %3610 = vmatpush1.msra.mxu0 %v3609
        %3611 = vmatprep.subr.mxu0 0.0
        %v3612 = vand.u32 %v2953, 4294901760
        %v3613 = vsub.f32 %v2953, %v3612
        %3614 = vmatpush1.msra.mxu0 %v3613
        %3615 = vmatprep.subr.mxu0 0.0
        %v3616 = vand.u32 %v2954, 4294901760
        %v3617 = vsub.f32 %v2954, %v3616
        %3618 = vmatpush1.msra.mxu0 %v3617
        %3619 = vmatprep.subr.mxu0 0.0
        %v3620 = vand.u32 %v2955, 4294901760
        %v3621 = vsub.f32 %v2955, %v3620
        %3622 = vmatpush1.msra.mxu0 %v3621
        %3623 = vmatprep.subr.mxu0 0.0
        %v3624 = vand.u32 %v2956, 4294901760
        %v3625 = vsub.f32 %v2956, %v3624
        %3626 = vmatpush1.msra.mxu0 %v3625
        %3627 = vmatprep.subr.mxu0 0.0
        %v3628 = vand.u32 %v2957, 4294901760
        %v3629 = vsub.f32 %v2957, %v3628
        %3630 = vmatpush1.msra.mxu0 %v3629
        %3631 = vmatprep.subr.mxu0 0.0
        %v3632 = vand.u32 %v2958, 4294901760
        %v3633 = vsub.f32 %v2958, %v3632
        %3634 = vmatpush1.msra.mxu0 %v3633
        %3635 = vmatprep.subr.mxu0 0.0
        %v3636 = vand.u32 %v2959, 4294901760
        %v3637 = vsub.f32 %v2959, %v3636
        %3638 = vmatpush1.msra.mxu0 %v3637
        %3639 = vmatprep.subr.mxu0 0.0
        %v3640 = vand.u32 %v2960, 4294901760
        %v3641 = vsub.f32 %v2960, %v3640
        %3642 = vmatpush1.msra.mxu0 %v3641
        %v3643 = vand.u32 %v2911, 4294901760
        %v3644 = vsub.f32 %v2911, %v3643
        %3645 = vmatprep.mubr.f32.mxu0 %v3644
        %v3646 = vand.u32 %v2903, 4294901760
        %v3647 = vsub.f32 %v2903, %v3646
        %3648 = vmatmul.mubr.f32.gmra.mrb[0].mxu0 %v3647
        %v3649 = vpop.f32.mrb[0].mxu0
        %v3650 = vadd.f32 %v3463, %v3649
        %v3651 = vpop.f32.mrb[0].mxu0
        %v3652 = vand.u32 %v2912, 4294901760
        %v3653 = vsub.f32 %v2912, %v3652
        %3654 = vmatprep.mubr.f32.mxu0 %v3653
        %v3655 = vand.u32 %v2904, 4294901760
        %v3656 = vsub.f32 %v2904, %v3655
        %3657 = vmatmul.mubr.f32.gmra.mrb[0].mxu0 %v3656
        %v3658 = vpop.f32.mrb[0].mxu0
        %v3659 = vadd.f32 %v3470, %v3658
        %v3660 = vpop.f32.mrb[0].mxu0
        %v3661 = vand.u32 %v2913, 4294901760
        %v3662 = vsub.f32 %v2913, %v3661
        %3663 = vmatprep.mubr.f32.mxu0 %v3662
        %v3664 = vand.u32 %v2905, 4294901760
        %v3665 = vsub.f32 %v2905, %v3664
        %3666 = vmatmul.mubr.f32.gmra.mrb[0].mxu0 %v3665
        %v3667 = vpop.f32.mrb[0].mxu0
        %v3668 = vadd.f32 %v3477, %v3667
        %v3669 = vpop.f32.mrb[0].mxu0
        %v3670 = vand.u32 %v2914, 4294901760
        %v3671 = vsub.f32 %v2914, %v3670
        %3672 = vmatprep.mubr.f32.mxu0 %v3671
        %v3673 = vand.u32 %v2906, 4294901760
        %v3674 = vsub.f32 %v2906, %v3673
        %3675 = vmatmul.mubr.f32.gmra.mrb[0].mxu0 %v3674
        %v3676 = vpop.f32.mrb[0].mxu0
        %v3677 = vadd.f32 %v3484, %v3676
        %v3678 = vpop.f32.mrb[0].mxu0
        %v3679 = vand.u32 %v2915, 4294901760
        %v3680 = vsub.f32 %v2915, %v3679
        %3681 = vmatprep.mubr.f32.mxu0 %v3680
        %v3682 = vand.u32 %v2907, 4294901760
        %v3683 = vsub.f32 %v2907, %v3682
        %3684 = vmatmul.mubr.f32.gmra.mrb[0].mxu0 %v3683
        %v3685 = vpop.f32.mrb[0].mxu0
        %v3686 = vadd.f32 %v3491, %v3685
        %v3687 = vpop.f32.mrb[0].mxu0
        %v3688 = vand.u32 %v2916, 4294901760
        %v3689 = vsub.f32 %v2916, %v3688
        %3690 = vmatprep.mubr.f32.mxu0 %v3689
        %v3691 = vand.u32 %v2908, 4294901760
        %v3692 = vsub.f32 %v2908, %v3691
        %3693 = vmatmul.mubr.f32.gmra.mrb[0].mxu0 %v3692
        %v3694 = vpop.f32.mrb[0].mxu0
        %v3695 = vadd.f32 %v3498, %v3694
        %v3696 = vpop.f32.mrb[0].mxu0
        %v3697 = vand.u32 %v2917, 4294901760
        %v3698 = vsub.f32 %v2917, %v3697
        %3699 = vmatprep.mubr.f32.mxu0 %v3698
        %v3700 = vand.u32 %v2909, 4294901760
        %v3701 = vsub.f32 %v2909, %v3700
        %3702 = vmatmul.mubr.f32.gmra.mrb[0].mxu0 %v3701
        %v3703 = vpop.f32.mrb[0].mxu0
        %v3704 = vadd.f32 %v3505, %v3703
        %v3705 = vpop.f32.mrb[0].mxu0
        %v3706 = vand.u32 %v2918, 4294901760
        %v3707 = vsub.f32 %v2918, %v3706
        %3708 = vmatprep.mubr.f32.mxu0 %v3707
        %v3709 = vand.u32 %v2910, 4294901760
        %v3710 = vsub.f32 %v2910, %v3709
        %3711 = vmatmul.mubr.f32.gmra.mrb[0].mxu0 %v3710
        %v3712 = vpop.f32.mrb[0].mxu0
        %v3713 = vadd.f32 %v3512, %v3712
        %v3714 = vpop.f32.mrb[0].mxu0
        %3715 = vdwg.mxu0
        %3716 = vmatprep.subr.mxu0 0.0
        %v3717 = vand.u32 %v2929, 4294901760
        %3718 = vmatpush1.msra.mxu0 %v3717
        %3719 = vmatprep.subr.mxu0 0.0
        %v3720 = vand.u32 %v2930, 4294901760
        %3721 = vmatpush1.msra.mxu0 %v3720
        %3722 = vmatprep.subr.mxu0 0.0
        %v3723 = vand.u32 %v2931, 4294901760
        %3724 = vmatpush1.msra.mxu0 %v3723
        %3725 = vmatprep.subr.mxu0 0.0
        %v3726 = vand.u32 %v2932, 4294901760
        %3727 = vmatpush1.msra.mxu0 %v3726
        %3728 = vmatprep.subr.mxu0 0.0
        %v3729 = vand.u32 %v2933, 4294901760
        %3730 = vmatpush1.msra.mxu0 %v3729
        %3731 = vmatprep.subr.mxu0 0.0
        %v3732 = vand.u32 %v2934, 4294901760
        %3733 = vmatpush1.msra.mxu0 %v3732
        %3734 = vmatprep.subr.mxu0 0.0
        %v3735 = vand.u32 %v2935, 4294901760
        %3736 = vmatpush1.msra.mxu0 %v3735
        %3737 = vmatprep.subr.mxu0 0.0
        %v3738 = vand.u32 %v2936, 4294901760
        %3739 = vmatpush1.msra.mxu0 %v3738
        %3740 = vmatprep.subr.mxu0 0.0
        %v3741 = vand.u32 %v2937, 4294901760
        %3742 = vmatpush1.msra.mxu0 %v3741
        %3743 = vmatprep.subr.mxu0 0.0
        %v3744 = vand.u32 %v2938, 4294901760
        %3745 = vmatpush1.msra.mxu0 %v3744
        %3746 = vmatprep.subr.mxu0 0.0
        %v3747 = vand.u32 %v2939, 4294901760
        %3748 = vmatpush1.msra.mxu0 %v3747
        %3749 = vmatprep.subr.mxu0 0.0
        %v3750 = vand.u32 %v2940, 4294901760
        %3751 = vmatpush1.msra.mxu0 %v3750
        %3752 = vmatprep.subr.mxu0 0.0
        %v3753 = vand.u32 %v2941, 4294901760
        %3754 = vmatpush1.msra.mxu0 %v3753
        %3755 = vmatprep.subr.mxu0 0.0
        %v3756 = vand.u32 %v2942, 4294901760
        %3757 = vmatpush1.msra.mxu0 %v3756
        %3758 = vmatprep.subr.mxu0 0.0
        %v3759 = vand.u32 %v2943, 4294901760
        %3760 = vmatpush1.msra.mxu0 %v3759
        %3761 = vmatprep.subr.mxu0 0.0
        %v3762 = vand.u32 %v2944, 4294901760
        %3763 = vmatpush1.msra.mxu0 %v3762
        %3764 = vmatprep.subr.mxu0 0.0
        %v3765 = vand.u32 %v2945, 4294901760
        %3766 = vmatpush1.msra.mxu0 %v3765
        %3767 = vmatprep.subr.mxu0 0.0
        %v3768 = vand.u32 %v2946, 4294901760
        %3769 = vmatpush1.msra.mxu0 %v3768
        %3770 = vmatprep.subr.mxu0 0.0
        %v3771 = vand.u32 %v2947, 4294901760
        %3772 = vmatpush1.msra.mxu0 %v3771
        %3773 = vmatprep.subr.mxu0 0.0
        %v3774 = vand.u32 %v2948, 4294901760
        %3775 = vmatpush1.msra.mxu0 %v3774
        %3776 = vmatprep.subr.mxu0 0.0
        %v3777 = vand.u32 %v2949, 4294901760
        %3778 = vmatpush1.msra.mxu0 %v3777
        %3779 = vmatprep.subr.mxu0 0.0
        %v3780 = vand.u32 %v2950, 4294901760
        %3781 = vmatpush1.msra.mxu0 %v3780
        %3782 = vmatprep.subr.mxu0 0.0
        %v3783 = vand.u32 %v2951, 4294901760
        %3784 = vmatpush1.msra.mxu0 %v3783
        %3785 = vmatprep.subr.mxu0 0.0
        %v3786 = vand.u32 %v2952, 4294901760
        %3787 = vmatpush1.msra.mxu0 %v3786
        %3788 = vmatprep.subr.mxu0 0.0
        %v3789 = vand.u32 %v2953, 4294901760
        %3790 = vmatpush1.msra.mxu0 %v3789
        %3791 = vmatprep.subr.mxu0 0.0
        %v3792 = vand.u32 %v2954, 4294901760
        %3793 = vmatpush1.msra.mxu0 %v3792
        %3794 = vmatprep.subr.mxu0 0.0
        %v3795 = vand.u32 %v2955, 4294901760
        %3796 = vmatpush1.msra.mxu0 %v3795
        %3797 = vmatprep.subr.mxu0 0.0
        %v3798 = vand.u32 %v2956, 4294901760
        %3799 = vmatpush1.msra.mxu0 %v3798
        %3800 = vmatprep.subr.mxu0 0.0
        %v3801 = vand.u32 %v2957, 4294901760
        %3802 = vmatpush1.msra.mxu0 %v3801
        %3803 = vmatprep.subr.mxu0 0.0
        %v3804 = vand.u32 %v2958, 4294901760
        %3805 = vmatpush1.msra.mxu0 %v3804
        %3806 = vmatprep.subr.mxu0 0.0
        %v3807 = vand.u32 %v2959, 4294901760
        %3808 = vmatpush1.msra.mxu0 %v3807
        %3809 = vmatprep.subr.mxu0 0.0
        %v3810 = vand.u32 %v2960, 4294901760
        %3811 = vmatpush1.msra.mxu0 %v3810
        %v3812 = vand.u32 %v2911, 4294901760
        %v3813 = vsub.f32 %v2911, %v3812
        %v3814 = vand.u32 %v3813, 4294901760
        %3815 = vmatprep.mubr.f32.mxu0 %v3814
        %v3816 = vand.u32 %v2903, 4294901760
        %v3817 = vsub.f32 %v2903, %v3816
        %v3818 = vand.u32 %v3817, 4294901760
        %3819 = vmatmul.mubr.f32.gmra.mrb[0].mxu0 %v3818
        %v3820 = vpop.f32.mrb[0].mxu0
        %v3821 = vadd.f32 %v3650, %v3820
        %v3822 = vpop.f32.mrb[0].mxu0
        %v3823 = vand.u32 %v2912, 4294901760
        %v3824 = vsub.f32 %v2912, %v3823
        %v3825 = vand.u32 %v3824, 4294901760
        %3826 = vmatprep.mubr.f32.mxu0 %v3825
        %v3827 = vand.u32 %v2904, 4294901760
        %v3828 = vsub.f32 %v2904, %v3827
        %v3829 = vand.u32 %v3828, 4294901760
        %3830 = vmatmul.mubr.f32.gmra.mrb[0].mxu0 %v3829
        %v3831 = vpop.f32.mrb[0].mxu0
        %v3832 = vadd.f32 %v3659, %v3831
        %v3833 = vpop.f32.mrb[0].mxu0
        %v3834 = vand.u32 %v2913, 4294901760
        %v3835 = vsub.f32 %v2913, %v3834
        %v3836 = vand.u32 %v3835, 4294901760
        %3837 = vmatprep.mubr.f32.mxu0 %v3836
        %v3838 = vand.u32 %v2905, 4294901760
        %v3839 = vsub.f32 %v2905, %v3838
        %v3840 = vand.u32 %v3839, 4294901760
        %3841 = vmatmul.mubr.f32.gmra.mrb[0].mxu0 %v3840
        %v3842 = vpop.f32.mrb[0].mxu0
        %v3843 = vadd.f32 %v3668, %v3842
        %v3844 = vpop.f32.mrb[0].mxu0
        %v3845 = vand.u32 %v2914, 4294901760
        %v3846 = vsub.f32 %v2914, %v3845
        %v3847 = vand.u32 %v3846, 4294901760
        %3848 = vmatprep.mubr.f32.mxu0 %v3847
        %v3849 = vand.u32 %v2906, 4294901760
        %v3850 = vsub.f32 %v2906, %v3849
        %v3851 = vand.u32 %v3850, 4294901760
        %3852 = vmatmul.mubr.f32.gmra.mrb[0].mxu0 %v3851
        %v3853 = vpop.f32.mrb[0].mxu0
        %v3854 = vadd.f32 %v3677, %v3853
        %v3855 = vpop.f32.mrb[0].mxu0
        %v3856 = vand.u32 %v2915, 4294901760
        %v3857 = vsub.f32 %v2915, %v3856
        %v3858 = vand.u32 %v3857, 4294901760
        %3859 = vmatprep.mubr.f32.mxu0 %v3858
        %v3860 = vand.u32 %v2907, 4294901760
        %v3861 = vsub.f32 %v2907, %v3860
        %v3862 = vand.u32 %v3861, 4294901760
        %3863 = vmatmul.mubr.f32.gmra.mrb[0].mxu0 %v3862
        %v3864 = vpop.f32.mrb[0].mxu0
        %v3865 = vadd.f32 %v3686, %v3864
        %v3866 = vpop.f32.mrb[0].mxu0
        %v3867 = vand.u32 %v2916, 4294901760
        %v3868 = vsub.f32 %v2916, %v3867
        %v3869 = vand.u32 %v3868, 4294901760
        %3870 = vmatprep.mubr.f32.mxu0 %v3869
        %v3871 = vand.u32 %v2908, 4294901760
        %v3872 = vsub.f32 %v2908, %v3871
        %v3873 = vand.u32 %v3872, 4294901760
        %3874 = vmatmul.mubr.f32.gmra.mrb[0].mxu0 %v3873
        %v3875 = vpop.f32.mrb[0].mxu0
        %v3876 = vadd.f32 %v3695, %v3875
        %v3877 = vpop.f32.mrb[0].mxu0
        %v3878 = vand.u32 %v2917, 4294901760
        %v3879 = vsub.f32 %v2917, %v3878
        %v3880 = vand.u32 %v3879, 4294901760
        %3881 = vmatprep.mubr.f32.mxu0 %v3880
        %v3882 = vand.u32 %v2909, 4294901760
        %v3883 = vsub.f32 %v2909, %v3882
        %v3884 = vand.u32 %v3883, 4294901760
        %3885 = vmatmul.mubr.f32.gmra.mrb[0].mxu0 %v3884
        %v3886 = vpop.f32.mrb[0].mxu0
        %v3887 = vadd.f32 %v3704, %v3886
        %v3888 = vpop.f32.mrb[0].mxu0
        %v3889 = vand.u32 %v2918, 4294901760
        %v3890 = vsub.f32 %v2918, %v3889
        %v3891 = vand.u32 %v3890, 4294901760
        %3892 = vmatprep.mubr.f32.mxu0 %v3891
        %v3893 = vand.u32 %v2910, 4294901760
        %v3894 = vsub.f32 %v2910, %v3893
        %v3895 = vand.u32 %v3894, 4294901760
        %3896 = vmatmul.mubr.f32.gmra.mrb[0].mxu0 %v3895
        %v3897 = vpop.f32.mrb[0].mxu0
        %v3898 = vadd.f32 %v3713, %v3897
        %v3899 = vpop.f32.mrb[0].mxu0
        %3900 = vdwg.mxu0
        %3901 = vmatprep.subr.mxu0 0.0
        %v3902 = vand.u32 %v2929, 4294901760
        %v3903 = vsub.f32 %v2929, %v3902
        %v3904 = vand.u32 %v3903, 4294901760
        %3905 = vmatpush1.msra.mxu0 %v3904
        %3906 = vmatprep.subr.mxu0 0.0
        %v3907 = vand.u32 %v2930, 4294901760
        %v3908 = vsub.f32 %v2930, %v3907
        %v3909 = vand.u32 %v3908, 4294901760
        %3910 = vmatpush1.msra.mxu0 %v3909
        %3911 = vmatprep.subr.mxu0 0.0
        %v3912 = vand.u32 %v2931, 4294901760
        %v3913 = vsub.f32 %v2931, %v3912
        %v3914 = vand.u32 %v3913, 4294901760
        %3915 = vmatpush1.msra.mxu0 %v3914
        %3916 = vmatprep.subr.mxu0 0.0
        %v3917 = vand.u32 %v2932, 4294901760
        %v3918 = vsub.f32 %v2932, %v3917
        %v3919 = vand.u32 %v3918, 4294901760
        %3920 = vmatpush1.msra.mxu0 %v3919
        %3921 = vmatprep.subr.mxu0 0.0
        %v3922 = vand.u32 %v2933, 4294901760
        %v3923 = vsub.f32 %v2933, %v3922
        %v3924 = vand.u32 %v3923, 4294901760
        %3925 = vmatpush1.msra.mxu0 %v3924
        %3926 = vmatprep.subr.mxu0 0.0
        %v3927 = vand.u32 %v2934, 4294901760
        %v3928 = vsub.f32 %v2934, %v3927
        %v3929 = vand.u32 %v3928, 4294901760
        %3930 = vmatpush1.msra.mxu0 %v3929
        %3931 = vmatprep.subr.mxu0 0.0
        %v3932 = vand.u32 %v2935, 4294901760
        %v3933 = vsub.f32 %v2935, %v3932
        %v3934 = vand.u32 %v3933, 4294901760
        %3935 = vmatpush1.msra.mxu0 %v3934
        %3936 = vmatprep.subr.mxu0 0.0
        %v3937 = vand.u32 %v2936, 4294901760
        %v3938 = vsub.f32 %v2936, %v3937
        %v3939 = vand.u32 %v3938, 4294901760
        %3940 = vmatpush1.msra.mxu0 %v3939
        %3941 = vmatprep.subr.mxu0 0.0
        %v3942 = vand.u32 %v2937, 4294901760
        %v3943 = vsub.f32 %v2937, %v3942
        %v3944 = vand.u32 %v3943, 4294901760
        %3945 = vmatpush1.msra.mxu0 %v3944
        %3946 = vmatprep.subr.mxu0 0.0
        %v3947 = vand.u32 %v2938, 4294901760
        %v3948 = vsub.f32 %v2938, %v3947
        %v3949 = vand.u32 %v3948, 4294901760
        %3950 = vmatpush1.msra.mxu0 %v3949
        %3951 = vmatprep.subr.mxu0 0.0
        %v3952 = vand.u32 %v2939, 4294901760
        %v3953 = vsub.f32 %v2939, %v3952
        %v3954 = vand.u32 %v3953, 4294901760
        %3955 = vmatpush1.msra.mxu0 %v3954
        %3956 = vmatprep.subr.mxu0 0.0
        %v3957 = vand.u32 %v2940, 4294901760
        %v3958 = vsub.f32 %v2940, %v3957
        %v3959 = vand.u32 %v3958, 4294901760
        %3960 = vmatpush1.msra.mxu0 %v3959
        %3961 = vmatprep.subr.mxu0 0.0
        %v3962 = vand.u32 %v2941, 4294901760
        %v3963 = vsub.f32 %v2941, %v3962
        %v3964 = vand.u32 %v3963, 4294901760
        %3965 = vmatpush1.msra.mxu0 %v3964
        %3966 = vmatprep.subr.mxu0 0.0
        %v3967 = vand.u32 %v2942, 4294901760
        %v3968 = vsub.f32 %v2942, %v3967
        %v3969 = vand.u32 %v3968, 4294901760
        %3970 = vmatpush1.msra.mxu0 %v3969
        %3971 = vmatprep.subr.mxu0 0.0
        %v3972 = vand.u32 %v2943, 4294901760
        %v3973 = vsub.f32 %v2943, %v3972
        %v3974 = vand.u32 %v3973, 4294901760
        %3975 = vmatpush1.msra.mxu0 %v3974
        %3976 = vmatprep.subr.mxu0 0.0
        %v3977 = vand.u32 %v2944, 4294901760
        %v3978 = vsub.f32 %v2944, %v3977
        %v3979 = vand.u32 %v3978, 4294901760
        %3980 = vmatpush1.msra.mxu0 %v3979
        %3981 = vmatprep.subr.mxu0 0.0
        %v3982 = vand.u32 %v2945, 4294901760
        %v3983 = vsub.f32 %v2945, %v3982
        %v3984 = vand.u32 %v3983, 4294901760
        %3985 = vmatpush1.msra.mxu0 %v3984
        %3986 = vmatprep.subr.mxu0 0.0
        %v3987 = vand.u32 %v2946, 4294901760
        %v3988 = vsub.f32 %v2946, %v3987
        %v3989 = vand.u32 %v3988, 4294901760
        %3990 = vmatpush1.msra.mxu0 %v3989
        %3991 = vmatprep.subr.mxu0 0.0
        %v3992 = vand.u32 %v2947, 4294901760
        %v3993 = vsub.f32 %v2947, %v3992
        %v3994 = vand.u32 %v3993, 4294901760
        %3995 = vmatpush1.msra.mxu0 %v3994
        %3996 = vmatprep.subr.mxu0 0.0
        %v3997 = vand.u32 %v2948, 4294901760
        %v3998 = vsub.f32 %v2948, %v3997
        %v3999 = vand.u32 %v3998, 4294901760
        %4000 = vmatpush1.msra.mxu0 %v3999
        %4001 = vmatprep.subr.mxu0 0.0
        %v4002 = vand.u32 %v2949, 4294901760
        %v4003 = vsub.f32 %v2949, %v4002
        %v4004 = vand.u32 %v4003, 4294901760
        %4005 = vmatpush1.msra.mxu0 %v4004
        %4006 = vmatprep.subr.mxu0 0.0
        %v4007 = vand.u32 %v2950, 4294901760
        %v4008 = vsub.f32 %v2950, %v4007
        %v4009 = vand.u32 %v4008, 4294901760
        %4010 = vmatpush1.msra.mxu0 %v4009
        %4011 = vmatprep.subr.mxu0 0.0
        %v4012 = vand.u32 %v2951, 4294901760
        %v4013 = vsub.f32 %v2951, %v4012
        %v4014 = vand.u32 %v4013, 4294901760
        %4015 = vmatpush1.msra.mxu0 %v4014
        %4016 = vmatprep.subr.mxu0 0.0
        %v4017 = vand.u32 %v2952, 4294901760
        %v4018 = vsub.f32 %v2952, %v4017
        %v4019 = vand.u32 %v4018, 4294901760
        %4020 = vmatpush1.msra.mxu0 %v4019
        %4021 = vmatprep.subr.mxu0 0.0
        %v4022 = vand.u32 %v2953, 4294901760
        %v4023 = vsub.f32 %v2953, %v4022
        %v4024 = vand.u32 %v4023, 4294901760
        %4025 = vmatpush1.msra.mxu0 %v4024
        %4026 = vmatprep.subr.mxu0 0.0
        %v4027 = vand.u32 %v2954, 4294901760
        %v4028 = vsub.f32 %v2954, %v4027
        %v4029 = vand.u32 %v4028, 4294901760
        %4030 = vmatpush1.msra.mxu0 %v4029
        %4031 = vmatprep.subr.mxu0 0.0
        %v4032 = vand.u32 %v2955, 4294901760
        %v4033 = vsub.f32 %v2955, %v4032
        %v4034 = vand.u32 %v4033, 4294901760
        %4035 = vmatpush1.msra.mxu0 %v4034
        %4036 = vmatprep.subr.mxu0 0.0
        %v4037 = vand.u32 %v2956, 4294901760
        %v4038 = vsub.f32 %v2956, %v4037
        %v4039 = vand.u32 %v4038, 4294901760
        %4040 = vmatpush1.msra.mxu0 %v4039
        %4041 = vmatprep.subr.mxu0 0.0
        %v4042 = vand.u32 %v2957, 4294901760
        %v4043 = vsub.f32 %v2957, %v4042
        %v4044 = vand.u32 %v4043, 4294901760
        %4045 = vmatpush1.msra.mxu0 %v4044
        %4046 = vmatprep.subr.mxu0 0.0
        %v4047 = vand.u32 %v2958, 4294901760
        %v4048 = vsub.f32 %v2958, %v4047
        %v4049 = vand.u32 %v4048, 4294901760
        %4050 = vmatpush1.msra.mxu0 %v4049
        %4051 = vmatprep.subr.mxu0 0.0
        %v4052 = vand.u32 %v2959, 4294901760
        %v4053 = vsub.f32 %v2959, %v4052
        %v4054 = vand.u32 %v4053, 4294901760
        %4055 = vmatpush1.msra.mxu0 %v4054
        %4056 = vmatprep.subr.mxu0 0.0
        %v4057 = vand.u32 %v2960, 4294901760
        %v4058 = vsub.f32 %v2960, %v4057
        %v4059 = vand.u32 %v4058, 4294901760
        %4060 = vmatpush1.msra.mxu0 %v4059
        %v4061 = vand.u32 %v2911, 4294901760
        %4062 = vmatprep.mubr.f32.mxu0 %v4061
        %v4063 = vand.u32 %v2903, 4294901760
        %4064 = vmatmul.mubr.f32.gmra.mrb[0].mxu0 %v4063
        %v4065 = vpop.f32.mrb[0].mxu0
        %v4066 = vadd.f32 %v3821, %v4065
        %v4067 = vpop.f32.mrb[0].mxu0
        %v4068 = vand.u32 %v2912, 4294901760
        %4069 = vmatprep.mubr.f32.mxu0 %v4068
        %v4070 = vand.u32 %v2904, 4294901760
        %4071 = vmatmul.mubr.f32.gmra.mrb[0].mxu0 %v4070
        %v4072 = vpop.f32.mrb[0].mxu0
        %v4073 = vadd.f32 %v3832, %v4072
        %v4074 = vpop.f32.mrb[0].mxu0
        %v4075 = vand.u32 %v2913, 4294901760
        %4076 = vmatprep.mubr.f32.mxu0 %v4075
        %v4077 = vand.u32 %v2905, 4294901760
        %4078 = vmatmul.mubr.f32.gmra.mrb[0].mxu0 %v4077
        %v4079 = vpop.f32.mrb[0].mxu0
        %v4080 = vadd.f32 %v3843, %v4079
        %v4081 = vpop.f32.mrb[0].mxu0
        %v4082 = vand.u32 %v2914, 4294901760
        %4083 = vmatprep.mubr.f32.mxu0 %v4082
        %v4084 = vand.u32 %v2906, 4294901760
        %4085 = vmatmul.mubr.f32.gmra.mrb[0].mxu0 %v4084
        %v4086 = vpop.f32.mrb[0].mxu0
        %v4087 = vadd.f32 %v3854, %v4086
        %v4088 = vpop.f32.mrb[0].mxu0
        %v4089 = vand.u32 %v2915, 4294901760
        %4090 = vmatprep.mubr.f32.mxu0 %v4089
        %v4091 = vand.u32 %v2907, 4294901760
        %4092 = vmatmul.mubr.f32.gmra.mrb[0].mxu0 %v4091
        %v4093 = vpop.f32.mrb[0].mxu0
        %v4094 = vadd.f32 %v3865, %v4093
        %v4095 = vpop.f32.mrb[0].mxu0
        %v4096 = vand.u32 %v2916, 4294901760
        %4097 = vmatprep.mubr.f32.mxu0 %v4096
        %v4098 = vand.u32 %v2908, 4294901760
        %4099 = vmatmul.mubr.f32.gmra.mrb[0].mxu0 %v4098
        %v4100 = vpop.f32.mrb[0].mxu0
        %v4101 = vadd.f32 %v3876, %v4100
        %v4102 = vpop.f32.mrb[0].mxu0
        %v4103 = vand.u32 %v2917, 4294901760
        %4104 = vmatprep.mubr.f32.mxu0 %v4103
        %v4105 = vand.u32 %v2909, 4294901760
        %4106 = vmatmul.mubr.f32.gmra.mrb[0].mxu0 %v4105
        %v4107 = vpop.f32.mrb[0].mxu0
        %v4108 = vadd.f32 %v3887, %v4107
        %v4109 = vpop.f32.mrb[0].mxu0
        %v4110 = vand.u32 %v2918, 4294901760
        %4111 = vmatprep.mubr.f32.mxu0 %v4110
        %v4112 = vand.u32 %v2910, 4294901760
        %4113 = vmatmul.mubr.f32.gmra.mrb[0].mxu0 %v4112
        %v4114 = vpop.f32.mrb[0].mxu0
        %v4115 = vadd.f32 %v3898, %v4114
        %v4116 = vpop.f32.mrb[0].mxu0
        %4117 = vdwg.mxu0
        %4118 = vmatprep.subr.mxu0 0.0
        %v4119 = vand.u32 %v2929, 4294901760
        %4120 = vmatpush1.msra.mxu0 %v4119
        %4121 = vmatprep.subr.mxu0 0.0
        %v4122 = vand.u32 %v2930, 4294901760
        %4123 = vmatpush1.msra.mxu0 %v4122
        %4124 = vmatprep.subr.mxu0 0.0
        %v4125 = vand.u32 %v2931, 4294901760
        %4126 = vmatpush1.msra.mxu0 %v4125
        %4127 = vmatprep.subr.mxu0 0.0
        %v4128 = vand.u32 %v2932, 4294901760
        %4129 = vmatpush1.msra.mxu0 %v4128
        %4130 = vmatprep.subr.mxu0 0.0
        %v4131 = vand.u32 %v2933, 4294901760
        %4132 = vmatpush1.msra.mxu0 %v4131
        %4133 = vmatprep.subr.mxu0 0.0
        %v4134 = vand.u32 %v2934, 4294901760
        %4135 = vmatpush1.msra.mxu0 %v4134
        %4136 = vmatprep.subr.mxu0 0.0
        %v4137 = vand.u32 %v2935, 4294901760
        %4138 = vmatpush1.msra.mxu0 %v4137
        %4139 = vmatprep.subr.mxu0 0.0
        %v4140 = vand.u32 %v2936, 4294901760
        %4141 = vmatpush1.msra.mxu0 %v4140
        %4142 = vmatprep.subr.mxu0 0.0
        %v4143 = vand.u32 %v2937, 4294901760
        %4144 = vmatpush1.msra.mxu0 %v4143
        %4145 = vmatprep.subr.mxu0 0.0
        %v4146 = vand.u32 %v2938, 4294901760
        %4147 = vmatpush1.msra.mxu0 %v4146
        %4148 = vmatprep.subr.mxu0 0.0
        %v4149 = vand.u32 %v2939, 4294901760
        %4150 = vmatpush1.msra.mxu0 %v4149
        %4151 = vmatprep.subr.mxu0 0.0
        %v4152 = vand.u32 %v2940, 4294901760
        %4153 = vmatpush1.msra.mxu0 %v4152
        %4154 = vmatprep.subr.mxu0 0.0
        %v4155 = vand.u32 %v2941, 4294901760
        %4156 = vmatpush1.msra.mxu0 %v4155
        %4157 = vmatprep.subr.mxu0 0.0
        %v4158 = vand.u32 %v2942, 4294901760
        %4159 = vmatpush1.msra.mxu0 %v4158
        %4160 = vmatprep.subr.mxu0 0.0
        %v4161 = vand.u32 %v2943, 4294901760
        %4162 = vmatpush1.msra.mxu0 %v4161
        %4163 = vmatprep.subr.mxu0 0.0
        %v4164 = vand.u32 %v2944, 4294901760
        %4165 = vmatpush1.msra.mxu0 %v4164
        %4166 = vmatprep.subr.mxu0 0.0
        %v4167 = vand.u32 %v2945, 4294901760
        %4168 = vmatpush1.msra.mxu0 %v4167
        %4169 = vmatprep.subr.mxu0 0.0
        %v4170 = vand.u32 %v2946, 4294901760
        %4171 = vmatpush1.msra.mxu0 %v4170
        %4172 = vmatprep.subr.mxu0 0.0
        %v4173 = vand.u32 %v2947, 4294901760
        %4174 = vmatpush1.msra.mxu0 %v4173
        %4175 = vmatprep.subr.mxu0 0.0
        %v4176 = vand.u32 %v2948, 4294901760
        %4177 = vmatpush1.msra.mxu0 %v4176
        %4178 = vmatprep.subr.mxu0 0.0
        %v4179 = vand.u32 %v2949, 4294901760
        %4180 = vmatpush1.msra.mxu0 %v4179
        %4181 = vmatprep.subr.mxu0 0.0
        %v4182 = vand.u32 %v2950, 4294901760
        %4183 = vmatpush1.msra.mxu0 %v4182
        %4184 = vmatprep.subr.mxu0 0.0
        %v4185 = vand.u32 %v2951, 4294901760
        %4186 = vmatpush1.msra.mxu0 %v4185
        %4187 = vmatprep.subr.mxu0 0.0
        %v4188 = vand.u32 %v2952, 4294901760
        %4189 = vmatpush1.msra.mxu0 %v4188
        %4190 = vmatprep.subr.mxu0 0.0
        %v4191 = vand.u32 %v2953, 4294901760
        %4192 = vmatpush1.msra.mxu0 %v4191
        %4193 = vmatprep.subr.mxu0 0.0
        %v4194 = vand.u32 %v2954, 4294901760
        %4195 = vmatpush1.msra.mxu0 %v4194
        %4196 = vmatprep.subr.mxu0 0.0
        %v4197 = vand.u32 %v2955, 4294901760
        %4198 = vmatpush1.msra.mxu0 %v4197
        %4199 = vmatprep.subr.mxu0 0.0
        %v4200 = vand.u32 %v2956, 4294901760
        %4201 = vmatpush1.msra.mxu0 %v4200
        %4202 = vmatprep.subr.mxu0 0.0
        %v4203 = vand.u32 %v2957, 4294901760
        %4204 = vmatpush1.msra.mxu0 %v4203
        %4205 = vmatprep.subr.mxu0 0.0
        %v4206 = vand.u32 %v2958, 4294901760
        %4207 = vmatpush1.msra.mxu0 %v4206
        %4208 = vmatprep.subr.mxu0 0.0
        %v4209 = vand.u32 %v2959, 4294901760
        %4210 = vmatpush1.msra.mxu0 %v4209
        %4211 = vmatprep.subr.mxu0 0.0
        %v4212 = vand.u32 %v2960, 4294901760
        %4213 = vmatpush1.msra.mxu0 %v4212
        %v4214 = vand.u32 %v2911, 4294901760
        %4215 = vmatprep.mubr.f32.mxu0 %v4214
        %v4216 = vand.u32 %v2903, 4294901760
        %4217 = vmatmul.mubr.f32.gmra.mrb[0].mxu0 %v4216
        %v4218 = vpop.f32.mrb[0].mxu0
        %v4219 = vadd.f32 %v4066, %v4218
        %v4220 = vpop.f32.mrb[0].mxu0
        %v4221 = vand.u32 %v2912, 4294901760
        %4222 = vmatprep.mubr.f32.mxu0 %v4221
        %v4223 = vand.u32 %v2904, 4294901760
        %4224 = vmatmul.mubr.f32.gmra.mrb[0].mxu0 %v4223
        %v4225 = vpop.f32.mrb[0].mxu0
        %v4226 = vadd.f32 %v4073, %v4225
        %v4227 = vpop.f32.mrb[0].mxu0
        %v4228 = vand.u32 %v2913, 4294901760
        %4229 = vmatprep.mubr.f32.mxu0 %v4228
        %v4230 = vand.u32 %v2905, 4294901760
        %4231 = vmatmul.mubr.f32.gmra.mrb[0].mxu0 %v4230
        %v4232 = vpop.f32.mrb[0].mxu0
        %v4233 = vadd.f32 %v4080, %v4232
        %v4234 = vpop.f32.mrb[0].mxu0
        %v4235 = vand.u32 %v2914, 4294901760
        %4236 = vmatprep.mubr.f32.mxu0 %v4235
        %v4237 = vand.u32 %v2906, 4294901760
        %4238 = vmatmul.mubr.f32.gmra.mrb[0].mxu0 %v4237
        %v4239 = vpop.f32.mrb[0].mxu0
        %v4240 = vadd.f32 %v4087, %v4239
        %v4241 = vpop.f32.mrb[0].mxu0
        %v4242 = vand.u32 %v2915, 4294901760
        %4243 = vmatprep.mubr.f32.mxu0 %v4242
        %v4244 = vand.u32 %v2907, 4294901760
        %4245 = vmatmul.mubr.f32.gmra.mrb[0].mxu0 %v4244
        %v4246 = vpop.f32.mrb[0].mxu0
        %v4247 = vadd.f32 %v4094, %v4246
        %v4248 = vpop.f32.mrb[0].mxu0
        %v4249 = vand.u32 %v2916, 4294901760
        %4250 = vmatprep.mubr.f32.mxu0 %v4249
        %v4251 = vand.u32 %v2908, 4294901760
        %4252 = vmatmul.mubr.f32.gmra.mrb[0].mxu0 %v4251
        %v4253 = vpop.f32.mrb[0].mxu0
        %v4254 = vadd.f32 %v4101, %v4253
        %v4255 = vpop.f32.mrb[0].mxu0
        %v4256 = vand.u32 %v2917, 4294901760
        %4257 = vmatprep.mubr.f32.mxu0 %v4256
        %v4258 = vand.u32 %v2909, 4294901760
        %4259 = vmatmul.mubr.f32.gmra.mrb[0].mxu0 %v4258
        %v4260 = vpop.f32.mrb[0].mxu0
        %v4261 = vadd.f32 %v4108, %v4260
        %v4262 = vpop.f32.mrb[0].mxu0
        %v4263 = vand.u32 %v2918, 4294901760
        %4264 = vmatprep.mubr.f32.mxu0 %v4263
        %v4265 = vand.u32 %v2910, 4294901760
        %4266 = vmatmul.mubr.f32.gmra.mrb[0].mxu0 %v4265
        %v4267 = vpop.f32.mrb[0].mxu0
        %v4268 = vadd.f32 %v4115, %v4267
        %v4269 = vpop.f32.mrb[0].mxu0
        %4270 = vdwg.mxu0
        %4271 = vmatprep.subr.mxu0 0.0
        %v4272 = vand.u32 %v2961, 4294901760
        %4273 = vmatpush1.msra.mxu0 %v4272
        %4274 = vmatprep.subr.mxu0 0.0
        %v4275 = vand.u32 %v2962, 4294901760
        %4276 = vmatpush1.msra.mxu0 %v4275
        %4277 = vmatprep.subr.mxu0 0.0
        %v4278 = vand.u32 %v2963, 4294901760
        %4279 = vmatpush1.msra.mxu0 %v4278
        %4280 = vmatprep.subr.mxu0 0.0
        %v4281 = vand.u32 %v2964, 4294901760
        %4282 = vmatpush1.msra.mxu0 %v4281
        %4283 = vmatprep.subr.mxu0 0.0
        %v4284 = vand.u32 %v2965, 4294901760
        %4285 = vmatpush1.msra.mxu0 %v4284
        %4286 = vmatprep.subr.mxu0 0.0
        %v4287 = vand.u32 %v2966, 4294901760
        %4288 = vmatpush1.msra.mxu0 %v4287
        %4289 = vmatprep.subr.mxu0 0.0
        %v4290 = vand.u32 %v2967, 4294901760
        %4291 = vmatpush1.msra.mxu0 %v4290
        %4292 = vmatprep.subr.mxu0 0.0
        %v4293 = vand.u32 %v2968, 4294901760
        %4294 = vmatpush1.msra.mxu0 %v4293
        %4295 = vmatprep.subr.mxu0 0.0
        %v4296 = vand.u32 %v2969, 4294901760
        %4297 = vmatpush1.msra.mxu0 %v4296
        %4298 = vmatprep.subr.mxu0 0.0
        %v4299 = vand.u32 %v2970, 4294901760
        %4300 = vmatpush1.msra.mxu0 %v4299
        %4301 = vmatprep.subr.mxu0 0.0
        %v4302 = vand.u32 %v2971, 4294901760
        %4303 = vmatpush1.msra.mxu0 %v4302
        %4304 = vmatprep.subr.mxu0 0.0
        %v4305 = vand.u32 %v2972, 4294901760
        %4306 = vmatpush1.msra.mxu0 %v4305
        %4307 = vmatprep.subr.mxu0 0.0
        %v4308 = vand.u32 %v2973, 4294901760
        %4309 = vmatpush1.msra.mxu0 %v4308
        %4310 = vmatprep.subr.mxu0 0.0
        %v4311 = vand.u32 %v2974, 4294901760
        %4312 = vmatpush1.msra.mxu0 %v4311
        %4313 = vmatprep.subr.mxu0 0.0
        %v4314 = vand.u32 %v2975, 4294901760
        %4315 = vmatpush1.msra.mxu0 %v4314
        %4316 = vmatprep.subr.mxu0 0.0
        %v4317 = vand.u32 %v2976, 4294901760
        %4318 = vmatpush1.msra.mxu0 %v4317
        %4319 = vmatprep.subr.mxu0 0.0
        %v4320 = vand.u32 %v2977, 4294901760
        %4321 = vmatpush1.msra.mxu0 %v4320
        %4322 = vmatprep.subr.mxu0 0.0
        %v4323 = vand.u32 %v2978, 4294901760
        %4324 = vmatpush1.msra.mxu0 %v4323
        %4325 = vmatprep.subr.mxu0 0.0
        %v4326 = vand.u32 %v2979, 4294901760
        %4327 = vmatpush1.msra.mxu0 %v4326
        %4328 = vmatprep.subr.mxu0 0.0
        %v4329 = vand.u32 %v2980, 4294901760
        %4330 = vmatpush1.msra.mxu0 %v4329
        %4331 = vmatprep.subr.mxu0 0.0
        %v4332 = vand.u32 %v2981, 4294901760
        %4333 = vmatpush1.msra.mxu0 %v4332
        %4334 = vmatprep.subr.mxu0 0.0
        %v4335 = vand.u32 %v2982, 4294901760
        %4336 = vmatpush1.msra.mxu0 %v4335
        %4337 = vmatprep.subr.mxu0 0.0
        %v4338 = vand.u32 %v2983, 4294901760
        %4339 = vmatpush1.msra.mxu0 %v4338
        %4340 = vmatprep.subr.mxu0 0.0
        %v4341 = vand.u32 %v2984, 4294901760
        %4342 = vmatpush1.msra.mxu0 %v4341
        %4343 = vmatprep.subr.mxu0 0.0
        %v4344 = vand.u32 %v2985, 4294901760
        %4345 = vmatpush1.msra.mxu0 %v4344
        %4346 = vmatprep.subr.mxu0 0.0
        %v4347 = vand.u32 %v2986, 4294901760
        %4348 = vmatpush1.msra.mxu0 %v4347
        %4349 = vmatprep.subr.mxu0 0.0
        %v4350 = vand.u32 %v2987, 4294901760
        %4351 = vmatpush1.msra.mxu0 %v4350
        %4352 = vmatprep.subr.mxu0 0.0
        %v4353 = vand.u32 %v2988, 4294901760
        %4354 = vmatpush1.msra.mxu0 %v4353
        %4355 = vmatprep.subr.mxu0 0.0
        %v4356 = vand.u32 %v2989, 4294901760
        %4357 = vmatpush1.msra.mxu0 %v4356
        %4358 = vmatprep.subr.mxu0 0.0
        %v4359 = vand.u32 %v2990, 4294901760
        %4360 = vmatpush1.msra.mxu0 %v4359
        %4361 = vmatprep.subr.mxu0 0.0
        %v4362 = vand.u32 %v2991, 4294901760
        %4363 = vmatpush1.msra.mxu0 %v4362
        %4364 = vmatprep.subr.mxu0 0.0
        %v4365 = vand.u32 %v2992, 4294901760
        %4366 = vmatpush1.msra.mxu0 %v4365
        %v4367 = vand.u32 %v2905, 4294901760
        %v4368 = vsub.f32 %v2905, %v4367
        %v4369 = vand.u32 %v4368, 4294901760
        %v4370 = vsub.f32 %v4368, %v4369
        %v4371 = vand.u32 %v4370, 4294901760
        %4372 = vmatprep.mubr.f32.mxu0 %v4371
        %v4373 = vand.u32 %v2919, 4294901760
        %v4374 = vsub.f32 %v2919, %v4373
        %v4375 = vand.u32 %v4374, 4294901760
        %v4376 = vsub.f32 %v4374, %v4375
        %v4377 = vand.u32 %v4376, 4294901760
        %4378 = vmatmul.mubr.f32.gmra.mrb[0].mxu0 %v4377
        %v4379 = vpop.f32.mrb[0].mxu0
        %v4380 = vadd.f32 %v4219, %v4379
        %v4381 = vpop.f32.mrb[0].mxu0
        %v4382 = vand.u32 %v2906, 4294901760
        %v4383 = vsub.f32 %v2906, %v4382
        %v4384 = vand.u32 %v4383, 4294901760
        %v4385 = vsub.f32 %v4383, %v4384
        %v4386 = vand.u32 %v4385, 4294901760
        %4387 = vmatprep.mubr.f32.mxu0 %v4386
        %v4388 = vand.u32 %v2920, 4294901760
        %v4389 = vsub.f32 %v2920, %v4388
        %v4390 = vand.u32 %v4389, 4294901760
        %v4391 = vsub.f32 %v4389, %v4390
        %v4392 = vand.u32 %v4391, 4294901760
        %4393 = vmatmul.mubr.f32.gmra.mrb[0].mxu0 %v4392
        %v4394 = vpop.f32.mrb[0].mxu0
        %v4395 = vadd.f32 %v4226, %v4394
        %v4396 = vpop.f32.mrb[0].mxu0
        %v4397 = vand.u32 %v2907, 4294901760
        %v4398 = vsub.f32 %v2907, %v4397
        %v4399 = vand.u32 %v4398, 4294901760
        %v4400 = vsub.f32 %v4398, %v4399
        %v4401 = vand.u32 %v4400, 4294901760
        %4402 = vmatprep.mubr.f32.mxu0 %v4401
        %v4403 = vand.u32 %v2921, 4294901760
        %v4404 = vsub.f32 %v2921, %v4403
        %v4405 = vand.u32 %v4404, 4294901760
        %v4406 = vsub.f32 %v4404, %v4405
        %v4407 = vand.u32 %v4406, 4294901760
        %4408 = vmatmul.mubr.f32.gmra.mrb[0].mxu0 %v4407
        %v4409 = vpop.f32.mrb[0].mxu0
        %v4410 = vadd.f32 %v4233, %v4409
        %v4411 = vpop.f32.mrb[0].mxu0
        %v4412 = vand.u32 %v2908, 4294901760
        %v4413 = vsub.f32 %v2908, %v4412
        %v4414 = vand.u32 %v4413, 4294901760
        %v4415 = vsub.f32 %v4413, %v4414
        %v4416 = vand.u32 %v4415, 4294901760
        %4417 = vmatprep.mubr.f32.mxu0 %v4416
        %v4418 = vand.u32 %v2922, 4294901760
        %v4419 = vsub.f32 %v2922, %v4418
        %v4420 = vand.u32 %v4419, 4294901760
        %v4421 = vsub.f32 %v4419, %v4420
        %v4422 = vand.u32 %v4421, 4294901760
        %4423 = vmatmul.mubr.f32.gmra.mrb[0].mxu0 %v4422
        %v4424 = vpop.f32.mrb[0].mxu0
        %v4425 = vadd.f32 %v4240, %v4424
        %v4426 = vpop.f32.mrb[0].mxu0
        %v4427 = vand.u32 %v2909, 4294901760
        %v4428 = vsub.f32 %v2909, %v4427
        %v4429 = vand.u32 %v4428, 4294901760
        %v4430 = vsub.f32 %v4428, %v4429
        %v4431 = vand.u32 %v4430, 4294901760
        %4432 = vmatprep.mubr.f32.mxu0 %v4431
        %v4433 = vand.u32 %v2923, 4294901760
        %v4434 = vsub.f32 %v2923, %v4433
        %v4435 = vand.u32 %v4434, 4294901760
        %v4436 = vsub.f32 %v4434, %v4435
        %v4437 = vand.u32 %v4436, 4294901760
        %4438 = vmatmul.mubr.f32.gmra.mrb[0].mxu0 %v4437
        %v4439 = vpop.f32.mrb[0].mxu0
        %v4440 = vadd.f32 %v4247, %v4439
        %v4441 = vpop.f32.mrb[0].mxu0
        %v4442 = vand.u32 %v2910, 4294901760
        %v4443 = vsub.f32 %v2910, %v4442
        %v4444 = vand.u32 %v4443, 4294901760
        %v4445 = vsub.f32 %v4443, %v4444
        %v4446 = vand.u32 %v4445, 4294901760
        %4447 = vmatprep.mubr.f32.mxu0 %v4446
        %v4448 = vand.u32 %v2924, 4294901760
        %v4449 = vsub.f32 %v2924, %v4448
        %v4450 = vand.u32 %v4449, 4294901760
        %v4451 = vsub.f32 %v4449, %v4450
        %v4452 = vand.u32 %v4451, 4294901760
        %4453 = vmatmul.mubr.f32.gmra.mrb[0].mxu0 %v4452
        %v4454 = vpop.f32.mrb[0].mxu0
        %v4455 = vadd.f32 %v4254, %v4454
        %v4456 = vpop.f32.mrb[0].mxu0
        %v4457 = vand.u32 %v2927, 4294901760
        %v4458 = vsub.f32 %v2927, %v4457
        %v4459 = vand.u32 %v4458, 4294901760
        %v4460 = vsub.f32 %v4458, %v4459
        %v4461 = vand.u32 %v4460, 4294901760
        %4462 = vmatprep.mubr.f32.mxu0 %v4461
        %v4463 = vand.u32 %v2925, 4294901760
        %v4464 = vsub.f32 %v2925, %v4463
        %v4465 = vand.u32 %v4464, 4294901760
        %v4466 = vsub.f32 %v4464, %v4465
        %v4467 = vand.u32 %v4466, 4294901760
        %4468 = vmatmul.mubr.f32.gmra.mrb[0].mxu0 %v4467
        %v4469 = vpop.f32.mrb[0].mxu0
        %v4470 = vadd.f32 %v4261, %v4469
        %v4471 = vpop.f32.mrb[0].mxu0
        %v4472 = vand.u32 %v2928, 4294901760
        %v4473 = vsub.f32 %v2928, %v4472
        %v4474 = vand.u32 %v4473, 4294901760
        %v4475 = vsub.f32 %v4473, %v4474
        %v4476 = vand.u32 %v4475, 4294901760
        %4477 = vmatprep.mubr.f32.mxu0 %v4476
        %v4478 = vand.u32 %v2926, 4294901760
        %v4479 = vsub.f32 %v2926, %v4478
        %v4480 = vand.u32 %v4479, 4294901760
        %v4481 = vsub.f32 %v4479, %v4480
        %v4482 = vand.u32 %v4481, 4294901760
        %4483 = vmatmul.mubr.f32.gmra.mrb[0].mxu0 %v4482
        %v4484 = vpop.f32.mrb[0].mxu0
        %v4485 = vadd.f32 %v4268, %v4484
        %v4486 = vpop.f32.mrb[0].mxu0
        %4487 = vdwg.mxu0
        %4488 = vmatprep.subr.mxu0 0.0
        %v4489 = vand.u32 %v2961, 4294901760
        %v4490 = vsub.f32 %v2961, %v4489
        %v4491 = vand.u32 %v4490, 4294901760
        %v4492 = vsub.f32 %v4490, %v4491
        %v4493 = vand.u32 %v4492, 4294901760
        %4494 = vmatpush1.msra.mxu0 %v4493
        %4495 = vmatprep.subr.mxu0 0.0
        %v4496 = vand.u32 %v2962, 4294901760
        %v4497 = vsub.f32 %v2962, %v4496
        %v4498 = vand.u32 %v4497, 4294901760
        %v4499 = vsub.f32 %v4497, %v4498
        %v4500 = vand.u32 %v4499, 4294901760
        %4501 = vmatpush1.msra.mxu0 %v4500
        %4502 = vmatprep.subr.mxu0 0.0
        %v4503 = vand.u32 %v2963, 4294901760
        %v4504 = vsub.f32 %v2963, %v4503
        %v4505 = vand.u32 %v4504, 4294901760
        %v4506 = vsub.f32 %v4504, %v4505
        %v4507 = vand.u32 %v4506, 4294901760
        %4508 = vmatpush1.msra.mxu0 %v4507
        %4509 = vmatprep.subr.mxu0 0.0
        %v4510 = vand.u32 %v2964, 4294901760
        %v4511 = vsub.f32 %v2964, %v4510
        %v4512 = vand.u32 %v4511, 4294901760
        %v4513 = vsub.f32 %v4511, %v4512
        %v4514 = vand.u32 %v4513, 4294901760
        %4515 = vmatpush1.msra.mxu0 %v4514
        %4516 = vmatprep.subr.mxu0 0.0
        %v4517 = vand.u32 %v2965, 4294901760
        %v4518 = vsub.f32 %v2965, %v4517
        %v4519 = vand.u32 %v4518, 4294901760
        %v4520 = vsub.f32 %v4518, %v4519
        %v4521 = vand.u32 %v4520, 4294901760
        %4522 = vmatpush1.msra.mxu0 %v4521
        %4523 = vmatprep.subr.mxu0 0.0
        %v4524 = vand.u32 %v2966, 4294901760
        %v4525 = vsub.f32 %v2966, %v4524
        %v4526 = vand.u32 %v4525, 4294901760
        %v4527 = vsub.f32 %v4525, %v4526
        %v4528 = vand.u32 %v4527, 4294901760
        %4529 = vmatpush1.msra.mxu0 %v4528
        %4530 = vmatprep.subr.mxu0 0.0
        %v4531 = vand.u32 %v2967, 4294901760
        %v4532 = vsub.f32 %v2967, %v4531
        %v4533 = vand.u32 %v4532, 4294901760
        %v4534 = vsub.f32 %v4532, %v4533
        %v4535 = vand.u32 %v4534, 4294901760
        %4536 = vmatpush1.msra.mxu0 %v4535
        %4537 = vmatprep.subr.mxu0 0.0
        %v4538 = vand.u32 %v2968, 4294901760
        %v4539 = vsub.f32 %v2968, %v4538
        %v4540 = vand.u32 %v4539, 4294901760
        %v4541 = vsub.f32 %v4539, %v4540
        %v4542 = vand.u32 %v4541, 4294901760
        %4543 = vmatpush1.msra.mxu0 %v4542
        %4544 = vmatprep.subr.mxu0 0.0
        %v4545 = vand.u32 %v2969, 4294901760
        %v4546 = vsub.f32 %v2969, %v4545
        %v4547 = vand.u32 %v4546, 4294901760
        %v4548 = vsub.f32 %v4546, %v4547
        %v4549 = vand.u32 %v4548, 4294901760
        %4550 = vmatpush1.msra.mxu0 %v4549
        %4551 = vmatprep.subr.mxu0 0.0
        %v4552 = vand.u32 %v2970, 4294901760
        %v4553 = vsub.f32 %v2970, %v4552
        %v4554 = vand.u32 %v4553, 4294901760
        %v4555 = vsub.f32 %v4553, %v4554
        %v4556 = vand.u32 %v4555, 4294901760
        %4557 = vmatpush1.msra.mxu0 %v4556
        %4558 = vmatprep.subr.mxu0 0.0
        %v4559 = vand.u32 %v2971, 4294901760
        %v4560 = vsub.f32 %v2971, %v4559
        %v4561 = vand.u32 %v4560, 4294901760
        %v4562 = vsub.f32 %v4560, %v4561
        %v4563 = vand.u32 %v4562, 4294901760
        %4564 = vmatpush1.msra.mxu0 %v4563
        %4565 = vmatprep.subr.mxu0 0.0
        %v4566 = vand.u32 %v2972, 4294901760
        %v4567 = vsub.f32 %v2972, %v4566
        %v4568 = vand.u32 %v4567, 4294901760
        %v4569 = vsub.f32 %v4567, %v4568
        %v4570 = vand.u32 %v4569, 4294901760
        %4571 = vmatpush1.msra.mxu0 %v4570
        %4572 = vmatprep.subr.mxu0 0.0
        %v4573 = vand.u32 %v2973, 4294901760
        %v4574 = vsub.f32 %v2973, %v4573
        %v4575 = vand.u32 %v4574, 4294901760
        %v4576 = vsub.f32 %v4574, %v4575
        %v4577 = vand.u32 %v4576, 4294901760
        %4578 = vmatpush1.msra.mxu0 %v4577
        %4579 = vmatprep.subr.mxu0 0.0
        %v4580 = vand.u32 %v2974, 4294901760
        %v4581 = vsub.f32 %v2974, %v4580
        %v4582 = vand.u32 %v4581, 4294901760
        %v4583 = vsub.f32 %v4581, %v4582
        %v4584 = vand.u32 %v4583, 4294901760
        %4585 = vmatpush1.msra.mxu0 %v4584
        %4586 = vmatprep.subr.mxu0 0.0
        %v4587 = vand.u32 %v2975, 4294901760
        %v4588 = vsub.f32 %v2975, %v4587
        %v4589 = vand.u32 %v4588, 4294901760
        %v4590 = vsub.f32 %v4588, %v4589
        %v4591 = vand.u32 %v4590, 4294901760
        %4592 = vmatpush1.msra.mxu0 %v4591
        %4593 = vmatprep.subr.mxu0 0.0
        %v4594 = vand.u32 %v2976, 4294901760
        %v4595 = vsub.f32 %v2976, %v4594
        %v4596 = vand.u32 %v4595, 4294901760
        %v4597 = vsub.f32 %v4595, %v4596
        %v4598 = vand.u32 %v4597, 4294901760
        %4599 = vmatpush1.msra.mxu0 %v4598
        %4600 = vmatprep.subr.mxu0 0.0
        %v4601 = vand.u32 %v2977, 4294901760
        %v4602 = vsub.f32 %v2977, %v4601
        %v4603 = vand.u32 %v4602, 4294901760
        %v4604 = vsub.f32 %v4602, %v4603
        %v4605 = vand.u32 %v4604, 4294901760
        %4606 = vmatpush1.msra.mxu0 %v4605
        %4607 = vmatprep.subr.mxu0 0.0
        %v4608 = vand.u32 %v2978, 4294901760
        %v4609 = vsub.f32 %v2978, %v4608
        %v4610 = vand.u32 %v4609, 4294901760
        %v4611 = vsub.f32 %v4609, %v4610
        %v4612 = vand.u32 %v4611, 4294901760
        %4613 = vmatpush1.msra.mxu0 %v4612
        %4614 = vmatprep.subr.mxu0 0.0
        %v4615 = vand.u32 %v2979, 4294901760
        %v4616 = vsub.f32 %v2979, %v4615
        %v4617 = vand.u32 %v4616, 4294901760
        %v4618 = vsub.f32 %v4616, %v4617
        %v4619 = vand.u32 %v4618, 4294901760
        %4620 = vmatpush1.msra.mxu0 %v4619
        %4621 = vmatprep.subr.mxu0 0.0
        %v4622 = vand.u32 %v2980, 4294901760
        %v4623 = vsub.f32 %v2980, %v4622
        %v4624 = vand.u32 %v4623, 4294901760
        %v4625 = vsub.f32 %v4623, %v4624
        %v4626 = vand.u32 %v4625, 4294901760
        %4627 = vmatpush1.msra.mxu0 %v4626
        %4628 = vmatprep.subr.mxu0 0.0
        %v4629 = vand.u32 %v2981, 4294901760
        %v4630 = vsub.f32 %v2981, %v4629
        %v4631 = vand.u32 %v4630, 4294901760
        %v4632 = vsub.f32 %v4630, %v4631
        %v4633 = vand.u32 %v4632, 4294901760
        %4634 = vmatpush1.msra.mxu0 %v4633
        %4635 = vmatprep.subr.mxu0 0.0
        %v4636 = vand.u32 %v2982, 4294901760
        %v4637 = vsub.f32 %v2982, %v4636
        %v4638 = vand.u32 %v4637, 4294901760
        %v4639 = vsub.f32 %v4637, %v4638
        %v4640 = vand.u32 %v4639, 4294901760
        %4641 = vmatpush1.msra.mxu0 %v4640
        %4642 = vmatprep.subr.mxu0 0.0
        %v4643 = vand.u32 %v2983, 4294901760
        %v4644 = vsub.f32 %v2983, %v4643
        %v4645 = vand.u32 %v4644, 4294901760
        %v4646 = vsub.f32 %v4644, %v4645
        %v4647 = vand.u32 %v4646, 4294901760
        %4648 = vmatpush1.msra.mxu0 %v4647
        %4649 = vmatprep.subr.mxu0 0.0
        %v4650 = vand.u32 %v2984, 4294901760
        %v4651 = vsub.f32 %v2984, %v4650
        %v4652 = vand.u32 %v4651, 4294901760
        %v4653 = vsub.f32 %v4651, %v4652
        %v4654 = vand.u32 %v4653, 4294901760
        %4655 = vmatpush1.msra.mxu0 %v4654
        %4656 = vmatprep.subr.mxu0 0.0
        %v4657 = vand.u32 %v2985, 4294901760
        %v4658 = vsub.f32 %v2985, %v4657
        %v4659 = vand.u32 %v4658, 4294901760
        %v4660 = vsub.f32 %v4658, %v4659
        %v4661 = vand.u32 %v4660, 4294901760
        %4662 = vmatpush1.msra.mxu0 %v4661
        %4663 = vmatprep.subr.mxu0 0.0
        %v4664 = vand.u32 %v2986, 4294901760
        %v4665 = vsub.f32 %v2986, %v4664
        %v4666 = vand.u32 %v4665, 4294901760
        %v4667 = vsub.f32 %v4665, %v4666
        %v4668 = vand.u32 %v4667, 4294901760
        %4669 = vmatpush1.msra.mxu0 %v4668
        %4670 = vmatprep.subr.mxu0 0.0
        %v4671 = vand.u32 %v2987, 4294901760
        %v4672 = vsub.f32 %v2987, %v4671
        %v4673 = vand.u32 %v4672, 4294901760
        %v4674 = vsub.f32 %v4672, %v4673
        %v4675 = vand.u32 %v4674, 4294901760
        %4676 = vmatpush1.msra.mxu0 %v4675
        %4677 = vmatprep.subr.mxu0 0.0
        %v4678 = vand.u32 %v2988, 4294901760
        %v4679 = vsub.f32 %v2988, %v4678
        %v4680 = vand.u32 %v4679, 4294901760
        %v4681 = vsub.f32 %v4679, %v4680
        %v4682 = vand.u32 %v4681, 4294901760
        %4683 = vmatpush1.msra.mxu0 %v4682
        %4684 = vmatprep.subr.mxu0 0.0
        %v4685 = vand.u32 %v2989, 4294901760
        %v4686 = vsub.f32 %v2989, %v4685
        %v4687 = vand.u32 %v4686, 4294901760
        %v4688 = vsub.f32 %v4686, %v4687
        %v4689 = vand.u32 %v4688, 4294901760
        %4690 = vmatpush1.msra.mxu0 %v4689
        %4691 = vmatprep.subr.mxu0 0.0
        %v4692 = vand.u32 %v2990, 4294901760
        %v4693 = vsub.f32 %v2990, %v4692
        %v4694 = vand.u32 %v4693, 4294901760
        %v4695 = vsub.f32 %v4693, %v4694
        %v4696 = vand.u32 %v4695, 4294901760
        %4697 = vmatpush1.msra.mxu0 %v4696
        %4698 = vmatprep.subr.mxu0 0.0
        %v4699 = vand.u32 %v2991, 4294901760
        %v4700 = vsub.f32 %v2991, %v4699
        %v4701 = vand.u32 %v4700, 4294901760
        %v4702 = vsub.f32 %v4700, %v4701
        %v4703 = vand.u32 %v4702, 4294901760
        %4704 = vmatpush1.msra.mxu0 %v4703
        %4705 = vmatprep.subr.mxu0 0.0
        %v4706 = vand.u32 %v2992, 4294901760
        %v4707 = vsub.f32 %v2992, %v4706
        %v4708 = vand.u32 %v4707, 4294901760
        %v4709 = vsub.f32 %v4707, %v4708
        %v4710 = vand.u32 %v4709, 4294901760
        %4711 = vmatpush1.msra.mxu0 %v4710
        %v4712 = vand.u32 %v2905, 4294901760
        %4713 = vmatprep.mubr.f32.mxu0 %v4712
        %v4714 = vand.u32 %v2919, 4294901760
        %4715 = vmatmul.mubr.f32.gmra.mrb[0].mxu0 %v4714
        %v4716 = vpop.f32.mrb[0].mxu0
        %v4717 = vadd.f32 %v4380, %v4716
        %v4718 = vpop.f32.mrb[0].mxu0
        %v4719 = vand.u32 %v2906, 4294901760
        %4720 = vmatprep.mubr.f32.mxu0 %v4719
        %v4721 = vand.u32 %v2920, 4294901760
        %4722 = vmatmul.mubr.f32.gmra.mrb[0].mxu0 %v4721
        %v4723 = vpop.f32.mrb[0].mxu0
        %v4724 = vadd.f32 %v4395, %v4723
        %v4725 = vpop.f32.mrb[0].mxu0
        %v4726 = vand.u32 %v2907, 4294901760
        %4727 = vmatprep.mubr.f32.mxu0 %v4726
        %v4728 = vand.u32 %v2921, 4294901760
        %4729 = vmatmul.mubr.f32.gmra.mrb[0].mxu0 %v4728
        %v4730 = vpop.f32.mrb[0].mxu0
        %v4731 = vadd.f32 %v4410, %v4730
        %v4732 = vpop.f32.mrb[0].mxu0
        %v4733 = vand.u32 %v2908, 4294901760
        %4734 = vmatprep.mubr.f32.mxu0 %v4733
        %v4735 = vand.u32 %v2922, 4294901760
        %4736 = vmatmul.mubr.f32.gmra.mrb[0].mxu0 %v4735
        %v4737 = vpop.f32.mrb[0].mxu0
        %v4738 = vadd.f32 %v4425, %v4737
        %v4739 = vpop.f32.mrb[0].mxu0
        %v4740 = vand.u32 %v2909, 4294901760
        %4741 = vmatprep.mubr.f32.mxu0 %v4740
        %v4742 = vand.u32 %v2923, 4294901760
        %4743 = vmatmul.mubr.f32.gmra.mrb[0].mxu0 %v4742
        %v4744 = vpop.f32.mrb[0].mxu0
        %v4745 = vadd.f32 %v4440, %v4744
        %v4746 = vpop.f32.mrb[0].mxu0
        %v4747 = vand.u32 %v2910, 4294901760
        %4748 = vmatprep.mubr.f32.mxu0 %v4747
        %v4749 = vand.u32 %v2924, 4294901760
        %4750 = vmatmul.mubr.f32.gmra.mrb[0].mxu0 %v4749
        %v4751 = vpop.f32.mrb[0].mxu0
        %v4752 = vadd.f32 %v4455, %v4751
        %v4753 = vpop.f32.mrb[0].mxu0
        %v4754 = vand.u32 %v2927, 4294901760
        %4755 = vmatprep.mubr.f32.mxu0 %v4754
        %v4756 = vand.u32 %v2925, 4294901760
        %4757 = vmatmul.mubr.f32.gmra.mrb[0].mxu0 %v4756
        %v4758 = vpop.f32.mrb[0].mxu0
        %v4759 = vadd.f32 %v4470, %v4758
        %v4760 = vpop.f32.mrb[0].mxu0
        %v4761 = vand.u32 %v2928, 4294901760
        %4762 = vmatprep.mubr.f32.mxu0 %v4761
        %v4763 = vand.u32 %v2926, 4294901760
        %4764 = vmatmul.mubr.f32.gmra.mrb[0].mxu0 %v4763
        %v4765 = vpop.f32.mrb[0].mxu0
        %v4766 = vadd.f32 %v4485, %v4765
        %v4767 = vpop.f32.mrb[0].mxu0
        %4768 = vdwg.mxu0
        %4769 = vmatprep.subr.mxu0 0.0
        %v4770 = vand.u32 %v2961, 4294901760
        %v4771 = vsub.f32 %v2961, %v4770
        %4772 = vmatpush1.msra.mxu0 %v4771
        %4773 = vmatprep.subr.mxu0 0.0
        %v4774 = vand.u32 %v2962, 4294901760
        %v4775 = vsub.f32 %v2962, %v4774
        %4776 = vmatpush1.msra.mxu0 %v4775
        %4777 = vmatprep.subr.mxu0 0.0
        %v4778 = vand.u32 %v2963, 4294901760
        %v4779 = vsub.f32 %v2963, %v4778
        %4780 = vmatpush1.msra.mxu0 %v4779
        %4781 = vmatprep.subr.mxu0 0.0
        %v4782 = vand.u32 %v2964, 4294901760
        %v4783 = vsub.f32 %v2964, %v4782
        %4784 = vmatpush1.msra.mxu0 %v4783
        %4785 = vmatprep.subr.mxu0 0.0
        %v4786 = vand.u32 %v2965, 4294901760
        %v4787 = vsub.f32 %v2965, %v4786
        %4788 = vmatpush1.msra.mxu0 %v4787
        %4789 = vmatprep.subr.mxu0 0.0
        %v4790 = vand.u32 %v2966, 4294901760
        %v4791 = vsub.f32 %v2966, %v4790
        %4792 = vmatpush1.msra.mxu0 %v4791
        %4793 = vmatprep.subr.mxu0 0.0
        %v4794 = vand.u32 %v2967, 4294901760
        %v4795 = vsub.f32 %v2967, %v4794
        %4796 = vmatpush1.msra.mxu0 %v4795
        %4797 = vmatprep.subr.mxu0 0.0
        %v4798 = vand.u32 %v2968, 4294901760
        %v4799 = vsub.f32 %v2968, %v4798
        %4800 = vmatpush1.msra.mxu0 %v4799
        %4801 = vmatprep.subr.mxu0 0.0
        %v4802 = vand.u32 %v2969, 4294901760
        %v4803 = vsub.f32 %v2969, %v4802
        %4804 = vmatpush1.msra.mxu0 %v4803
        %4805 = vmatprep.subr.mxu0 0.0
        %v4806 = vand.u32 %v2970, 4294901760
        %v4807 = vsub.f32 %v2970, %v4806
        %4808 = vmatpush1.msra.mxu0 %v4807
        %4809 = vmatprep.subr.mxu0 0.0
        %v4810 = vand.u32 %v2971, 4294901760
        %v4811 = vsub.f32 %v2971, %v4810
        %4812 = vmatpush1.msra.mxu0 %v4811
        %4813 = vmatprep.subr.mxu0 0.0
        %v4814 = vand.u32 %v2972, 4294901760
        %v4815 = vsub.f32 %v2972, %v4814
        %4816 = vmatpush1.msra.mxu0 %v4815
        %4817 = vmatprep.subr.mxu0 0.0
        %v4818 = vand.u32 %v2973, 4294901760
        %v4819 = vsub.f32 %v2973, %v4818
        %4820 = vmatpush1.msra.mxu0 %v4819
        %4821 = vmatprep.subr.mxu0 0.0
        %v4822 = vand.u32 %v2974, 4294901760
        %v4823 = vsub.f32 %v2974, %v4822
        %4824 = vmatpush1.msra.mxu0 %v4823
        %4825 = vmatprep.subr.mxu0 0.0
        %v4826 = vand.u32 %v2975, 4294901760
        %v4827 = vsub.f32 %v2975, %v4826
        %4828 = vmatpush1.msra.mxu0 %v4827
        %4829 = vmatprep.subr.mxu0 0.0
        %v4830 = vand.u32 %v2976, 4294901760
        %v4831 = vsub.f32 %v2976, %v4830
        %4832 = vmatpush1.msra.mxu0 %v4831
        %4833 = vmatprep.subr.mxu0 0.0
        %v4834 = vand.u32 %v2977, 4294901760
        %v4835 = vsub.f32 %v2977, %v4834
        %4836 = vmatpush1.msra.mxu0 %v4835
        %4837 = vmatprep.subr.mxu0 0.0
        %v4838 = vand.u32 %v2978, 4294901760
        %v4839 = vsub.f32 %v2978, %v4838
        %4840 = vmatpush1.msra.mxu0 %v4839
        %4841 = vmatprep.subr.mxu0 0.0
        %v4842 = vand.u32 %v2979, 4294901760
        %v4843 = vsub.f32 %v2979, %v4842
        %4844 = vmatpush1.msra.mxu0 %v4843
        %4845 = vmatprep.subr.mxu0 0.0
        %v4846 = vand.u32 %v2980, 4294901760
        %v4847 = vsub.f32 %v2980, %v4846
        %4848 = vmatpush1.msra.mxu0 %v4847
        %4849 = vmatprep.subr.mxu0 0.0
        %v4850 = vand.u32 %v2981, 4294901760
        %v4851 = vsub.f32 %v2981, %v4850
        %4852 = vmatpush1.msra.mxu0 %v4851
        %4853 = vmatprep.subr.mxu0 0.0
        %v4854 = vand.u32 %v2982, 4294901760
        %v4855 = vsub.f32 %v2982, %v4854
        %4856 = vmatpush1.msra.mxu0 %v4855
        %4857 = vmatprep.subr.mxu0 0.0
        %v4858 = vand.u32 %v2983, 4294901760
        %v4859 = vsub.f32 %v2983, %v4858
        %4860 = vmatpush1.msra.mxu0 %v4859
        %4861 = vmatprep.subr.mxu0 0.0
        %v4862 = vand.u32 %v2984, 4294901760
        %v4863 = vsub.f32 %v2984, %v4862
        %4864 = vmatpush1.msra.mxu0 %v4863
        %4865 = vmatprep.subr.mxu0 0.0
        %v4866 = vand.u32 %v2985, 4294901760
        %v4867 = vsub.f32 %v2985, %v4866
        %4868 = vmatpush1.msra.mxu0 %v4867
        %4869 = vmatprep.subr.mxu0 0.0
        %v4870 = vand.u32 %v2986, 4294901760
        %v4871 = vsub.f32 %v2986, %v4870
        %4872 = vmatpush1.msra.mxu0 %v4871
        %4873 = vmatprep.subr.mxu0 0.0
        %v4874 = vand.u32 %v2987, 4294901760
        %v4875 = vsub.f32 %v2987, %v4874
        %4876 = vmatpush1.msra.mxu0 %v4875
        %4877 = vmatprep.subr.mxu0 0.0
        %v4878 = vand.u32 %v2988, 4294901760
        %v4879 = vsub.f32 %v2988, %v4878
        %4880 = vmatpush1.msra.mxu0 %v4879
        %4881 = vmatprep.subr.mxu0 0.0
        %v4882 = vand.u32 %v2989, 4294901760
        %v4883 = vsub.f32 %v2989, %v4882
        %4884 = vmatpush1.msra.mxu0 %v4883
        %4885 = vmatprep.subr.mxu0 0.0
        %v4886 = vand.u32 %v2990, 4294901760
        %v4887 = vsub.f32 %v2990, %v4886
        %4888 = vmatpush1.msra.mxu0 %v4887
        %4889 = vmatprep.subr.mxu0 0.0
        %v4890 = vand.u32 %v2991, 4294901760
        %v4891 = vsub.f32 %v2991, %v4890
        %4892 = vmatpush1.msra.mxu0 %v4891
        %4893 = vmatprep.subr.mxu0 0.0
        %v4894 = vand.u32 %v2992, 4294901760
        %v4895 = vsub.f32 %v2992, %v4894
        %4896 = vmatpush1.msra.mxu0 %v4895
        %v4897 = vand.u32 %v2905, 4294901760
        %v4898 = vsub.f32 %v2905, %v4897
        %4899 = vmatprep.mubr.f32.mxu0 %v4898
        %v4900 = vand.u32 %v2919, 4294901760
        %v4901 = vsub.f32 %v2919, %v4900
        %4902 = vmatmul.mubr.f32.gmra.mrb[0].mxu0 %v4901
        %v4903 = vpop.f32.mrb[0].mxu0
        %v4904 = vadd.f32 %v4717, %v4903
        %v4905 = vpop.f32.mrb[0].mxu0
        %v4906 = vand.u32 %v2906, 4294901760
        %v4907 = vsub.f32 %v2906, %v4906
        %4908 = vmatprep.mubr.f32.mxu0 %v4907
        %v4909 = vand.u32 %v2920, 4294901760
        %v4910 = vsub.f32 %v2920, %v4909
        %4911 = vmatmul.mubr.f32.gmra.mrb[0].mxu0 %v4910
        %v4912 = vpop.f32.mrb[0].mxu0
        %v4913 = vadd.f32 %v4724, %v4912
        %v4914 = vpop.f32.mrb[0].mxu0
        %v4915 = vand.u32 %v2907, 4294901760
        %v4916 = vsub.f32 %v2907, %v4915
        %4917 = vmatprep.mubr.f32.mxu0 %v4916
        %v4918 = vand.u32 %v2921, 4294901760
        %v4919 = vsub.f32 %v2921, %v4918
        %4920 = vmatmul.mubr.f32.gmra.mrb[0].mxu0 %v4919
        %v4921 = vpop.f32.mrb[0].mxu0
        %v4922 = vadd.f32 %v4731, %v4921
        %v4923 = vpop.f32.mrb[0].mxu0
        %v4924 = vand.u32 %v2908, 4294901760
        %v4925 = vsub.f32 %v2908, %v4924
        %4926 = vmatprep.mubr.f32.mxu0 %v4925
        %v4927 = vand.u32 %v2922, 4294901760
        %v4928 = vsub.f32 %v2922, %v4927
        %4929 = vmatmul.mubr.f32.gmra.mrb[0].mxu0 %v4928
        %v4930 = vpop.f32.mrb[0].mxu0
        %v4931 = vadd.f32 %v4738, %v4930
        %v4932 = vpop.f32.mrb[0].mxu0
        %v4933 = vand.u32 %v2909, 4294901760
        %v4934 = vsub.f32 %v2909, %v4933
        %4935 = vmatprep.mubr.f32.mxu0 %v4934
        %v4936 = vand.u32 %v2923, 4294901760
        %v4937 = vsub.f32 %v2923, %v4936
        %4938 = vmatmul.mubr.f32.gmra.mrb[0].mxu0 %v4937
        %v4939 = vpop.f32.mrb[0].mxu0
        %v4940 = vadd.f32 %v4745, %v4939
        %v4941 = vpop.f32.mrb[0].mxu0
        %v4942 = vand.u32 %v2910, 4294901760
        %v4943 = vsub.f32 %v2910, %v4942
        %4944 = vmatprep.mubr.f32.mxu0 %v4943
        %v4945 = vand.u32 %v2924, 4294901760
        %v4946 = vsub.f32 %v2924, %v4945
        %4947 = vmatmul.mubr.f32.gmra.mrb[0].mxu0 %v4946
        %v4948 = vpop.f32.mrb[0].mxu0
        %v4949 = vadd.f32 %v4752, %v4948
        %v4950 = vpop.f32.mrb[0].mxu0
        %v4951 = vand.u32 %v2927, 4294901760
        %v4952 = vsub.f32 %v2927, %v4951
        %4953 = vmatprep.mubr.f32.mxu0 %v4952
        %v4954 = vand.u32 %v2925, 4294901760
        %v4955 = vsub.f32 %v2925, %v4954
        %4956 = vmatmul.mubr.f32.gmra.mrb[0].mxu0 %v4955
        %v4957 = vpop.f32.mrb[0].mxu0
        %v4958 = vadd.f32 %v4759, %v4957
        %v4959 = vpop.f32.mrb[0].mxu0
        %v4960 = vand.u32 %v2928, 4294901760
        %v4961 = vsub.f32 %v2928, %v4960
        %4962 = vmatprep.mubr.f32.mxu0 %v4961
        %v4963 = vand.u32 %v2926, 4294901760
        %v4964 = vsub.f32 %v2926, %v4963
        %4965 = vmatmul.mubr.f32.gmra.mrb[0].mxu0 %v4964
        %v4966 = vpop.f32.mrb[0].mxu0
        %v4967 = vadd.f32 %v4766, %v4966
        %v4968 = vpop.f32.mrb[0].mxu0
        %4969 = vdwg.mxu0
        %4970 = vmatprep.subr.mxu0 0.0
        %v4971 = vand.u32 %v2961, 4294901760
        %4972 = vmatpush1.msra.mxu0 %v4971
        %4973 = vmatprep.subr.mxu0 0.0
        %v4974 = vand.u32 %v2962, 4294901760
        %4975 = vmatpush1.msra.mxu0 %v4974
        %4976 = vmatprep.subr.mxu0 0.0
        %v4977 = vand.u32 %v2963, 4294901760
        %4978 = vmatpush1.msra.mxu0 %v4977
        %4979 = vmatprep.subr.mxu0 0.0
        %v4980 = vand.u32 %v2964, 4294901760
        %4981 = vmatpush1.msra.mxu0 %v4980
        %4982 = vmatprep.subr.mxu0 0.0
        %v4983 = vand.u32 %v2965, 4294901760
        %4984 = vmatpush1.msra.mxu0 %v4983
        %4985 = vmatprep.subr.mxu0 0.0
        %v4986 = vand.u32 %v2966, 4294901760
        %4987 = vmatpush1.msra.mxu0 %v4986
        %4988 = vmatprep.subr.mxu0 0.0
        %v4989 = vand.u32 %v2967, 4294901760
        %4990 = vmatpush1.msra.mxu0 %v4989
        %4991 = vmatprep.subr.mxu0 0.0
        %v4992 = vand.u32 %v2968, 4294901760
        %4993 = vmatpush1.msra.mxu0 %v4992
        %4994 = vmatprep.subr.mxu0 0.0
        %v4995 = vand.u32 %v2969, 4294901760
        %4996 = vmatpush1.msra.mxu0 %v4995
        %4997 = vmatprep.subr.mxu0 0.0
        %v4998 = vand.u32 %v2970, 4294901760
        %4999 = vmatpush1.msra.mxu0 %v4998
        %5000 = vmatprep.subr.mxu0 0.0
        %v5001 = vand.u32 %v2971, 4294901760
        %5002 = vmatpush1.msra.mxu0 %v5001
        %5003 = vmatprep.subr.mxu0 0.0
        %v5004 = vand.u32 %v2972, 4294901760
        %5005 = vmatpush1.msra.mxu0 %v5004
        %5006 = vmatprep.subr.mxu0 0.0
        %v5007 = vand.u32 %v2973, 4294901760
        %5008 = vmatpush1.msra.mxu0 %v5007
        %5009 = vmatprep.subr.mxu0 0.0
        %v5010 = vand.u32 %v2974, 4294901760
        %5011 = vmatpush1.msra.mxu0 %v5010
        %5012 = vmatprep.subr.mxu0 0.0
        %v5013 = vand.u32 %v2975, 4294901760
        %5014 = vmatpush1.msra.mxu0 %v5013
        %5015 = vmatprep.subr.mxu0 0.0
        %v5016 = vand.u32 %v2976, 4294901760
        %5017 = vmatpush1.msra.mxu0 %v5016
        %5018 = vmatprep.subr.mxu0 0.0
        %v5019 = vand.u32 %v2977, 4294901760
        %5020 = vmatpush1.msra.mxu0 %v5019
        %5021 = vmatprep.subr.mxu0 0.0
        %v5022 = vand.u32 %v2978, 4294901760
        %5023 = vmatpush1.msra.mxu0 %v5022
        %5024 = vmatprep.subr.mxu0 0.0
        %v5025 = vand.u32 %v2979, 4294901760
        %5026 = vmatpush1.msra.mxu0 %v5025
        %5027 = vmatprep.subr.mxu0 0.0
        %v5028 = vand.u32 %v2980, 4294901760
        %5029 = vmatpush1.msra.mxu0 %v5028
        %5030 = vmatprep.subr.mxu0 0.0
        %v5031 = vand.u32 %v2981, 4294901760
        %5032 = vmatpush1.msra.mxu0 %v5031
        %5033 = vmatprep.subr.mxu0 0.0
        %v5034 = vand.u32 %v2982, 4294901760
        %5035 = vmatpush1.msra.mxu0 %v5034
        %5036 = vmatprep.subr.mxu0 0.0
        %v5037 = vand.u32 %v2983, 4294901760
        %5038 = vmatpush1.msra.mxu0 %v5037
        %5039 = vmatprep.subr.mxu0 0.0
        %v5040 = vand.u32 %v2984, 4294901760
        %5041 = vmatpush1.msra.mxu0 %v5040
        %5042 = vmatprep.subr.mxu0 0.0
        %v5043 = vand.u32 %v2985, 4294901760
        %5044 = vmatpush1.msra.mxu0 %v5043
        %5045 = vmatprep.subr.mxu0 0.0
        %v5046 = vand.u32 %v2986, 4294901760
        %5047 = vmatpush1.msra.mxu0 %v5046
        %5048 = vmatprep.subr.mxu0 0.0
        %v5049 = vand.u32 %v2987, 4294901760
        %5050 = vmatpush1.msra.mxu0 %v5049
        %5051 = vmatprep.subr.mxu0 0.0
        %v5052 = vand.u32 %v2988, 4294901760
        %5053 = vmatpush1.msra.mxu0 %v5052
        %5054 = vmatprep.subr.mxu0 0.0
        %v5055 = vand.u32 %v2989, 4294901760
        %5056 = vmatpush1.msra.mxu0 %v5055
        %5057 = vmatprep.subr.mxu0 0.0
        %v5058 = vand.u32 %v2990, 4294901760
        %5059 = vmatpush1.msra.mxu0 %v5058
        %5060 = vmatprep.subr.mxu0 0.0
        %v5061 = vand.u32 %v2991, 4294901760
        %5062 = vmatpush1.msra.mxu0 %v5061
        %5063 = vmatprep.subr.mxu0 0.0
        %v5064 = vand.u32 %v2992, 4294901760
        %5065 = vmatpush1.msra.mxu0 %v5064
        %v5066 = vand.u32 %v2905, 4294901760
        %v5067 = vsub.f32 %v2905, %v5066
        %v5068 = vand.u32 %v5067, 4294901760
        %5069 = vmatprep.mubr.f32.mxu0 %v5068
        %v5070 = vand.u32 %v2919, 4294901760
        %v5071 = vsub.f32 %v2919, %v5070
        %v5072 = vand.u32 %v5071, 4294901760
        %5073 = vmatmul.mubr.f32.gmra.mrb[0].mxu0 %v5072
        %v5074 = vpop.f32.mrb[0].mxu0
        %v5075 = vadd.f32 %v4904, %v5074
        %v5076 = vpop.f32.mrb[0].mxu0
        %v5077 = vand.u32 %v2906, 4294901760
        %v5078 = vsub.f32 %v2906, %v5077
        %v5079 = vand.u32 %v5078, 4294901760
        %5080 = vmatprep.mubr.f32.mxu0 %v5079
        %v5081 = vand.u32 %v2920, 4294901760
        %v5082 = vsub.f32 %v2920, %v5081
        %v5083 = vand.u32 %v5082, 4294901760
        %5084 = vmatmul.mubr.f32.gmra.mrb[0].mxu0 %v5083
        %v5085 = vpop.f32.mrb[0].mxu0
        %v5086 = vadd.f32 %v4913, %v5085
        %v5087 = vpop.f32.mrb[0].mxu0
        %v5088 = vand.u32 %v2907, 4294901760
        %v5089 = vsub.f32 %v2907, %v5088
        %v5090 = vand.u32 %v5089, 4294901760
        %5091 = vmatprep.mubr.f32.mxu0 %v5090
        %v5092 = vand.u32 %v2921, 4294901760
        %v5093 = vsub.f32 %v2921, %v5092
        %v5094 = vand.u32 %v5093, 4294901760
        %5095 = vmatmul.mubr.f32.gmra.mrb[0].mxu0 %v5094
        %v5096 = vpop.f32.mrb[0].mxu0
        %v5097 = vadd.f32 %v4922, %v5096
        %v5098 = vpop.f32.mrb[0].mxu0
        %v5099 = vand.u32 %v2908, 4294901760
        %v5100 = vsub.f32 %v2908, %v5099
        %v5101 = vand.u32 %v5100, 4294901760
        %5102 = vmatprep.mubr.f32.mxu0 %v5101
        %v5103 = vand.u32 %v2922, 4294901760
        %v5104 = vsub.f32 %v2922, %v5103
        %v5105 = vand.u32 %v5104, 4294901760
        %5106 = vmatmul.mubr.f32.gmra.mrb[0].mxu0 %v5105
        %v5107 = vpop.f32.mrb[0].mxu0
        %v5108 = vadd.f32 %v4931, %v5107
        %v5109 = vpop.f32.mrb[0].mxu0
        %v5110 = vand.u32 %v2909, 4294901760
        %v5111 = vsub.f32 %v2909, %v5110
        %v5112 = vand.u32 %v5111, 4294901760
        %5113 = vmatprep.mubr.f32.mxu0 %v5112
        %v5114 = vand.u32 %v2923, 4294901760
        %v5115 = vsub.f32 %v2923, %v5114
        %v5116 = vand.u32 %v5115, 4294901760
        %5117 = vmatmul.mubr.f32.gmra.mrb[0].mxu0 %v5116
        %v5118 = vpop.f32.mrb[0].mxu0
        %v5119 = vadd.f32 %v4940, %v5118
        %v5120 = vpop.f32.mrb[0].mxu0
        %v5121 = vand.u32 %v2910, 4294901760
        %v5122 = vsub.f32 %v2910, %v5121
        %v5123 = vand.u32 %v5122, 4294901760
        %5124 = vmatprep.mubr.f32.mxu0 %v5123
        %v5125 = vand.u32 %v2924, 4294901760
        %v5126 = vsub.f32 %v2924, %v5125
        %v5127 = vand.u32 %v5126, 4294901760
        %5128 = vmatmul.mubr.f32.gmra.mrb[0].mxu0 %v5127
        %v5129 = vpop.f32.mrb[0].mxu0
        %v5130 = vadd.f32 %v4949, %v5129
        %v5131 = vpop.f32.mrb[0].mxu0
        %v5132 = vand.u32 %v2927, 4294901760
        %v5133 = vsub.f32 %v2927, %v5132
        %v5134 = vand.u32 %v5133, 4294901760
        %5135 = vmatprep.mubr.f32.mxu0 %v5134
        %v5136 = vand.u32 %v2925, 4294901760
        %v5137 = vsub.f32 %v2925, %v5136
        %v5138 = vand.u32 %v5137, 4294901760
        %5139 = vmatmul.mubr.f32.gmra.mrb[0].mxu0 %v5138
        %v5140 = vpop.f32.mrb[0].mxu0
        %v5141 = vadd.f32 %v4958, %v5140
        %v5142 = vpop.f32.mrb[0].mxu0
        %v5143 = vand.u32 %v2928, 4294901760
        %v5144 = vsub.f32 %v2928, %v5143
        %v5145 = vand.u32 %v5144, 4294901760
        %5146 = vmatprep.mubr.f32.mxu0 %v5145
        %v5147 = vand.u32 %v2926, 4294901760
        %v5148 = vsub.f32 %v2926, %v5147
        %v5149 = vand.u32 %v5148, 4294901760
        %5150 = vmatmul.mubr.f32.gmra.mrb[0].mxu0 %v5149
        %v5151 = vpop.f32.mrb[0].mxu0
        %v5152 = vadd.f32 %v4967, %v5151
        %v5153 = vpop.f32.mrb[0].mxu0
        %5154 = vdwg.mxu0
        %5155 = vmatprep.subr.mxu0 0.0
        %v5156 = vand.u32 %v2961, 4294901760
        %v5157 = vsub.f32 %v2961, %v5156
        %v5158 = vand.u32 %v5157, 4294901760
        %5159 = vmatpush1.msra.mxu0 %v5158
        %5160 = vmatprep.subr.mxu0 0.0
        %v5161 = vand.u32 %v2962, 4294901760
        %v5162 = vsub.f32 %v2962, %v5161
        %v5163 = vand.u32 %v5162, 4294901760
        %5164 = vmatpush1.msra.mxu0 %v5163
        %5165 = vmatprep.subr.mxu0 0.0
        %v5166 = vand.u32 %v2963, 4294901760
        %v5167 = vsub.f32 %v2963, %v5166
        %v5168 = vand.u32 %v5167, 4294901760
        %5169 = vmatpush1.msra.mxu0 %v5168
        %5170 = vmatprep.subr.mxu0 0.0
        %v5171 = vand.u32 %v2964, 4294901760
        %v5172 = vsub.f32 %v2964, %v5171
        %v5173 = vand.u32 %v5172, 4294901760
        %5174 = vmatpush1.msra.mxu0 %v5173
        %5175 = vmatprep.subr.mxu0 0.0
        %v5176 = vand.u32 %v2965, 4294901760
        %v5177 = vsub.f32 %v2965, %v5176
        %v5178 = vand.u32 %v5177, 4294901760
        %5179 = vmatpush1.msra.mxu0 %v5178
        %5180 = vmatprep.subr.mxu0 0.0
        %v5181 = vand.u32 %v2966, 4294901760
        %v5182 = vsub.f32 %v2966, %v5181
        %v5183 = vand.u32 %v5182, 4294901760
        %5184 = vmatpush1.msra.mxu0 %v5183
        %5185 = vmatprep.subr.mxu0 0.0
        %v5186 = vand.u32 %v2967, 4294901760
        %v5187 = vsub.f32 %v2967, %v5186
        %v5188 = vand.u32 %v5187, 4294901760
        %5189 = vmatpush1.msra.mxu0 %v5188
        %5190 = vmatprep.subr.mxu0 0.0
        %v5191 = vand.u32 %v2968, 4294901760
        %v5192 = vsub.f32 %v2968, %v5191
        %v5193 = vand.u32 %v5192, 4294901760
        %5194 = vmatpush1.msra.mxu0 %v5193
        %5195 = vmatprep.subr.mxu0 0.0
        %v5196 = vand.u32 %v2969, 4294901760
        %v5197 = vsub.f32 %v2969, %v5196
        %v5198 = vand.u32 %v5197, 4294901760
        %5199 = vmatpush1.msra.mxu0 %v5198
        %5200 = vmatprep.subr.mxu0 0.0
        %v5201 = vand.u32 %v2970, 4294901760
        %v5202 = vsub.f32 %v2970, %v5201
        %v5203 = vand.u32 %v5202, 4294901760
        %5204 = vmatpush1.msra.mxu0 %v5203
        %5205 = vmatprep.subr.mxu0 0.0
        %v5206 = vand.u32 %v2971, 4294901760
        %v5207 = vsub.f32 %v2971, %v5206
        %v5208 = vand.u32 %v5207, 4294901760
        %5209 = vmatpush1.msra.mxu0 %v5208
        %5210 = vmatprep.subr.mxu0 0.0
        %v5211 = vand.u32 %v2972, 4294901760
        %v5212 = vsub.f32 %v2972, %v5211
        %v5213 = vand.u32 %v5212, 4294901760
        %5214 = vmatpush1.msra.mxu0 %v5213
        %5215 = vmatprep.subr.mxu0 0.0
        %v5216 = vand.u32 %v2973, 4294901760
        %v5217 = vsub.f32 %v2973, %v5216
        %v5218 = vand.u32 %v5217, 4294901760
        %5219 = vmatpush1.msra.mxu0 %v5218
        %5220 = vmatprep.subr.mxu0 0.0
        %v5221 = vand.u32 %v2974, 4294901760
        %v5222 = vsub.f32 %v2974, %v5221
        %v5223 = vand.u32 %v5222, 4294901760
        %5224 = vmatpush1.msra.mxu0 %v5223
        %5225 = vmatprep.subr.mxu0 0.0
        %v5226 = vand.u32 %v2975, 4294901760
        %v5227 = vsub.f32 %v2975, %v5226
        %v5228 = vand.u32 %v5227, 4294901760
        %5229 = vmatpush1.msra.mxu0 %v5228
        %5230 = vmatprep.subr.mxu0 0.0
        %v5231 = vand.u32 %v2976, 4294901760
        %v5232 = vsub.f32 %v2976, %v5231
        %v5233 = vand.u32 %v5232, 4294901760
        %5234 = vmatpush1.msra.mxu0 %v5233
        %5235 = vmatprep.subr.mxu0 0.0
        %v5236 = vand.u32 %v2977, 4294901760
        %v5237 = vsub.f32 %v2977, %v5236
        %v5238 = vand.u32 %v5237, 4294901760
        %5239 = vmatpush1.msra.mxu0 %v5238
        %5240 = vmatprep.subr.mxu0 0.0
        %v5241 = vand.u32 %v2978, 4294901760
        %v5242 = vsub.f32 %v2978, %v5241
        %v5243 = vand.u32 %v5242, 4294901760
        %5244 = vmatpush1.msra.mxu0 %v5243
        %5245 = vmatprep.subr.mxu0 0.0
        %v5246 = vand.u32 %v2979, 4294901760
        %v5247 = vsub.f32 %v2979, %v5246
        %v5248 = vand.u32 %v5247, 4294901760
        %5249 = vmatpush1.msra.mxu0 %v5248
        %5250 = vmatprep.subr.mxu0 0.0
        %v5251 = vand.u32 %v2980, 4294901760
        %v5252 = vsub.f32 %v2980, %v5251
        %v5253 = vand.u32 %v5252, 4294901760
        %5254 = vmatpush1.msra.mxu0 %v5253
        %5255 = vmatprep.subr.mxu0 0.0
        %v5256 = vand.u32 %v2981, 4294901760
        %v5257 = vsub.f32 %v2981, %v5256
        %v5258 = vand.u32 %v5257, 4294901760
        %5259 = vmatpush1.msra.mxu0 %v5258
        %5260 = vmatprep.subr.mxu0 0.0
        %v5261 = vand.u32 %v2982, 4294901760
        %v5262 = vsub.f32 %v2982, %v5261
        %v5263 = vand.u32 %v5262, 4294901760
        %5264 = vmatpush1.msra.mxu0 %v5263
        %5265 = vmatprep.subr.mxu0 0.0
        %v5266 = vand.u32 %v2983, 4294901760
        %v5267 = vsub.f32 %v2983, %v5266
        %v5268 = vand.u32 %v5267, 4294901760
        %5269 = vmatpush1.msra.mxu0 %v5268
        %5270 = vmatprep.subr.mxu0 0.0
        %v5271 = vand.u32 %v2984, 4294901760
        %v5272 = vsub.f32 %v2984, %v5271
        %v5273 = vand.u32 %v5272, 4294901760
        %5274 = vmatpush1.msra.mxu0 %v5273
        %5275 = vmatprep.subr.mxu0 0.0
        %v5276 = vand.u32 %v2985, 4294901760
        %v5277 = vsub.f32 %v2985, %v5276
        %v5278 = vand.u32 %v5277, 4294901760
        %5279 = vmatpush1.msra.mxu0 %v5278
        %5280 = vmatprep.subr.mxu0 0.0
        %v5281 = vand.u32 %v2986, 4294901760
        %v5282 = vsub.f32 %v2986, %v5281
        %v5283 = vand.u32 %v5282, 4294901760
        %5284 = vmatpush1.msra.mxu0 %v5283
        %5285 = vmatprep.subr.mxu0 0.0
        %v5286 = vand.u32 %v2987, 4294901760
        %v5287 = vsub.f32 %v2987, %v5286
        %v5288 = vand.u32 %v5287, 4294901760
        %5289 = vmatpush1.msra.mxu0 %v5288
        %5290 = vmatprep.subr.mxu0 0.0
        %v5291 = vand.u32 %v2988, 4294901760
        %v5292 = vsub.f32 %v2988, %v5291
        %v5293 = vand.u32 %v5292, 4294901760
        %5294 = vmatpush1.msra.mxu0 %v5293
        %5295 = vmatprep.subr.mxu0 0.0
        %v5296 = vand.u32 %v2989, 4294901760
        %v5297 = vsub.f32 %v2989, %v5296
        %v5298 = vand.u32 %v5297, 4294901760
        %5299 = vmatpush1.msra.mxu0 %v5298
        %5300 = vmatprep.subr.mxu0 0.0
        %v5301 = vand.u32 %v2990, 4294901760
        %v5302 = vsub.f32 %v2990, %v5301
        %v5303 = vand.u32 %v5302, 4294901760
        %5304 = vmatpush1.msra.mxu0 %v5303
        %5305 = vmatprep.subr.mxu0 0.0
        %v5306 = vand.u32 %v2991, 4294901760
        %v5307 = vsub.f32 %v2991, %v5306
        %v5308 = vand.u32 %v5307, 4294901760
        %5309 = vmatpush1.msra.mxu0 %v5308
        %5310 = vmatprep.subr.mxu0 0.0
        %v5311 = vand.u32 %v2992, 4294901760
        %v5312 = vsub.f32 %v2992, %v5311
        %v5313 = vand.u32 %v5312, 4294901760
        %5314 = vmatpush1.msra.mxu0 %v5313
        %v5315 = vand.u32 %v2905, 4294901760
        %5316 = vmatprep.mubr.f32.mxu0 %v5315
        %v5317 = vand.u32 %v2919, 4294901760
        %5318 = vmatmul.mubr.f32.gmra.mrb[0].mxu0 %v5317
        %v5319 = vpop.f32.mrb[0].mxu0
        %v5320 = vadd.f32 %v5075, %v5319
        %v5321 = vpop.f32.mrb[0].mxu0
        %v5322 = vand.u32 %v2906, 4294901760
        %5323 = vmatprep.mubr.f32.mxu0 %v5322
        %v5324 = vand.u32 %v2920, 4294901760
        %5325 = vmatmul.mubr.f32.gmra.mrb[0].mxu0 %v5324
        %v5326 = vpop.f32.mrb[0].mxu0
        %v5327 = vadd.f32 %v5086, %v5326
        %v5328 = vpop.f32.mrb[0].mxu0
        %v5329 = vand.u32 %v2907, 4294901760
        %5330 = vmatprep.mubr.f32.mxu0 %v5329
        %v5331 = vand.u32 %v2921, 4294901760
        %5332 = vmatmul.mubr.f32.gmra.mrb[0].mxu0 %v5331
        %v5333 = vpop.f32.mrb[0].mxu0
        %v5334 = vadd.f32 %v5097, %v5333
        %v5335 = vpop.f32.mrb[0].mxu0
        %v5336 = vand.u32 %v2908, 4294901760
        %5337 = vmatprep.mubr.f32.mxu0 %v5336
        %v5338 = vand.u32 %v2922, 4294901760
        %5339 = vmatmul.mubr.f32.gmra.mrb[0].mxu0 %v5338
        %v5340 = vpop.f32.mrb[0].mxu0
        %v5341 = vadd.f32 %v5108, %v5340
        %v5342 = vpop.f32.mrb[0].mxu0
        %v5343 = vand.u32 %v2909, 4294901760
        %5344 = vmatprep.mubr.f32.mxu0 %v5343
        %v5345 = vand.u32 %v2923, 4294901760
        %5346 = vmatmul.mubr.f32.gmra.mrb[0].mxu0 %v5345
        %v5347 = vpop.f32.mrb[0].mxu0
        %v5348 = vadd.f32 %v5119, %v5347
        %v5349 = vpop.f32.mrb[0].mxu0
        %v5350 = vand.u32 %v2910, 4294901760
        %5351 = vmatprep.mubr.f32.mxu0 %v5350
        %v5352 = vand.u32 %v2924, 4294901760
        %5353 = vmatmul.mubr.f32.gmra.mrb[0].mxu0 %v5352
        %v5354 = vpop.f32.mrb[0].mxu0
        %v5355 = vadd.f32 %v5130, %v5354
        %v5356 = vpop.f32.mrb[0].mxu0
        %v5357 = vand.u32 %v2927, 4294901760
        %5358 = vmatprep.mubr.f32.mxu0 %v5357
        %v5359 = vand.u32 %v2925, 4294901760
        %5360 = vmatmul.mubr.f32.gmra.mrb[0].mxu0 %v5359
        %v5361 = vpop.f32.mrb[0].mxu0
        %v5362 = vadd.f32 %v5141, %v5361
        %v5363 = vpop.f32.mrb[0].mxu0
        %v5364 = vand.u32 %v2928, 4294901760
        %5365 = vmatprep.mubr.f32.mxu0 %v5364
        %v5366 = vand.u32 %v2926, 4294901760
        %5367 = vmatmul.mubr.f32.gmra.mrb[0].mxu0 %v5366
        %v5368 = vpop.f32.mrb[0].mxu0
        %v5369 = vadd.f32 %v5152, %v5368
        %v5370 = vpop.f32.mrb[0].mxu0
        %5371 = vdwg.mxu0
        %5372 = vmatprep.subr.mxu0 0.0
        %v5373 = vand.u32 %v2961, 4294901760
        %5374 = vmatpush1.msra.mxu0 %v5373
        %5375 = vmatprep.subr.mxu0 0.0
        %v5376 = vand.u32 %v2962, 4294901760
        %5377 = vmatpush1.msra.mxu0 %v5376
        %5378 = vmatprep.subr.mxu0 0.0
        %v5379 = vand.u32 %v2963, 4294901760
        %5380 = vmatpush1.msra.mxu0 %v5379
        %5381 = vmatprep.subr.mxu0 0.0
        %v5382 = vand.u32 %v2964, 4294901760
        %5383 = vmatpush1.msra.mxu0 %v5382
        %5384 = vmatprep.subr.mxu0 0.0
        %v5385 = vand.u32 %v2965, 4294901760
        %5386 = vmatpush1.msra.mxu0 %v5385
        %5387 = vmatprep.subr.mxu0 0.0
        %v5388 = vand.u32 %v2966, 4294901760
        %5389 = vmatpush1.msra.mxu0 %v5388
        %5390 = vmatprep.subr.mxu0 0.0
        %v5391 = vand.u32 %v2967, 4294901760
        %5392 = vmatpush1.msra.mxu0 %v5391
        %5393 = vmatprep.subr.mxu0 0.0
        %v5394 = vand.u32 %v2968, 4294901760
        %5395 = vmatpush1.msra.mxu0 %v5394
        %5396 = vmatprep.subr.mxu0 0.0
        %v5397 = vand.u32 %v2969, 4294901760
        %5398 = vmatpush1.msra.mxu0 %v5397
        %5399 = vmatprep.subr.mxu0 0.0
        %v5400 = vand.u32 %v2970, 4294901760
        %5401 = vmatpush1.msra.mxu0 %v5400
        %5402 = vmatprep.subr.mxu0 0.0
        %v5403 = vand.u32 %v2971, 4294901760
        %5404 = vmatpush1.msra.mxu0 %v5403
        %5405 = vmatprep.subr.mxu0 0.0
        %v5406 = vand.u32 %v2972, 4294901760
        %5407 = vmatpush1.msra.mxu0 %v5406
        %5408 = vmatprep.subr.mxu0 0.0
        %v5409 = vand.u32 %v2973, 4294901760
        %5410 = vmatpush1.msra.mxu0 %v5409
        %5411 = vmatprep.subr.mxu0 0.0
        %v5412 = vand.u32 %v2974, 4294901760
        %5413 = vmatpush1.msra.mxu0 %v5412
        %5414 = vmatprep.subr.mxu0 0.0
        %v5415 = vand.u32 %v2975, 4294901760
        %5416 = vmatpush1.msra.mxu0 %v5415
        %5417 = vmatprep.subr.mxu0 0.0
        %v5418 = vand.u32 %v2976, 4294901760
        %5419 = vmatpush1.msra.mxu0 %v5418
        %5420 = vmatprep.subr.mxu0 0.0
        %v5421 = vand.u32 %v2977, 4294901760
        %5422 = vmatpush1.msra.mxu0 %v5421
        %5423 = vmatprep.subr.mxu0 0.0
        %v5424 = vand.u32 %v2978, 4294901760
        %5425 = vmatpush1.msra.mxu0 %v5424
        %5426 = vmatprep.subr.mxu0 0.0
        %v5427 = vand.u32 %v2979, 4294901760
        %5428 = vmatpush1.msra.mxu0 %v5427
        %5429 = vmatprep.subr.mxu0 0.0
        %v5430 = vand.u32 %v2980, 4294901760
        %5431 = vmatpush1.msra.mxu0 %v5430
        %5432 = vmatprep.subr.mxu0 0.0
        %v5433 = vand.u32 %v2981, 4294901760
        %5434 = vmatpush1.msra.mxu0 %v5433
        %5435 = vmatprep.subr.mxu0 0.0
        %v5436 = vand.u32 %v2982, 4294901760
        %5437 = vmatpush1.msra.mxu0 %v5436
        %5438 = vmatprep.subr.mxu0 0.0
        %v5439 = vand.u32 %v2983, 4294901760
        %5440 = vmatpush1.msra.mxu0 %v5439
        %5441 = vmatprep.subr.mxu0 0.0
        %v5442 = vand.u32 %v2984, 4294901760
        %5443 = vmatpush1.msra.mxu0 %v5442
        %5444 = vmatprep.subr.mxu0 0.0
        %v5445 = vand.u32 %v2985, 4294901760
        %5446 = vmatpush1.msra.mxu0 %v5445
        %5447 = vmatprep.subr.mxu0 0.0
        %v5448 = vand.u32 %v2986, 4294901760
        %5449 = vmatpush1.msra.mxu0 %v5448
        %5450 = vmatprep.subr.mxu0 0.0
        %v5451 = vand.u32 %v2987, 4294901760
        %5452 = vmatpush1.msra.mxu0 %v5451
        %5453 = vmatprep.subr.mxu0 0.0
        %v5454 = vand.u32 %v2988, 4294901760
        %5455 = vmatpush1.msra.mxu0 %v5454
        %5456 = vmatprep.subr.mxu0 0.0
        %v5457 = vand.u32 %v2989, 4294901760
        %5458 = vmatpush1.msra.mxu0 %v5457
        %5459 = vmatprep.subr.mxu0 0.0
        %v5460 = vand.u32 %v2990, 4294901760
        %5461 = vmatpush1.msra.mxu0 %v5460
        %5462 = vmatprep.subr.mxu0 0.0
        %v5463 = vand.u32 %v2991, 4294901760
        %5464 = vmatpush1.msra.mxu0 %v5463
        %5465 = vmatprep.subr.mxu0 0.0
        %v5466 = vand.u32 %v2992, 4294901760
        %5467 = vmatpush1.msra.mxu0 %v5466
        %v5468 = vand.u32 %v2905, 4294901760
        %5469 = vmatprep.mubr.f32.mxu0 %v5468
        %v5470 = vand.u32 %v2919, 4294901760
        %5471 = vmatmul.mubr.f32.gmra.mrb[0].mxu0 %v5470
        %v5472 = vpop.f32.mrb[0].mxu0
        %v5473 = vadd.f32 %v5320, %v5472
        %v5474 = vpop.f32.mrb[0].mxu0
        %v5475 = vand.u32 %v2906, 4294901760
        %5476 = vmatprep.mubr.f32.mxu0 %v5475
        %v5477 = vand.u32 %v2920, 4294901760
        %5478 = vmatmul.mubr.f32.gmra.mrb[0].mxu0 %v5477
        %v5479 = vpop.f32.mrb[0].mxu0
        %v5480 = vadd.f32 %v5327, %v5479
        %v5481 = vpop.f32.mrb[0].mxu0
        %v5482 = vand.u32 %v2907, 4294901760
        %5483 = vmatprep.mubr.f32.mxu0 %v5482
        %v5484 = vand.u32 %v2921, 4294901760
        %5485 = vmatmul.mubr.f32.gmra.mrb[0].mxu0 %v5484
        %v5486 = vpop.f32.mrb[0].mxu0
        %v5487 = vadd.f32 %v5334, %v5486
        %v5488 = vpop.f32.mrb[0].mxu0
        %v5489 = vand.u32 %v2908, 4294901760
        %5490 = vmatprep.mubr.f32.mxu0 %v5489
        %v5491 = vand.u32 %v2922, 4294901760
        %5492 = vmatmul.mubr.f32.gmra.mrb[0].mxu0 %v5491
        %v5493 = vpop.f32.mrb[0].mxu0
        %v5494 = vadd.f32 %v5341, %v5493
        %v5495 = vpop.f32.mrb[0].mxu0
        %v5496 = vand.u32 %v2909, 4294901760
        %5497 = vmatprep.mubr.f32.mxu0 %v5496
        %v5498 = vand.u32 %v2923, 4294901760
        %5499 = vmatmul.mubr.f32.gmra.mrb[0].mxu0 %v5498
        %v5500 = vpop.f32.mrb[0].mxu0
        %v5501 = vadd.f32 %v5348, %v5500
        %v5502 = vpop.f32.mrb[0].mxu0
        %v5503 = vand.u32 %v2910, 4294901760
        %5504 = vmatprep.mubr.f32.mxu0 %v5503
        %v5505 = vand.u32 %v2924, 4294901760
        %5506 = vmatmul.mubr.f32.gmra.mrb[0].mxu0 %v5505
        %v5507 = vpop.f32.mrb[0].mxu0
        %v5508 = vadd.f32 %v5355, %v5507
        %v5509 = vpop.f32.mrb[0].mxu0
        %v5510 = vand.u32 %v2927, 4294901760
        %5511 = vmatprep.mubr.f32.mxu0 %v5510
        %v5512 = vand.u32 %v2925, 4294901760
        %5513 = vmatmul.mubr.f32.gmra.mrb[0].mxu0 %v5512
        %v5514 = vpop.f32.mrb[0].mxu0
        %v5515 = vadd.f32 %v5362, %v5514
        %v5516 = vpop.f32.mrb[0].mxu0
        %v5517 = vand.u32 %v2928, 4294901760
        %5518 = vmatprep.mubr.f32.mxu0 %v5517
        %v5519 = vand.u32 %v2926, 4294901760
        %5520 = vmatmul.mubr.f32.gmra.mrb[0].mxu0 %v5519
        %v5521 = vpop.f32.mrb[0].mxu0
        %v5522 = vadd.f32 %v5369, %v5521
        %v5523 = vpop.f32.mrb[0].mxu0
        %5524 = vdwg.mxu0
        %5525 = vmatprep.subr.mxu0 0.0
        %v5526 = vand.u32 %v2993, 4294901760
        %5527 = vmatpush1.msra.mxu0 %v5526
        %5528 = vmatprep.subr.mxu0 0.0
        %v5529 = vand.u32 %v2994, 4294901760
        %5530 = vmatpush1.msra.mxu0 %v5529
        %5531 = vmatprep.subr.mxu0 0.0
        %v5532 = vand.u32 %v2995, 4294901760
        %5533 = vmatpush1.msra.mxu0 %v5532
        %5534 = vmatprep.subr.mxu0 0.0
        %v5535 = vand.u32 %v2996, 4294901760
        %5536 = vmatpush1.msra.mxu0 %v5535
        %5537 = vmatprep.subr.mxu0 0.0
        %v5538 = vand.u32 %v2997, 4294901760
        %5539 = vmatpush1.msra.mxu0 %v5538
        %5540 = vmatprep.subr.mxu0 0.0
        %v5541 = vand.u32 %v2998, 4294901760
        %5542 = vmatpush1.msra.mxu0 %v5541
        %5543 = vmatprep.subr.mxu0 0.0
        %v5544 = vand.u32 %v2999, 4294901760
        %5545 = vmatpush1.msra.mxu0 %v5544
        %5546 = vmatprep.subr.mxu0 0.0
        %v5547 = vand.u32 %v3000, 4294901760
        %5548 = vmatpush1.msra.mxu0 %v5547
        %5549 = vmatprep.subr.mxu0 0.0
        %5550 = vmatpush1.msra.mxu0 0.0
        %5551 = vmatprep.subr.mxu0 0.0
        %5552 = vmatpush1.msra.mxu0 0.0
        %5553 = vmatprep.subr.mxu0 0.0
        %5554 = vmatpush1.msra.mxu0 0.0
        %5555 = vmatprep.subr.mxu0 0.0
        %5556 = vmatpush1.msra.mxu0 0.0
        %5557 = vmatprep.subr.mxu0 0.0
        %5558 = vmatpush1.msra.mxu0 0.0
        %5559 = vmatprep.subr.mxu0 0.0
        %5560 = vmatpush1.msra.mxu0 0.0
        %5561 = vmatprep.subr.mxu0 0.0
        %5562 = vmatpush1.msra.mxu0 0.0
        %5563 = vmatprep.subr.mxu0 0.0
        %5564 = vmatpush1.msra.mxu0 0.0
        %5565 = vmatprep.subr.mxu0 0.0
        %5566 = vmatpush1.msra.mxu0 0.0
        %5567 = vmatprep.subr.mxu0 0.0
        %5568 = vmatpush1.msra.mxu0 0.0
        %5569 = vmatprep.subr.mxu0 0.0
        %5570 = vmatpush1.msra.mxu0 0.0
        %5571 = vmatprep.subr.mxu0 0.0
        %5572 = vmatpush1.msra.mxu0 0.0
        %5573 = vmatprep.subr.mxu0 0.0
        %5574 = vmatpush1.msra.mxu0 0.0
        %5575 = vmatprep.subr.mxu0 0.0
        %5576 = vmatpush1.msra.mxu0 0.0
        %5577 = vmatprep.subr.mxu0 0.0
        %5578 = vmatpush1.msra.mxu0 0.0
        %5579 = vmatprep.subr.mxu0 0.0
        %5580 = vmatpush1.msra.mxu0 0.0
        %5581 = vmatprep.subr.mxu0 0.0
        %5582 = vmatpush1.msra.mxu0 0.0
        %5583 = vmatprep.subr.mxu0 0.0
        %5584 = vmatpush1.msra.mxu0 0.0
        %5585 = vmatprep.subr.mxu0 0.0
        %5586 = vmatpush1.msra.mxu0 0.0
        %5587 = vmatprep.subr.mxu0 0.0
        %5588 = vmatpush1.msra.mxu0 0.0
        %5589 = vmatprep.subr.mxu0 0.0
        %5590 = vmatpush1.msra.mxu0 0.0
        %5591 = vmatprep.subr.mxu0 0.0
        %5592 = vmatpush1.msra.mxu0 0.0
        %5593 = vmatprep.subr.mxu0 0.0
        %5594 = vmatpush1.msra.mxu0 0.0
        %5595 = vmatprep.subr.mxu0 0.0
        %5596 = vmatpush1.msra.mxu0 0.0
        %5597 = vmatprep.mubr.f32.mxu0 0.0
        %v5598 = vand.u32 %v3001, 4294901760
        %v5599 = vsub.f32 %v3001, %v5598
        %v5600 = vand.u32 %v5599, 4294901760
        %v5601 = vsub.f32 %v5599, %v5600
        %v5602 = vand.u32 %v5601, 4294901760
        %5603 = vmatmul.mubr.f32.gmra.mrb[0].mxu0 %v5602
        %v5604 = vpop.f32.mrb[0].mxu0
        %v5605 = vadd.f32 %v5473, %v5604
        %v5606 = vpop.f32.mrb[0].mxu0
        %5607 = vmatprep.mubr.f32.mxu0 0.0
        %v5608 = vand.u32 %v3003, 4294901760
        %v5609 = vsub.f32 %v3003, %v5608
        %v5610 = vand.u32 %v5609, 4294901760
        %v5611 = vsub.f32 %v5609, %v5610
        %v5612 = vand.u32 %v5611, 4294901760
        %5613 = vmatmul.mubr.f32.gmra.mrb[0].mxu0 %v5612
        %v5614 = vpop.f32.mrb[0].mxu0
        %v5615 = vadd.f32 %v5480, %v5614
        %v5616 = vpop.f32.mrb[0].mxu0
        %5617 = vmatprep.mubr.f32.mxu0 0.0
        %v5618 = vand.u32 %v3005, 4294901760
        %v5619 = vsub.f32 %v3005, %v5618
        %v5620 = vand.u32 %v5619, 4294901760
        %v5621 = vsub.f32 %v5619, %v5620
        %v5622 = vand.u32 %v5621, 4294901760
        %5623 = vmatmul.mubr.f32.gmra.mrb[0].mxu0 %v5622
        %v5624 = vpop.f32.mrb[0].mxu0
        %v5625 = vadd.f32 %v5487, %v5624
        %v5626 = vpop.f32.mrb[0].mxu0
        %5627 = vmatprep.mubr.f32.mxu0 0.0
        %v5628 = vand.u32 %v3007, 4294901760
        %v5629 = vsub.f32 %v3007, %v5628
        %v5630 = vand.u32 %v5629, 4294901760
        %v5631 = vsub.f32 %v5629, %v5630
        %v5632 = vand.u32 %v5631, 4294901760
        %5633 = vmatmul.mubr.f32.gmra.mrb[0].mxu0 %v5632
        %v5634 = vpop.f32.mrb[0].mxu0
        %v5635 = vadd.f32 %v5494, %v5634
        %v5636 = vpop.f32.mrb[0].mxu0
        %5637 = vmatprep.mubr.f32.mxu0 0.0
        %v5638 = vand.u32 %v3009, 4294901760
        %v5639 = vsub.f32 %v3009, %v5638
        %v5640 = vand.u32 %v5639, 4294901760
        %v5641 = vsub.f32 %v5639, %v5640
        %v5642 = vand.u32 %v5641, 4294901760
        %5643 = vmatmul.mubr.f32.gmra.mrb[0].mxu0 %v5642
        %v5644 = vpop.f32.mrb[0].mxu0
        %v5645 = vadd.f32 %v5501, %v5644
        %v5646 = vpop.f32.mrb[0].mxu0
        %5647 = vmatprep.mubr.f32.mxu0 0.0
        %v5648 = vand.u32 %v3011, 4294901760
        %v5649 = vsub.f32 %v3011, %v5648
        %v5650 = vand.u32 %v5649, 4294901760
        %v5651 = vsub.f32 %v5649, %v5650
        %v5652 = vand.u32 %v5651, 4294901760
        %5653 = vmatmul.mubr.f32.gmra.mrb[0].mxu0 %v5652
        %v5654 = vpop.f32.mrb[0].mxu0
        %v5655 = vadd.f32 %v5508, %v5654
        %v5656 = vpop.f32.mrb[0].mxu0
        %5657 = vmatprep.mubr.f32.mxu0 0.0
        %v5658 = vand.u32 %v3013, 4294901760
        %v5659 = vsub.f32 %v3013, %v5658
        %v5660 = vand.u32 %v5659, 4294901760
        %v5661 = vsub.f32 %v5659, %v5660
        %v5662 = vand.u32 %v5661, 4294901760
        %5663 = vmatmul.mubr.f32.gmra.mrb[0].mxu0 %v5662
        %v5664 = vpop.f32.mrb[0].mxu0
        %v5665 = vadd.f32 %v5515, %v5664
        %v5666 = vpop.f32.mrb[0].mxu0
        %5667 = vmatprep.mubr.f32.mxu0 0.0
        %v5668 = vand.u32 %v3015, 4294901760
        %v5669 = vsub.f32 %v3015, %v5668
        %v5670 = vand.u32 %v5669, 4294901760
        %v5671 = vsub.f32 %v5669, %v5670
        %v5672 = vand.u32 %v5671, 4294901760
        %5673 = vmatmul.mubr.f32.gmra.mrb[0].mxu0 %v5672
        %v5674 = vpop.f32.mrb[0].mxu0
        %v5675 = vadd.f32 %v5522, %v5674
        %v5676 = vpop.f32.mrb[0].mxu0
        %5677 = vdwg.mxu0
        %5678 = vmatprep.subr.mxu0 0.0
        %v5679 = vand.u32 %v2993, 4294901760
        %v5680 = vsub.f32 %v2993, %v5679
        %v5681 = vand.u32 %v5680, 4294901760
        %v5682 = vsub.f32 %v5680, %v5681
        %v5683 = vand.u32 %v5682, 4294901760
        %5684 = vmatpush1.msra.mxu0 %v5683
        %5685 = vmatprep.subr.mxu0 0.0
        %v5686 = vand.u32 %v2994, 4294901760
        %v5687 = vsub.f32 %v2994, %v5686
        %v5688 = vand.u32 %v5687, 4294901760
        %v5689 = vsub.f32 %v5687, %v5688
        %v5690 = vand.u32 %v5689, 4294901760
        %5691 = vmatpush1.msra.mxu0 %v5690
        %5692 = vmatprep.subr.mxu0 0.0
        %v5693 = vand.u32 %v2995, 4294901760
        %v5694 = vsub.f32 %v2995, %v5693
        %v5695 = vand.u32 %v5694, 4294901760
        %v5696 = vsub.f32 %v5694, %v5695
        %v5697 = vand.u32 %v5696, 4294901760
        %5698 = vmatpush1.msra.mxu0 %v5697
        %5699 = vmatprep.subr.mxu0 0.0
        %v5700 = vand.u32 %v2996, 4294901760
        %v5701 = vsub.f32 %v2996, %v5700
        %v5702 = vand.u32 %v5701, 4294901760
        %v5703 = vsub.f32 %v5701, %v5702
        %v5704 = vand.u32 %v5703, 4294901760
        %5705 = vmatpush1.msra.mxu0 %v5704
        %5706 = vmatprep.subr.mxu0 0.0
        %v5707 = vand.u32 %v2997, 4294901760
        %v5708 = vsub.f32 %v2997, %v5707
        %v5709 = vand.u32 %v5708, 4294901760
        %v5710 = vsub.f32 %v5708, %v5709
        %v5711 = vand.u32 %v5710, 4294901760
        %5712 = vmatpush1.msra.mxu0 %v5711
        %5713 = vmatprep.subr.mxu0 0.0
        %v5714 = vand.u32 %v2998, 4294901760
        %v5715 = vsub.f32 %v2998, %v5714
        %v5716 = vand.u32 %v5715, 4294901760
        %v5717 = vsub.f32 %v5715, %v5716
        %v5718 = vand.u32 %v5717, 4294901760
        %5719 = vmatpush1.msra.mxu0 %v5718
        %5720 = vmatprep.subr.mxu0 0.0
        %v5721 = vand.u32 %v2999, 4294901760
        %v5722 = vsub.f32 %v2999, %v5721
        %v5723 = vand.u32 %v5722, 4294901760
        %v5724 = vsub.f32 %v5722, %v5723
        %v5725 = vand.u32 %v5724, 4294901760
        %5726 = vmatpush1.msra.mxu0 %v5725
        %5727 = vmatprep.subr.mxu0 0.0
        %v5728 = vand.u32 %v3000, 4294901760
        %v5729 = vsub.f32 %v3000, %v5728
        %v5730 = vand.u32 %v5729, 4294901760
        %v5731 = vsub.f32 %v5729, %v5730
        %v5732 = vand.u32 %v5731, 4294901760
        %5733 = vmatpush1.msra.mxu0 %v5732
        %5734 = vmatprep.subr.mxu0 0.0
        %5735 = vmatpush1.msra.mxu0 0.0
        %5736 = vmatprep.subr.mxu0 0.0
        %5737 = vmatpush1.msra.mxu0 0.0
        %5738 = vmatprep.subr.mxu0 0.0
        %5739 = vmatpush1.msra.mxu0 0.0
        %5740 = vmatprep.subr.mxu0 0.0
        %5741 = vmatpush1.msra.mxu0 0.0
        %5742 = vmatprep.subr.mxu0 0.0
        %5743 = vmatpush1.msra.mxu0 0.0
        %5744 = vmatprep.subr.mxu0 0.0
        %5745 = vmatpush1.msra.mxu0 0.0
        %5746 = vmatprep.subr.mxu0 0.0
        %5747 = vmatpush1.msra.mxu0 0.0
        %5748 = vmatprep.subr.mxu0 0.0
        %5749 = vmatpush1.msra.mxu0 0.0
        %5750 = vmatprep.subr.mxu0 0.0
        %5751 = vmatpush1.msra.mxu0 0.0
        %5752 = vmatprep.subr.mxu0 0.0
        %5753 = vmatpush1.msra.mxu0 0.0
        %5754 = vmatprep.subr.mxu0 0.0
        %5755 = vmatpush1.msra.mxu0 0.0
        %5756 = vmatprep.subr.mxu0 0.0
        %5757 = vmatpush1.msra.mxu0 0.0
        %5758 = vmatprep.subr.mxu0 0.0
        %5759 = vmatpush1.msra.mxu0 0.0
        %5760 = vmatprep.subr.mxu0 0.0
        %5761 = vmatpush1.msra.mxu0 0.0
        %5762 = vmatprep.subr.mxu0 0.0
        %5763 = vmatpush1.msra.mxu0 0.0
        %5764 = vmatprep.subr.mxu0 0.0
        %5765 = vmatpush1.msra.mxu0 0.0
        %5766 = vmatprep.subr.mxu0 0.0
        %5767 = vmatpush1.msra.mxu0 0.0
        %5768 = vmatprep.subr.mxu0 0.0
        %5769 = vmatpush1.msra.mxu0 0.0
        %5770 = vmatprep.subr.mxu0 0.0
        %5771 = vmatpush1.msra.mxu0 0.0
        %5772 = vmatprep.subr.mxu0 0.0
        %5773 = vmatpush1.msra.mxu0 0.0
        %5774 = vmatprep.subr.mxu0 0.0
        %5775 = vmatpush1.msra.mxu0 0.0
        %5776 = vmatprep.subr.mxu0 0.0
        %5777 = vmatpush1.msra.mxu0 0.0
        %5778 = vmatprep.subr.mxu0 0.0
        %5779 = vmatpush1.msra.mxu0 0.0
        %5780 = vmatprep.subr.mxu0 0.0
        %5781 = vmatpush1.msra.mxu0 0.0
        %5782 = vmatprep.mubr.f32.mxu0 0.0
        %v5783 = vand.u32 %v3001, 4294901760
        %5784 = vmatmul.mubr.f32.gmra.mrb[0].mxu0 %v5783
        %v5785 = vpop.f32.mrb[0].mxu0
        %v5786 = vadd.f32 %v5605, %v5785
        %v5787 = vpop.f32.mrb[0].mxu0
        %5788 = vmatprep.mubr.f32.mxu0 0.0
        %v5789 = vand.u32 %v3003, 4294901760
        %5790 = vmatmul.mubr.f32.gmra.mrb[0].mxu0 %v5789
        %v5791 = vpop.f32.mrb[0].mxu0
        %v5792 = vadd.f32 %v5615, %v5791
        %v5793 = vpop.f32.mrb[0].mxu0
        %5794 = vmatprep.mubr.f32.mxu0 0.0
        %v5795 = vand.u32 %v3005, 4294901760
        %5796 = vmatmul.mubr.f32.gmra.mrb[0].mxu0 %v5795
        %v5797 = vpop.f32.mrb[0].mxu0
        %v5798 = vadd.f32 %v5625, %v5797
        %v5799 = vpop.f32.mrb[0].mxu0
        %5800 = vmatprep.mubr.f32.mxu0 0.0
        %v5801 = vand.u32 %v3007, 4294901760
        %5802 = vmatmul.mubr.f32.gmra.mrb[0].mxu0 %v5801
        %v5803 = vpop.f32.mrb[0].mxu0
        %v5804 = vadd.f32 %v5635, %v5803
        %v5805 = vpop.f32.mrb[0].mxu0
        %5806 = vmatprep.mubr.f32.mxu0 0.0
        %v5807 = vand.u32 %v3009, 4294901760
        %5808 = vmatmul.mubr.f32.gmra.mrb[0].mxu0 %v5807
        %v5809 = vpop.f32.mrb[0].mxu0
        %v5810 = vadd.f32 %v5645, %v5809
        %v5811 = vpop.f32.mrb[0].mxu0
        %5812 = vmatprep.mubr.f32.mxu0 0.0
        %v5813 = vand.u32 %v3011, 4294901760
        %5814 = vmatmul.mubr.f32.gmra.mrb[0].mxu0 %v5813
        %v5815 = vpop.f32.mrb[0].mxu0
        %v5816 = vadd.f32 %v5655, %v5815
        %v5817 = vpop.f32.mrb[0].mxu0
        %5818 = vmatprep.mubr.f32.mxu0 0.0
        %v5819 = vand.u32 %v3013, 4294901760
        %5820 = vmatmul.mubr.f32.gmra.mrb[0].mxu0 %v5819
        %v5821 = vpop.f32.mrb[0].mxu0
        %v5822 = vadd.f32 %v5665, %v5821
        %v5823 = vpop.f32.mrb[0].mxu0
        %5824 = vmatprep.mubr.f32.mxu0 0.0
        %v5825 = vand.u32 %v3015, 4294901760
        %5826 = vmatmul.mubr.f32.gmra.mrb[0].mxu0 %v5825
        %v5827 = vpop.f32.mrb[0].mxu0
        %v5828 = vadd.f32 %v5675, %v5827
        %v5829 = vpop.f32.mrb[0].mxu0
        %5830 = vdwg.mxu0
        %5831 = vmatprep.subr.mxu0 0.0
        %v5832 = vand.u32 %v2993, 4294901760
        %v5833 = vsub.f32 %v2993, %v5832
        %5834 = vmatpush1.msra.mxu0 %v5833
        %5835 = vmatprep.subr.mxu0 0.0
        %v5836 = vand.u32 %v2994, 4294901760
        %v5837 = vsub.f32 %v2994, %v5836
        %5838 = vmatpush1.msra.mxu0 %v5837
        %5839 = vmatprep.subr.mxu0 0.0
        %v5840 = vand.u32 %v2995, 4294901760
        %v5841 = vsub.f32 %v2995, %v5840
        %5842 = vmatpush1.msra.mxu0 %v5841
        %5843 = vmatprep.subr.mxu0 0.0
        %v5844 = vand.u32 %v2996, 4294901760
        %v5845 = vsub.f32 %v2996, %v5844
        %5846 = vmatpush1.msra.mxu0 %v5845
        %5847 = vmatprep.subr.mxu0 0.0
        %v5848 = vand.u32 %v2997, 4294901760
        %v5849 = vsub.f32 %v2997, %v5848
        %5850 = vmatpush1.msra.mxu0 %v5849
        %5851 = vmatprep.subr.mxu0 0.0
        %v5852 = vand.u32 %v2998, 4294901760
        %v5853 = vsub.f32 %v2998, %v5852
        %5854 = vmatpush1.msra.mxu0 %v5853
        %5855 = vmatprep.subr.mxu0 0.0
        %v5856 = vand.u32 %v2999, 4294901760
        %v5857 = vsub.f32 %v2999, %v5856
        %5858 = vmatpush1.msra.mxu0 %v5857
        %5859 = vmatprep.subr.mxu0 0.0
        %v5860 = vand.u32 %v3000, 4294901760
        %v5861 = vsub.f32 %v3000, %v5860
        %5862 = vmatpush1.msra.mxu0 %v5861
        %5863 = vmatprep.subr.mxu0 0.0
        %5864 = vmatpush1.msra.mxu0 0.0
        %5865 = vmatprep.subr.mxu0 0.0
        %5866 = vmatpush1.msra.mxu0 0.0
        %5867 = vmatprep.subr.mxu0 0.0
        %5868 = vmatpush1.msra.mxu0 0.0
        %5869 = vmatprep.subr.mxu0 0.0
        %5870 = vmatpush1.msra.mxu0 0.0
        %5871 = vmatprep.subr.mxu0 0.0
        %5872 = vmatpush1.msra.mxu0 0.0
        %5873 = vmatprep.subr.mxu0 0.0
        %5874 = vmatpush1.msra.mxu0 0.0
        %5875 = vmatprep.subr.mxu0 0.0
        %5876 = vmatpush1.msra.mxu0 0.0
        %5877 = vmatprep.subr.mxu0 0.0
        %5878 = vmatpush1.msra.mxu0 0.0
        %5879 = vmatprep.subr.mxu0 0.0
        %5880 = vmatpush1.msra.mxu0 0.0
        %5881 = vmatprep.subr.mxu0 0.0
        %5882 = vmatpush1.msra.mxu0 0.0
        %5883 = vmatprep.subr.mxu0 0.0
        %5884 = vmatpush1.msra.mxu0 0.0
        %5885 = vmatprep.subr.mxu0 0.0
        %5886 = vmatpush1.msra.mxu0 0.0
        %5887 = vmatprep.subr.mxu0 0.0
        %5888 = vmatpush1.msra.mxu0 0.0
        %5889 = vmatprep.subr.mxu0 0.0
        %5890 = vmatpush1.msra.mxu0 0.0
        %5891 = vmatprep.subr.mxu0 0.0
        %5892 = vmatpush1.msra.mxu0 0.0
        %5893 = vmatprep.subr.mxu0 0.0
        %5894 = vmatpush1.msra.mxu0 0.0
        %5895 = vmatprep.subr.mxu0 0.0
        %5896 = vmatpush1.msra.mxu0 0.0
        %5897 = vmatprep.subr.mxu0 0.0
        %5898 = vmatpush1.msra.mxu0 0.0
        %5899 = vmatprep.subr.mxu0 0.0
        %5900 = vmatpush1.msra.mxu0 0.0
        %5901 = vmatprep.subr.mxu0 0.0
        %5902 = vmatpush1.msra.mxu0 0.0
        %5903 = vmatprep.subr.mxu0 0.0
        %5904 = vmatpush1.msra.mxu0 0.0
        %5905 = vmatprep.subr.mxu0 0.0
        %5906 = vmatpush1.msra.mxu0 0.0
        %5907 = vmatprep.subr.mxu0 0.0
        %5908 = vmatpush1.msra.mxu0 0.0
        %5909 = vmatprep.subr.mxu0 0.0
        %5910 = vmatpush1.msra.mxu0 0.0
        %5911 = vmatprep.mubr.f32.mxu0 0.0
        %v5912 = vand.u32 %v3001, 4294901760
        %v5913 = vsub.f32 %v3001, %v5912
        %5914 = vmatmul.mubr.f32.gmra.mrb[0].mxu0 %v5913
        %v5915 = vpop.f32.mrb[0].mxu0
        %v5916 = vadd.f32 %v5786, %v5915
        %v5917 = vpop.f32.mrb[0].mxu0
        %5918 = vmatprep.mubr.f32.mxu0 0.0
        %v5919 = vand.u32 %v3003, 4294901760
        %v5920 = vsub.f32 %v3003, %v5919
        %5921 = vmatmul.mubr.f32.gmra.mrb[0].mxu0 %v5920
        %v5922 = vpop.f32.mrb[0].mxu0
        %v5923 = vadd.f32 %v5792, %v5922
        %v5924 = vpop.f32.mrb[0].mxu0
        %5925 = vmatprep.mubr.f32.mxu0 0.0
        %v5926 = vand.u32 %v3005, 4294901760
        %v5927 = vsub.f32 %v3005, %v5926
        %5928 = vmatmul.mubr.f32.gmra.mrb[0].mxu0 %v5927
        %v5929 = vpop.f32.mrb[0].mxu0
        %v5930 = vadd.f32 %v5798, %v5929
        %v5931 = vpop.f32.mrb[0].mxu0
        %5932 = vmatprep.mubr.f32.mxu0 0.0
        %v5933 = vand.u32 %v3007, 4294901760
        %v5934 = vsub.f32 %v3007, %v5933
        %5935 = vmatmul.mubr.f32.gmra.mrb[0].mxu0 %v5934
        %v5936 = vpop.f32.mrb[0].mxu0
        %v5937 = vadd.f32 %v5804, %v5936
        %v5938 = vpop.f32.mrb[0].mxu0
        %5939 = vmatprep.mubr.f32.mxu0 0.0
        %v5940 = vand.u32 %v3009, 4294901760
        %v5941 = vsub.f32 %v3009, %v5940
        %5942 = vmatmul.mubr.f32.gmra.mrb[0].mxu0 %v5941
        %v5943 = vpop.f32.mrb[0].mxu0
        %v5944 = vadd.f32 %v5810, %v5943
        %v5945 = vpop.f32.mrb[0].mxu0
        %5946 = vmatprep.mubr.f32.mxu0 0.0
        %v5947 = vand.u32 %v3011, 4294901760
        %v5948 = vsub.f32 %v3011, %v5947
        %5949 = vmatmul.mubr.f32.gmra.mrb[0].mxu0 %v5948
        %v5950 = vpop.f32.mrb[0].mxu0
        %v5951 = vadd.f32 %v5816, %v5950
        %v5952 = vpop.f32.mrb[0].mxu0
        %5953 = vmatprep.mubr.f32.mxu0 0.0
        %v5954 = vand.u32 %v3013, 4294901760
        %v5955 = vsub.f32 %v3013, %v5954
        %5956 = vmatmul.mubr.f32.gmra.mrb[0].mxu0 %v5955
        %v5957 = vpop.f32.mrb[0].mxu0
        %v5958 = vadd.f32 %v5822, %v5957
        %v5959 = vpop.f32.mrb[0].mxu0
        %5960 = vmatprep.mubr.f32.mxu0 0.0
        %v5961 = vand.u32 %v3015, 4294901760
        %v5962 = vsub.f32 %v3015, %v5961
        %5963 = vmatmul.mubr.f32.gmra.mrb[0].mxu0 %v5962
        %v5964 = vpop.f32.mrb[0].mxu0
        %v5965 = vadd.f32 %v5828, %v5964
        %v5966 = vpop.f32.mrb[0].mxu0
        %5967 = vdwg.mxu0
        %5968 = vmatprep.subr.mxu0 0.0
        %v5969 = vand.u32 %v2993, 4294901760
        %5970 = vmatpush1.msra.mxu0 %v5969
        %5971 = vmatprep.subr.mxu0 0.0
        %v5972 = vand.u32 %v2994, 4294901760
        %5973 = vmatpush1.msra.mxu0 %v5972
        %5974 = vmatprep.subr.mxu0 0.0
        %v5975 = vand.u32 %v2995, 4294901760
        %5976 = vmatpush1.msra.mxu0 %v5975
        %5977 = vmatprep.subr.mxu0 0.0
        %v5978 = vand.u32 %v2996, 4294901760
        %5979 = vmatpush1.msra.mxu0 %v5978
        %5980 = vmatprep.subr.mxu0 0.0
        %v5981 = vand.u32 %v2997, 4294901760
        %5982 = vmatpush1.msra.mxu0 %v5981
        %5983 = vmatprep.subr.mxu0 0.0
        %v5984 = vand.u32 %v2998, 4294901760
        %5985 = vmatpush1.msra.mxu0 %v5984
        %5986 = vmatprep.subr.mxu0 0.0
        %v5987 = vand.u32 %v2999, 4294901760
        %5988 = vmatpush1.msra.mxu0 %v5987
        %5989 = vmatprep.subr.mxu0 0.0
        %v5990 = vand.u32 %v3000, 4294901760
        %5991 = vmatpush1.msra.mxu0 %v5990
        %5992 = vmatprep.subr.mxu0 0.0
        %5993 = vmatpush1.msra.mxu0 0.0
        %5994 = vmatprep.subr.mxu0 0.0
        %5995 = vmatpush1.msra.mxu0 0.0
        %5996 = vmatprep.subr.mxu0 0.0
        %5997 = vmatpush1.msra.mxu0 0.0
        %5998 = vmatprep.subr.mxu0 0.0
        %5999 = vmatpush1.msra.mxu0 0.0
        %6000 = vmatprep.subr.mxu0 0.0
        %6001 = vmatpush1.msra.mxu0 0.0
        %6002 = vmatprep.subr.mxu0 0.0
        %6003 = vmatpush1.msra.mxu0 0.0
        %6004 = vmatprep.subr.mxu0 0.0
        %6005 = vmatpush1.msra.mxu0 0.0
        %6006 = vmatprep.subr.mxu0 0.0
        %6007 = vmatpush1.msra.mxu0 0.0
        %6008 = vmatprep.subr.mxu0 0.0
        %6009 = vmatpush1.msra.mxu0 0.0
        %6010 = vmatprep.subr.mxu0 0.0
        %6011 = vmatpush1.msra.mxu0 0.0
        %6012 = vmatprep.subr.mxu0 0.0
        %6013 = vmatpush1.msra.mxu0 0.0
        %6014 = vmatprep.subr.mxu0 0.0
        %6015 = vmatpush1.msra.mxu0 0.0
        %6016 = vmatprep.subr.mxu0 0.0
        %6017 = vmatpush1.msra.mxu0 0.0
        %6018 = vmatprep.subr.mxu0 0.0
        %6019 = vmatpush1.msra.mxu0 0.0
        %6020 = vmatprep.subr.mxu0 0.0
        %6021 = vmatpush1.msra.mxu0 0.0
        %6022 = vmatprep.subr.mxu0 0.0
        %6023 = vmatpush1.msra.mxu0 0.0
        %6024 = vmatprep.subr.mxu0 0.0
        %6025 = vmatpush1.msra.mxu0 0.0
        %6026 = vmatprep.subr.mxu0 0.0
        %6027 = vmatpush1.msra.mxu0 0.0
        %6028 = vmatprep.subr.mxu0 0.0
        %6029 = vmatpush1.msra.mxu0 0.0
        %6030 = vmatprep.subr.mxu0 0.0
        %6031 = vmatpush1.msra.mxu0 0.0
        %6032 = vmatprep.subr.mxu0 0.0
        %6033 = vmatpush1.msra.mxu0 0.0
        %6034 = vmatprep.subr.mxu0 0.0
        %6035 = vmatpush1.msra.mxu0 0.0
        %6036 = vmatprep.subr.mxu0 0.0
        %6037 = vmatpush1.msra.mxu0 0.0
        %6038 = vmatprep.subr.mxu0 0.0
        %6039 = vmatpush1.msra.mxu0 0.0
        %6040 = vmatprep.mubr.f32.mxu0 0.0
        %v6041 = vand.u32 %v3001, 4294901760
        %v6042 = vsub.f32 %v3001, %v6041
        %v6043 = vand.u32 %v6042, 4294901760
        %6044 = vmatmul.mubr.f32.gmra.mrb[0].mxu0 %v6043
        %v6045 = vpop.f32.mrb[0].mxu0
        %v6046 = vadd.f32 %v5916, %v6045
        %v6047 = vpop.f32.mrb[0].mxu0
        %6048 = vmatprep.mubr.f32.mxu0 0.0
        %v6049 = vand.u32 %v3003, 4294901760
        %v6050 = vsub.f32 %v3003, %v6049
        %v6051 = vand.u32 %v6050, 4294901760
        %6052 = vmatmul.mubr.f32.gmra.mrb[0].mxu0 %v6051
        %v6053 = vpop.f32.mrb[0].mxu0
        %v6054 = vadd.f32 %v5923, %v6053
        %v6055 = vpop.f32.mrb[0].mxu0
        %6056 = vmatprep.mubr.f32.mxu0 0.0
        %v6057 = vand.u32 %v3005, 4294901760
        %v6058 = vsub.f32 %v3005, %v6057
        %v6059 = vand.u32 %v6058, 4294901760
        %6060 = vmatmul.mubr.f32.gmra.mrb[0].mxu0 %v6059
        %v6061 = vpop.f32.mrb[0].mxu0
        %v6062 = vadd.f32 %v5930, %v6061
        %v6063 = vpop.f32.mrb[0].mxu0
        %6064 = vmatprep.mubr.f32.mxu0 0.0
        %v6065 = vand.u32 %v3007, 4294901760
        %v6066 = vsub.f32 %v3007, %v6065
        %v6067 = vand.u32 %v6066, 4294901760
        %6068 = vmatmul.mubr.f32.gmra.mrb[0].mxu0 %v6067
        %v6069 = vpop.f32.mrb[0].mxu0
        %v6070 = vadd.f32 %v5937, %v6069
        %v6071 = vpop.f32.mrb[0].mxu0
        %6072 = vmatprep.mubr.f32.mxu0 0.0
        %v6073 = vand.u32 %v3009, 4294901760
        %v6074 = vsub.f32 %v3009, %v6073
        %v6075 = vand.u32 %v6074, 4294901760
        %6076 = vmatmul.mubr.f32.gmra.mrb[0].mxu0 %v6075
        %v6077 = vpop.f32.mrb[0].mxu0
        %v6078 = vadd.f32 %v5944, %v6077
        %v6079 = vpop.f32.mrb[0].mxu0
        %6080 = vmatprep.mubr.f32.mxu0 0.0
        %v6081 = vand.u32 %v3011, 4294901760
        %v6082 = vsub.f32 %v3011, %v6081
        %v6083 = vand.u32 %v6082, 4294901760
        %6084 = vmatmul.mubr.f32.gmra.mrb[0].mxu0 %v6083
        %v6085 = vpop.f32.mrb[0].mxu0
        %v6086 = vadd.f32 %v5951, %v6085
        %v6087 = vpop.f32.mrb[0].mxu0
        %6088 = vmatprep.mubr.f32.mxu0 0.0
        %v6089 = vand.u32 %v3013, 4294901760
        %v6090 = vsub.f32 %v3013, %v6089
        %v6091 = vand.u32 %v6090, 4294901760
        %6092 = vmatmul.mubr.f32.gmra.mrb[0].mxu0 %v6091
        %v6093 = vpop.f32.mrb[0].mxu0
        %v6094 = vadd.f32 %v5958, %v6093
        %v6095 = vpop.f32.mrb[0].mxu0
        %6096 = vmatprep.mubr.f32.mxu0 0.0
        %v6097 = vand.u32 %v3015, 4294901760
        %v6098 = vsub.f32 %v3015, %v6097
        %v6099 = vand.u32 %v6098, 4294901760
        %6100 = vmatmul.mubr.f32.gmra.mrb[0].mxu0 %v6099
        %v6101 = vpop.f32.mrb[0].mxu0
        %v6102 = vadd.f32 %v5965, %v6101
        %v6103 = vpop.f32.mrb[0].mxu0
        %6104 = vdwg.mxu0
        %6105 = vmatprep.subr.mxu0 0.0
        %v6106 = vand.u32 %v2993, 4294901760
        %v6107 = vsub.f32 %v2993, %v6106
        %v6108 = vand.u32 %v6107, 4294901760
        %6109 = vmatpush1.msra.mxu0 %v6108
        %6110 = vmatprep.subr.mxu0 0.0
        %v6111 = vand.u32 %v2994, 4294901760
        %v6112 = vsub.f32 %v2994, %v6111
        %v6113 = vand.u32 %v6112, 4294901760
        %6114 = vmatpush1.msra.mxu0 %v6113
        %6115 = vmatprep.subr.mxu0 0.0
        %v6116 = vand.u32 %v2995, 4294901760
        %v6117 = vsub.f32 %v2995, %v6116
        %v6118 = vand.u32 %v6117, 4294901760
        %6119 = vmatpush1.msra.mxu0 %v6118
        %6120 = vmatprep.subr.mxu0 0.0
        %v6121 = vand.u32 %v2996, 4294901760
        %v6122 = vsub.f32 %v2996, %v6121
        %v6123 = vand.u32 %v6122, 4294901760
        %6124 = vmatpush1.msra.mxu0 %v6123
        %6125 = vmatprep.subr.mxu0 0.0
        %v6126 = vand.u32 %v2997, 4294901760
        %v6127 = vsub.f32 %v2997, %v6126
        %v6128 = vand.u32 %v6127, 4294901760
        %6129 = vmatpush1.msra.mxu0 %v6128
        %6130 = vmatprep.subr.mxu0 0.0
        %v6131 = vand.u32 %v2998, 4294901760
        %v6132 = vsub.f32 %v2998, %v6131
        %v6133 = vand.u32 %v6132, 4294901760
        %6134 = vmatpush1.msra.mxu0 %v6133
        %6135 = vmatprep.subr.mxu0 0.0
        %v6136 = vand.u32 %v2999, 4294901760
        %v6137 = vsub.f32 %v2999, %v6136
        %v6138 = vand.u32 %v6137, 4294901760
        %6139 = vmatpush1.msra.mxu0 %v6138
        %6140 = vmatprep.subr.mxu0 0.0
        %v6141 = vand.u32 %v3000, 4294901760
        %v6142 = vsub.f32 %v3000, %v6141
        %v6143 = vand.u32 %v6142, 4294901760
        %6144 = vmatpush1.msra.mxu0 %v6143
        %6145 = vmatprep.subr.mxu0 0.0
        %6146 = vmatpush1.msra.mxu0 0.0
        %6147 = vmatprep.subr.mxu0 0.0
        %6148 = vmatpush1.msra.mxu0 0.0
        %6149 = vmatprep.subr.mxu0 0.0
        %6150 = vmatpush1.msra.mxu0 0.0
        %6151 = vmatprep.subr.mxu0 0.0
        %6152 = vmatpush1.msra.mxu0 0.0
        %6153 = vmatprep.subr.mxu0 0.0
        %6154 = vmatpush1.msra.mxu0 0.0
        %6155 = vmatprep.subr.mxu0 0.0
        %6156 = vmatpush1.msra.mxu0 0.0
        %6157 = vmatprep.subr.mxu0 0.0
        %6158 = vmatpush1.msra.mxu0 0.0
        %6159 = vmatprep.subr.mxu0 0.0
        %6160 = vmatpush1.msra.mxu0 0.0
        %6161 = vmatprep.subr.mxu0 0.0
        %6162 = vmatpush1.msra.mxu0 0.0
        %6163 = vmatprep.subr.mxu0 0.0
        %6164 = vmatpush1.msra.mxu0 0.0
        %6165 = vmatprep.subr.mxu0 0.0
        %6166 = vmatpush1.msra.mxu0 0.0
        %6167 = vmatprep.subr.mxu0 0.0
        %6168 = vmatpush1.msra.mxu0 0.0
        %6169 = vmatprep.subr.mxu0 0.0
        %6170 = vmatpush1.msra.mxu0 0.0
        %6171 = vmatprep.subr.mxu0 0.0
        %6172 = vmatpush1.msra.mxu0 0.0
        %6173 = vmatprep.subr.mxu0 0.0
        %6174 = vmatpush1.msra.mxu0 0.0
        %6175 = vmatprep.subr.mxu0 0.0
        %6176 = vmatpush1.msra.mxu0 0.0
        %6177 = vmatprep.subr.mxu0 0.0
        %6178 = vmatpush1.msra.mxu0 0.0
        %6179 = vmatprep.subr.mxu0 0.0
        %6180 = vmatpush1.msra.mxu0 0.0
        %6181 = vmatprep.subr.mxu0 0.0
        %6182 = vmatpush1.msra.mxu0 0.0
        %6183 = vmatprep.subr.mxu0 0.0
        %6184 = vmatpush1.msra.mxu0 0.0
        %6185 = vmatprep.subr.mxu0 0.0
        %6186 = vmatpush1.msra.mxu0 0.0
        %6187 = vmatprep.subr.mxu0 0.0
        %6188 = vmatpush1.msra.mxu0 0.0
        %6189 = vmatprep.subr.mxu0 0.0
        %6190 = vmatpush1.msra.mxu0 0.0
        %6191 = vmatprep.subr.mxu0 0.0
        %6192 = vmatpush1.msra.mxu0 0.0
        %6193 = vmatprep.mubr.f32.mxu0 0.0
        %v6194 = vand.u32 %v3001, 4294901760
        %6195 = vmatmul.mubr.f32.gmra.mrb[0].mxu0 %v6194
        %v6196 = vpop.f32.mrb[0].mxu0
        %v6197 = vadd.f32 %v6046, %v6196
        %v6198 = vpop.f32.mrb[0].mxu0
        %6199 = vmatprep.mubr.f32.mxu0 0.0
        %v6200 = vand.u32 %v3003, 4294901760
        %6201 = vmatmul.mubr.f32.gmra.mrb[0].mxu0 %v6200
        %v6202 = vpop.f32.mrb[0].mxu0
        %v6203 = vadd.f32 %v6054, %v6202
        %v6204 = vpop.f32.mrb[0].mxu0
        %6205 = vmatprep.mubr.f32.mxu0 0.0
        %v6206 = vand.u32 %v3005, 4294901760
        %6207 = vmatmul.mubr.f32.gmra.mrb[0].mxu0 %v6206
        %v6208 = vpop.f32.mrb[0].mxu0
        %v6209 = vadd.f32 %v6062, %v6208
        %v6210 = vpop.f32.mrb[0].mxu0
        %6211 = vmatprep.mubr.f32.mxu0 0.0
        %v6212 = vand.u32 %v3007, 4294901760
        %6213 = vmatmul.mubr.f32.gmra.mrb[0].mxu0 %v6212
        %v6214 = vpop.f32.mrb[0].mxu0
        %v6215 = vadd.f32 %v6070, %v6214
        %v6216 = vpop.f32.mrb[0].mxu0
        %6217 = vmatprep.mubr.f32.mxu0 0.0
        %v6218 = vand.u32 %v3009, 4294901760
        %6219 = vmatmul.mubr.f32.gmra.mrb[0].mxu0 %v6218
        %v6220 = vpop.f32.mrb[0].mxu0
        %v6221 = vadd.f32 %v6078, %v6220
        %v6222 = vpop.f32.mrb[0].mxu0
        %6223 = vmatprep.mubr.f32.mxu0 0.0
        %v6224 = vand.u32 %v3011, 4294901760
        %6225 = vmatmul.mubr.f32.gmra.mrb[0].mxu0 %v6224
        %v6226 = vpop.f32.mrb[0].mxu0
        %v6227 = vadd.f32 %v6086, %v6226
        %v6228 = vpop.f32.mrb[0].mxu0
        %6229 = vmatprep.mubr.f32.mxu0 0.0
        %v6230 = vand.u32 %v3013, 4294901760
        %6231 = vmatmul.mubr.f32.gmra.mrb[0].mxu0 %v6230
        %v6232 = vpop.f32.mrb[0].mxu0
        %v6233 = vadd.f32 %v6094, %v6232
        %v6234 = vpop.f32.mrb[0].mxu0
        %6235 = vmatprep.mubr.f32.mxu0 0.0
        %v6236 = vand.u32 %v3015, 4294901760
        %6237 = vmatmul.mubr.f32.gmra.mrb[0].mxu0 %v6236
        %v6238 = vpop.f32.mrb[0].mxu0
        %v6239 = vadd.f32 %v6102, %v6238
        %v6240 = vpop.f32.mrb[0].mxu0
        %6241 = vdwg.mxu0
        %6242 = vmatprep.subr.mxu0 0.0
        %v6243 = vand.u32 %v2993, 4294901760
        %6244 = vmatpush1.msra.mxu0 %v6243
        %6245 = vmatprep.subr.mxu0 0.0
        %v6246 = vand.u32 %v2994, 4294901760
        %6247 = vmatpush1.msra.mxu0 %v6246
        %6248 = vmatprep.subr.mxu0 0.0
        %v6249 = vand.u32 %v2995, 4294901760
        %6250 = vmatpush1.msra.mxu0 %v6249
        %6251 = vmatprep.subr.mxu0 0.0
        %v6252 = vand.u32 %v2996, 4294901760
        %6253 = vmatpush1.msra.mxu0 %v6252
        %6254 = vmatprep.subr.mxu0 0.0
        %v6255 = vand.u32 %v2997, 4294901760
        %6256 = vmatpush1.msra.mxu0 %v6255
        %6257 = vmatprep.subr.mxu0 0.0
        %v6258 = vand.u32 %v2998, 4294901760
        %6259 = vmatpush1.msra.mxu0 %v6258
        %6260 = vmatprep.subr.mxu0 0.0
        %v6261 = vand.u32 %v2999, 4294901760
        %6262 = vmatpush1.msra.mxu0 %v6261
        %6263 = vmatprep.subr.mxu0 0.0
        %v6264 = vand.u32 %v3000, 4294901760
        %6265 = vmatpush1.msra.mxu0 %v6264
        %6266 = vmatprep.subr.mxu0 0.0
        %6267 = vmatpush1.msra.mxu0 0.0
        %6268 = vmatprep.subr.mxu0 0.0
        %6269 = vmatpush1.msra.mxu0 0.0
        %6270 = vmatprep.subr.mxu0 0.0
        %6271 = vmatpush1.msra.mxu0 0.0
        %6272 = vmatprep.subr.mxu0 0.0
        %6273 = vmatpush1.msra.mxu0 0.0
        %6274 = vmatprep.subr.mxu0 0.0
        %6275 = vmatpush1.msra.mxu0 0.0
        %6276 = vmatprep.subr.mxu0 0.0
        %6277 = vmatpush1.msra.mxu0 0.0
        %6278 = vmatprep.subr.mxu0 0.0
        %6279 = vmatpush1.msra.mxu0 0.0
        %6280 = vmatprep.subr.mxu0 0.0
        %6281 = vmatpush1.msra.mxu0 0.0
        %6282 = vmatprep.subr.mxu0 0.0
        %6283 = vmatpush1.msra.mxu0 0.0
        %6284 = vmatprep.subr.mxu0 0.0
        %6285 = vmatpush1.msra.mxu0 0.0
        %6286 = vmatprep.subr.mxu0 0.0
        %6287 = vmatpush1.msra.mxu0 0.0
        %6288 = vmatprep.subr.mxu0 0.0
        %6289 = vmatpush1.msra.mxu0 0.0
        %6290 = vmatprep.subr.mxu0 0.0
        %6291 = vmatpush1.msra.mxu0 0.0
        %6292 = vmatprep.subr.mxu0 0.0
        %6293 = vmatpush1.msra.mxu0 0.0
        %6294 = vmatprep.subr.mxu0 0.0
        %6295 = vmatpush1.msra.mxu0 0.0
        %6296 = vmatprep.subr.mxu0 0.0
        %6297 = vmatpush1.msra.mxu0 0.0
        %6298 = vmatprep.subr.mxu0 0.0
        %6299 = vmatpush1.msra.mxu0 0.0
        %6300 = vmatprep.subr.mxu0 0.0
        %6301 = vmatpush1.msra.mxu0 0.0
        %6302 = vmatprep.subr.mxu0 0.0
        %6303 = vmatpush1.msra.mxu0 0.0
        %6304 = vmatprep.subr.mxu0 0.0
        %6305 = vmatpush1.msra.mxu0 0.0
        %6306 = vmatprep.subr.mxu0 0.0
        %6307 = vmatpush1.msra.mxu0 0.0
        %6308 = vmatprep.subr.mxu0 0.0
        %6309 = vmatpush1.msra.mxu0 0.0
        %6310 = vmatprep.subr.mxu0 0.0
        %6311 = vmatpush1.msra.mxu0 0.0
        %6312 = vmatprep.subr.mxu0 0.0
        %6313 = vmatpush1.msra.mxu0 0.0
        %6314 = vmatprep.mubr.f32.mxu0 0.0
        %v6315 = vand.u32 %v3001, 4294901760
        %6316 = vmatmul.mubr.f32.gmra.mrb[0].mxu0 %v6315
        %v6317 = vpop.f32.mrb[0].mxu0
        %v6318 = vadd.f32 %v6197, %v6317
        %v6319 = vpop.f32.mrb[0].mxu0
        %6320 = vmatprep.mubr.f32.mxu0 0.0
        %v6321 = vand.u32 %v3003, 4294901760
        %6322 = vmatmul.mubr.f32.gmra.mrb[0].mxu0 %v6321
        %v6323 = vpop.f32.mrb[0].mxu0
        %v6324 = vadd.f32 %v6203, %v6323
        %v6325 = vpop.f32.mrb[0].mxu0
        %6326 = vmatprep.mubr.f32.mxu0 0.0
        %v6327 = vand.u32 %v3005, 4294901760
        %6328 = vmatmul.mubr.f32.gmra.mrb[0].mxu0 %v6327
        %v6329 = vpop.f32.mrb[0].mxu0
        %v6330 = vadd.f32 %v6209, %v6329
        %v6331 = vpop.f32.mrb[0].mxu0
        %6332 = vmatprep.mubr.f32.mxu0 0.0
        %v6333 = vand.u32 %v3007, 4294901760
        %6334 = vmatmul.mubr.f32.gmra.mrb[0].mxu0 %v6333
        %v6335 = vpop.f32.mrb[0].mxu0
        %v6336 = vadd.f32 %v6215, %v6335
        %v6337 = vpop.f32.mrb[0].mxu0
        %6338 = vmatprep.mubr.f32.mxu0 0.0
        %v6339 = vand.u32 %v3009, 4294901760
        %6340 = vmatmul.mubr.f32.gmra.mrb[0].mxu0 %v6339
        %v6341 = vpop.f32.mrb[0].mxu0
        %v6342 = vadd.f32 %v6221, %v6341
        %v6343 = vpop.f32.mrb[0].mxu0
        %6344 = vmatprep.mubr.f32.mxu0 0.0
        %v6345 = vand.u32 %v3011, 4294901760
        %6346 = vmatmul.mubr.f32.gmra.mrb[0].mxu0 %v6345
        %v6347 = vpop.f32.mrb[0].mxu0
        %v6348 = vadd.f32 %v6227, %v6347
        %v6349 = vpop.f32.mrb[0].mxu0
        %6350 = vmatprep.mubr.f32.mxu0 0.0
        %v6351 = vand.u32 %v3013, 4294901760
        %6352 = vmatmul.mubr.f32.gmra.mrb[0].mxu0 %v6351
        %v6353 = vpop.f32.mrb[0].mxu0
        %v6354 = vadd.f32 %v6233, %v6353
        %v6355 = vpop.f32.mrb[0].mxu0
        %6356 = vmatprep.mubr.f32.mxu0 0.0
        %v6357 = vand.u32 %v3015, 4294901760
        %6358 = vmatmul.mubr.f32.gmra.mrb[0].mxu0 %v6357
        %v6359 = vpop.f32.mrb[0].mxu0
        %v6360 = vadd.f32 %v6239, %v6359
        %v6361 = vpop.f32.mrb[0].mxu0
        %6362 = vdwg.mxu0
        %v6363 = vld [vmem:[%s6] sm:$0x1]
        %v6365 = vlaneseq
        %v6366 = vshrl.u32 %v6365, 7
        %v6367 = vsub.s32 0, %v6366
        %v6368 = vrot.slane %v6363, %v6367
        %v6370 = vmul.f32 %v6318, %v6368
        %v6371 = vmul.f32 %v6324, %v6368
        %v6372 = vmul.f32 %v6330, %v6368
        %v6373 = vmul.f32 %v6336, %v6368
        %v6374 = vmul.f32 %v6342, %v6368
        %v6375 = vmul.f32 %v6348, %v6368
        %v6376 = vmul.f32 %v6354, %v6368
        %v6377 = vmul.f32 %v6360, %v6368
        %v6378 = vld [vmem:[%s7] sm:$0x1]
        %v6380 = vlaneseq
        %v6381 = vshrl.u32 %v6380, 7
        %v6382 = vsub.s32 0, %v6381
        %v6383 = vrot.slane %v6378, %v6382
        %v6385 = vadd.f32 %v6370, %v6383
        %v6386 = vadd.f32 %v6371, %v6383
        %v6387 = vadd.f32 %v6372, %v6383
        %v6388 = vadd.f32 %v6373, %v6383
        %v6389 = vadd.f32 %v6374, %v6383
        %v6390 = vadd.f32 %v6375, %v6383
        %v6391 = vadd.f32 %v6376, %v6383
        %v6392 = vadd.f32 %v6377, %v6383
        %v6393 = vsel %vm2676, %v6385, 0.0
        %v6394 = vsel %vm2676, %v6386, 0.0
        %v6395 = vadd.f32 %v6393, %v6394
        %v6396 = vsel %vm2676, %v6387, 0.0
        %v6397 = vadd.f32 %v6395, %v6396
        %v6398 = vsel %vm2676, %v6388, 0.0
        %v6399 = vadd.f32 %v6397, %v6398
        %v6400 = vsel %vm2676, %v6389, 0.0
        %v6401 = vadd.f32 %v6399, %v6400
        %v6402 = vsel %vm2676, %v6390, 0.0
        %v6403 = vadd.f32 %v6401, %v6402
        %v6404 = vsel %vm2676, %v6391, 0.0
        %v6405 = vadd.f32 %v6403, %v6404
        %v6406 = vsel %vm2676, %v6392, 0.0
        %v6407 = vadd.f32 %v6405, %v6406
        %v6408 = vrot.slane %v6407, 4
        %v6409 = vadd.f32 %v6407, %v6408
        %v6410 = vrot.slane %v6409, 2
        %v6411 = vadd.f32 %v6409, %v6410
        %v6412 = vrot.slane %v6411, 1
        %v6413 = vadd.f32 %v6411, %v6412
        %v6414 = vrcp.pop 64.0
        %v6415 = vmul.f32 %v6413, %v6414
        %v6416 = vld [vmem:[%s8] sm:$0xff]
        %v6417 = vld [vmem:[%s8 + $0x8] sm:$0xff]
        %v6418 = vld [vmem:[%s8 + $0x10] sm:$0xff]
        %v6419 = vld [vmem:[%s8 + $0x18] sm:$0xff]
        %v6420 = vld [vmem:[%s8 + $0x20] sm:$0xff]
        %v6421 = vld [vmem:[%s8 + $0x28] sm:$0xff]
        %v6422 = vld [vmem:[%s8 + $0x30] sm:$0xff]
        %v6423 = vld [vmem:[%s8 + $0x38] sm:$0xff]
        %v6424 = vld [vmem:[%s9] sm:$0x1]
        %v6426 = vsel %vm2676, %v6415, 0
        %6428 = vmatprep.subr.mxu0 0.0
        %v6429 = vand.u32 %v6416, 4294901760
        %6430 = vmatpush1.msra.mxu0 %v6429
        %6431 = vmatprep.subr.mxu0 0.0
        %v6432 = vand.u32 %v6417, 4294901760
        %6433 = vmatpush1.msra.mxu0 %v6432
        %6434 = vmatprep.subr.mxu0 0.0
        %v6435 = vand.u32 %v6418, 4294901760
        %6436 = vmatpush1.msra.mxu0 %v6435
        %6437 = vmatprep.subr.mxu0 0.0
        %v6438 = vand.u32 %v6419, 4294901760
        %6439 = vmatpush1.msra.mxu0 %v6438
        %6440 = vmatprep.subr.mxu0 0.0
        %v6441 = vand.u32 %v6420, 4294901760
        %6442 = vmatpush1.msra.mxu0 %v6441
        %6443 = vmatprep.subr.mxu0 0.0
        %v6444 = vand.u32 %v6421, 4294901760
        %6445 = vmatpush1.msra.mxu0 %v6444
        %6446 = vmatprep.subr.mxu0 0.0
        %v6447 = vand.u32 %v6422, 4294901760
        %6448 = vmatpush1.msra.mxu0 %v6447
        %6449 = vmatprep.subr.mxu0 0.0
        %v6450 = vand.u32 %v6423, 4294901760
        %6451 = vmatpush1.msra.mxu0 %v6450
        %6452 = vmatprep.subr.mxu0 0.0
        %6453 = vmatpush1.msra.mxu0 0.0
        %6454 = vmatprep.subr.mxu0 0.0
        %6455 = vmatpush1.msra.mxu0 0.0
        %6456 = vmatprep.subr.mxu0 0.0
        %6457 = vmatpush1.msra.mxu0 0.0
        %6458 = vmatprep.subr.mxu0 0.0
        %6459 = vmatpush1.msra.mxu0 0.0
        %6460 = vmatprep.subr.mxu0 0.0
        %6461 = vmatpush1.msra.mxu0 0.0
        %6462 = vmatprep.subr.mxu0 0.0
        %6463 = vmatpush1.msra.mxu0 0.0
        %6464 = vmatprep.subr.mxu0 0.0
        %6465 = vmatpush1.msra.mxu0 0.0
        %6466 = vmatprep.subr.mxu0 0.0
        %6467 = vmatpush1.msra.mxu0 0.0
        %6468 = vmatprep.subr.mxu0 0.0
        %6469 = vmatpush1.msra.mxu0 0.0
        %6470 = vmatprep.subr.mxu0 0.0
        %6471 = vmatpush1.msra.mxu0 0.0
        %6472 = vmatprep.subr.mxu0 0.0
        %6473 = vmatpush1.msra.mxu0 0.0
        %6474 = vmatprep.subr.mxu0 0.0
        %6475 = vmatpush1.msra.mxu0 0.0
        %6476 = vmatprep.subr.mxu0 0.0
        %6477 = vmatpush1.msra.mxu0 0.0
        %6478 = vmatprep.subr.mxu0 0.0
        %6479 = vmatpush1.msra.mxu0 0.0
        %6480 = vmatprep.subr.mxu0 0.0
        %6481 = vmatpush1.msra.mxu0 0.0
        %6482 = vmatprep.subr.mxu0 0.0
        %6483 = vmatpush1.msra.mxu0 0.0
        %6484 = vmatprep.subr.mxu0 0.0
        %6485 = vmatpush1.msra.mxu0 0.0
        %6486 = vmatprep.subr.mxu0 0.0
        %6487 = vmatpush1.msra.mxu0 0.0
        %6488 = vmatprep.subr.mxu0 0.0
        %6489 = vmatpush1.msra.mxu0 0.0
        %6490 = vmatprep.subr.mxu0 0.0
        %6491 = vmatpush1.msra.mxu0 0.0
        %6492 = vmatprep.subr.mxu0 0.0
        %6493 = vmatpush1.msra.mxu0 0.0
        %6494 = vmatprep.subr.mxu0 0.0
        %6495 = vmatpush1.msra.mxu0 0.0
        %6496 = vmatprep.subr.mxu0 0.0
        %6497 = vmatpush1.msra.mxu0 0.0
        %6498 = vmatprep.subr.mxu0 0.0
        %6499 = vmatpush1.msra.mxu0 0.0
        %6500 = vmatprep.mubr.f32.mxu0 0.0
        %v6501 = vand.u32 %v6426, 4294901760
        %v6502 = vsub.f32 %v6426, %v6501
        %v6503 = vand.u32 %v6502, 4294901760
        %v6504 = vsub.f32 %v6502, %v6503
        %v6505 = vand.u32 %v6504, 4294901760
        %6506 = vmatmul.mubr.f32.gmra.mrb[0].mxu0 %v6505
        %v6507 = vpop.f32.mrb[0].mxu0
        %v6508 = vadd.f32 %v6424, %v6507
        %v6509 = vpop.f32.mrb[0].mxu0
        %6510 = vdwg.mxu0
        %6511 = vmatprep.subr.mxu0 0.0
        %v6512 = vand.u32 %v6416, 4294901760
        %v6513 = vsub.f32 %v6416, %v6512
        %v6514 = vand.u32 %v6513, 4294901760
        %v6515 = vsub.f32 %v6513, %v6514
        %v6516 = vand.u32 %v6515, 4294901760
        %6517 = vmatpush1.msra.mxu0 %v6516
        %6518 = vmatprep.subr.mxu0 0.0
        %v6519 = vand.u32 %v6417, 4294901760
        %v6520 = vsub.f32 %v6417, %v6519
        %v6521 = vand.u32 %v6520, 4294901760
        %v6522 = vsub.f32 %v6520, %v6521
        %v6523 = vand.u32 %v6522, 4294901760
        %6524 = vmatpush1.msra.mxu0 %v6523
        %6525 = vmatprep.subr.mxu0 0.0
        %v6526 = vand.u32 %v6418, 4294901760
        %v6527 = vsub.f32 %v6418, %v6526
        %v6528 = vand.u32 %v6527, 4294901760
        %v6529 = vsub.f32 %v6527, %v6528
        %v6530 = vand.u32 %v6529, 4294901760
        %6531 = vmatpush1.msra.mxu0 %v6530
        %6532 = vmatprep.subr.mxu0 0.0
        %v6533 = vand.u32 %v6419, 4294901760
        %v6534 = vsub.f32 %v6419, %v6533
        %v6535 = vand.u32 %v6534, 4294901760
        %v6536 = vsub.f32 %v6534, %v6535
        %v6537 = vand.u32 %v6536, 4294901760
        %6538 = vmatpush1.msra.mxu0 %v6537
        %6539 = vmatprep.subr.mxu0 0.0
        %v6540 = vand.u32 %v6420, 4294901760
        %v6541 = vsub.f32 %v6420, %v6540
        %v6542 = vand.u32 %v6541, 4294901760
        %v6543 = vsub.f32 %v6541, %v6542
        %v6544 = vand.u32 %v6543, 4294901760
        %6545 = vmatpush1.msra.mxu0 %v6544
        %6546 = vmatprep.subr.mxu0 0.0
        %v6547 = vand.u32 %v6421, 4294901760
        %v6548 = vsub.f32 %v6421, %v6547
        %v6549 = vand.u32 %v6548, 4294901760
        %v6550 = vsub.f32 %v6548, %v6549
        %v6551 = vand.u32 %v6550, 4294901760
        %6552 = vmatpush1.msra.mxu0 %v6551
        %6553 = vmatprep.subr.mxu0 0.0
        %v6554 = vand.u32 %v6422, 4294901760
        %v6555 = vsub.f32 %v6422, %v6554
        %v6556 = vand.u32 %v6555, 4294901760
        %v6557 = vsub.f32 %v6555, %v6556
        %v6558 = vand.u32 %v6557, 4294901760
        %6559 = vmatpush1.msra.mxu0 %v6558
        %6560 = vmatprep.subr.mxu0 0.0
        %v6561 = vand.u32 %v6423, 4294901760
        %v6562 = vsub.f32 %v6423, %v6561
        %v6563 = vand.u32 %v6562, 4294901760
        %v6564 = vsub.f32 %v6562, %v6563
        %v6565 = vand.u32 %v6564, 4294901760
        %6566 = vmatpush1.msra.mxu0 %v6565
        %6567 = vmatprep.subr.mxu0 0.0
        %6568 = vmatpush1.msra.mxu0 0.0
        %6569 = vmatprep.subr.mxu0 0.0
        %6570 = vmatpush1.msra.mxu0 0.0
        %6571 = vmatprep.subr.mxu0 0.0
        %6572 = vmatpush1.msra.mxu0 0.0
        %6573 = vmatprep.subr.mxu0 0.0
        %6574 = vmatpush1.msra.mxu0 0.0
        %6575 = vmatprep.subr.mxu0 0.0
        %6576 = vmatpush1.msra.mxu0 0.0
        %6577 = vmatprep.subr.mxu0 0.0
        %6578 = vmatpush1.msra.mxu0 0.0
        %6579 = vmatprep.subr.mxu0 0.0
        %6580 = vmatpush1.msra.mxu0 0.0
        %6581 = vmatprep.subr.mxu0 0.0
        %6582 = vmatpush1.msra.mxu0 0.0
        %6583 = vmatprep.subr.mxu0 0.0
        %6584 = vmatpush1.msra.mxu0 0.0
        %6585 = vmatprep.subr.mxu0 0.0
        %6586 = vmatpush1.msra.mxu0 0.0
        %6587 = vmatprep.subr.mxu0 0.0
        %6588 = vmatpush1.msra.mxu0 0.0
        %6589 = vmatprep.subr.mxu0 0.0
        %6590 = vmatpush1.msra.mxu0 0.0
        %6591 = vmatprep.subr.mxu0 0.0
        %6592 = vmatpush1.msra.mxu0 0.0
        %6593 = vmatprep.subr.mxu0 0.0
        %6594 = vmatpush1.msra.mxu0 0.0
        %6595 = vmatprep.subr.mxu0 0.0
        %6596 = vmatpush1.msra.mxu0 0.0
        %6597 = vmatprep.subr.mxu0 0.0
        %6598 = vmatpush1.msra.mxu0 0.0
        %6599 = vmatprep.subr.mxu0 0.0
        %6600 = vmatpush1.msra.mxu0 0.0
        %6601 = vmatprep.subr.mxu0 0.0
        %6602 = vmatpush1.msra.mxu0 0.0
        %6603 = vmatprep.subr.mxu0 0.0
        %6604 = vmatpush1.msra.mxu0 0.0
        %6605 = vmatprep.subr.mxu0 0.0
        %6606 = vmatpush1.msra.mxu0 0.0
        %6607 = vmatprep.subr.mxu0 0.0
        %6608 = vmatpush1.msra.mxu0 0.0
        %6609 = vmatprep.subr.mxu0 0.0
        %6610 = vmatpush1.msra.mxu0 0.0
        %6611 = vmatprep.subr.mxu0 0.0
        %6612 = vmatpush1.msra.mxu0 0.0
        %6613 = vmatprep.subr.mxu0 0.0
        %6614 = vmatpush1.msra.mxu0 0.0
        %6615 = vmatprep.mubr.f32.mxu0 0.0
        %v6616 = vand.u32 %v6426, 4294901760
        %6617 = vmatmul.mubr.f32.gmra.mrb[0].mxu0 %v6616
        %v6618 = vpop.f32.mrb[0].mxu0
        %v6619 = vadd.f32 %v6508, %v6618
        %v6620 = vpop.f32.mrb[0].mxu0
        %6621 = vdwg.mxu0
        %6622 = vmatprep.subr.mxu0 0.0
        %v6623 = vand.u32 %v6416, 4294901760
        %v6624 = vsub.f32 %v6416, %v6623
        %6625 = vmatpush1.msra.mxu0 %v6624
        %6626 = vmatprep.subr.mxu0 0.0
        %v6627 = vand.u32 %v6417, 4294901760
        %v6628 = vsub.f32 %v6417, %v6627
        %6629 = vmatpush1.msra.mxu0 %v6628
        %6630 = vmatprep.subr.mxu0 0.0
        %v6631 = vand.u32 %v6418, 4294901760
        %v6632 = vsub.f32 %v6418, %v6631
        %6633 = vmatpush1.msra.mxu0 %v6632
        %6634 = vmatprep.subr.mxu0 0.0
        %v6635 = vand.u32 %v6419, 4294901760
        %v6636 = vsub.f32 %v6419, %v6635
        %6637 = vmatpush1.msra.mxu0 %v6636
        %6638 = vmatprep.subr.mxu0 0.0
        %v6639 = vand.u32 %v6420, 4294901760
        %v6640 = vsub.f32 %v6420, %v6639
        %6641 = vmatpush1.msra.mxu0 %v6640
        %6642 = vmatprep.subr.mxu0 0.0
        %v6643 = vand.u32 %v6421, 4294901760
        %v6644 = vsub.f32 %v6421, %v6643
        %6645 = vmatpush1.msra.mxu0 %v6644
        %6646 = vmatprep.subr.mxu0 0.0
        %v6647 = vand.u32 %v6422, 4294901760
        %v6648 = vsub.f32 %v6422, %v6647
        %6649 = vmatpush1.msra.mxu0 %v6648
        %6650 = vmatprep.subr.mxu0 0.0
        %v6651 = vand.u32 %v6423, 4294901760
        %v6652 = vsub.f32 %v6423, %v6651
        %6653 = vmatpush1.msra.mxu0 %v6652
        %6654 = vmatprep.subr.mxu0 0.0
        %6655 = vmatpush1.msra.mxu0 0.0
        %6656 = vmatprep.subr.mxu0 0.0
        %6657 = vmatpush1.msra.mxu0 0.0
        %6658 = vmatprep.subr.mxu0 0.0
        %6659 = vmatpush1.msra.mxu0 0.0
        %6660 = vmatprep.subr.mxu0 0.0
        %6661 = vmatpush1.msra.mxu0 0.0
        %6662 = vmatprep.subr.mxu0 0.0
        %6663 = vmatpush1.msra.mxu0 0.0
        %6664 = vmatprep.subr.mxu0 0.0
        %6665 = vmatpush1.msra.mxu0 0.0
        %6666 = vmatprep.subr.mxu0 0.0
        %6667 = vmatpush1.msra.mxu0 0.0
        %6668 = vmatprep.subr.mxu0 0.0
        %6669 = vmatpush1.msra.mxu0 0.0
        %6670 = vmatprep.subr.mxu0 0.0
        %6671 = vmatpush1.msra.mxu0 0.0
        %6672 = vmatprep.subr.mxu0 0.0
        %6673 = vmatpush1.msra.mxu0 0.0
        %6674 = vmatprep.subr.mxu0 0.0
        %6675 = vmatpush1.msra.mxu0 0.0
        %6676 = vmatprep.subr.mxu0 0.0
        %6677 = vmatpush1.msra.mxu0 0.0
        %6678 = vmatprep.subr.mxu0 0.0
        %6679 = vmatpush1.msra.mxu0 0.0
        %6680 = vmatprep.subr.mxu0 0.0
        %6681 = vmatpush1.msra.mxu0 0.0
        %6682 = vmatprep.subr.mxu0 0.0
        %6683 = vmatpush1.msra.mxu0 0.0
        %6684 = vmatprep.subr.mxu0 0.0
        %6685 = vmatpush1.msra.mxu0 0.0
        %6686 = vmatprep.subr.mxu0 0.0
        %6687 = vmatpush1.msra.mxu0 0.0
        %6688 = vmatprep.subr.mxu0 0.0
        %6689 = vmatpush1.msra.mxu0 0.0
        %6690 = vmatprep.subr.mxu0 0.0
        %6691 = vmatpush1.msra.mxu0 0.0
        %6692 = vmatprep.subr.mxu0 0.0
        %6693 = vmatpush1.msra.mxu0 0.0
        %6694 = vmatprep.subr.mxu0 0.0
        %6695 = vmatpush1.msra.mxu0 0.0
        %6696 = vmatprep.subr.mxu0 0.0
        %6697 = vmatpush1.msra.mxu0 0.0
        %6698 = vmatprep.subr.mxu0 0.0
        %6699 = vmatpush1.msra.mxu0 0.0
        %6700 = vmatprep.subr.mxu0 0.0
        %6701 = vmatpush1.msra.mxu0 0.0
        %6702 = vmatprep.mubr.f32.mxu0 0.0
        %v6703 = vand.u32 %v6426, 4294901760
        %v6704 = vsub.f32 %v6426, %v6703
        %6705 = vmatmul.mubr.f32.gmra.mrb[0].mxu0 %v6704
        %v6706 = vpop.f32.mrb[0].mxu0
        %v6707 = vadd.f32 %v6619, %v6706
        %v6708 = vpop.f32.mrb[0].mxu0
        %6709 = vdwg.mxu0
        %6710 = vmatprep.subr.mxu0 0.0
        %v6711 = vand.u32 %v6416, 4294901760
        %6712 = vmatpush1.msra.mxu0 %v6711
        %6713 = vmatprep.subr.mxu0 0.0
        %v6714 = vand.u32 %v6417, 4294901760
        %6715 = vmatpush1.msra.mxu0 %v6714
        %6716 = vmatprep.subr.mxu0 0.0
        %v6717 = vand.u32 %v6418, 4294901760
        %6718 = vmatpush1.msra.mxu0 %v6717
        %6719 = vmatprep.subr.mxu0 0.0
        %v6720 = vand.u32 %v6419, 4294901760
        %6721 = vmatpush1.msra.mxu0 %v6720
        %6722 = vmatprep.subr.mxu0 0.0
        %v6723 = vand.u32 %v6420, 4294901760
        %6724 = vmatpush1.msra.mxu0 %v6723
        %6725 = vmatprep.subr.mxu0 0.0
        %v6726 = vand.u32 %v6421, 4294901760
        %6727 = vmatpush1.msra.mxu0 %v6726
        %6728 = vmatprep.subr.mxu0 0.0
        %v6729 = vand.u32 %v6422, 4294901760
        %6730 = vmatpush1.msra.mxu0 %v6729
        %6731 = vmatprep.subr.mxu0 0.0
        %v6732 = vand.u32 %v6423, 4294901760
        %6733 = vmatpush1.msra.mxu0 %v6732
        %6734 = vmatprep.subr.mxu0 0.0
        %6735 = vmatpush1.msra.mxu0 0.0
        %6736 = vmatprep.subr.mxu0 0.0
        %6737 = vmatpush1.msra.mxu0 0.0
        %6738 = vmatprep.subr.mxu0 0.0
        %6739 = vmatpush1.msra.mxu0 0.0
        %6740 = vmatprep.subr.mxu0 0.0
        %6741 = vmatpush1.msra.mxu0 0.0
        %6742 = vmatprep.subr.mxu0 0.0
        %6743 = vmatpush1.msra.mxu0 0.0
        %6744 = vmatprep.subr.mxu0 0.0
        %6745 = vmatpush1.msra.mxu0 0.0
        %6746 = vmatprep.subr.mxu0 0.0
        %6747 = vmatpush1.msra.mxu0 0.0
        %6748 = vmatprep.subr.mxu0 0.0
        %6749 = vmatpush1.msra.mxu0 0.0
        %6750 = vmatprep.subr.mxu0 0.0
        %6751 = vmatpush1.msra.mxu0 0.0
        %6752 = vmatprep.subr.mxu0 0.0
        %6753 = vmatpush1.msra.mxu0 0.0
        %6754 = vmatprep.subr.mxu0 0.0
        %6755 = vmatpush1.msra.mxu0 0.0
        %6756 = vmatprep.subr.mxu0 0.0
        %6757 = vmatpush1.msra.mxu0 0.0
        %6758 = vmatprep.subr.mxu0 0.0
        %6759 = vmatpush1.msra.mxu0 0.0
        %6760 = vmatprep.subr.mxu0 0.0
        %6761 = vmatpush1.msra.mxu0 0.0
        %6762 = vmatprep.subr.mxu0 0.0
        %6763 = vmatpush1.msra.mxu0 0.0
        %6764 = vmatprep.subr.mxu0 0.0
        %6765 = vmatpush1.msra.mxu0 0.0
        %6766 = vmatprep.subr.mxu0 0.0
        %6767 = vmatpush1.msra.mxu0 0.0
        %6768 = vmatprep.subr.mxu0 0.0
        %6769 = vmatpush1.msra.mxu0 0.0
        %6770 = vmatprep.subr.mxu0 0.0
        %6771 = vmatpush1.msra.mxu0 0.0
        %6772 = vmatprep.subr.mxu0 0.0
        %6773 = vmatpush1.msra.mxu0 0.0
        %6774 = vmatprep.subr.mxu0 0.0
        %6775 = vmatpush1.msra.mxu0 0.0
        %6776 = vmatprep.subr.mxu0 0.0
        %6777 = vmatpush1.msra.mxu0 0.0
        %6778 = vmatprep.subr.mxu0 0.0
        %6779 = vmatpush1.msra.mxu0 0.0
        %6780 = vmatprep.subr.mxu0 0.0
        %6781 = vmatpush1.msra.mxu0 0.0
        %6782 = vmatprep.mubr.f32.mxu0 0.0
        %v6783 = vand.u32 %v6426, 4294901760
        %v6784 = vsub.f32 %v6426, %v6783
        %v6785 = vand.u32 %v6784, 4294901760
        %6786 = vmatmul.mubr.f32.gmra.mrb[0].mxu0 %v6785
        %v6787 = vpop.f32.mrb[0].mxu0
        %v6788 = vadd.f32 %v6707, %v6787
        %v6789 = vpop.f32.mrb[0].mxu0
        %6790 = vdwg.mxu0
        %6791 = vmatprep.subr.mxu0 0.0
        %v6792 = vand.u32 %v6416, 4294901760
        %v6793 = vsub.f32 %v6416, %v6792
        %v6794 = vand.u32 %v6793, 4294901760
        %6795 = vmatpush1.msra.mxu0 %v6794
        %6796 = vmatprep.subr.mxu0 0.0
        %v6797 = vand.u32 %v6417, 4294901760
        %v6798 = vsub.f32 %v6417, %v6797
        %v6799 = vand.u32 %v6798, 4294901760
        %6800 = vmatpush1.msra.mxu0 %v6799
        %6801 = vmatprep.subr.mxu0 0.0
        %v6802 = vand.u32 %v6418, 4294901760
        %v6803 = vsub.f32 %v6418, %v6802
        %v6804 = vand.u32 %v6803, 4294901760
        %6805 = vmatpush1.msra.mxu0 %v6804
        %6806 = vmatprep.subr.mxu0 0.0
        %v6807 = vand.u32 %v6419, 4294901760
        %v6808 = vsub.f32 %v6419, %v6807
        %v6809 = vand.u32 %v6808, 4294901760
        %6810 = vmatpush1.msra.mxu0 %v6809
        %6811 = vmatprep.subr.mxu0 0.0
        %v6812 = vand.u32 %v6420, 4294901760
        %v6813 = vsub.f32 %v6420, %v6812
        %v6814 = vand.u32 %v6813, 4294901760
        %6815 = vmatpush1.msra.mxu0 %v6814
        %6816 = vmatprep.subr.mxu0 0.0
        %v6817 = vand.u32 %v6421, 4294901760
        %v6818 = vsub.f32 %v6421, %v6817
        %v6819 = vand.u32 %v6818, 4294901760
        %6820 = vmatpush1.msra.mxu0 %v6819
        %6821 = vmatprep.subr.mxu0 0.0
        %v6822 = vand.u32 %v6422, 4294901760
        %v6823 = vsub.f32 %v6422, %v6822
        %v6824 = vand.u32 %v6823, 4294901760
        %6825 = vmatpush1.msra.mxu0 %v6824
        %6826 = vmatprep.subr.mxu0 0.0
        %v6827 = vand.u32 %v6423, 4294901760
        %v6828 = vsub.f32 %v6423, %v6827
        %v6829 = vand.u32 %v6828, 4294901760
        %6830 = vmatpush1.msra.mxu0 %v6829
        %6831 = vmatprep.subr.mxu0 0.0
        %6832 = vmatpush1.msra.mxu0 0.0
        %6833 = vmatprep.subr.mxu0 0.0
        %6834 = vmatpush1.msra.mxu0 0.0
        %6835 = vmatprep.subr.mxu0 0.0
        %6836 = vmatpush1.msra.mxu0 0.0
        %6837 = vmatprep.subr.mxu0 0.0
        %6838 = vmatpush1.msra.mxu0 0.0
        %6839 = vmatprep.subr.mxu0 0.0
        %6840 = vmatpush1.msra.mxu0 0.0
        %6841 = vmatprep.subr.mxu0 0.0
        %6842 = vmatpush1.msra.mxu0 0.0
        %6843 = vmatprep.subr.mxu0 0.0
        %6844 = vmatpush1.msra.mxu0 0.0
        %6845 = vmatprep.subr.mxu0 0.0
        %6846 = vmatpush1.msra.mxu0 0.0
        %6847 = vmatprep.subr.mxu0 0.0
        %6848 = vmatpush1.msra.mxu0 0.0
        %6849 = vmatprep.subr.mxu0 0.0
        %6850 = vmatpush1.msra.mxu0 0.0
        %6851 = vmatprep.subr.mxu0 0.0
        %6852 = vmatpush1.msra.mxu0 0.0
        %6853 = vmatprep.subr.mxu0 0.0
        %6854 = vmatpush1.msra.mxu0 0.0
        %6855 = vmatprep.subr.mxu0 0.0
        %6856 = vmatpush1.msra.mxu0 0.0
        %6857 = vmatprep.subr.mxu0 0.0
        %6858 = vmatpush1.msra.mxu0 0.0
        %6859 = vmatprep.subr.mxu0 0.0
        %6860 = vmatpush1.msra.mxu0 0.0
        %6861 = vmatprep.subr.mxu0 0.0
        %6862 = vmatpush1.msra.mxu0 0.0
        %6863 = vmatprep.subr.mxu0 0.0
        %6864 = vmatpush1.msra.mxu0 0.0
        %6865 = vmatprep.subr.mxu0 0.0
        %6866 = vmatpush1.msra.mxu0 0.0
        %6867 = vmatprep.subr.mxu0 0.0
        %6868 = vmatpush1.msra.mxu0 0.0
        %6869 = vmatprep.subr.mxu0 0.0
        %6870 = vmatpush1.msra.mxu0 0.0
        %6871 = vmatprep.subr.mxu0 0.0
        %6872 = vmatpush1.msra.mxu0 0.0
        %6873 = vmatprep.subr.mxu0 0.0
        %6874 = vmatpush1.msra.mxu0 0.0
        %6875 = vmatprep.subr.mxu0 0.0
        %6876 = vmatpush1.msra.mxu0 0.0
        %6877 = vmatprep.subr.mxu0 0.0
        %6878 = vmatpush1.msra.mxu0 0.0
        %6879 = vmatprep.mubr.f32.mxu0 0.0
        %v6880 = vand.u32 %v6426, 4294901760
        %6881 = vmatmul.mubr.f32.gmra.mrb[0].mxu0 %v6880
        %v6882 = vpop.f32.mrb[0].mxu0
        %v6883 = vadd.f32 %v6788, %v6882
        %v6884 = vpop.f32.mrb[0].mxu0
        %6885 = vdwg.mxu0
        %6886 = vmatprep.subr.mxu0 0.0
        %v6887 = vand.u32 %v6416, 4294901760
        %6888 = vmatpush1.msra.mxu0 %v6887
        %6889 = vmatprep.subr.mxu0 0.0
        %v6890 = vand.u32 %v6417, 4294901760
        %6891 = vmatpush1.msra.mxu0 %v6890
        %6892 = vmatprep.subr.mxu0 0.0
        %v6893 = vand.u32 %v6418, 4294901760
        %6894 = vmatpush1.msra.mxu0 %v6893
        %6895 = vmatprep.subr.mxu0 0.0
        %v6896 = vand.u32 %v6419, 4294901760
        %6897 = vmatpush1.msra.mxu0 %v6896
        %6898 = vmatprep.subr.mxu0 0.0
        %v6899 = vand.u32 %v6420, 4294901760
        %6900 = vmatpush1.msra.mxu0 %v6899
        %6901 = vmatprep.subr.mxu0 0.0
        %v6902 = vand.u32 %v6421, 4294901760
        %6903 = vmatpush1.msra.mxu0 %v6902
        %6904 = vmatprep.subr.mxu0 0.0
        %v6905 = vand.u32 %v6422, 4294901760
        %6906 = vmatpush1.msra.mxu0 %v6905
        %6907 = vmatprep.subr.mxu0 0.0
        %v6908 = vand.u32 %v6423, 4294901760
        %6909 = vmatpush1.msra.mxu0 %v6908
        %6910 = vmatprep.subr.mxu0 0.0
        %6911 = vmatpush1.msra.mxu0 0.0
        %6912 = vmatprep.subr.mxu0 0.0
        %6913 = vmatpush1.msra.mxu0 0.0
        %6914 = vmatprep.subr.mxu0 0.0
        %6915 = vmatpush1.msra.mxu0 0.0
        %6916 = vmatprep.subr.mxu0 0.0
        %6917 = vmatpush1.msra.mxu0 0.0
        %6918 = vmatprep.subr.mxu0 0.0
        %6919 = vmatpush1.msra.mxu0 0.0
        %6920 = vmatprep.subr.mxu0 0.0
        %6921 = vmatpush1.msra.mxu0 0.0
        %6922 = vmatprep.subr.mxu0 0.0
        %6923 = vmatpush1.msra.mxu0 0.0
        %6924 = vmatprep.subr.mxu0 0.0
        %6925 = vmatpush1.msra.mxu0 0.0
        %6926 = vmatprep.subr.mxu0 0.0
        %6927 = vmatpush1.msra.mxu0 0.0
        %6928 = vmatprep.subr.mxu0 0.0
        %6929 = vmatpush1.msra.mxu0 0.0
        %6930 = vmatprep.subr.mxu0 0.0
        %6931 = vmatpush1.msra.mxu0 0.0
        %6932 = vmatprep.subr.mxu0 0.0
        %6933 = vmatpush1.msra.mxu0 0.0
        %6934 = vmatprep.subr.mxu0 0.0
        %6935 = vmatpush1.msra.mxu0 0.0
        %6936 = vmatprep.subr.mxu0 0.0
        %6937 = vmatpush1.msra.mxu0 0.0
        %6938 = vmatprep.subr.mxu0 0.0
        %6939 = vmatpush1.msra.mxu0 0.0
        %6940 = vmatprep.subr.mxu0 0.0
        %6941 = vmatpush1.msra.mxu0 0.0
        %6942 = vmatprep.subr.mxu0 0.0
        %6943 = vmatpush1.msra.mxu0 0.0
        %6944 = vmatprep.subr.mxu0 0.0
        %6945 = vmatpush1.msra.mxu0 0.0
        %6946 = vmatprep.subr.mxu0 0.0
        %6947 = vmatpush1.msra.mxu0 0.0
        %6948 = vmatprep.subr.mxu0 0.0
        %6949 = vmatpush1.msra.mxu0 0.0
        %6950 = vmatprep.subr.mxu0 0.0
        %6951 = vmatpush1.msra.mxu0 0.0
        %6952 = vmatprep.subr.mxu0 0.0
        %6953 = vmatpush1.msra.mxu0 0.0
        %6954 = vmatprep.subr.mxu0 0.0
        %6955 = vmatpush1.msra.mxu0 0.0
        %6956 = vmatprep.subr.mxu0 0.0
        %6957 = vmatpush1.msra.mxu0 0.0
        %6958 = vmatprep.mubr.f32.mxu0 0.0
        %v6959 = vand.u32 %v6426, 4294901760
        %6960 = vmatmul.mubr.f32.gmra.mrb[0].mxu0 %v6959
        %v6961 = vpop.f32.mrb[0].mxu0
        %v6962 = vadd.f32 %v6883, %v6961
        %v6963 = vpop.f32.mrb[0].mxu0
        %6964 = vdwg.mxu0
        %v6965 = vmax.f32 %v6962, 0.0
        %v6966 = vld [vmem:[%s10] sm:$0xff]
        %v6967 = vld [vmem:[%s11] sm:$0x1]
        %vm6968 = vcmask 64512
        %v6970 = vsel %vm6968, %v6965, 0
        %6972 = vmatprep.subr.mxu0 0.0
        %v6973 = vand.u32 %v6966, 4294901760
        %6974 = vmatpush1.msra.mxu0 %v6973
        %6975 = vmatprep.subr.mxu0 0.0
        %6976 = vmatpush1.msra.mxu0 0.0
        %6977 = vmatprep.subr.mxu0 0.0
        %6978 = vmatpush1.msra.mxu0 0.0
        %6979 = vmatprep.subr.mxu0 0.0
        %6980 = vmatpush1.msra.mxu0 0.0
        %6981 = vmatprep.subr.mxu0 0.0
        %6982 = vmatpush1.msra.mxu0 0.0
        %6983 = vmatprep.subr.mxu0 0.0
        %6984 = vmatpush1.msra.mxu0 0.0
        %6985 = vmatprep.subr.mxu0 0.0
        %6986 = vmatpush1.msra.mxu0 0.0
        %6987 = vmatprep.subr.mxu0 0.0
        %6988 = vmatpush1.msra.mxu0 0.0
        %6989 = vmatprep.subr.mxu0 0.0
        %6990 = vmatpush1.msra.mxu0 0.0
        %6991 = vmatprep.subr.mxu0 0.0
        %6992 = vmatpush1.msra.mxu0 0.0
        %6993 = vmatprep.subr.mxu0 0.0
        %6994 = vmatpush1.msra.mxu0 0.0
        %6995 = vmatprep.subr.mxu0 0.0
        %6996 = vmatpush1.msra.mxu0 0.0
        %6997 = vmatprep.subr.mxu0 0.0
        %6998 = vmatpush1.msra.mxu0 0.0
        %6999 = vmatprep.subr.mxu0 0.0
        %7000 = vmatpush1.msra.mxu0 0.0
        %7001 = vmatprep.subr.mxu0 0.0
        %7002 = vmatpush1.msra.mxu0 0.0
        %7003 = vmatprep.subr.mxu0 0.0
        %7004 = vmatpush1.msra.mxu0 0.0
        %7005 = vmatprep.subr.mxu0 0.0
        %7006 = vmatpush1.msra.mxu0 0.0
        %7007 = vmatprep.subr.mxu0 0.0
        %7008 = vmatpush1.msra.mxu0 0.0
        %7009 = vmatprep.subr.mxu0 0.0
        %7010 = vmatpush1.msra.mxu0 0.0
        %7011 = vmatprep.subr.mxu0 0.0
        %7012 = vmatpush1.msra.mxu0 0.0
        %7013 = vmatprep.subr.mxu0 0.0
        %7014 = vmatpush1.msra.mxu0 0.0
        %7015 = vmatprep.subr.mxu0 0.0
        %7016 = vmatpush1.msra.mxu0 0.0
        %7017 = vmatprep.subr.mxu0 0.0
        %7018 = vmatpush1.msra.mxu0 0.0
        %7019 = vmatprep.subr.mxu0 0.0
        %7020 = vmatpush1.msra.mxu0 0.0
        %7021 = vmatprep.subr.mxu0 0.0
        %7022 = vmatpush1.msra.mxu0 0.0
        %7023 = vmatprep.subr.mxu0 0.0
        %7024 = vmatpush1.msra.mxu0 0.0
        %7025 = vmatprep.subr.mxu0 0.0
        %7026 = vmatpush1.msra.mxu0 0.0
        %7027 = vmatprep.subr.mxu0 0.0
        %7028 = vmatpush1.msra.mxu0 0.0
        %7029 = vmatprep.subr.mxu0 0.0
        %7030 = vmatpush1.msra.mxu0 0.0
        %7031 = vmatprep.subr.mxu0 0.0
        %7032 = vmatpush1.msra.mxu0 0.0
        %7033 = vmatprep.subr.mxu0 0.0
        %7034 = vmatpush1.msra.mxu0 0.0
        %7035 = vmatprep.subr.mxu0 0.0
        %7036 = vmatpush1.msra.mxu0 0.0
        %7037 = vmatprep.mubr.f32.mxu0 0.0
        %v7038 = vand.u32 %v6970, 4294901760
        %v7039 = vsub.f32 %v6970, %v7038
        %v7040 = vand.u32 %v7039, 4294901760
        %v7041 = vsub.f32 %v7039, %v7040
        %v7042 = vand.u32 %v7041, 4294901760
        %7043 = vmatmul.mubr.f32.gmra.mrb[0].mxu0 %v7042
        %v7044 = vpop.f32.mrb[0].mxu0
        %v7045 = vadd.f32 %v6967, %v7044
        %v7046 = vpop.f32.mrb[0].mxu0
        %7047 = vdwg.mxu0
        %7048 = vmatprep.subr.mxu0 0.0
        %v7049 = vand.u32 %v6966, 4294901760
        %v7050 = vsub.f32 %v6966, %v7049
        %v7051 = vand.u32 %v7050, 4294901760
        %v7052 = vsub.f32 %v7050, %v7051
        %v7053 = vand.u32 %v7052, 4294901760
        %7054 = vmatpush1.msra.mxu0 %v7053
        %7055 = vmatprep.subr.mxu0 0.0
        %7056 = vmatpush1.msra.mxu0 0.0
        %7057 = vmatprep.subr.mxu0 0.0
        %7058 = vmatpush1.msra.mxu0 0.0
        %7059 = vmatprep.subr.mxu0 0.0
        %7060 = vmatpush1.msra.mxu0 0.0
        %7061 = vmatprep.subr.mxu0 0.0
        %7062 = vmatpush1.msra.mxu0 0.0
        %7063 = vmatprep.subr.mxu0 0.0
        %7064 = vmatpush1.msra.mxu0 0.0
        %7065 = vmatprep.subr.mxu0 0.0
        %7066 = vmatpush1.msra.mxu0 0.0
        %7067 = vmatprep.subr.mxu0 0.0
        %7068 = vmatpush1.msra.mxu0 0.0
        %7069 = vmatprep.subr.mxu0 0.0
        %7070 = vmatpush1.msra.mxu0 0.0
        %7071 = vmatprep.subr.mxu0 0.0
        %7072 = vmatpush1.msra.mxu0 0.0
        %7073 = vmatprep.subr.mxu0 0.0
        %7074 = vmatpush1.msra.mxu0 0.0
        %7075 = vmatprep.subr.mxu0 0.0
        %7076 = vmatpush1.msra.mxu0 0.0
        %7077 = vmatprep.subr.mxu0 0.0
        %7078 = vmatpush1.msra.mxu0 0.0
        %7079 = vmatprep.subr.mxu0 0.0
        %7080 = vmatpush1.msra.mxu0 0.0
        %7081 = vmatprep.subr.mxu0 0.0
        %7082 = vmatpush1.msra.mxu0 0.0
        %7083 = vmatprep.subr.mxu0 0.0
        %7084 = vmatpush1.msra.mxu0 0.0
        %7085 = vmatprep.subr.mxu0 0.0
        %7086 = vmatpush1.msra.mxu0 0.0
        %7087 = vmatprep.subr.mxu0 0.0
        %7088 = vmatpush1.msra.mxu0 0.0
        %7089 = vmatprep.subr.mxu0 0.0
        %7090 = vmatpush1.msra.mxu0 0.0
        %7091 = vmatprep.subr.mxu0 0.0
        %7092 = vmatpush1.msra.mxu0 0.0
        %7093 = vmatprep.subr.mxu0 0.0
        %7094 = vmatpush1.msra.mxu0 0.0
        %7095 = vmatprep.subr.mxu0 0.0
        %7096 = vmatpush1.msra.mxu0 0.0
        %7097 = vmatprep.subr.mxu0 0.0
        %7098 = vmatpush1.msra.mxu0 0.0
        %7099 = vmatprep.subr.mxu0 0.0
        %7100 = vmatpush1.msra.mxu0 0.0
        %7101 = vmatprep.subr.mxu0 0.0
        %7102 = vmatpush1.msra.mxu0 0.0
        %7103 = vmatprep.subr.mxu0 0.0
        %7104 = vmatpush1.msra.mxu0 0.0
        %7105 = vmatprep.subr.mxu0 0.0
        %7106 = vmatpush1.msra.mxu0 0.0
        %7107 = vmatprep.subr.mxu0 0.0
        %7108 = vmatpush1.msra.mxu0 0.0
        %7109 = vmatprep.subr.mxu0 0.0
        %7110 = vmatpush1.msra.mxu0 0.0
        %7111 = vmatprep.subr.mxu0 0.0
        %7112 = vmatpush1.msra.mxu0 0.0
        %7113 = vmatprep.subr.mxu0 0.0
        %7114 = vmatpush1.msra.mxu0 0.0
        %7115 = vmatprep.subr.mxu0 0.0
        %7116 = vmatpush1.msra.mxu0 0.0
        %7117 = vmatprep.mubr.f32.mxu0 0.0
        %v7118 = vand.u32 %v6970, 4294901760
        %7119 = vmatmul.mubr.f32.gmra.mrb[0].mxu0 %v7118
        %v7120 = vpop.f32.mrb[0].mxu0
        %v7121 = vadd.f32 %v7045, %v7120
        %v7122 = vpop.f32.mrb[0].mxu0
        %7123 = vdwg.mxu0
        %7124 = vmatprep.subr.mxu0 0.0
        %v7125 = vand.u32 %v6966, 4294901760
        %v7126 = vsub.f32 %v6966, %v7125
        %7127 = vmatpush1.msra.mxu0 %v7126
        %7128 = vmatprep.subr.mxu0 0.0
        %7129 = vmatpush1.msra.mxu0 0.0
        %7130 = vmatprep.subr.mxu0 0.0
        %7131 = vmatpush1.msra.mxu0 0.0
        %7132 = vmatprep.subr.mxu0 0.0
        %7133 = vmatpush1.msra.mxu0 0.0
        %7134 = vmatprep.subr.mxu0 0.0
        %7135 = vmatpush1.msra.mxu0 0.0
        %7136 = vmatprep.subr.mxu0 0.0
        %7137 = vmatpush1.msra.mxu0 0.0
        %7138 = vmatprep.subr.mxu0 0.0
        %7139 = vmatpush1.msra.mxu0 0.0
        %7140 = vmatprep.subr.mxu0 0.0
        %7141 = vmatpush1.msra.mxu0 0.0
        %7142 = vmatprep.subr.mxu0 0.0
        %7143 = vmatpush1.msra.mxu0 0.0
        %7144 = vmatprep.subr.mxu0 0.0
        %7145 = vmatpush1.msra.mxu0 0.0
        %7146 = vmatprep.subr.mxu0 0.0
        %7147 = vmatpush1.msra.mxu0 0.0
        %7148 = vmatprep.subr.mxu0 0.0
        %7149 = vmatpush1.msra.mxu0 0.0
        %7150 = vmatprep.subr.mxu0 0.0
        %7151 = vmatpush1.msra.mxu0 0.0
        %7152 = vmatprep.subr.mxu0 0.0
        %7153 = vmatpush1.msra.mxu0 0.0
        %7154 = vmatprep.subr.mxu0 0.0
        %7155 = vmatpush1.msra.mxu0 0.0
        %7156 = vmatprep.subr.mxu0 0.0
        %7157 = vmatpush1.msra.mxu0 0.0
        %7158 = vmatprep.subr.mxu0 0.0
        %7159 = vmatpush1.msra.mxu0 0.0
        %7160 = vmatprep.subr.mxu0 0.0
        %7161 = vmatpush1.msra.mxu0 0.0
        %7162 = vmatprep.subr.mxu0 0.0
        %7163 = vmatpush1.msra.mxu0 0.0
        %7164 = vmatprep.subr.mxu0 0.0
        %7165 = vmatpush1.msra.mxu0 0.0
        %7166 = vmatprep.subr.mxu0 0.0
        %7167 = vmatpush1.msra.mxu0 0.0
        %7168 = vmatprep.subr.mxu0 0.0
        %7169 = vmatpush1.msra.mxu0 0.0
        %7170 = vmatprep.subr.mxu0 0.0
        %7171 = vmatpush1.msra.mxu0 0.0
        %7172 = vmatprep.subr.mxu0 0.0
        %7173 = vmatpush1.msra.mxu0 0.0
        %7174 = vmatprep.subr.mxu0 0.0
        %7175 = vmatpush1.msra.mxu0 0.0
        %7176 = vmatprep.subr.mxu0 0.0
        %7177 = vmatpush1.msra.mxu0 0.0
        %7178 = vmatprep.subr.mxu0 0.0
        %7179 = vmatpush1.msra.mxu0 0.0
        %7180 = vmatprep.subr.mxu0 0.0
        %7181 = vmatpush1.msra.mxu0 0.0
        %7182 = vmatprep.subr.mxu0 0.0
        %7183 = vmatpush1.msra.mxu0 0.0
        %7184 = vmatprep.subr.mxu0 0.0
        %7185 = vmatpush1.msra.mxu0 0.0
        %7186 = vmatprep.subr.mxu0 0.0
        %7187 = vmatpush1.msra.mxu0 0.0
        %7188 = vmatprep.subr.mxu0 0.0
        %7189 = vmatpush1.msra.mxu0 0.0
        %7190 = vmatprep.mubr.f32.mxu0 0.0
        %v7191 = vand.u32 %v6970, 4294901760
        %v7192 = vsub.f32 %v6970, %v7191
        %7193 = vmatmul.mubr.f32.gmra.mrb[0].mxu0 %v7192
        %v7194 = vpop.f32.mrb[0].mxu0
        %v7195 = vadd.f32 %v7121, %v7194
        %v7196 = vpop.f32.mrb[0].mxu0
        %7197 = vdwg.mxu0
        %7198 = vmatprep.subr.mxu0 0.0
        %v7199 = vand.u32 %v6966, 4294901760
        %7200 = vmatpush1.msra.mxu0 %v7199
        %7201 = vmatprep.subr.mxu0 0.0
        %7202 = vmatpush1.msra.mxu0 0.0
        %7203 = vmatprep.subr.mxu0 0.0
        %7204 = vmatpush1.msra.mxu0 0.0
        %7205 = vmatprep.subr.mxu0 0.0
        %7206 = vmatpush1.msra.mxu0 0.0
        %7207 = vmatprep.subr.mxu0 0.0
        %7208 = vmatpush1.msra.mxu0 0.0
        %7209 = vmatprep.subr.mxu0 0.0
        %7210 = vmatpush1.msra.mxu0 0.0
        %7211 = vmatprep.subr.mxu0 0.0
        %7212 = vmatpush1.msra.mxu0 0.0
        %7213 = vmatprep.subr.mxu0 0.0
        %7214 = vmatpush1.msra.mxu0 0.0
        %7215 = vmatprep.subr.mxu0 0.0
        %7216 = vmatpush1.msra.mxu0 0.0
        %7217 = vmatprep.subr.mxu0 0.0
        %7218 = vmatpush1.msra.mxu0 0.0
        %7219 = vmatprep.subr.mxu0 0.0
        %7220 = vmatpush1.msra.mxu0 0.0
        %7221 = vmatprep.subr.mxu0 0.0
        %7222 = vmatpush1.msra.mxu0 0.0
        %7223 = vmatprep.subr.mxu0 0.0
        %7224 = vmatpush1.msra.mxu0 0.0
        %7225 = vmatprep.subr.mxu0 0.0
        %7226 = vmatpush1.msra.mxu0 0.0
        %7227 = vmatprep.subr.mxu0 0.0
        %7228 = vmatpush1.msra.mxu0 0.0
        %7229 = vmatprep.subr.mxu0 0.0
        %7230 = vmatpush1.msra.mxu0 0.0
        %7231 = vmatprep.subr.mxu0 0.0
        %7232 = vmatpush1.msra.mxu0 0.0
        %7233 = vmatprep.subr.mxu0 0.0
        %7234 = vmatpush1.msra.mxu0 0.0
        %7235 = vmatprep.subr.mxu0 0.0
        %7236 = vmatpush1.msra.mxu0 0.0
        %7237 = vmatprep.subr.mxu0 0.0
        %7238 = vmatpush1.msra.mxu0 0.0
        %7239 = vmatprep.subr.mxu0 0.0
        %7240 = vmatpush1.msra.mxu0 0.0
        %7241 = vmatprep.subr.mxu0 0.0
        %7242 = vmatpush1.msra.mxu0 0.0
        %7243 = vmatprep.subr.mxu0 0.0
        %7244 = vmatpush1.msra.mxu0 0.0
        %7245 = vmatprep.subr.mxu0 0.0
        %7246 = vmatpush1.msra.mxu0 0.0
        %7247 = vmatprep.subr.mxu0 0.0
        %7248 = vmatpush1.msra.mxu0 0.0
        %7249 = vmatprep.subr.mxu0 0.0
        %7250 = vmatpush1.msra.mxu0 0.0
        %7251 = vmatprep.subr.mxu0 0.0
        %7252 = vmatpush1.msra.mxu0 0.0
        %7253 = vmatprep.subr.mxu0 0.0
        %7254 = vmatpush1.msra.mxu0 0.0
        %7255 = vmatprep.subr.mxu0 0.0
        %7256 = vmatpush1.msra.mxu0 0.0
        %7257 = vmatprep.subr.mxu0 0.0
        %7258 = vmatpush1.msra.mxu0 0.0
        %7259 = vmatprep.subr.mxu0 0.0
        %7260 = vmatpush1.msra.mxu0 0.0
        %7261 = vmatprep.subr.mxu0 0.0
        %7262 = vmatpush1.msra.mxu0 0.0
        %7263 = vmatprep.mubr.f32.mxu0 0.0
        %v7264 = vand.u32 %v6970, 4294901760
        %v7265 = vsub.f32 %v6970, %v7264
        %v7266 = vand.u32 %v7265, 4294901760
        %7267 = vmatmul.mubr.f32.gmra.mrb[0].mxu0 %v7266
        %v7268 = vpop.f32.mrb[0].mxu0
        %v7269 = vadd.f32 %v7195, %v7268
        %v7270 = vpop.f32.mrb[0].mxu0
        %7271 = vdwg.mxu0
        %7272 = vmatprep.subr.mxu0 0.0
        %v7273 = vand.u32 %v6966, 4294901760
        %v7274 = vsub.f32 %v6966, %v7273
        %v7275 = vand.u32 %v7274, 4294901760
        %7276 = vmatpush1.msra.mxu0 %v7275
        %7277 = vmatprep.subr.mxu0 0.0
        %7278 = vmatpush1.msra.mxu0 0.0
        %7279 = vmatprep.subr.mxu0 0.0
        %7280 = vmatpush1.msra.mxu0 0.0
        %7281 = vmatprep.subr.mxu0 0.0
        %7282 = vmatpush1.msra.mxu0 0.0
        %7283 = vmatprep.subr.mxu0 0.0
        %7284 = vmatpush1.msra.mxu0 0.0
        %7285 = vmatprep.subr.mxu0 0.0
        %7286 = vmatpush1.msra.mxu0 0.0
        %7287 = vmatprep.subr.mxu0 0.0
        %7288 = vmatpush1.msra.mxu0 0.0
        %7289 = vmatprep.subr.mxu0 0.0
        %7290 = vmatpush1.msra.mxu0 0.0
        %7291 = vmatprep.subr.mxu0 0.0
        %7292 = vmatpush1.msra.mxu0 0.0
        %7293 = vmatprep.subr.mxu0 0.0
        %7294 = vmatpush1.msra.mxu0 0.0
        %7295 = vmatprep.subr.mxu0 0.0
        %7296 = vmatpush1.msra.mxu0 0.0
        %7297 = vmatprep.subr.mxu0 0.0
        %7298 = vmatpush1.msra.mxu0 0.0
        %7299 = vmatprep.subr.mxu0 0.0
        %7300 = vmatpush1.msra.mxu0 0.0
        %7301 = vmatprep.subr.mxu0 0.0
        %7302 = vmatpush1.msra.mxu0 0.0
        %7303 = vmatprep.subr.mxu0 0.0
        %7304 = vmatpush1.msra.mxu0 0.0
        %7305 = vmatprep.subr.mxu0 0.0
        %7306 = vmatpush1.msra.mxu0 0.0
        %7307 = vmatprep.subr.mxu0 0.0
        %7308 = vmatpush1.msra.mxu0 0.0
        %7309 = vmatprep.subr.mxu0 0.0
        %7310 = vmatpush1.msra.mxu0 0.0
        %7311 = vmatprep.subr.mxu0 0.0
        %7312 = vmatpush1.msra.mxu0 0.0
        %7313 = vmatprep.subr.mxu0 0.0
        %7314 = vmatpush1.msra.mxu0 0.0
        %7315 = vmatprep.subr.mxu0 0.0
        %7316 = vmatpush1.msra.mxu0 0.0
        %7317 = vmatprep.subr.mxu0 0.0
        %7318 = vmatpush1.msra.mxu0 0.0
        %7319 = vmatprep.subr.mxu0 0.0
        %7320 = vmatpush1.msra.mxu0 0.0
        %7321 = vmatprep.subr.mxu0 0.0
        %7322 = vmatpush1.msra.mxu0 0.0
        %7323 = vmatprep.subr.mxu0 0.0
        %7324 = vmatpush1.msra.mxu0 0.0
        %7325 = vmatprep.subr.mxu0 0.0
        %7326 = vmatpush1.msra.mxu0 0.0
        %7327 = vmatprep.subr.mxu0 0.0
        %7328 = vmatpush1.msra.mxu0 0.0
        %7329 = vmatprep.subr.mxu0 0.0
        %7330 = vmatpush1.msra.mxu0 0.0
        %7331 = vmatprep.subr.mxu0 0.0
        %7332 = vmatpush1.msra.mxu0 0.0
        %7333 = vmatprep.subr.mxu0 0.0
        %7334 = vmatpush1.msra.mxu0 0.0
        %7335 = vmatprep.subr.mxu0 0.0
        %7336 = vmatpush1.msra.mxu0 0.0
        %7337 = vmatprep.subr.mxu0 0.0
        %7338 = vmatpush1.msra.mxu0 0.0
        %7339 = vmatprep.mubr.f32.mxu0 0.0
        %v7340 = vand.u32 %v6970, 4294901760
        %7341 = vmatmul.mubr.f32.gmra.mrb[0].mxu0 %v7340
        %v7342 = vpop.f32.mrb[0].mxu0
        %v7343 = vadd.f32 %v7269, %v7342
        %v7344 = vpop.f32.mrb[0].mxu0
        %7345 = vdwg.mxu0
        %7346 = vmatprep.subr.mxu0 0.0
        %v7347 = vand.u32 %v6966, 4294901760
        %7348 = vmatpush1.msra.mxu0 %v7347
        %7349 = vmatprep.subr.mxu0 0.0
        %7350 = vmatpush1.msra.mxu0 0.0
        %7351 = vmatprep.subr.mxu0 0.0
        %7352 = vmatpush1.msra.mxu0 0.0
        %7353 = vmatprep.subr.mxu0 0.0
        %7354 = vmatpush1.msra.mxu0 0.0
        %7355 = vmatprep.subr.mxu0 0.0
        %7356 = vmatpush1.msra.mxu0 0.0
        %7357 = vmatprep.subr.mxu0 0.0
        %7358 = vmatpush1.msra.mxu0 0.0
        %7359 = vmatprep.subr.mxu0 0.0
        %7360 = vmatpush1.msra.mxu0 0.0
        %7361 = vmatprep.subr.mxu0 0.0
        %7362 = vmatpush1.msra.mxu0 0.0
        %7363 = vmatprep.subr.mxu0 0.0
        %7364 = vmatpush1.msra.mxu0 0.0
        %7365 = vmatprep.subr.mxu0 0.0
        %7366 = vmatpush1.msra.mxu0 0.0
        %7367 = vmatprep.subr.mxu0 0.0
        %7368 = vmatpush1.msra.mxu0 0.0
        %7369 = vmatprep.subr.mxu0 0.0
        %7370 = vmatpush1.msra.mxu0 0.0
        %7371 = vmatprep.subr.mxu0 0.0
        %7372 = vmatpush1.msra.mxu0 0.0
        %7373 = vmatprep.subr.mxu0 0.0
        %7374 = vmatpush1.msra.mxu0 0.0
        %7375 = vmatprep.subr.mxu0 0.0
        %7376 = vmatpush1.msra.mxu0 0.0
        %7377 = vmatprep.subr.mxu0 0.0
        %7378 = vmatpush1.msra.mxu0 0.0
        %7379 = vmatprep.subr.mxu0 0.0
        %7380 = vmatpush1.msra.mxu0 0.0
        %7381 = vmatprep.subr.mxu0 0.0
        %7382 = vmatpush1.msra.mxu0 0.0
        %7383 = vmatprep.subr.mxu0 0.0
        %7384 = vmatpush1.msra.mxu0 0.0
        %7385 = vmatprep.subr.mxu0 0.0
        %7386 = vmatpush1.msra.mxu0 0.0
        %7387 = vmatprep.subr.mxu0 0.0
        %7388 = vmatpush1.msra.mxu0 0.0
        %7389 = vmatprep.subr.mxu0 0.0
        %7390 = vmatpush1.msra.mxu0 0.0
        %7391 = vmatprep.subr.mxu0 0.0
        %7392 = vmatpush1.msra.mxu0 0.0
        %7393 = vmatprep.subr.mxu0 0.0
        %7394 = vmatpush1.msra.mxu0 0.0
        %7395 = vmatprep.subr.mxu0 0.0
        %7396 = vmatpush1.msra.mxu0 0.0
        %7397 = vmatprep.subr.mxu0 0.0
        %7398 = vmatpush1.msra.mxu0 0.0
        %7399 = vmatprep.subr.mxu0 0.0
        %7400 = vmatpush1.msra.mxu0 0.0
        %7401 = vmatprep.subr.mxu0 0.0
        %7402 = vmatpush1.msra.mxu0 0.0
        %7403 = vmatprep.subr.mxu0 0.0
        %7404 = vmatpush1.msra.mxu0 0.0
        %7405 = vmatprep.subr.mxu0 0.0
        %7406 = vmatpush1.msra.mxu0 0.0
        %7407 = vmatprep.subr.mxu0 0.0
        %7408 = vmatpush1.msra.mxu0 0.0
        %7409 = vmatprep.subr.mxu0 0.0
        %7410 = vmatpush1.msra.mxu0 0.0
        %7411 = vmatprep.mubr.f32.mxu0 0.0
        %v7412 = vand.u32 %v6970, 4294901760
        %7413 = vmatmul.mubr.f32.gmra.mrb[0].mxu0 %v7412
        %v7414 = vpop.f32.mrb[0].mxu0
        %v7415 = vadd.f32 %v7343, %v7414
        %v7416 = vpop.f32.mrb[0].mxu0
        %7417 = vdwg.mxu0
        %v7418 = vmax.f32 %v7415, 0.0
        %v7419 = vlaneseq
        %v7420 = vshrl.u32 %v7419, 7
        %v7421 = vsub.s32 0, %v7420
        %v7422 = vrot.slane %v7418, %v7421
        %v7423 = vmul.f32 %v6385, %v7422
        %v7424 = vmul.f32 %v6386, %v7422
        %v7425 = vmul.f32 %v6387, %v7422
        %v7426 = vmul.f32 %v6388, %v7422
        %v7427 = vmul.f32 %v6389, %v7422
        %v7428 = vmul.f32 %v6390, %v7422
        %v7429 = vmul.f32 %v6391, %v7422
        %v7430 = vmul.f32 %v6392, %v7422
        %v7431 = vld [vmem:[%s512] sm:$0xff]
        %v7432 = vld [vmem:[%s512 + $0x8] sm:$0xff]
        %v7433 = vld [vmem:[%s512 + $0x10] sm:$0xff]
        %v7434 = vld [vmem:[%s512 + $0x18] sm:$0xff]
        %v7435 = vld [vmem:[%s512 + $0x20] sm:$0xff]
        %v7436 = vld [vmem:[%s512 + $0x28] sm:$0xff]
        %v7437 = vld [vmem:[%s512 + $0x30] sm:$0xff]
        %v7438 = vld [vmem:[%s512 + $0x38] sm:$0xff]
        %v7439 = vld [vmem:[%s12] sm:$0xff]
        %v7440 = vld [vmem:[%s12 + $0x8] sm:$0xff]
        %v7441 = vld [vmem:[%s12 + $0x10] sm:$0xff]
        %v7442 = vld [vmem:[%s12 + $0x18] sm:$0xff]
        %v7444 = vsel %vm573, %v7431, 0
        %v7447 = vsel %vm573, %v7432, 0
        %v7450 = vsel %vm573, %v7433, 0
        %v7453 = vsel %vm573, %v7434, 0
        %v7456 = vsel %vm573, %v7435, 0
        %v7459 = vsel %vm573, %v7436, 0
        %v7462 = vsel %vm573, %v7437, 0
        %v7465 = vsel %vm573, %v7438, 0
        %7467 = vmatprep.subr.mxu0 0.0
        %v7468 = vand.u32 %v7439, 4294901760
        %7469 = vmatpush1.msra.mxu0 %v7468
        %7470 = vmatprep.subr.mxu0 0.0
        %v7471 = vand.u32 %v7440, 4294901760
        %7472 = vmatpush1.msra.mxu0 %v7471
        %7473 = vmatprep.subr.mxu0 0.0
        %v7474 = vand.u32 %v7441, 4294901760
        %7475 = vmatpush1.msra.mxu0 %v7474
        %7476 = vmatprep.subr.mxu0 0.0
        %v7477 = vand.u32 %v7442, 4294901760
        %7478 = vmatpush1.msra.mxu0 %v7477
        %7479 = vmatprep.subr.mxu0 0.0
        %7480 = vmatpush1.msra.mxu0 0.0
        %7481 = vmatprep.subr.mxu0 0.0
        %7482 = vmatpush1.msra.mxu0 0.0
        %7483 = vmatprep.subr.mxu0 0.0
        %7484 = vmatpush1.msra.mxu0 0.0
        %7485 = vmatprep.subr.mxu0 0.0
        %7486 = vmatpush1.msra.mxu0 0.0
        %7487 = vmatprep.subr.mxu0 0.0
        %7488 = vmatpush1.msra.mxu0 0.0
        %7489 = vmatprep.subr.mxu0 0.0
        %7490 = vmatpush1.msra.mxu0 0.0
        %7491 = vmatprep.subr.mxu0 0.0
        %7492 = vmatpush1.msra.mxu0 0.0
        %7493 = vmatprep.subr.mxu0 0.0
        %7494 = vmatpush1.msra.mxu0 0.0
        %7495 = vmatprep.subr.mxu0 0.0
        %7496 = vmatpush1.msra.mxu0 0.0
        %7497 = vmatprep.subr.mxu0 0.0
        %7498 = vmatpush1.msra.mxu0 0.0
        %7499 = vmatprep.subr.mxu0 0.0
        %7500 = vmatpush1.msra.mxu0 0.0
        %7501 = vmatprep.subr.mxu0 0.0
        %7502 = vmatpush1.msra.mxu0 0.0
        %7503 = vmatprep.subr.mxu0 0.0
        %7504 = vmatpush1.msra.mxu0 0.0
        %7505 = vmatprep.subr.mxu0 0.0
        %7506 = vmatpush1.msra.mxu0 0.0
        %7507 = vmatprep.subr.mxu0 0.0
        %7508 = vmatpush1.msra.mxu0 0.0
        %7509 = vmatprep.subr.mxu0 0.0
        %7510 = vmatpush1.msra.mxu0 0.0
        %7511 = vmatprep.subr.mxu0 0.0
        %7512 = vmatpush1.msra.mxu0 0.0
        %7513 = vmatprep.subr.mxu0 0.0
        %7514 = vmatpush1.msra.mxu0 0.0
        %7515 = vmatprep.subr.mxu0 0.0
        %7516 = vmatpush1.msra.mxu0 0.0
        %7517 = vmatprep.subr.mxu0 0.0
        %7518 = vmatpush1.msra.mxu0 0.0
        %7519 = vmatprep.subr.mxu0 0.0
        %7520 = vmatpush1.msra.mxu0 0.0
        %7521 = vmatprep.subr.mxu0 0.0
        %7522 = vmatpush1.msra.mxu0 0.0
        %7523 = vmatprep.subr.mxu0 0.0
        %7524 = vmatpush1.msra.mxu0 0.0
        %7525 = vmatprep.subr.mxu0 0.0
        %7526 = vmatpush1.msra.mxu0 0.0
        %7527 = vmatprep.subr.mxu0 0.0
        %7528 = vmatpush1.msra.mxu0 0.0
        %7529 = vmatprep.subr.mxu0 0.0
        %7530 = vmatpush1.msra.mxu0 0.0
        %7531 = vmatprep.subr.mxu0 0.0
        %7532 = vmatpush1.msra.mxu0 0.0
        %7533 = vmatprep.subr.mxu0 0.0
        %7534 = vmatpush1.msra.mxu0 0.0
        %7535 = vmatprep.mubr.f32.mxu0 0.0
        %v7536 = vand.u32 %v7444, 4294901760
        %v7537 = vsub.f32 %v7444, %v7536
        %v7538 = vand.u32 %v7537, 4294901760
        %v7539 = vsub.f32 %v7537, %v7538
        %v7540 = vand.u32 %v7539, 4294901760
        %7541 = vmatmul.mubr.f32.gmra.mrb[0].mxu0 %v7540
        %v7542 = vpop.f32.mrb[0].mxu0
        %v7543 = vadd.f32 0.0, %v7542
        %v7544 = vpop.f32.mrb[0].mxu0
        %7545 = vmatprep.mubr.f32.mxu0 0.0
        %v7546 = vand.u32 %v7447, 4294901760
        %v7547 = vsub.f32 %v7447, %v7546
        %v7548 = vand.u32 %v7547, 4294901760
        %v7549 = vsub.f32 %v7547, %v7548
        %v7550 = vand.u32 %v7549, 4294901760
        %7551 = vmatmul.mubr.f32.gmra.mrb[0].mxu0 %v7550
        %v7552 = vpop.f32.mrb[0].mxu0
        %v7553 = vadd.f32 0.0, %v7552
        %v7554 = vpop.f32.mrb[0].mxu0
        %7555 = vmatprep.mubr.f32.mxu0 0.0
        %v7556 = vand.u32 %v7450, 4294901760
        %v7557 = vsub.f32 %v7450, %v7556
        %v7558 = vand.u32 %v7557, 4294901760
        %v7559 = vsub.f32 %v7557, %v7558
        %v7560 = vand.u32 %v7559, 4294901760
        %7561 = vmatmul.mubr.f32.gmra.mrb[0].mxu0 %v7560
        %v7562 = vpop.f32.mrb[0].mxu0
        %v7563 = vadd.f32 0.0, %v7562
        %v7564 = vpop.f32.mrb[0].mxu0
        %7565 = vmatprep.mubr.f32.mxu0 0.0
        %v7566 = vand.u32 %v7453, 4294901760
        %v7567 = vsub.f32 %v7453, %v7566
        %v7568 = vand.u32 %v7567, 4294901760
        %v7569 = vsub.f32 %v7567, %v7568
        %v7570 = vand.u32 %v7569, 4294901760
        %7571 = vmatmul.mubr.f32.gmra.mrb[0].mxu0 %v7570
        %v7572 = vpop.f32.mrb[0].mxu0
        %v7573 = vadd.f32 0.0, %v7572
        %v7574 = vpop.f32.mrb[0].mxu0
        %7575 = vmatprep.mubr.f32.mxu0 0.0
        %v7576 = vand.u32 %v7456, 4294901760
        %v7577 = vsub.f32 %v7456, %v7576
        %v7578 = vand.u32 %v7577, 4294901760
        %v7579 = vsub.f32 %v7577, %v7578
        %v7580 = vand.u32 %v7579, 4294901760
        %7581 = vmatmul.mubr.f32.gmra.mrb[0].mxu0 %v7580
        %v7582 = vpop.f32.mrb[0].mxu0
        %v7583 = vadd.f32 0.0, %v7582
        %v7584 = vpop.f32.mrb[0].mxu0
        %7585 = vmatprep.mubr.f32.mxu0 0.0
        %v7586 = vand.u32 %v7459, 4294901760
        %v7587 = vsub.f32 %v7459, %v7586
        %v7588 = vand.u32 %v7587, 4294901760
        %v7589 = vsub.f32 %v7587, %v7588
        %v7590 = vand.u32 %v7589, 4294901760
        %7591 = vmatmul.mubr.f32.gmra.mrb[0].mxu0 %v7590
        %v7592 = vpop.f32.mrb[0].mxu0
        %v7593 = vadd.f32 0.0, %v7592
        %v7594 = vpop.f32.mrb[0].mxu0
        %7595 = vmatprep.mubr.f32.mxu0 0.0
        %v7596 = vand.u32 %v7462, 4294901760
        %v7597 = vsub.f32 %v7462, %v7596
        %v7598 = vand.u32 %v7597, 4294901760
        %v7599 = vsub.f32 %v7597, %v7598
        %v7600 = vand.u32 %v7599, 4294901760
        %7601 = vmatmul.mubr.f32.gmra.mrb[0].mxu0 %v7600
        %v7602 = vpop.f32.mrb[0].mxu0
        %v7603 = vadd.f32 0.0, %v7602
        %v7604 = vpop.f32.mrb[0].mxu0
        %7605 = vmatprep.mubr.f32.mxu0 0.0
        %v7606 = vand.u32 %v7465, 4294901760
        %v7607 = vsub.f32 %v7465, %v7606
        %v7608 = vand.u32 %v7607, 4294901760
        %v7609 = vsub.f32 %v7607, %v7608
        %v7610 = vand.u32 %v7609, 4294901760
        %7611 = vmatmul.mubr.f32.gmra.mrb[0].mxu0 %v7610
        %v7612 = vpop.f32.mrb[0].mxu0
        %v7613 = vadd.f32 0.0, %v7612
        %v7614 = vpop.f32.mrb[0].mxu0
        %7615 = vdwg.mxu0
        %7616 = vmatprep.subr.mxu0 0.0
        %v7617 = vand.u32 %v7439, 4294901760
        %v7618 = vsub.f32 %v7439, %v7617
        %v7619 = vand.u32 %v7618, 4294901760
        %v7620 = vsub.f32 %v7618, %v7619
        %v7621 = vand.u32 %v7620, 4294901760
        %7622 = vmatpush1.msra.mxu0 %v7621
        %7623 = vmatprep.subr.mxu0 0.0
        %v7624 = vand.u32 %v7440, 4294901760
        %v7625 = vsub.f32 %v7440, %v7624
        %v7626 = vand.u32 %v7625, 4294901760
        %v7627 = vsub.f32 %v7625, %v7626
        %v7628 = vand.u32 %v7627, 4294901760
        %7629 = vmatpush1.msra.mxu0 %v7628
        %7630 = vmatprep.subr.mxu0 0.0
        %v7631 = vand.u32 %v7441, 4294901760
        %v7632 = vsub.f32 %v7441, %v7631
        %v7633 = vand.u32 %v7632, 4294901760
        %v7634 = vsub.f32 %v7632, %v7633
        %v7635 = vand.u32 %v7634, 4294901760
        %7636 = vmatpush1.msra.mxu0 %v7635
        %7637 = vmatprep.subr.mxu0 0.0
        %v7638 = vand.u32 %v7442, 4294901760
        %v7639 = vsub.f32 %v7442, %v7638
        %v7640 = vand.u32 %v7639, 4294901760
        %v7641 = vsub.f32 %v7639, %v7640
        %v7642 = vand.u32 %v7641, 4294901760
        %7643 = vmatpush1.msra.mxu0 %v7642
        %7644 = vmatprep.subr.mxu0 0.0
        %7645 = vmatpush1.msra.mxu0 0.0
        %7646 = vmatprep.subr.mxu0 0.0
        %7647 = vmatpush1.msra.mxu0 0.0
        %7648 = vmatprep.subr.mxu0 0.0
        %7649 = vmatpush1.msra.mxu0 0.0
        %7650 = vmatprep.subr.mxu0 0.0
        %7651 = vmatpush1.msra.mxu0 0.0
        %7652 = vmatprep.subr.mxu0 0.0
        %7653 = vmatpush1.msra.mxu0 0.0
        %7654 = vmatprep.subr.mxu0 0.0
        %7655 = vmatpush1.msra.mxu0 0.0
        %7656 = vmatprep.subr.mxu0 0.0
        %7657 = vmatpush1.msra.mxu0 0.0
        %7658 = vmatprep.subr.mxu0 0.0
        %7659 = vmatpush1.msra.mxu0 0.0
        %7660 = vmatprep.subr.mxu0 0.0
        %7661 = vmatpush1.msra.mxu0 0.0
        %7662 = vmatprep.subr.mxu0 0.0
        %7663 = vmatpush1.msra.mxu0 0.0
        %7664 = vmatprep.subr.mxu0 0.0
        %7665 = vmatpush1.msra.mxu0 0.0
        %7666 = vmatprep.subr.mxu0 0.0
        %7667 = vmatpush1.msra.mxu0 0.0
        %7668 = vmatprep.subr.mxu0 0.0
        %7669 = vmatpush1.msra.mxu0 0.0
        %7670 = vmatprep.subr.mxu0 0.0
        %7671 = vmatpush1.msra.mxu0 0.0
        %7672 = vmatprep.subr.mxu0 0.0
        %7673 = vmatpush1.msra.mxu0 0.0
        %7674 = vmatprep.subr.mxu0 0.0
        %7675 = vmatpush1.msra.mxu0 0.0
        %7676 = vmatprep.subr.mxu0 0.0
        %7677 = vmatpush1.msra.mxu0 0.0
        %7678 = vmatprep.subr.mxu0 0.0
        %7679 = vmatpush1.msra.mxu0 0.0
        %7680 = vmatprep.subr.mxu0 0.0
        %7681 = vmatpush1.msra.mxu0 0.0
        %7682 = vmatprep.subr.mxu0 0.0
        %7683 = vmatpush1.msra.mxu0 0.0
        %7684 = vmatprep.subr.mxu0 0.0
        %7685 = vmatpush1.msra.mxu0 0.0
        %7686 = vmatprep.subr.mxu0 0.0
        %7687 = vmatpush1.msra.mxu0 0.0
        %7688 = vmatprep.subr.mxu0 0.0
        %7689 = vmatpush1.msra.mxu0 0.0
        %7690 = vmatprep.subr.mxu0 0.0
        %7691 = vmatpush1.msra.mxu0 0.0
        %7692 = vmatprep.subr.mxu0 0.0
        %7693 = vmatpush1.msra.mxu0 0.0
        %7694 = vmatprep.subr.mxu0 0.0
        %7695 = vmatpush1.msra.mxu0 0.0
        %7696 = vmatprep.subr.mxu0 0.0
        %7697 = vmatpush1.msra.mxu0 0.0
        %7698 = vmatprep.subr.mxu0 0.0
        %7699 = vmatpush1.msra.mxu0 0.0
        %7700 = vmatprep.mubr.f32.mxu0 0.0
        %v7701 = vand.u32 %v7444, 4294901760
        %7702 = vmatmul.mubr.f32.gmra.mrb[0].mxu0 %v7701
        %v7703 = vpop.f32.mrb[0].mxu0
        %v7704 = vadd.f32 %v7543, %v7703
        %v7705 = vpop.f32.mrb[0].mxu0
        %7706 = vmatprep.mubr.f32.mxu0 0.0
        %v7707 = vand.u32 %v7447, 4294901760
        %7708 = vmatmul.mubr.f32.gmra.mrb[0].mxu0 %v7707
        %v7709 = vpop.f32.mrb[0].mxu0
        %v7710 = vadd.f32 %v7553, %v7709
        %v7711 = vpop.f32.mrb[0].mxu0
        %7712 = vmatprep.mubr.f32.mxu0 0.0
        %v7713 = vand.u32 %v7450, 4294901760
        %7714 = vmatmul.mubr.f32.gmra.mrb[0].mxu0 %v7713
        %v7715 = vpop.f32.mrb[0].mxu0
        %v7716 = vadd.f32 %v7563, %v7715
        %v7717 = vpop.f32.mrb[0].mxu0
        %7718 = vmatprep.mubr.f32.mxu0 0.0
        %v7719 = vand.u32 %v7453, 4294901760
        %7720 = vmatmul.mubr.f32.gmra.mrb[0].mxu0 %v7719
        %v7721 = vpop.f32.mrb[0].mxu0
        %v7722 = vadd.f32 %v7573, %v7721
        %v7723 = vpop.f32.mrb[0].mxu0
        %7724 = vmatprep.mubr.f32.mxu0 0.0
        %v7725 = vand.u32 %v7456, 4294901760
        %7726 = vmatmul.mubr.f32.gmra.mrb[0].mxu0 %v7725
        %v7727 = vpop.f32.mrb[0].mxu0
        %v7728 = vadd.f32 %v7583, %v7727
        %v7729 = vpop.f32.mrb[0].mxu0
        %7730 = vmatprep.mubr.f32.mxu0 0.0
        %v7731 = vand.u32 %v7459, 4294901760
        %7732 = vmatmul.mubr.f32.gmra.mrb[0].mxu0 %v7731
        %v7733 = vpop.f32.mrb[0].mxu0
        %v7734 = vadd.f32 %v7593, %v7733
        %v7735 = vpop.f32.mrb[0].mxu0
        %7736 = vmatprep.mubr.f32.mxu0 0.0
        %v7737 = vand.u32 %v7462, 4294901760
        %7738 = vmatmul.mubr.f32.gmra.mrb[0].mxu0 %v7737
        %v7739 = vpop.f32.mrb[0].mxu0
        %v7740 = vadd.f32 %v7603, %v7739
        %v7741 = vpop.f32.mrb[0].mxu0
        %7742 = vmatprep.mubr.f32.mxu0 0.0
        %v7743 = vand.u32 %v7465, 4294901760
        %7744 = vmatmul.mubr.f32.gmra.mrb[0].mxu0 %v7743
        %v7745 = vpop.f32.mrb[0].mxu0
        %v7746 = vadd.f32 %v7613, %v7745
        %v7747 = vpop.f32.mrb[0].mxu0
        %7748 = vdwg.mxu0
        %7749 = vmatprep.subr.mxu0 0.0
        %v7750 = vand.u32 %v7439, 4294901760
        %v7751 = vsub.f32 %v7439, %v7750
        %7752 = vmatpush1.msra.mxu0 %v7751
        %7753 = vmatprep.subr.mxu0 0.0
        %v7754 = vand.u32 %v7440, 4294901760
        %v7755 = vsub.f32 %v7440, %v7754
        %7756 = vmatpush1.msra.mxu0 %v7755
        %7757 = vmatprep.subr.mxu0 0.0
        %v7758 = vand.u32 %v7441, 4294901760
        %v7759 = vsub.f32 %v7441, %v7758
        %7760 = vmatpush1.msra.mxu0 %v7759
        %7761 = vmatprep.subr.mxu0 0.0
        %v7762 = vand.u32 %v7442, 4294901760
        %v7763 = vsub.f32 %v7442, %v7762
        %7764 = vmatpush1.msra.mxu0 %v7763
        %7765 = vmatprep.subr.mxu0 0.0
        %7766 = vmatpush1.msra.mxu0 0.0
        %7767 = vmatprep.subr.mxu0 0.0
        %7768 = vmatpush1.msra.mxu0 0.0
        %7769 = vmatprep.subr.mxu0 0.0
        %7770 = vmatpush1.msra.mxu0 0.0
        %7771 = vmatprep.subr.mxu0 0.0
        %7772 = vmatpush1.msra.mxu0 0.0
        %7773 = vmatprep.subr.mxu0 0.0
        %7774 = vmatpush1.msra.mxu0 0.0
        %7775 = vmatprep.subr.mxu0 0.0
        %7776 = vmatpush1.msra.mxu0 0.0
        %7777 = vmatprep.subr.mxu0 0.0
        %7778 = vmatpush1.msra.mxu0 0.0
        %7779 = vmatprep.subr.mxu0 0.0
        %7780 = vmatpush1.msra.mxu0 0.0
        %7781 = vmatprep.subr.mxu0 0.0
        %7782 = vmatpush1.msra.mxu0 0.0
        %7783 = vmatprep.subr.mxu0 0.0
        %7784 = vmatpush1.msra.mxu0 0.0
        %7785 = vmatprep.subr.mxu0 0.0
        %7786 = vmatpush1.msra.mxu0 0.0
        %7787 = vmatprep.subr.mxu0 0.0
        %7788 = vmatpush1.msra.mxu0 0.0
        %7789 = vmatprep.subr.mxu0 0.0
        %7790 = vmatpush1.msra.mxu0 0.0
        %7791 = vmatprep.subr.mxu0 0.0
        %7792 = vmatpush1.msra.mxu0 0.0
        %7793 = vmatprep.subr.mxu0 0.0
        %7794 = vmatpush1.msra.mxu0 0.0
        %7795 = vmatprep.subr.mxu0 0.0
        %7796 = vmatpush1.msra.mxu0 0.0
        %7797 = vmatprep.subr.mxu0 0.0
        %7798 = vmatpush1.msra.mxu0 0.0
        %7799 = vmatprep.subr.mxu0 0.0
        %7800 = vmatpush1.msra.mxu0 0.0
        %7801 = vmatprep.subr.mxu0 0.0
        %7802 = vmatpush1.msra.mxu0 0.0
        %7803 = vmatprep.subr.mxu0 0.0
        %7804 = vmatpush1.msra.mxu0 0.0
        %7805 = vmatprep.subr.mxu0 0.0
        %7806 = vmatpush1.msra.mxu0 0.0
        %7807 = vmatprep.subr.mxu0 0.0
        %7808 = vmatpush1.msra.mxu0 0.0
        %7809 = vmatprep.subr.mxu0 0.0
        %7810 = vmatpush1.msra.mxu0 0.0
        %7811 = vmatprep.subr.mxu0 0.0
        %7812 = vmatpush1.msra.mxu0 0.0
        %7813 = vmatprep.subr.mxu0 0.0
        %7814 = vmatpush1.msra.mxu0 0.0
        %7815 = vmatprep.subr.mxu0 0.0
        %7816 = vmatpush1.msra.mxu0 0.0
        %7817 = vmatprep.subr.mxu0 0.0
        %7818 = vmatpush1.msra.mxu0 0.0
        %7819 = vmatprep.subr.mxu0 0.0
        %7820 = vmatpush1.msra.mxu0 0.0
        %7821 = vmatprep.mubr.f32.mxu0 0.0
        %v7822 = vand.u32 %v7444, 4294901760
        %v7823 = vsub.f32 %v7444, %v7822
        %7824 = vmatmul.mubr.f32.gmra.mrb[0].mxu0 %v7823
        %v7825 = vpop.f32.mrb[0].mxu0
        %v7826 = vadd.f32 %v7704, %v7825
        %v7827 = vpop.f32.mrb[0].mxu0
        %7828 = vmatprep.mubr.f32.mxu0 0.0
        %v7829 = vand.u32 %v7447, 4294901760
        %v7830 = vsub.f32 %v7447, %v7829
        %7831 = vmatmul.mubr.f32.gmra.mrb[0].mxu0 %v7830
        %v7832 = vpop.f32.mrb[0].mxu0
        %v7833 = vadd.f32 %v7710, %v7832
        %v7834 = vpop.f32.mrb[0].mxu0
        %7835 = vmatprep.mubr.f32.mxu0 0.0
        %v7836 = vand.u32 %v7450, 4294901760
        %v7837 = vsub.f32 %v7450, %v7836
        %7838 = vmatmul.mubr.f32.gmra.mrb[0].mxu0 %v7837
        %v7839 = vpop.f32.mrb[0].mxu0
        %v7840 = vadd.f32 %v7716, %v7839
        %v7841 = vpop.f32.mrb[0].mxu0
        %7842 = vmatprep.mubr.f32.mxu0 0.0
        %v7843 = vand.u32 %v7453, 4294901760
        %v7844 = vsub.f32 %v7453, %v7843
        %7845 = vmatmul.mubr.f32.gmra.mrb[0].mxu0 %v7844
        %v7846 = vpop.f32.mrb[0].mxu0
        %v7847 = vadd.f32 %v7722, %v7846
        %v7848 = vpop.f32.mrb[0].mxu0
        %7849 = vmatprep.mubr.f32.mxu0 0.0
        %v7850 = vand.u32 %v7456, 4294901760
        %v7851 = vsub.f32 %v7456, %v7850
        %7852 = vmatmul.mubr.f32.gmra.mrb[0].mxu0 %v7851
        %v7853 = vpop.f32.mrb[0].mxu0
        %v7854 = vadd.f32 %v7728, %v7853
        %v7855 = vpop.f32.mrb[0].mxu0
        %7856 = vmatprep.mubr.f32.mxu0 0.0
        %v7857 = vand.u32 %v7459, 4294901760
        %v7858 = vsub.f32 %v7459, %v7857
        %7859 = vmatmul.mubr.f32.gmra.mrb[0].mxu0 %v7858
        %v7860 = vpop.f32.mrb[0].mxu0
        %v7861 = vadd.f32 %v7734, %v7860
        %v7862 = vpop.f32.mrb[0].mxu0
        %7863 = vmatprep.mubr.f32.mxu0 0.0
        %v7864 = vand.u32 %v7462, 4294901760
        %v7865 = vsub.f32 %v7462, %v7864
        %7866 = vmatmul.mubr.f32.gmra.mrb[0].mxu0 %v7865
        %v7867 = vpop.f32.mrb[0].mxu0
        %v7868 = vadd.f32 %v7740, %v7867
        %v7869 = vpop.f32.mrb[0].mxu0
        %7870 = vmatprep.mubr.f32.mxu0 0.0
        %v7871 = vand.u32 %v7465, 4294901760
        %v7872 = vsub.f32 %v7465, %v7871
        %7873 = vmatmul.mubr.f32.gmra.mrb[0].mxu0 %v7872
        %v7874 = vpop.f32.mrb[0].mxu0
        %v7875 = vadd.f32 %v7746, %v7874
        %v7876 = vpop.f32.mrb[0].mxu0
        %7877 = vdwg.mxu0
        %7878 = vmatprep.subr.mxu0 0.0
        %v7879 = vand.u32 %v7439, 4294901760
        %7880 = vmatpush1.msra.mxu0 %v7879
        %7881 = vmatprep.subr.mxu0 0.0
        %v7882 = vand.u32 %v7440, 4294901760
        %7883 = vmatpush1.msra.mxu0 %v7882
        %7884 = vmatprep.subr.mxu0 0.0
        %v7885 = vand.u32 %v7441, 4294901760
        %7886 = vmatpush1.msra.mxu0 %v7885
        %7887 = vmatprep.subr.mxu0 0.0
        %v7888 = vand.u32 %v7442, 4294901760
        %7889 = vmatpush1.msra.mxu0 %v7888
        %7890 = vmatprep.subr.mxu0 0.0
        %7891 = vmatpush1.msra.mxu0 0.0
        %7892 = vmatprep.subr.mxu0 0.0
        %7893 = vmatpush1.msra.mxu0 0.0
        %7894 = vmatprep.subr.mxu0 0.0
        %7895 = vmatpush1.msra.mxu0 0.0
        %7896 = vmatprep.subr.mxu0 0.0
        %7897 = vmatpush1.msra.mxu0 0.0
        %7898 = vmatprep.subr.mxu0 0.0
        %7899 = vmatpush1.msra.mxu0 0.0
        %7900 = vmatprep.subr.mxu0 0.0
        %7901 = vmatpush1.msra.mxu0 0.0
        %7902 = vmatprep.subr.mxu0 0.0
        %7903 = vmatpush1.msra.mxu0 0.0
        %7904 = vmatprep.subr.mxu0 0.0
        %7905 = vmatpush1.msra.mxu0 0.0
        %7906 = vmatprep.subr.mxu0 0.0
        %7907 = vmatpush1.msra.mxu0 0.0
        %7908 = vmatprep.subr.mxu0 0.0
        %7909 = vmatpush1.msra.mxu0 0.0
        %7910 = vmatprep.subr.mxu0 0.0
        %7911 = vmatpush1.msra.mxu0 0.0
        %7912 = vmatprep.subr.mxu0 0.0
        %7913 = vmatpush1.msra.mxu0 0.0
        %7914 = vmatprep.subr.mxu0 0.0
        %7915 = vmatpush1.msra.mxu0 0.0
        %7916 = vmatprep.subr.mxu0 0.0
        %7917 = vmatpush1.msra.mxu0 0.0
        %7918 = vmatprep.subr.mxu0 0.0
        %7919 = vmatpush1.msra.mxu0 0.0
        %7920 = vmatprep.subr.mxu0 0.0
        %7921 = vmatpush1.msra.mxu0 0.0
        %7922 = vmatprep.subr.mxu0 0.0
        %7923 = vmatpush1.msra.mxu0 0.0
        %7924 = vmatprep.subr.mxu0 0.0
        %7925 = vmatpush1.msra.mxu0 0.0
        %7926 = vmatprep.subr.mxu0 0.0
        %7927 = vmatpush1.msra.mxu0 0.0
        %7928 = vmatprep.subr.mxu0 0.0
        %7929 = vmatpush1.msra.mxu0 0.0
        %7930 = vmatprep.subr.mxu0 0.0
        %7931 = vmatpush1.msra.mxu0 0.0
        %7932 = vmatprep.subr.mxu0 0.0
        %7933 = vmatpush1.msra.mxu0 0.0
        %7934 = vmatprep.subr.mxu0 0.0
        %7935 = vmatpush1.msra.mxu0 0.0
        %7936 = vmatprep.subr.mxu0 0.0
        %7937 = vmatpush1.msra.mxu0 0.0
        %7938 = vmatprep.subr.mxu0 0.0
        %7939 = vmatpush1.msra.mxu0 0.0
        %7940 = vmatprep.subr.mxu0 0.0
        %7941 = vmatpush1.msra.mxu0 0.0
        %7942 = vmatprep.subr.mxu0 0.0
        %7943 = vmatpush1.msra.mxu0 0.0
        %7944 = vmatprep.subr.mxu0 0.0
        %7945 = vmatpush1.msra.mxu0 0.0
        %7946 = vmatprep.mubr.f32.mxu0 0.0
        %v7947 = vand.u32 %v7444, 4294901760
        %v7948 = vsub.f32 %v7444, %v7947
        %v7949 = vand.u32 %v7948, 4294901760
        %7950 = vmatmul.mubr.f32.gmra.mrb[0].mxu0 %v7949
        %v7951 = vpop.f32.mrb[0].mxu0
        %v7952 = vadd.f32 %v7826, %v7951
        %v7953 = vpop.f32.mrb[0].mxu0
        %7954 = vmatprep.mubr.f32.mxu0 0.0
        %v7955 = vand.u32 %v7447, 4294901760
        %v7956 = vsub.f32 %v7447, %v7955
        %v7957 = vand.u32 %v7956, 4294901760
        %7958 = vmatmul.mubr.f32.gmra.mrb[0].mxu0 %v7957
        %v7959 = vpop.f32.mrb[0].mxu0
        %v7960 = vadd.f32 %v7833, %v7959
        %v7961 = vpop.f32.mrb[0].mxu0
        %7962 = vmatprep.mubr.f32.mxu0 0.0
        %v7963 = vand.u32 %v7450, 4294901760
        %v7964 = vsub.f32 %v7450, %v7963
        %v7965 = vand.u32 %v7964, 4294901760
        %7966 = vmatmul.mubr.f32.gmra.mrb[0].mxu0 %v7965
        %v7967 = vpop.f32.mrb[0].mxu0
        %v7968 = vadd.f32 %v7840, %v7967
        %v7969 = vpop.f32.mrb[0].mxu0
        %7970 = vmatprep.mubr.f32.mxu0 0.0
        %v7971 = vand.u32 %v7453, 4294901760
        %v7972 = vsub.f32 %v7453, %v7971
        %v7973 = vand.u32 %v7972, 4294901760
        %7974 = vmatmul.mubr.f32.gmra.mrb[0].mxu0 %v7973
        %v7975 = vpop.f32.mrb[0].mxu0
        %v7976 = vadd.f32 %v7847, %v7975
        %v7977 = vpop.f32.mrb[0].mxu0
        %7978 = vmatprep.mubr.f32.mxu0 0.0
        %v7979 = vand.u32 %v7456, 4294901760
        %v7980 = vsub.f32 %v7456, %v7979
        %v7981 = vand.u32 %v7980, 4294901760
        %7982 = vmatmul.mubr.f32.gmra.mrb[0].mxu0 %v7981
        %v7983 = vpop.f32.mrb[0].mxu0
        %v7984 = vadd.f32 %v7854, %v7983
        %v7985 = vpop.f32.mrb[0].mxu0
        %7986 = vmatprep.mubr.f32.mxu0 0.0
        %v7987 = vand.u32 %v7459, 4294901760
        %v7988 = vsub.f32 %v7459, %v7987
        %v7989 = vand.u32 %v7988, 4294901760
        %7990 = vmatmul.mubr.f32.gmra.mrb[0].mxu0 %v7989
        %v7991 = vpop.f32.mrb[0].mxu0
        %v7992 = vadd.f32 %v7861, %v7991
        %v7993 = vpop.f32.mrb[0].mxu0
        %7994 = vmatprep.mubr.f32.mxu0 0.0
        %v7995 = vand.u32 %v7462, 4294901760
        %v7996 = vsub.f32 %v7462, %v7995
        %v7997 = vand.u32 %v7996, 4294901760
        %7998 = vmatmul.mubr.f32.gmra.mrb[0].mxu0 %v7997
        %v7999 = vpop.f32.mrb[0].mxu0
        %v8000 = vadd.f32 %v7868, %v7999
        %v8001 = vpop.f32.mrb[0].mxu0
        %8002 = vmatprep.mubr.f32.mxu0 0.0
        %v8003 = vand.u32 %v7465, 4294901760
        %v8004 = vsub.f32 %v7465, %v8003
        %v8005 = vand.u32 %v8004, 4294901760
        %8006 = vmatmul.mubr.f32.gmra.mrb[0].mxu0 %v8005
        %v8007 = vpop.f32.mrb[0].mxu0
        %v8008 = vadd.f32 %v7875, %v8007
        %v8009 = vpop.f32.mrb[0].mxu0
        %8010 = vdwg.mxu0
        %8011 = vmatprep.subr.mxu0 0.0
        %v8012 = vand.u32 %v7439, 4294901760
        %v8013 = vsub.f32 %v7439, %v8012
        %v8014 = vand.u32 %v8013, 4294901760
        %8015 = vmatpush1.msra.mxu0 %v8014
        %8016 = vmatprep.subr.mxu0 0.0
        %v8017 = vand.u32 %v7440, 4294901760
        %v8018 = vsub.f32 %v7440, %v8017
        %v8019 = vand.u32 %v8018, 4294901760
        %8020 = vmatpush1.msra.mxu0 %v8019
        %8021 = vmatprep.subr.mxu0 0.0
        %v8022 = vand.u32 %v7441, 4294901760
        %v8023 = vsub.f32 %v7441, %v8022
        %v8024 = vand.u32 %v8023, 4294901760
        %8025 = vmatpush1.msra.mxu0 %v8024
        %8026 = vmatprep.subr.mxu0 0.0
        %v8027 = vand.u32 %v7442, 4294901760
        %v8028 = vsub.f32 %v7442, %v8027
        %v8029 = vand.u32 %v8028, 4294901760
        %8030 = vmatpush1.msra.mxu0 %v8029
        %8031 = vmatprep.subr.mxu0 0.0
        %8032 = vmatpush1.msra.mxu0 0.0
        %8033 = vmatprep.subr.mxu0 0.0
        %8034 = vmatpush1.msra.mxu0 0.0
        %8035 = vmatprep.subr.mxu0 0.0
        %8036 = vmatpush1.msra.mxu0 0.0
        %8037 = vmatprep.subr.mxu0 0.0
        %8038 = vmatpush1.msra.mxu0 0.0
        %8039 = vmatprep.subr.mxu0 0.0
        %8040 = vmatpush1.msra.mxu0 0.0
        %8041 = vmatprep.subr.mxu0 0.0
        %8042 = vmatpush1.msra.mxu0 0.0
        %8043 = vmatprep.subr.mxu0 0.0
        %8044 = vmatpush1.msra.mxu0 0.0
        %8045 = vmatprep.subr.mxu0 0.0
        %8046 = vmatpush1.msra.mxu0 0.0
        %8047 = vmatprep.subr.mxu0 0.0
        %8048 = vmatpush1.msra.mxu0 0.0
        %8049 = vmatprep.subr.mxu0 0.0
        %8050 = vmatpush1.msra.mxu0 0.0
        %8051 = vmatprep.subr.mxu0 0.0
        %8052 = vmatpush1.msra.mxu0 0.0
        %8053 = vmatprep.subr.mxu0 0.0
        %8054 = vmatpush1.msra.mxu0 0.0
        %8055 = vmatprep.subr.mxu0 0.0
        %8056 = vmatpush1.msra.mxu0 0.0
        %8057 = vmatprep.subr.mxu0 0.0
        %8058 = vmatpush1.msra.mxu0 0.0
        %8059 = vmatprep.subr.mxu0 0.0
        %8060 = vmatpush1.msra.mxu0 0.0
        %8061 = vmatprep.subr.mxu0 0.0
        %8062 = vmatpush1.msra.mxu0 0.0
        %8063 = vmatprep.subr.mxu0 0.0
        %8064 = vmatpush1.msra.mxu0 0.0
        %8065 = vmatprep.subr.mxu0 0.0
        %8066 = vmatpush1.msra.mxu0 0.0
        %8067 = vmatprep.subr.mxu0 0.0
        %8068 = vmatpush1.msra.mxu0 0.0
        %8069 = vmatprep.subr.mxu0 0.0
        %8070 = vmatpush1.msra.mxu0 0.0
        %8071 = vmatprep.subr.mxu0 0.0
        %8072 = vmatpush1.msra.mxu0 0.0
        %8073 = vmatprep.subr.mxu0 0.0
        %8074 = vmatpush1.msra.mxu0 0.0
        %8075 = vmatprep.subr.mxu0 0.0
        %8076 = vmatpush1.msra.mxu0 0.0
        %8077 = vmatprep.subr.mxu0 0.0
        %8078 = vmatpush1.msra.mxu0 0.0
        %8079 = vmatprep.subr.mxu0 0.0
        %8080 = vmatpush1.msra.mxu0 0.0
        %8081 = vmatprep.subr.mxu0 0.0
        %8082 = vmatpush1.msra.mxu0 0.0
        %8083 = vmatprep.subr.mxu0 0.0
        %8084 = vmatpush1.msra.mxu0 0.0
        %8085 = vmatprep.subr.mxu0 0.0
        %8086 = vmatpush1.msra.mxu0 0.0
        %8087 = vmatprep.mubr.f32.mxu0 0.0
        %v8088 = vand.u32 %v7444, 4294901760
        %8089 = vmatmul.mubr.f32.gmra.mrb[0].mxu0 %v8088
        %v8090 = vpop.f32.mrb[0].mxu0
        %v8091 = vadd.f32 %v7952, %v8090
        %v8092 = vpop.f32.mrb[0].mxu0
        %8093 = vmatprep.mubr.f32.mxu0 0.0
        %v8094 = vand.u32 %v7447, 4294901760
        %8095 = vmatmul.mubr.f32.gmra.mrb[0].mxu0 %v8094
        %v8096 = vpop.f32.mrb[0].mxu0
        %v8097 = vadd.f32 %v7960, %v8096
        %v8098 = vpop.f32.mrb[0].mxu0
        %8099 = vmatprep.mubr.f32.mxu0 0.0
        %v8100 = vand.u32 %v7450, 4294901760
        %8101 = vmatmul.mubr.f32.gmra.mrb[0].mxu0 %v8100
        %v8102 = vpop.f32.mrb[0].mxu0
        %v8103 = vadd.f32 %v7968, %v8102
        %v8104 = vpop.f32.mrb[0].mxu0
        %8105 = vmatprep.mubr.f32.mxu0 0.0
        %v8106 = vand.u32 %v7453, 4294901760
        %8107 = vmatmul.mubr.f32.gmra.mrb[0].mxu0 %v8106
        %v8108 = vpop.f32.mrb[0].mxu0
        %v8109 = vadd.f32 %v7976, %v8108
        %v8110 = vpop.f32.mrb[0].mxu0
        %8111 = vmatprep.mubr.f32.mxu0 0.0
        %v8112 = vand.u32 %v7456, 4294901760
        %8113 = vmatmul.mubr.f32.gmra.mrb[0].mxu0 %v8112
        %v8114 = vpop.f32.mrb[0].mxu0
        %v8115 = vadd.f32 %v7984, %v8114
        %v8116 = vpop.f32.mrb[0].mxu0
        %8117 = vmatprep.mubr.f32.mxu0 0.0
        %v8118 = vand.u32 %v7459, 4294901760
        %8119 = vmatmul.mubr.f32.gmra.mrb[0].mxu0 %v8118
        %v8120 = vpop.f32.mrb[0].mxu0
        %v8121 = vadd.f32 %v7992, %v8120
        %v8122 = vpop.f32.mrb[0].mxu0
        %8123 = vmatprep.mubr.f32.mxu0 0.0
        %v8124 = vand.u32 %v7462, 4294901760
        %8125 = vmatmul.mubr.f32.gmra.mrb[0].mxu0 %v8124
        %v8126 = vpop.f32.mrb[0].mxu0
        %v8127 = vadd.f32 %v8000, %v8126
        %v8128 = vpop.f32.mrb[0].mxu0
        %8129 = vmatprep.mubr.f32.mxu0 0.0
        %v8130 = vand.u32 %v7465, 4294901760
        %8131 = vmatmul.mubr.f32.gmra.mrb[0].mxu0 %v8130
        %v8132 = vpop.f32.mrb[0].mxu0
        %v8133 = vadd.f32 %v8008, %v8132
        %v8134 = vpop.f32.mrb[0].mxu0
        %8135 = vdwg.mxu0
        %8136 = vmatprep.subr.mxu0 0.0
        %v8137 = vand.u32 %v7439, 4294901760
        %8138 = vmatpush1.msra.mxu0 %v8137
        %8139 = vmatprep.subr.mxu0 0.0
        %v8140 = vand.u32 %v7440, 4294901760
        %8141 = vmatpush1.msra.mxu0 %v8140
        %8142 = vmatprep.subr.mxu0 0.0
        %v8143 = vand.u32 %v7441, 4294901760
        %8144 = vmatpush1.msra.mxu0 %v8143
        %8145 = vmatprep.subr.mxu0 0.0
        %v8146 = vand.u32 %v7442, 4294901760
        %8147 = vmatpush1.msra.mxu0 %v8146
        %8148 = vmatprep.subr.mxu0 0.0
        %8149 = vmatpush1.msra.mxu0 0.0
        %8150 = vmatprep.subr.mxu0 0.0
        %8151 = vmatpush1.msra.mxu0 0.0
        %8152 = vmatprep.subr.mxu0 0.0
        %8153 = vmatpush1.msra.mxu0 0.0
        %8154 = vmatprep.subr.mxu0 0.0
        %8155 = vmatpush1.msra.mxu0 0.0
        %8156 = vmatprep.subr.mxu0 0.0
        %8157 = vmatpush1.msra.mxu0 0.0
        %8158 = vmatprep.subr.mxu0 0.0
        %8159 = vmatpush1.msra.mxu0 0.0
        %8160 = vmatprep.subr.mxu0 0.0
        %8161 = vmatpush1.msra.mxu0 0.0
        %8162 = vmatprep.subr.mxu0 0.0
        %8163 = vmatpush1.msra.mxu0 0.0
        %8164 = vmatprep.subr.mxu0 0.0
        %8165 = vmatpush1.msra.mxu0 0.0
        %8166 = vmatprep.subr.mxu0 0.0
        %8167 = vmatpush1.msra.mxu0 0.0
        %8168 = vmatprep.subr.mxu0 0.0
        %8169 = vmatpush1.msra.mxu0 0.0
        %8170 = vmatprep.subr.mxu0 0.0
        %8171 = vmatpush1.msra.mxu0 0.0
        %8172 = vmatprep.subr.mxu0 0.0
        %8173 = vmatpush1.msra.mxu0 0.0
        %8174 = vmatprep.subr.mxu0 0.0
        %8175 = vmatpush1.msra.mxu0 0.0
        %8176 = vmatprep.subr.mxu0 0.0
        %8177 = vmatpush1.msra.mxu0 0.0
        %8178 = vmatprep.subr.mxu0 0.0
        %8179 = vmatpush1.msra.mxu0 0.0
        %8180 = vmatprep.subr.mxu0 0.0
        %8181 = vmatpush1.msra.mxu0 0.0
        %8182 = vmatprep.subr.mxu0 0.0
        %8183 = vmatpush1.msra.mxu0 0.0
        %8184 = vmatprep.subr.mxu0 0.0
        %8185 = vmatpush1.msra.mxu0 0.0
        %8186 = vmatprep.subr.mxu0 0.0
        %8187 = vmatpush1.msra.mxu0 0.0
        %8188 = vmatprep.subr.mxu0 0.0
        %8189 = vmatpush1.msra.mxu0 0.0
        %8190 = vmatprep.subr.mxu0 0.0
        %8191 = vmatpush1.msra.mxu0 0.0
        %8192 = vmatprep.subr.mxu0 0.0
        %8193 = vmatpush1.msra.mxu0 0.0
        %8194 = vmatprep.subr.mxu0 0.0
        %8195 = vmatpush1.msra.mxu0 0.0
        %8196 = vmatprep.subr.mxu0 0.0
        %8197 = vmatpush1.msra.mxu0 0.0
        %8198 = vmatprep.subr.mxu0 0.0
        %8199 = vmatpush1.msra.mxu0 0.0
        %8200 = vmatprep.subr.mxu0 0.0
        %8201 = vmatpush1.msra.mxu0 0.0
        %8202 = vmatprep.subr.mxu0 0.0
        %8203 = vmatpush1.msra.mxu0 0.0
        %8204 = vmatprep.mubr.f32.mxu0 0.0
        %v8205 = vand.u32 %v7444, 4294901760
        %8206 = vmatmul.mubr.f32.gmra.mrb[0].mxu0 %v8205
        %v8207 = vpop.f32.mrb[0].mxu0
        %v8208 = vadd.f32 %v8091, %v8207
        %v8209 = vpop.f32.mrb[0].mxu0
        %8210 = vmatprep.mubr.f32.mxu0 0.0
        %v8211 = vand.u32 %v7447, 4294901760
        %8212 = vmatmul.mubr.f32.gmra.mrb[0].mxu0 %v8211
        %v8213 = vpop.f32.mrb[0].mxu0
        %v8214 = vadd.f32 %v8097, %v8213
        %v8215 = vpop.f32.mrb[0].mxu0
        %8216 = vmatprep.mubr.f32.mxu0 0.0
        %v8217 = vand.u32 %v7450, 4294901760
        %8218 = vmatmul.mubr.f32.gmra.mrb[0].mxu0 %v8217
        %v8219 = vpop.f32.mrb[0].mxu0
        %v8220 = vadd.f32 %v8103, %v8219
        %v8221 = vpop.f32.mrb[0].mxu0
        %8222 = vmatprep.mubr.f32.mxu0 0.0
        %v8223 = vand.u32 %v7453, 4294901760
        %8224 = vmatmul.mubr.f32.gmra.mrb[0].mxu0 %v8223
        %v8225 = vpop.f32.mrb[0].mxu0
        %v8226 = vadd.f32 %v8109, %v8225
        %v8227 = vpop.f32.mrb[0].mxu0
        %8228 = vmatprep.mubr.f32.mxu0 0.0
        %v8229 = vand.u32 %v7456, 4294901760
        %8230 = vmatmul.mubr.f32.gmra.mrb[0].mxu0 %v8229
        %v8231 = vpop.f32.mrb[0].mxu0
        %v8232 = vadd.f32 %v8115, %v8231
        %v8233 = vpop.f32.mrb[0].mxu0
        %8234 = vmatprep.mubr.f32.mxu0 0.0
        %v8235 = vand.u32 %v7459, 4294901760
        %8236 = vmatmul.mubr.f32.gmra.mrb[0].mxu0 %v8235
        %v8237 = vpop.f32.mrb[0].mxu0
        %v8238 = vadd.f32 %v8121, %v8237
        %v8239 = vpop.f32.mrb[0].mxu0
        %8240 = vmatprep.mubr.f32.mxu0 0.0
        %v8241 = vand.u32 %v7462, 4294901760
        %8242 = vmatmul.mubr.f32.gmra.mrb[0].mxu0 %v8241
        %v8243 = vpop.f32.mrb[0].mxu0
        %v8244 = vadd.f32 %v8127, %v8243
        %v8245 = vpop.f32.mrb[0].mxu0
        %8246 = vmatprep.mubr.f32.mxu0 0.0
        %v8247 = vand.u32 %v7465, 4294901760
        %8248 = vmatmul.mubr.f32.gmra.mrb[0].mxu0 %v8247
        %v8249 = vpop.f32.mrb[0].mxu0
        %v8250 = vadd.f32 %v8133, %v8249
        %v8251 = vpop.f32.mrb[0].mxu0
        %8252 = vdwg.mxu0
        %v8253 = vld [vmem:[%s13] sm:$0x1]
        %v8255 = vlaneseq
        %v8256 = vshrl.u32 %v8255, 7
        %v8257 = vsub.s32 0, %v8256
        %v8258 = vrot.slane %v8253, %v8257
        %v8260 = vmul.f32 %v8208, %v8258
        %v8261 = vmul.f32 %v8214, %v8258
        %v8262 = vmul.f32 %v8220, %v8258
        %v8263 = vmul.f32 %v8226, %v8258
        %v8264 = vmul.f32 %v8232, %v8258
        %v8265 = vmul.f32 %v8238, %v8258
        %v8266 = vmul.f32 %v8244, %v8258
        %v8267 = vmul.f32 %v8250, %v8258
        %v8268 = vld [vmem:[%s14] sm:$0x1]
        %v8270 = vlaneseq
        %v8271 = vshrl.u32 %v8270, 7
        %v8272 = vsub.s32 0, %v8271
        %v8273 = vrot.slane %v8268, %v8272
        %v8275 = vadd.f32 %v8260, %v8273
        %v8276 = vadd.f32 %v8261, %v8273
        %v8277 = vadd.f32 %v8262, %v8273
        %v8278 = vadd.f32 %v8263, %v8273
        %v8279 = vadd.f32 %v8264, %v8273
        %v8280 = vadd.f32 %v8265, %v8273
        %v8281 = vadd.f32 %v8266, %v8273
        %v8282 = vadd.f32 %v8267, %v8273
        %v8283 = vadd.f32 %v7423, %v8275
        %v8284 = vadd.f32 %v7424, %v8276
        %v8285 = vadd.f32 %v7425, %v8277
        %v8286 = vadd.f32 %v7426, %v8278
        %v8287 = vadd.f32 %v7427, %v8279
        %v8288 = vadd.f32 %v7428, %v8280
        %v8289 = vadd.f32 %v7429, %v8281
        %v8290 = vadd.f32 %v7430, %v8282
        %v8291 = vmax.f32 %v8283, 0.0
        %v8292 = vmax.f32 %v8284, 0.0
        %v8293 = vmax.f32 %v8285, 0.0
        %v8294 = vmax.f32 %v8286, 0.0
        %v8295 = vmax.f32 %v8287, 0.0
        %v8296 = vmax.f32 %v8288, 0.0
        %v8297 = vmax.f32 %v8289, 0.0
        %v8298 = vmax.f32 %v8290, 0.0
        %8299 = vst.msk [vmem:[%s502] sm:$0xff] %vm2676, %v8291
        %8300 = vst.msk [vmem:[%s502 + $0x8] sm:$0xff] %vm2676, %v8292
        %8301 = vst.msk [vmem:[%s502 + $0x10] sm:$0xff] %vm2676, %v8293
        %8302 = vst.msk [vmem:[%s502 + $0x18] sm:$0xff] %vm2676, %v8294
        %8303 = vst.msk [vmem:[%s502 + $0x20] sm:$0xff] %vm2676, %v8295
        %8304 = vst.msk [vmem:[%s502 + $0x28] sm:$0xff] %vm2676, %v8296
        %8305 = vst.msk [vmem:[%s502 + $0x30] sm:$0xff] %vm2676, %v8297
        %8306 = vst.msk [vmem:[%s502 + $0x38] sm:$0xff] %vm2676, %v8298
        %s8307 = sand.u32 %s362, 1
        %s8308 = scalar_lea.sflag [#allocation4], %s8307
        %s8309 = sand.u32 %s362, 1
        %s8310 = smul.addr %s8309, 64
        %s8311 = scalar_lea.vmem [#allocation3], %s8310
        // Predicated region
        $region81: #{tpu_custom_call.1} parent=79 // pred_check
          %p8312 = pneg %p372
        $region82: #{tpu_custom_call.1} parent=79 // pred_check_branch
          %8314 = sbr.rel (%p8312) target = $region84
        $region83: #{tpu_custom_call.1} parent=79 // pred_region
          %s8316 = ssub.s32 1024, 1024
          %8317 = vsyncadd %s8308, %s8316
          %s8318 = smul.addr %s29, 8
          %s8319 = smul.addr %s8318, 128
          %s8320 = scalar_lea.hbm %s15, %s8319
          %s8321 = sshll.u32 %s8311, 4
          %s8322 = int_to_ptr.vmem [resolvable:$true] %s8321
          %8327 = dma.vmem_to_hbm [thread:$0]  %s8322, 1024, %s8320, %s8308, 128, 128, 8
        $region84: #{tpu_custom_call.1} parent=79 // pred_fallthru
          _
      $region80: #{tpu_custom_call.1} parent=5 // pred_fallthru
        _
      %p8328 = scmp.le.s32.totalorder 2, %s24
      // Predicated region
      $region85: #{tpu_custom_call.1} parent=5 // pred_check
        %p8329 = pneg %p8328
      $region86: #{tpu_custom_call.1} parent=5 // pred_check_branch
        %8331 = sbr.rel (%p8329) target = $region88
      $region87: #{tpu_custom_call.1} parent=5 // pred_region
        %s8332 = ssub.s32 %s24, 2
        // Predicated region
        $region89: #{tpu_custom_call.1} parent=87 // pred_check
          %p8333 = pneg %p378
        $region90: #{tpu_custom_call.1} parent=87 // pred_check_branch
          %8335 = sbr.rel (%p8333) target = $region92
        $region91: #{tpu_custom_call.1} parent=87 // pred_region
          %s8336 = sand.u32 %s363, 1
          %s8337 = scalar_lea.sflag [#allocation4], %s8336
          %s8338 = sand.u32 %s363, 1
          %s8339 = smul.addr %s8338, 64
          %s8340 = scalar_lea.vmem [#allocation3], %s8339
          %8341 = dma.done %s8337, 1024
        $region92: #{tpu_custom_call.1} parent=87 // pred_fallthru
          _
      $region88: #{tpu_custom_call.1} parent=5 // pred_fallthru
        _
    $region6: #{tpu_custom_call.1} parent=1 // loop_footer
      %s28 = sadd.s32 1, %s24
    $region7: #{tpu_custom_call.1} parent=1 // loop_footer_branch
      %23 = sbr.rel target = $region3
    $region8: #{tpu_custom_call.1} parent=1 // loop_exit
      _
    %8342 = vsyncpa [#allocation4], 1
    %s8343 = scalar_lea.sflag [#allocation4], 1
    %8344 = vsyncpa %s8343, 1

</llo_original>
